<compile_context>
chip_gen: v6e
topology: v6e:2x2x1
jax: 0.10.0
libtpu: 0.0.40
codegen_flags: <defaults>
</compile_context>

<pallas_src>
import jax
import jax.numpy as jnp
from jax import lax
from jax.experimental import pallas as pl
from jax.experimental.pallas import tpu as pltpu

IMG = 28            # forced by fc input dim 192 = 3 * 8 * 8 (conv 26x26 -> pool/3 -> 8x8)
C_OUT = 3
POOL_P = 64         # 8 * 8 pooled spatial positions
FEAT = 192          # 3 * 64
N_CLASSES = 10
LANE = 128          # inner batch chunk = one full lane dimension
HALF = 32           # pooled positions processed in sublane halves (vreg-pressure insurance)
TB_MAX = 512        # examples per grid step (amortizes the ~600-cycle pipeline overhead)


def convnet_kernel(g_ref, wc_ref, bc_ref, wfc_ref, bfc_ref, out_ref):
    """One batch tile of tb examples, processed in 128-lane chunks.

    g_ref:   (5, 5, 64, tb) VMEM bf16  G[a, b, pi*8+pj, n] = img[n, 3*pi + a, 3*pj + b]
    wc_ref:  (27,)          SMEM f32   conv weights, index c*9 + dr*3 + dc
    bc_ref:  (3,)           SMEM f32   conv bias
    wfc_ref: (10, 192)      VMEM f32   fc weight (PyTorch layout: [class, c*64 + p])
    bfc_ref: (10, 1)        VMEM f32   fc bias
    out_ref: (10, tb)       VMEM f32   log-probabilities, transposed (class, batch)
    """
    tb = out_ref.shape[-1]
    n_chunks = tb // LANE
    n_halves = POOL_P // HALF

    # Hoist all SMEM scalar reads out of the hot loops (read once per kernel invocation).
    wc = [[[wc_ref[c * 9 + dr * 3 + dc] for dc in range(3)] for dr in range(3)]
          for c in range(C_OUT)]
    bc = [bc_ref[c] for c in range(C_OUT)]
    wfc = wfc_ref[...]
    bfc = bfc_ref[...]

    for s in range(n_chunks):                          # 128-lane batch chunks
        s0 = s * LANE
        feat_parts = [None] * (C_OUT * n_halves)       # flatten order: row = c*64 + p

        for h in range(n_halves):                      # pooled positions in 32-sublane halves
            p0 = h * HALF
            pooled = [jnp.full((HALF, LANE), -jnp.inf, dtype=jnp.float32)
                      for _ in range(C_OUT)]
            for di in range(3):                        # pool-window row offset
                for dj in range(3):                    # pool-window col offset
                    acc = [jnp.zeros((HALF, LANE), dtype=jnp.float32)
                           for _ in range(C_OUT)]
                    for dr in range(3):                # conv-kernel row offset
                        for dc in range(3):            # conv-kernel col offset
                            # static indices / static aligned slices only; bf16 -> f32 upcast
                            g = g_ref[di + dr, dj + dc,
                                      p0:p0 + HALF, s0:s0 + LANE].astype(jnp.float32)
                            for c in range(C_OUT):
                                acc[c] = acc[c] + g * wc[c][dr][dc]
                    for c in range(C_OUT):
                        pooled[c] = jnp.maximum(pooled[c], acc[c])
            # bias + ReLU applied after the max (bias commutes with max -> hoisted)
            for c in range(C_OUT):
                feat_parts[c * n_halves + h] = jnp.maximum(pooled[c] + bc[c], 0.0)

        # --- fc on the MXU straight from values; rows in PyTorch flatten order c*64 + p ---
        feat_t = jnp.concatenate(feat_parts, axis=0)                  # (192, LANE)
        logits = jnp.dot(wfc, feat_t,
                         preferred_element_type=jnp.float32) + bfc    # (10, LANE)

        # --- log_softmax over the class (sublane) axis; lane-dense store ---
        m = jnp.max(logits, axis=0, keepdims=True)
        z = logits - m
        lse = jnp.log(jnp.sum(jnp.exp(z), axis=0, keepdims=True))
        out_ref[:, s0:s0 + LANE] = z - lse


def make_taps(x):
    """x (N, 1, 28, 28) f32 -> G (5, 5, 64, N) bf16 with
    G[a, b, pi*8+pj, n] = x[n, 0, 3*pi + a, 3*pj + b].

    Built from 25 strided slices (no advanced-index gather); cast to bf16 *before* the
    N-major -> N-minor transpose so the transpose writes half the bytes."""
    x2 = x[:, 0].astype(jnp.bfloat16)                        # (N, 28, 28)
    taps = [x2[:, a:a + 22:3, b:b + 22:3]                    # (N, 8, 8): rows a+3*pi, cols b+3*pj
            for a in range(5) for b in range(5)]
    g = jnp.stack(taps, axis=0)                              # (25, N, 8, 8)
    g = g.transpose(0, 2, 3, 1)                              # (25, 8, 8, N)
    return g.reshape(5, 5, POOL_P, x.shape[0])


def pick_tb(n):
    """Batch-tile size: as large as TB_MAX, but keep >= 2 grid blocks whenever the batch
    allows it so the 'parallel' axis can shard across v7x's two TensorCores."""
    n_lane = pl.cdiv(n, LANE) * LANE
    tb = min(TB_MAX, n_lane)
    if n_lane >= 2 * LANE:
        tb = max(LANE, min(tb, (n_lane // (2 * LANE)) * LANE))
    return tb


def convnet_forward(x, conv_w, conv_b, fc_w, fc_b):
    n = x.shape[0]
    tb = pick_tb(n)
    n_blocks = pl.cdiv(n, tb)
    n_pad = n_blocks * tb
    if n_pad != n:                                           # pad batch to a whole tile
        x = jnp.pad(x, ((0, n_pad - n), (0, 0), (0, 0), (0, 0)))

    taps = make_taps(x)                                      # (5, 5, 64, n_pad) bf16
    wc_flat = conv_w.reshape(C_OUT * 9).astype(jnp.float32)  # index c*9 + dr*3 + dc
    bc = conv_b.astype(jnp.float32)
    wfc = fc_w.astype(jnp.float32)                           # (10, 192), col = c*64 + p
    bfc = fc_b.reshape(N_CLASSES, 1).astype(jnp.float32)

    out_t = pl.pallas_call(
        convnet_kernel,
        out_shape=jax.ShapeDtypeStruct((N_CLASSES, n_pad), jnp.float32),
        grid=(n_blocks,),
        in_specs=[
            pl.BlockSpec((5, 5, POOL_P, tb), lambda b: (0, 0, 0, b)),   # taps (pipelined, bf16)
            pl.BlockSpec(memory_space=pltpu.MemorySpace.SMEM),          # conv weights (scalars)
            pl.BlockSpec(memory_space=pltpu.MemorySpace.SMEM),          # conv bias   (scalars)
            pl.BlockSpec((N_CLASSES, FEAT), lambda b: (0, 0)),          # fc weight (resident)
            pl.BlockSpec((N_CLASSES, 1), lambda b: (0, 0)),             # fc bias   (resident)
        ],
        out_specs=pl.BlockSpec((N_CLASSES, tb), lambda b: (0, b)),      # lane-dense store
        compiler_params=pltpu.CompilerParams(
            dimension_semantics=("parallel",)),              # batch axis -> v7x megacore
    )(taps, wc_flat, bc, wfc, bfc)

    return out_t[:, :n].T                                    # (N, 10), PyTorch layout


def reference_forward(x, conv_w, conv_b, fc_w, fc_b):
    """Plain-JAX reference matching PyTorch semantics."""
    conv = lax.conv_general_dilated(
        x, conv_w, window_strides=(1, 1), padding="VALID",
        dimension_numbers=("NCHW", "OIHW", "NCHW"))
    conv = conv + conv_b[None, :, None, None]
    pooled = lax.reduce_window(conv, -jnp.inf, lax.max,
                               (1, 1, 3, 3), (1, 1, 3, 3), "VALID")
    act = jnp.maximum(pooled, 0.0)
    feat = act.reshape(act.shape[0], -1)
    logits = feat @ fc_w.T + fc_b
    return jax.nn.log_softmax(logits, axis=1)


if __name__ == "__main__":
    key = jax.random.PRNGKey(0)
    kx, kw1, kb1, kw2, kb2 = jax.random.split(key, 5)

    # deterministic synthetic parameters (shapes from ConvNet.__init__)
    conv_w = jax.random.normal(kw1, (C_OUT, 1, 3, 3), jnp.float32) * 0.3   # Conv2d(1,3,3)
    conv_b = jax.random.normal(kb1, (C_OUT,), jnp.float32) * 0.1
    fc_w = jax.random.normal(kw2, (N_CLASSES, FEAT), jnp.float32) * 0.05   # Linear(192,10)
    fc_b = jax.random.normal(kb2, (N_CLASSES,), jnp.float32) * 0.1

    # batch=2:    small PyTorch-style check (one padded 128-lane tile).
    # batch=256:  2 grid blocks -> exercises the "parallel" batch axis (v7x megacore path).
    # batch=1024: tb=512 -> exercises the in-kernel 4-chunk 128-lane sub-loop per grid step.
    for n_batch in (2, 256, 1024):
        x = jax.random.normal(kx, (n_batch, 1, IMG, IMG), jnp.float32)
        out = jax.block_until_ready(convnet_forward(x, conv_w, conv_b, fc_w, fc_b))
        assert out.shape == (n_batch, N_CLASSES)

        # apples-to-apples: reference evaluated on the same bf16-rounded input
        x_q = x.astype(jnp.bfloat16).astype(jnp.float32)
        ref_q = reference_forward(x_q, conv_w, conv_b, fc_w, fc_b)
        assert jnp.allclose(out, ref_q, atol=2e-4, rtol=2e-4), n_batch

        # loose sanity check vs the full-f32 forward (only bf16 input rounding differs)
        ref = reference_forward(x, conv_w, conv_b, fc_w, fc_b)
        assert jnp.allclose(out, ref, atol=5e-2, rtol=5e-2), n_batch

    print("KERNEL_OK")
</pallas_src>

<mosaic_0001>
module attributes {stable_mosaic.version = 11 : i64} {
  func.func @convnet_kernel(%arg0: i32, %arg1: memref<5x5x64x128xbf16, #tpu.memory_space<vmem>>, %arg2: memref<27xf32, #tpu.memory_space<smem>>, %arg3: memref<3xf32, #tpu.memory_space<smem>>, %arg4: memref<10x192xf32, #tpu.memory_space<vmem>>, %arg5: memref<10x1xf32, #tpu.memory_space<vmem>>, %arg6: memref<10x128xf32, #tpu.memory_space<vmem>>) attributes {dimension_semantics = [#tpu.dimension_semantics<parallel>], iteration_bounds = array<i64: 1>, scalar_prefetch = 0 : i64, scratch_operands = 0 : i64, tpu.core_type = #tpu.core_type<tc>, window_params = [{transform_indices = @transform_0, window_bounds = array<i64: 5, 5, 64, 128>}, {transform_indices = @transform_1, window_bounds = array<i64: 27>}, {transform_indices = @transform_2, window_bounds = array<i64: 3>}, {pipeline_mode = #tpu.pipeline_mode<synchronous>, transform_indices = @transform_3, window_bounds = array<i64: 10, 192>}, {pipeline_mode = #tpu.pipeline_mode<synchronous>, transform_indices = @transform_4, window_bounds = array<i64: 10, 1>}, {transform_indices = @transform_5, window_bounds = array<i64: 10, 128>}]} {
    %c0 = arith.constant 0 : index
    %0 = memref.load %arg2[%c0] : memref<27xf32, #tpu.memory_space<smem>>
    %c1 = arith.constant 1 : index
    %1 = memref.load %arg2[%c1] : memref<27xf32, #tpu.memory_space<smem>>
    %c2 = arith.constant 2 : index
    %2 = memref.load %arg2[%c2] : memref<27xf32, #tpu.memory_space<smem>>
    %c3 = arith.constant 3 : index
    %3 = memref.load %arg2[%c3] : memref<27xf32, #tpu.memory_space<smem>>
    %c4 = arith.constant 4 : index
    %4 = memref.load %arg2[%c4] : memref<27xf32, #tpu.memory_space<smem>>
    %c5 = arith.constant 5 : index
    %5 = memref.load %arg2[%c5] : memref<27xf32, #tpu.memory_space<smem>>
    %c6 = arith.constant 6 : index
    %6 = memref.load %arg2[%c6] : memref<27xf32, #tpu.memory_space<smem>>
    %c7 = arith.constant 7 : index
    %7 = memref.load %arg2[%c7] : memref<27xf32, #tpu.memory_space<smem>>
    %c8 = arith.constant 8 : index
    %8 = memref.load %arg2[%c8] : memref<27xf32, #tpu.memory_space<smem>>
    %c9 = arith.constant 9 : index
    %9 = memref.load %arg2[%c9] : memref<27xf32, #tpu.memory_space<smem>>
    %c10 = arith.constant 10 : index
    %10 = memref.load %arg2[%c10] : memref<27xf32, #tpu.memory_space<smem>>
    %c11 = arith.constant 11 : index
    %11 = memref.load %arg2[%c11] : memref<27xf32, #tpu.memory_space<smem>>
    %c12 = arith.constant 12 : index
    %12 = memref.load %arg2[%c12] : memref<27xf32, #tpu.memory_space<smem>>
    %c13 = arith.constant 13 : index
    %13 = memref.load %arg2[%c13] : memref<27xf32, #tpu.memory_space<smem>>
    %c14 = arith.constant 14 : index
    %14 = memref.load %arg2[%c14] : memref<27xf32, #tpu.memory_space<smem>>
    %c15 = arith.constant 15 : index
    %15 = memref.load %arg2[%c15] : memref<27xf32, #tpu.memory_space<smem>>
    %c16 = arith.constant 16 : index
    %16 = memref.load %arg2[%c16] : memref<27xf32, #tpu.memory_space<smem>>
    %c17 = arith.constant 17 : index
    %17 = memref.load %arg2[%c17] : memref<27xf32, #tpu.memory_space<smem>>
    %c18 = arith.constant 18 : index
    %18 = memref.load %arg2[%c18] : memref<27xf32, #tpu.memory_space<smem>>
    %c19 = arith.constant 19 : index
    %19 = memref.load %arg2[%c19] : memref<27xf32, #tpu.memory_space<smem>>
    %c20 = arith.constant 20 : index
    %20 = memref.load %arg2[%c20] : memref<27xf32, #tpu.memory_space<smem>>
    %c21 = arith.constant 21 : index
    %21 = memref.load %arg2[%c21] : memref<27xf32, #tpu.memory_space<smem>>
    %c22 = arith.constant 22 : index
    %22 = memref.load %arg2[%c22] : memref<27xf32, #tpu.memory_space<smem>>
    %c23 = arith.constant 23 : index
    %23 = memref.load %arg2[%c23] : memref<27xf32, #tpu.memory_space<smem>>
    %c24 = arith.constant 24 : index
    %24 = memref.load %arg2[%c24] : memref<27xf32, #tpu.memory_space<smem>>
    %c25 = arith.constant 25 : index
    %25 = memref.load %arg2[%c25] : memref<27xf32, #tpu.memory_space<smem>>
    %c26 = arith.constant 26 : index
    %26 = memref.load %arg2[%c26] : memref<27xf32, #tpu.memory_space<smem>>
    %c0_0 = arith.constant 0 : index
    %27 = memref.load %arg3[%c0_0] : memref<3xf32, #tpu.memory_space<smem>>
    %c1_1 = arith.constant 1 : index
    %28 = memref.load %arg3[%c1_1] : memref<3xf32, #tpu.memory_space<smem>>
    %c2_2 = arith.constant 2 : index
    %29 = memref.load %arg3[%c2_2] : memref<3xf32, #tpu.memory_space<smem>>
    %c0_3 = arith.constant 0 : index
    %c0_4 = arith.constant 0 : index
    %30 = vector.load %arg4[%c0_3, %c0_4] : memref<10x192xf32, #tpu.memory_space<vmem>>, vector<10x192xf32>
    %c0_5 = arith.constant 0 : index
    %c0_6 = arith.constant 0 : index
    %31 = vector.load %arg5[%c0_5, %c0_6] : memref<10x1xf32, #tpu.memory_space<vmem>>, vector<10x1xf32>
    %cst = arith.constant 0xFF800000 : f32
    %32 = vector.broadcast %cst : f32 to vector<32x128xf32>
    %cst_7 = arith.constant 0xFF800000 : f32
    %33 = vector.broadcast %cst_7 : f32 to vector<32x128xf32>
    %cst_8 = arith.constant 0xFF800000 : f32
    %34 = vector.broadcast %cst_8 : f32 to vector<32x128xf32>
    %cst_9 = arith.constant 0.000000e+00 : f32
    %35 = vector.broadcast %cst_9 : f32 to vector<32x128xf32>
    %cst_10 = arith.constant 0.000000e+00 : f32
    %36 = vector.broadcast %cst_10 : f32 to vector<32x128xf32>
    %cst_11 = arith.constant 0.000000e+00 : f32
    %37 = vector.broadcast %cst_11 : f32 to vector<32x128xf32>
    %c0_12 = arith.constant 0 : index
    %c0_13 = arith.constant 0 : index
    %c0_14 = arith.constant 0 : index
    %c0_15 = arith.constant 0 : index
    %38 = vector.load %arg1[%c0_12, %c0_13, %c0_14, %c0_15] : memref<5x5x64x128xbf16, #tpu.memory_space<vmem>>, vector<1x1x32x128xbf16>
    %39 = vector.shape_cast %38 : vector<1x1x32x128xbf16> to vector<32x128xbf16>
    %40 = arith.extf %39 : vector<32x128xbf16> to vector<32x128xf32>
    %41 = vector.broadcast %0 : f32 to vector<32x128xf32>
    %42 = arith.mulf %40, %41 : vector<32x128xf32>
    %43 = arith.addf %35, %42 : vector<32x128xf32>
    %44 = vector.broadcast %9 : f32 to vector<32x128xf32>
    %45 = arith.mulf %40, %44 : vector<32x128xf32>
    %46 = arith.addf %36, %45 : vector<32x128xf32>
    %47 = vector.broadcast %18 : f32 to vector<32x128xf32>
    %48 = arith.mulf %40, %47 : vector<32x128xf32>
    %49 = arith.addf %37, %48 : vector<32x128xf32>
    %c0_16 = arith.constant 0 : index
    %c1_17 = arith.constant 1 : index
    %c0_18 = arith.constant 0 : index
    %c0_19 = arith.constant 0 : index
    %50 = vector.load %arg1[%c0_16, %c1_17, %c0_18, %c0_19] : memref<5x5x64x128xbf16, #tpu.memory_space<vmem>>, vector<1x1x32x128xbf16>
    %51 = vector.shape_cast %50 : vector<1x1x32x128xbf16> to vector<32x128xbf16>
    %52 = arith.extf %51 : vector<32x128xbf16> to vector<32x128xf32>
    %53 = vector.broadcast %1 : f32 to vector<32x128xf32>
    %54 = arith.mulf %52, %53 : vector<32x128xf32>
    %55 = arith.addf %43, %54 : vector<32x128xf32>
    %56 = vector.broadcast %10 : f32 to vector<32x128xf32>
    %57 = arith.mulf %52, %56 : vector<32x128xf32>
    %58 = arith.addf %46, %57 : vector<32x128xf32>
    %59 = vector.broadcast %19 : f32 to vector<32x128xf32>
    %60 = arith.mulf %52, %59 : vector<32x128xf32>
    %61 = arith.addf %49, %60 : vector<32x128xf32>
    %c0_20 = arith.constant 0 : index
    %c2_21 = arith.constant 2 : index
    %c0_22 = arith.constant 0 : index
    %c0_23 = arith.constant 0 : index
    %62 = vector.load %arg1[%c0_20, %c2_21, %c0_22, %c0_23] : memref<5x5x64x128xbf16, #tpu.memory_space<vmem>>, vector<1x1x32x128xbf16>
    %63 = vector.shape_cast %62 : vector<1x1x32x128xbf16> to vector<32x128xbf16>
    %64 = arith.extf %63 : vector<32x128xbf16> to vector<32x128xf32>
    %65 = vector.broadcast %2 : f32 to vector<32x128xf32>
    %66 = arith.mulf %64, %65 : vector<32x128xf32>
    %67 = arith.addf %55, %66 : vector<32x128xf32>
    %68 = vector.broadcast %11 : f32 to vector<32x128xf32>
    %69 = arith.mulf %64, %68 : vector<32x128xf32>
    %70 = arith.addf %58, %69 : vector<32x128xf32>
    %71 = vector.broadcast %20 : f32 to vector<32x128xf32>
    %72 = arith.mulf %64, %71 : vector<32x128xf32>
    %73 = arith.addf %61, %72 : vector<32x128xf32>
    %c1_24 = arith.constant 1 : index
    %c0_25 = arith.constant 0 : index
    %c0_26 = arith.constant 0 : index
    %c0_27 = arith.constant 0 : index
    %74 = vector.load %arg1[%c1_24, %c0_25, %c0_26, %c0_27] : memref<5x5x64x128xbf16, #tpu.memory_space<vmem>>, vector<1x1x32x128xbf16>
    %75 = vector.shape_cast %74 : vector<1x1x32x128xbf16> to vector<32x128xbf16>
    %76 = arith.extf %75 : vector<32x128xbf16> to vector<32x128xf32>
    %77 = vector.broadcast %3 : f32 to vector<32x128xf32>
    %78 = arith.mulf %76, %77 : vector<32x128xf32>
    %79 = arith.addf %67, %78 : vector<32x128xf32>
    %80 = vector.broadcast %12 : f32 to vector<32x128xf32>
    %81 = arith.mulf %76, %80 : vector<32x128xf32>
    %82 = arith.addf %70, %81 : vector<32x128xf32>
    %83 = vector.broadcast %21 : f32 to vector<32x128xf32>
    %84 = arith.mulf %76, %83 : vector<32x128xf32>
    %85 = arith.addf %73, %84 : vector<32x128xf32>
    %c1_28 = arith.constant 1 : index
    %c1_29 = arith.constant 1 : index
    %c0_30 = arith.constant 0 : index
    %c0_31 = arith.constant 0 : index
    %86 = vector.load %arg1[%c1_28, %c1_29, %c0_30, %c0_31] : memref<5x5x64x128xbf16, #tpu.memory_space<vmem>>, vector<1x1x32x128xbf16>
    %87 = vector.shape_cast %86 : vector<1x1x32x128xbf16> to vector<32x128xbf16>
    %88 = arith.extf %87 : vector<32x128xbf16> to vector<32x128xf32>
    %89 = vector.broadcast %4 : f32 to vector<32x128xf32>
    %90 = arith.mulf %88, %89 : vector<32x128xf32>
    %91 = arith.addf %79, %90 : vector<32x128xf32>
    %92 = vector.broadcast %13 : f32 to vector<32x128xf32>
    %93 = arith.mulf %88, %92 : vector<32x128xf32>
    %94 = arith.addf %82, %93 : vector<32x128xf32>
    %95 = vector.broadcast %22 : f32 to vector<32x128xf32>
    %96 = arith.mulf %88, %95 : vector<32x128xf32>
    %97 = arith.addf %85, %96 : vector<32x128xf32>
    %c1_32 = arith.constant 1 : index
    %c2_33 = arith.constant 2 : index
    %c0_34 = arith.constant 0 : index
    %c0_35 = arith.constant 0 : index
    %98 = vector.load %arg1[%c1_32, %c2_33, %c0_34, %c0_35] : memref<5x5x64x128xbf16, #tpu.memory_space<vmem>>, vector<1x1x32x128xbf16>
    %99 = vector.shape_cast %98 : vector<1x1x32x128xbf16> to vector<32x128xbf16>
    %100 = arith.extf %99 : vector<32x128xbf16> to vector<32x128xf32>
    %101 = vector.broadcast %5 : f32 to vector<32x128xf32>
    %102 = arith.mulf %100, %101 : vector<32x128xf32>
    %103 = arith.addf %91, %102 : vector<32x128xf32>
    %104 = vector.broadcast %14 : f32 to vector<32x128xf32>
    %105 = arith.mulf %100, %104 : vector<32x128xf32>
    %106 = arith.addf %94, %105 : vector<32x128xf32>
    %107 = vector.broadcast %23 : f32 to vector<32x128xf32>
    %108 = arith.mulf %100, %107 : vector<32x128xf32>
    %109 = arith.addf %97, %108 : vector<32x128xf32>
    %c2_36 = arith.constant 2 : index
    %c0_37 = arith.constant 0 : index
    %c0_38 = arith.constant 0 : index
    %c0_39 = arith.constant 0 : index
    %110 = vector.load %arg1[%c2_36, %c0_37, %c0_38, %c0_39] : memref<5x5x64x128xbf16, #tpu.memory_space<vmem>>, vector<1x1x32x128xbf16>
    %111 = vector.shape_cast %110 : vector<1x1x32x128xbf16> to vector<32x128xbf16>
    %112 = arith.extf %111 : vector<32x128xbf16> to vector<32x128xf32>
    %113 = vector.broadcast %6 : f32 to vector<32x128xf32>
    %114 = arith.mulf %112, %113 : vector<32x128xf32>
    %115 = arith.addf %103, %114 : vector<32x128xf32>
    %116 = vector.broadcast %15 : f32 to vector<32x128xf32>
    %117 = arith.mulf %112, %116 : vector<32x128xf32>
    %118 = arith.addf %106, %117 : vector<32x128xf32>
    %119 = vector.broadcast %24 : f32 to vector<32x128xf32>
    %120 = arith.mulf %112, %119 : vector<32x128xf32>
    %121 = arith.addf %109, %120 : vector<32x128xf32>
    %c2_40 = arith.constant 2 : index
    %c1_41 = arith.constant 1 : index
    %c0_42 = arith.constant 0 : index
    %c0_43 = arith.constant 0 : index
    %122 = vector.load %arg1[%c2_40, %c1_41, %c0_42, %c0_43] : memref<5x5x64x128xbf16, #tpu.memory_space<vmem>>, vector<1x1x32x128xbf16>
    %123 = vector.shape_cast %122 : vector<1x1x32x128xbf16> to vector<32x128xbf16>
    %124 = arith.extf %123 : vector<32x128xbf16> to vector<32x128xf32>
    %125 = vector.broadcast %7 : f32 to vector<32x128xf32>
    %126 = arith.mulf %124, %125 : vector<32x128xf32>
    %127 = arith.addf %115, %126 : vector<32x128xf32>
    %128 = vector.broadcast %16 : f32 to vector<32x128xf32>
    %129 = arith.mulf %124, %128 : vector<32x128xf32>
    %130 = arith.addf %118, %129 : vector<32x128xf32>
    %131 = vector.broadcast %25 : f32 to vector<32x128xf32>
    %132 = arith.mulf %124, %131 : vector<32x128xf32>
    %133 = arith.addf %121, %132 : vector<32x128xf32>
    %c2_44 = arith.constant 2 : index
    %c2_45 = arith.constant 2 : index
    %c0_46 = arith.constant 0 : index
    %c0_47 = arith.constant 0 : index
    %134 = vector.load %arg1[%c2_44, %c2_45, %c0_46, %c0_47] : memref<5x5x64x128xbf16, #tpu.memory_space<vmem>>, vector<1x1x32x128xbf16>
    %135 = vector.shape_cast %134 : vector<1x1x32x128xbf16> to vector<32x128xbf16>
    %136 = arith.extf %135 : vector<32x128xbf16> to vector<32x128xf32>
    %137 = vector.broadcast %8 : f32 to vector<32x128xf32>
    %138 = arith.mulf %136, %137 : vector<32x128xf32>
    %139 = arith.addf %127, %138 : vector<32x128xf32>
    %140 = vector.broadcast %17 : f32 to vector<32x128xf32>
    %141 = arith.mulf %136, %140 : vector<32x128xf32>
    %142 = arith.addf %130, %141 : vector<32x128xf32>
    %143 = vector.broadcast %26 : f32 to vector<32x128xf32>
    %144 = arith.mulf %136, %143 : vector<32x128xf32>
    %145 = arith.addf %133, %144 : vector<32x128xf32>
    %146 = arith.maximumf %32, %139 : vector<32x128xf32>
    %147 = arith.maximumf %33, %142 : vector<32x128xf32>
    %148 = arith.maximumf %34, %145 : vector<32x128xf32>
    %cst_48 = arith.constant 0.000000e+00 : f32
    %149 = vector.broadcast %cst_48 : f32 to vector<32x128xf32>
    %cst_49 = arith.constant 0.000000e+00 : f32
    %150 = vector.broadcast %cst_49 : f32 to vector<32x128xf32>
    %cst_50 = arith.constant 0.000000e+00 : f32
    %151 = vector.broadcast %cst_50 : f32 to vector<32x128xf32>
    %c0_51 = arith.constant 0 : index
    %c1_52 = arith.constant 1 : index
    %c0_53 = arith.constant 0 : index
    %c0_54 = arith.constant 0 : index
    %152 = vector.load %arg1[%c0_51, %c1_52, %c0_53, %c0_54] : memref<5x5x64x128xbf16, #tpu.memory_space<vmem>>, vector<1x1x32x128xbf16>
    %153 = vector.shape_cast %152 : vector<1x1x32x128xbf16> to vector<32x128xbf16>
    %154 = arith.extf %153 : vector<32x128xbf16> to vector<32x128xf32>
    %155 = vector.broadcast %0 : f32 to vector<32x128xf32>
    %156 = arith.mulf %154, %155 : vector<32x128xf32>
    %157 = arith.addf %149, %156 : vector<32x128xf32>
    %158 = vector.broadcast %9 : f32 to vector<32x128xf32>
    %159 = arith.mulf %154, %158 : vector<32x128xf32>
    %160 = arith.addf %150, %159 : vector<32x128xf32>
    %161 = vector.broadcast %18 : f32 to vector<32x128xf32>
    %162 = arith.mulf %154, %161 : vector<32x128xf32>
    %163 = arith.addf %151, %162 : vector<32x128xf32>
    %c0_55 = arith.constant 0 : index
    %c2_56 = arith.constant 2 : index
    %c0_57 = arith.constant 0 : index
    %c0_58 = arith.constant 0 : index
    %164 = vector.load %arg1[%c0_55, %c2_56, %c0_57, %c0_58] : memref<5x5x64x128xbf16, #tpu.memory_space<vmem>>, vector<1x1x32x128xbf16>
    %165 = vector.shape_cast %164 : vector<1x1x32x128xbf16> to vector<32x128xbf16>
    %166 = arith.extf %165 : vector<32x128xbf16> to vector<32x128xf32>
    %167 = vector.broadcast %1 : f32 to vector<32x128xf32>
    %168 = arith.mulf %166, %167 : vector<32x128xf32>
    %169 = arith.addf %157, %168 : vector<32x128xf32>
    %170 = vector.broadcast %10 : f32 to vector<32x128xf32>
    %171 = arith.mulf %166, %170 : vector<32x128xf32>
    %172 = arith.addf %160, %171 : vector<32x128xf32>
    %173 = vector.broadcast %19 : f32 to vector<32x128xf32>
    %174 = arith.mulf %166, %173 : vector<32x128xf32>
    %175 = arith.addf %163, %174 : vector<32x128xf32>
    %c0_59 = arith.constant 0 : index
    %c3_60 = arith.constant 3 : index
    %c0_61 = arith.constant 0 : index
    %c0_62 = arith.constant 0 : index
    %176 = vector.load %arg1[%c0_59, %c3_60, %c0_61, %c0_62] : memref<5x5x64x128xbf16, #tpu.memory_space<vmem>>, vector<1x1x32x128xbf16>
    %177 = vector.shape_cast %176 : vector<1x1x32x128xbf16> to vector<32x128xbf16>
    %178 = arith.extf %177 : vector<32x128xbf16> to vector<32x128xf32>
    %179 = vector.broadcast %2 : f32 to vector<32x128xf32>
    %180 = arith.mulf %178, %179 : vector<32x128xf32>
    %181 = arith.addf %169, %180 : vector<32x128xf32>
    %182 = vector.broadcast %11 : f32 to vector<32x128xf32>
    %183 = arith.mulf %178, %182 : vector<32x128xf32>
    %184 = arith.addf %172, %183 : vector<32x128xf32>
    %185 = vector.broadcast %20 : f32 to vector<32x128xf32>
    %186 = arith.mulf %178, %185 : vector<32x128xf32>
    %187 = arith.addf %175, %186 : vector<32x128xf32>
    %c1_63 = arith.constant 1 : index
    %c1_64 = arith.constant 1 : index
    %c0_65 = arith.constant 0 : index
    %c0_66 = arith.constant 0 : index
    %188 = vector.load %arg1[%c1_63, %c1_64, %c0_65, %c0_66] : memref<5x5x64x128xbf16, #tpu.memory_space<vmem>>, vector<1x1x32x128xbf16>
    %189 = vector.shape_cast %188 : vector<1x1x32x128xbf16> to vector<32x128xbf16>
    %190 = arith.extf %189 : vector<32x128xbf16> to vector<32x128xf32>
    %191 = vector.broadcast %3 : f32 to vector<32x128xf32>
    %192 = arith.mulf %190, %191 : vector<32x128xf32>
    %193 = arith.addf %181, %192 : vector<32x128xf32>
    %194 = vector.broadcast %12 : f32 to vector<32x128xf32>
    %195 = arith.mulf %190, %194 : vector<32x128xf32>
    %196 = arith.addf %184, %195 : vector<32x128xf32>
    %197 = vector.broadcast %21 : f32 to vector<32x128xf32>
    %198 = arith.mulf %190, %197 : vector<32x128xf32>
    %199 = arith.addf %187, %198 : vector<32x128xf32>
    %c1_67 = arith.constant 1 : index
    %c2_68 = arith.constant 2 : index
    %c0_69 = arith.constant 0 : index
    %c0_70 = arith.constant 0 : index
    %200 = vector.load %arg1[%c1_67, %c2_68, %c0_69, %c0_70] : memref<5x5x64x128xbf16, #tpu.memory_space<vmem>>, vector<1x1x32x128xbf16>
    %201 = vector.shape_cast %200 : vector<1x1x32x128xbf16> to vector<32x128xbf16>
    %202 = arith.extf %201 : vector<32x128xbf16> to vector<32x128xf32>
    %203 = vector.broadcast %4 : f32 to vector<32x128xf32>
    %204 = arith.mulf %202, %203 : vector<32x128xf32>
    %205 = arith.addf %193, %204 : vector<32x128xf32>
    %206 = vector.broadcast %13 : f32 to vector<32x128xf32>
    %207 = arith.mulf %202, %206 : vector<32x128xf32>
    %208 = arith.addf %196, %207 : vector<32x128xf32>
    %209 = vector.broadcast %22 : f32 to vector<32x128xf32>
    %210 = arith.mulf %202, %209 : vector<32x128xf32>
    %211 = arith.addf %199, %210 : vector<32x128xf32>
    %c1_71 = arith.constant 1 : index
    %c3_72 = arith.constant 3 : index
    %c0_73 = arith.constant 0 : index
    %c0_74 = arith.constant 0 : index
    %212 = vector.load %arg1[%c1_71, %c3_72, %c0_73, %c0_74] : memref<5x5x64x128xbf16, #tpu.memory_space<vmem>>, vector<1x1x32x128xbf16>
    %213 = vector.shape_cast %212 : vector<1x1x32x128xbf16> to vector<32x128xbf16>
    %214 = arith.extf %213 : vector<32x128xbf16> to vector<32x128xf32>
    %215 = vector.broadcast %5 : f32 to vector<32x128xf32>
    %216 = arith.mulf %214, %215 : vector<32x128xf32>
    %217 = arith.addf %205, %216 : vector<32x128xf32>
    %218 = vector.broadcast %14 : f32 to vector<32x128xf32>
    %219 = arith.mulf %214, %218 : vector<32x128xf32>
    %220 = arith.addf %208, %219 : vector<32x128xf32>
    %221 = vector.broadcast %23 : f32 to vector<32x128xf32>
    %222 = arith.mulf %214, %221 : vector<32x128xf32>
    %223 = arith.addf %211, %222 : vector<32x128xf32>
    %c2_75 = arith.constant 2 : index
    %c1_76 = arith.constant 1 : index
    %c0_77 = arith.constant 0 : index
    %c0_78 = arith.constant 0 : index
    %224 = vector.load %arg1[%c2_75, %c1_76, %c0_77, %c0_78] : memref<5x5x64x128xbf16, #tpu.memory_space<vmem>>, vector<1x1x32x128xbf16>
    %225 = vector.shape_cast %224 : vector<1x1x32x128xbf16> to vector<32x128xbf16>
    %226 = arith.extf %225 : vector<32x128xbf16> to vector<32x128xf32>
    %227 = vector.broadcast %6 : f32 to vector<32x128xf32>
    %228 = arith.mulf %226, %227 : vector<32x128xf32>
    %229 = arith.addf %217, %228 : vector<32x128xf32>
    %230 = vector.broadcast %15 : f32 to vector<32x128xf32>
    %231 = arith.mulf %226, %230 : vector<32x128xf32>
    %232 = arith.addf %220, %231 : vector<32x128xf32>
    %233 = vector.broadcast %24 : f32 to vector<32x128xf32>
    %234 = arith.mulf %226, %233 : vector<32x128xf32>
    %235 = arith.addf %223, %234 : vector<32x128xf32>
    %c2_79 = arith.constant 2 : index
    %c2_80 = arith.constant 2 : index
    %c0_81 = arith.constant 0 : index
    %c0_82 = arith.constant 0 : index
    %236 = vector.load %arg1[%c2_79, %c2_80, %c0_81, %c0_82] : memref<5x5x64x128xbf16, #tpu.memory_space<vmem>>, vector<1x1x32x128xbf16>
    %237 = vector.shape_cast %236 : vector<1x1x32x128xbf16> to vector<32x128xbf16>
    %238 = arith.extf %237 : vector<32x128xbf16> to vector<32x128xf32>
    %239 = vector.broadcast %7 : f32 to vector<32x128xf32>
    %240 = arith.mulf %238, %239 : vector<32x128xf32>
    %241 = arith.addf %229, %240 : vector<32x128xf32>
    %242 = vector.broadcast %16 : f32 to vector<32x128xf32>
    %243 = arith.mulf %238, %242 : vector<32x128xf32>
    %244 = arith.addf %232, %243 : vector<32x128xf32>
    %245 = vector.broadcast %25 : f32 to vector<32x128xf32>
    %246 = arith.mulf %238, %245 : vector<32x128xf32>
    %247 = arith.addf %235, %246 : vector<32x128xf32>
    %c2_83 = arith.constant 2 : index
    %c3_84 = arith.constant 3 : index
    %c0_85 = arith.constant 0 : index
    %c0_86 = arith.constant 0 : index
    %248 = vector.load %arg1[%c2_83, %c3_84, %c0_85, %c0_86] : memref<5x5x64x128xbf16, #tpu.memory_space<vmem>>, vector<1x1x32x128xbf16>
    %249 = vector.shape_cast %248 : vector<1x1x32x128xbf16> to vector<32x128xbf16>
    %250 = arith.extf %249 : vector<32x128xbf16> to vector<32x128xf32>
    %251 = vector.broadcast %8 : f32 to vector<32x128xf32>
    %252 = arith.mulf %250, %251 : vector<32x128xf32>
    %253 = arith.addf %241, %252 : vector<32x128xf32>
    %254 = vector.broadcast %17 : f32 to vector<32x128xf32>
    %255 = arith.mulf %250, %254 : vector<32x128xf32>
    %256 = arith.addf %244, %255 : vector<32x128xf32>
    %257 = vector.broadcast %26 : f32 to vector<32x128xf32>
    %258 = arith.mulf %250, %257 : vector<32x128xf32>
    %259 = arith.addf %247, %258 : vector<32x128xf32>
    %260 = arith.maximumf %146, %253 : vector<32x128xf32>
    %261 = arith.maximumf %147, %256 : vector<32x128xf32>
    %262 = arith.maximumf %148, %259 : vector<32x128xf32>
    %cst_87 = arith.constant 0.000000e+00 : f32
    %263 = vector.broadcast %cst_87 : f32 to vector<32x128xf32>
    %cst_88 = arith.constant 0.000000e+00 : f32
    %264 = vector.broadcast %cst_88 : f32 to vector<32x128xf32>
    %cst_89 = arith.constant 0.000000e+00 : f32
    %265 = vector.broadcast %cst_89 : f32 to vector<32x128xf32>
    %c0_90 = arith.constant 0 : index
    %c2_91 = arith.constant 2 : index
    %c0_92 = arith.constant 0 : index
    %c0_93 = arith.constant 0 : index
    %266 = vector.load %arg1[%c0_90, %c2_91, %c0_92, %c0_93] : memref<5x5x64x128xbf16, #tpu.memory_space<vmem>>, vector<1x1x32x128xbf16>
    %267 = vector.shape_cast %266 : vector<1x1x32x128xbf16> to vector<32x128xbf16>
    %268 = arith.extf %267 : vector<32x128xbf16> to vector<32x128xf32>
    %269 = vector.broadcast %0 : f32 to vector<32x128xf32>
    %270 = arith.mulf %268, %269 : vector<32x128xf32>
    %271 = arith.addf %263, %270 : vector<32x128xf32>
    %272 = vector.broadcast %9 : f32 to vector<32x128xf32>
    %273 = arith.mulf %268, %272 : vector<32x128xf32>
    %274 = arith.addf %264, %273 : vector<32x128xf32>
    %275 = vector.broadcast %18 : f32 to vector<32x128xf32>
    %276 = arith.mulf %268, %275 : vector<32x128xf32>
    %277 = arith.addf %265, %276 : vector<32x128xf32>
    %c0_94 = arith.constant 0 : index
    %c3_95 = arith.constant 3 : index
    %c0_96 = arith.constant 0 : index
    %c0_97 = arith.constant 0 : index
    %278 = vector.load %arg1[%c0_94, %c3_95, %c0_96, %c0_97] : memref<5x5x64x128xbf16, #tpu.memory_space<vmem>>, vector<1x1x32x128xbf16>
    %279 = vector.shape_cast %278 : vector<1x1x32x128xbf16> to vector<32x128xbf16>
    %280 = arith.extf %279 : vector<32x128xbf16> to vector<32x128xf32>
    %281 = vector.broadcast %1 : f32 to vector<32x128xf32>
    %282 = arith.mulf %280, %281 : vector<32x128xf32>
    %283 = arith.addf %271, %282 : vector<32x128xf32>
    %284 = vector.broadcast %10 : f32 to vector<32x128xf32>
    %285 = arith.mulf %280, %284 : vector<32x128xf32>
    %286 = arith.addf %274, %285 : vector<32x128xf32>
    %287 = vector.broadcast %19 : f32 to vector<32x128xf32>
    %288 = arith.mulf %280, %287 : vector<32x128xf32>
    %289 = arith.addf %277, %288 : vector<32x128xf32>
    %c0_98 = arith.constant 0 : index
    %c4_99 = arith.constant 4 : index
    %c0_100 = arith.constant 0 : index
    %c0_101 = arith.constant 0 : index
    %290 = vector.load %arg1[%c0_98, %c4_99, %c0_100, %c0_101] : memref<5x5x64x128xbf16, #tpu.memory_space<vmem>>, vector<1x1x32x128xbf16>
    %291 = vector.shape_cast %290 : vector<1x1x32x128xbf16> to vector<32x128xbf16>
    %292 = arith.extf %291 : vector<32x128xbf16> to vector<32x128xf32>
    %293 = vector.broadcast %2 : f32 to vector<32x128xf32>
    %294 = arith.mulf %292, %293 : vector<32x128xf32>
    %295 = arith.addf %283, %294 : vector<32x128xf32>
    %296 = vector.broadcast %11 : f32 to vector<32x128xf32>
    %297 = arith.mulf %292, %296 : vector<32x128xf32>
    %298 = arith.addf %286, %297 : vector<32x128xf32>
    %299 = vector.broadcast %20 : f32 to vector<32x128xf32>
    %300 = arith.mulf %292, %299 : vector<32x128xf32>
    %301 = arith.addf %289, %300 : vector<32x128xf32>
    %c1_102 = arith.constant 1 : index
    %c2_103 = arith.constant 2 : index
    %c0_104 = arith.constant 0 : index
    %c0_105 = arith.constant 0 : index
    %302 = vector.load %arg1[%c1_102, %c2_103, %c0_104, %c0_105] : memref<5x5x64x128xbf16, #tpu.memory_space<vmem>>, vector<1x1x32x128xbf16>
    %303 = vector.shape_cast %302 : vector<1x1x32x128xbf16> to vector<32x128xbf16>
    %304 = arith.extf %303 : vector<32x128xbf16> to vector<32x128xf32>
    %305 = vector.broadcast %3 : f32 to vector<32x128xf32>
    %306 = arith.mulf %304, %305 : vector<32x128xf32>
    %307 = arith.addf %295, %306 : vector<32x128xf32>
    %308 = vector.broadcast %12 : f32 to vector<32x128xf32>
    %309 = arith.mulf %304, %308 : vector<32x128xf32>
    %310 = arith.addf %298, %309 : vector<32x128xf32>
    %311 = vector.broadcast %21 : f32 to vector<32x128xf32>
    %312 = arith.mulf %304, %311 : vector<32x128xf32>
    %313 = arith.addf %301, %312 : vector<32x128xf32>
    %c1_106 = arith.constant 1 : index
    %c3_107 = arith.constant 3 : index
    %c0_108 = arith.constant 0 : index
    %c0_109 = arith.constant 0 : index
    %314 = vector.load %arg1[%c1_106, %c3_107, %c0_108, %c0_109] : memref<5x5x64x128xbf16, #tpu.memory_space<vmem>>, vector<1x1x32x128xbf16>
    %315 = vector.shape_cast %314 : vector<1x1x32x128xbf16> to vector<32x128xbf16>
    %316 = arith.extf %315 : vector<32x128xbf16> to vector<32x128xf32>
    %317 = vector.broadcast %4 : f32 to vector<32x128xf32>
    %318 = arith.mulf %316, %317 : vector<32x128xf32>
    %319 = arith.addf %307, %318 : vector<32x128xf32>
    %320 = vector.broadcast %13 : f32 to vector<32x128xf32>
    %321 = arith.mulf %316, %320 : vector<32x128xf32>
    %322 = arith.addf %310, %321 : vector<32x128xf32>
    %323 = vector.broadcast %22 : f32 to vector<32x128xf32>
    %324 = arith.mulf %316, %323 : vector<32x128xf32>
    %325 = arith.addf %313, %324 : vector<32x128xf32>
    %c1_110 = arith.constant 1 : index
    %c4_111 = arith.constant 4 : index
    %c0_112 = arith.constant 0 : index
    %c0_113 = arith.constant 0 : index
    %326 = vector.load %arg1[%c1_110, %c4_111, %c0_112, %c0_113] : memref<5x5x64x128xbf16, #tpu.memory_space<vmem>>, vector<1x1x32x128xbf16>
    %327 = vector.shape_cast %326 : vector<1x1x32x128xbf16> to vector<32x128xbf16>
    %328 = arith.extf %327 : vector<32x128xbf16> to vector<32x128xf32>
    %329 = vector.broadcast %5 : f32 to vector<32x128xf32>
    %330 = arith.mulf %328, %329 : vector<32x128xf32>
    %331 = arith.addf %319, %330 : vector<32x128xf32>
    %332 = vector.broadcast %14 : f32 to vector<32x128xf32>
    %333 = arith.mulf %328, %332 : vector<32x128xf32>
    %334 = arith.addf %322, %333 : vector<32x128xf32>
    %335 = vector.broadcast %23 : f32 to vector<32x128xf32>
    %336 = arith.mulf %328, %335 : vector<32x128xf32>
    %337 = arith.addf %325, %336 : vector<32x128xf32>
    %c2_114 = arith.constant 2 : index
    %c2_115 = arith.constant 2 : index
    %c0_116 = arith.constant 0 : index
    %c0_117 = arith.constant 0 : index
    %338 = vector.load %arg1[%c2_114, %c2_115, %c0_116, %c0_117] : memref<5x5x64x128xbf16, #tpu.memory_space<vmem>>, vector<1x1x32x128xbf16>
    %339 = vector.shape_cast %338 : vector<1x1x32x128xbf16> to vector<32x128xbf16>
    %340 = arith.extf %339 : vector<32x128xbf16> to vector<32x128xf32>
    %341 = vector.broadcast %6 : f32 to vector<32x128xf32>
    %342 = arith.mulf %340, %341 : vector<32x128xf32>
    %343 = arith.addf %331, %342 : vector<32x128xf32>
    %344 = vector.broadcast %15 : f32 to vector<32x128xf32>
    %345 = arith.mulf %340, %344 : vector<32x128xf32>
    %346 = arith.addf %334, %345 : vector<32x128xf32>
    %347 = vector.broadcast %24 : f32 to vector<32x128xf32>
    %348 = arith.mulf %340, %347 : vector<32x128xf32>
    %349 = arith.addf %337, %348 : vector<32x128xf32>
    %c2_118 = arith.constant 2 : index
    %c3_119 = arith.constant 3 : index
    %c0_120 = arith.constant 0 : index
    %c0_121 = arith.constant 0 : index
    %350 = vector.load %arg1[%c2_118, %c3_119, %c0_120, %c0_121] : memref<5x5x64x128xbf16, #tpu.memory_space<vmem>>, vector<1x1x32x128xbf16>
    %351 = vector.shape_cast %350 : vector<1x1x32x128xbf16> to vector<32x128xbf16>
    %352 = arith.extf %351 : vector<32x128xbf16> to vector<32x128xf32>
    %353 = vector.broadcast %7 : f32 to vector<32x128xf32>
    %354 = arith.mulf %352, %353 : vector<32x128xf32>
    %355 = arith.addf %343, %354 : vector<32x128xf32>
    %356 = vector.broadcast %16 : f32 to vector<32x128xf32>
    %357 = arith.mulf %352, %356 : vector<32x128xf32>
    %358 = arith.addf %346, %357 : vector<32x128xf32>
    %359 = vector.broadcast %25 : f32 to vector<32x128xf32>
    %360 = arith.mulf %352, %359 : vector<32x128xf32>
    %361 = arith.addf %349, %360 : vector<32x128xf32>
    %c2_122 = arith.constant 2 : index
    %c4_123 = arith.constant 4 : index
    %c0_124 = arith.constant 0 : index
    %c0_125 = arith.constant 0 : index
    %362 = vector.load %arg1[%c2_122, %c4_123, %c0_124, %c0_125] : memref<5x5x64x128xbf16, #tpu.memory_space<vmem>>, vector<1x1x32x128xbf16>
    %363 = vector.shape_cast %362 : vector<1x1x32x128xbf16> to vector<32x128xbf16>
    %364 = arith.extf %363 : vector<32x128xbf16> to vector<32x128xf32>
    %365 = vector.broadcast %8 : f32 to vector<32x128xf32>
    %366 = arith.mulf %364, %365 : vector<32x128xf32>
    %367 = arith.addf %355, %366 : vector<32x128xf32>
    %368 = vector.broadcast %17 : f32 to vector<32x128xf32>
    %369 = arith.mulf %364, %368 : vector<32x128xf32>
    %370 = arith.addf %358, %369 : vector<32x128xf32>
    %371 = vector.broadcast %26 : f32 to vector<32x128xf32>
    %372 = arith.mulf %364, %371 : vector<32x128xf32>
    %373 = arith.addf %361, %372 : vector<32x128xf32>
    %374 = arith.maximumf %260, %367 : vector<32x128xf32>
    %375 = arith.maximumf %261, %370 : vector<32x128xf32>
    %376 = arith.maximumf %262, %373 : vector<32x128xf32>
    %cst_126 = arith.constant 0.000000e+00 : f32
    %377 = vector.broadcast %cst_126 : f32 to vector<32x128xf32>
    %cst_127 = arith.constant 0.000000e+00 : f32
    %378 = vector.broadcast %cst_127 : f32 to vector<32x128xf32>
    %cst_128 = arith.constant 0.000000e+00 : f32
    %379 = vector.broadcast %cst_128 : f32 to vector<32x128xf32>
    %c1_129 = arith.constant 1 : index
    %c0_130 = arith.constant 0 : index
    %c0_131 = arith.constant 0 : index
    %c0_132 = arith.constant 0 : index
    %380 = vector.load %arg1[%c1_129, %c0_130, %c0_131, %c0_132] : memref<5x5x64x128xbf16, #tpu.memory_space<vmem>>, vector<1x1x32x128xbf16>
    %381 = vector.shape_cast %380 : vector<1x1x32x128xbf16> to vector<32x128xbf16>
    %382 = arith.extf %381 : vector<32x128xbf16> to vector<32x128xf32>
    %383 = vector.broadcast %0 : f32 to vector<32x128xf32>
    %384 = arith.mulf %382, %383 : vector<32x128xf32>
    %385 = arith.addf %377, %384 : vector<32x128xf32>
    %386 = vector.broadcast %9 : f32 to vector<32x128xf32>
    %387 = arith.mulf %382, %386 : vector<32x128xf32>
    %388 = arith.addf %378, %387 : vector<32x128xf32>
    %389 = vector.broadcast %18 : f32 to vector<32x128xf32>
    %390 = arith.mulf %382, %389 : vector<32x128xf32>
    %391 = arith.addf %379, %390 : vector<32x128xf32>
    %c1_133 = arith.constant 1 : index
    %c1_134 = arith.constant 1 : index
    %c0_135 = arith.constant 0 : index
    %c0_136 = arith.constant 0 : index
    %392 = vector.load %arg1[%c1_133, %c1_134, %c0_135, %c0_136] : memref<5x5x64x128xbf16, #tpu.memory_space<vmem>>, vector<1x1x32x128xbf16>
    %393 = vector.shape_cast %392 : vector<1x1x32x128xbf16> to vector<32x128xbf16>
    %394 = arith.extf %393 : vector<32x128xbf16> to vector<32x128xf32>
    %395 = vector.broadcast %1 : f32 to vector<32x128xf32>
    %396 = arith.mulf %394, %395 : vector<32x128xf32>
    %397 = arith.addf %385, %396 : vector<32x128xf32>
    %398 = vector.broadcast %10 : f32 to vector<32x128xf32>
    %399 = arith.mulf %394, %398 : vector<32x128xf32>
    %400 = arith.addf %388, %399 : vector<32x128xf32>
    %401 = vector.broadcast %19 : f32 to vector<32x128xf32>
    %402 = arith.mulf %394, %401 : vector<32x128xf32>
    %403 = arith.addf %391, %402 : vector<32x128xf32>
    %c1_137 = arith.constant 1 : index
    %c2_138 = arith.constant 2 : index
    %c0_139 = arith.constant 0 : index
    %c0_140 = arith.constant 0 : index
    %404 = vector.load %arg1[%c1_137, %c2_138, %c0_139, %c0_140] : memref<5x5x64x128xbf16, #tpu.memory_space<vmem>>, vector<1x1x32x128xbf16>
    %405 = vector.shape_cast %404 : vector<1x1x32x128xbf16> to vector<32x128xbf16>
    %406 = arith.extf %405 : vector<32x128xbf16> to vector<32x128xf32>
    %407 = vector.broadcast %2 : f32 to vector<32x128xf32>
    %408 = arith.mulf %406, %407 : vector<32x128xf32>
    %409 = arith.addf %397, %408 : vector<32x128xf32>
    %410 = vector.broadcast %11 : f32 to vector<32x128xf32>
    %411 = arith.mulf %406, %410 : vector<32x128xf32>
    %412 = arith.addf %400, %411 : vector<32x128xf32>
    %413 = vector.broadcast %20 : f32 to vector<32x128xf32>
    %414 = arith.mulf %406, %413 : vector<32x128xf32>
    %415 = arith.addf %403, %414 : vector<32x128xf32>
    %c2_141 = arith.constant 2 : index
    %c0_142 = arith.constant 0 : index
    %c0_143 = arith.constant 0 : index
    %c0_144 = arith.constant 0 : index
    %416 = vector.load %arg1[%c2_141, %c0_142, %c0_143, %c0_144] : memref<5x5x64x128xbf16, #tpu.memory_space<vmem>>, vector<1x1x32x128xbf16>
    %417 = vector.shape_cast %416 : vector<1x1x32x128xbf16> to vector<32x128xbf16>
    %418 = arith.extf %417 : vector<32x128xbf16> to vector<32x128xf32>
    %419 = vector.broadcast %3 : f32 to vector<32x128xf32>
    %420 = arith.mulf %418, %419 : vector<32x128xf32>
    %421 = arith.addf %409, %420 : vector<32x128xf32>
    %422 = vector.broadcast %12 : f32 to vector<32x128xf32>
    %423 = arith.mulf %418, %422 : vector<32x128xf32>
    %424 = arith.addf %412, %423 : vector<32x128xf32>
    %425 = vector.broadcast %21 : f32 to vector<32x128xf32>
    %426 = arith.mulf %418, %425 : vector<32x128xf32>
    %427 = arith.addf %415, %426 : vector<32x128xf32>
    %c2_145 = arith.constant 2 : index
    %c1_146 = arith.constant 1 : index
    %c0_147 = arith.constant 0 : index
    %c0_148 = arith.constant 0 : index
    %428 = vector.load %arg1[%c2_145, %c1_146, %c0_147, %c0_148] : memref<5x5x64x128xbf16, #tpu.memory_space<vmem>>, vector<1x1x32x128xbf16>
    %429 = vector.shape_cast %428 : vector<1x1x32x128xbf16> to vector<32x128xbf16>
    %430 = arith.extf %429 : vector<32x128xbf16> to vector<32x128xf32>
    %431 = vector.broadcast %4 : f32 to vector<32x128xf32>
    %432 = arith.mulf %430, %431 : vector<32x128xf32>
    %433 = arith.addf %421, %432 : vector<32x128xf32>
    %434 = vector.broadcast %13 : f32 to vector<32x128xf32>
    %435 = arith.mulf %430, %434 : vector<32x128xf32>
    %436 = arith.addf %424, %435 : vector<32x128xf32>
    %437 = vector.broadcast %22 : f32 to vector<32x128xf32>
    %438 = arith.mulf %430, %437 : vector<32x128xf32>
    %439 = arith.addf %427, %438 : vector<32x128xf32>
    %c2_149 = arith.constant 2 : index
    %c2_150 = arith.constant 2 : index
    %c0_151 = arith.constant 0 : index
    %c0_152 = arith.constant 0 : index
    %440 = vector.load %arg1[%c2_149, %c2_150, %c0_151, %c0_152] : memref<5x5x64x128xbf16, #tpu.memory_space<vmem>>, vector<1x1x32x128xbf16>
    %441 = vector.shape_cast %440 : vector<1x1x32x128xbf16> to vector<32x128xbf16>
    %442 = arith.extf %441 : vector<32x128xbf16> to vector<32x128xf32>
    %443 = vector.broadcast %5 : f32 to vector<32x128xf32>
    %444 = arith.mulf %442, %443 : vector<32x128xf32>
    %445 = arith.addf %433, %444 : vector<32x128xf32>
    %446 = vector.broadcast %14 : f32 to vector<32x128xf32>
    %447 = arith.mulf %442, %446 : vector<32x128xf32>
    %448 = arith.addf %436, %447 : vector<32x128xf32>
    %449 = vector.broadcast %23 : f32 to vector<32x128xf32>
    %450 = arith.mulf %442, %449 : vector<32x128xf32>
    %451 = arith.addf %439, %450 : vector<32x128xf32>
    %c3_153 = arith.constant 3 : index
    %c0_154 = arith.constant 0 : index
    %c0_155 = arith.constant 0 : index
    %c0_156 = arith.constant 0 : index
    %452 = vector.load %arg1[%c3_153, %c0_154, %c0_155, %c0_156] : memref<5x5x64x128xbf16, #tpu.memory_space<vmem>>, vector<1x1x32x128xbf16>
    %453 = vector.shape_cast %452 : vector<1x1x32x128xbf16> to vector<32x128xbf16>
    %454 = arith.extf %453 : vector<32x128xbf16> to vector<32x128xf32>
    %455 = vector.broadcast %6 : f32 to vector<32x128xf32>
    %456 = arith.mulf %454, %455 : vector<32x128xf32>
    %457 = arith.addf %445, %456 : vector<32x128xf32>
    %458 = vector.broadcast %15 : f32 to vector<32x128xf32>
    %459 = arith.mulf %454, %458 : vector<32x128xf32>
    %460 = arith.addf %448, %459 : vector<32x128xf32>
    %461 = vector.broadcast %24 : f32 to vector<32x128xf32>
    %462 = arith.mulf %454, %461 : vector<32x128xf32>
    %463 = arith.addf %451, %462 : vector<32x128xf32>
    %c3_157 = arith.constant 3 : index
    %c1_158 = arith.constant 1 : index
    %c0_159 = arith.constant 0 : index
    %c0_160 = arith.constant 0 : index
    %464 = vector.load %arg1[%c3_157, %c1_158, %c0_159, %c0_160] : memref<5x5x64x128xbf16, #tpu.memory_space<vmem>>, vector<1x1x32x128xbf16>
    %465 = vector.shape_cast %464 : vector<1x1x32x128xbf16> to vector<32x128xbf16>
    %466 = arith.extf %465 : vector<32x128xbf16> to vector<32x128xf32>
    %467 = vector.broadcast %7 : f32 to vector<32x128xf32>
    %468 = arith.mulf %466, %467 : vector<32x128xf32>
    %469 = arith.addf %457, %468 : vector<32x128xf32>
    %470 = vector.broadcast %16 : f32 to vector<32x128xf32>
    %471 = arith.mulf %466, %470 : vector<32x128xf32>
    %472 = arith.addf %460, %471 : vector<32x128xf32>
    %473 = vector.broadcast %25 : f32 to vector<32x128xf32>
    %474 = arith.mulf %466, %473 : vector<32x128xf32>
    %475 = arith.addf %463, %474 : vector<32x128xf32>
    %c3_161 = arith.constant 3 : index
    %c2_162 = arith.constant 2 : index
    %c0_163 = arith.constant 0 : index
    %c0_164 = arith.constant 0 : index
    %476 = vector.load %arg1[%c3_161, %c2_162, %c0_163, %c0_164] : memref<5x5x64x128xbf16, #tpu.memory_space<vmem>>, vector<1x1x32x128xbf16>
    %477 = vector.shape_cast %476 : vector<1x1x32x128xbf16> to vector<32x128xbf16>
    %478 = arith.extf %477 : vector<32x128xbf16> to vector<32x128xf32>
    %479 = vector.broadcast %8 : f32 to vector<32x128xf32>
    %480 = arith.mulf %478, %479 : vector<32x128xf32>
    %481 = arith.addf %469, %480 : vector<32x128xf32>
    %482 = vector.broadcast %17 : f32 to vector<32x128xf32>
    %483 = arith.mulf %478, %482 : vector<32x128xf32>
    %484 = arith.addf %472, %483 : vector<32x128xf32>
    %485 = vector.broadcast %26 : f32 to vector<32x128xf32>
    %486 = arith.mulf %478, %485 : vector<32x128xf32>
    %487 = arith.addf %475, %486 : vector<32x128xf32>
    %488 = arith.maximumf %374, %481 : vector<32x128xf32>
    %489 = arith.maximumf %375, %484 : vector<32x128xf32>
    %490 = arith.maximumf %376, %487 : vector<32x128xf32>
    %cst_165 = arith.constant 0.000000e+00 : f32
    %491 = vector.broadcast %cst_165 : f32 to vector<32x128xf32>
    %cst_166 = arith.constant 0.000000e+00 : f32
    %492 = vector.broadcast %cst_166 : f32 to vector<32x128xf32>
    %cst_167 = arith.constant 0.000000e+00 : f32
    %493 = vector.broadcast %cst_167 : f32 to vector<32x128xf32>
    %c1_168 = arith.constant 1 : index
    %c1_169 = arith.constant 1 : index
    %c0_170 = arith.constant 0 : index
    %c0_171 = arith.constant 0 : index
    %494 = vector.load %arg1[%c1_168, %c1_169, %c0_170, %c0_171] : memref<5x5x64x128xbf16, #tpu.memory_space<vmem>>, vector<1x1x32x128xbf16>
    %495 = vector.shape_cast %494 : vector<1x1x32x128xbf16> to vector<32x128xbf16>
    %496 = arith.extf %495 : vector<32x128xbf16> to vector<32x128xf32>
    %497 = vector.broadcast %0 : f32 to vector<32x128xf32>
    %498 = arith.mulf %496, %497 : vector<32x128xf32>
    %499 = arith.addf %491, %498 : vector<32x128xf32>
    %500 = vector.broadcast %9 : f32 to vector<32x128xf32>
    %501 = arith.mulf %496, %500 : vector<32x128xf32>
    %502 = arith.addf %492, %501 : vector<32x128xf32>
    %503 = vector.broadcast %18 : f32 to vector<32x128xf32>
    %504 = arith.mulf %496, %503 : vector<32x128xf32>
    %505 = arith.addf %493, %504 : vector<32x128xf32>
    %c1_172 = arith.constant 1 : index
    %c2_173 = arith.constant 2 : index
    %c0_174 = arith.constant 0 : index
    %c0_175 = arith.constant 0 : index
    %506 = vector.load %arg1[%c1_172, %c2_173, %c0_174, %c0_175] : memref<5x5x64x128xbf16, #tpu.memory_space<vmem>>, vector<1x1x32x128xbf16>
    %507 = vector.shape_cast %506 : vector<1x1x32x128xbf16> to vector<32x128xbf16>
    %508 = arith.extf %507 : vector<32x128xbf16> to vector<32x128xf32>
    %509 = vector.broadcast %1 : f32 to vector<32x128xf32>
    %510 = arith.mulf %508, %509 : vector<32x128xf32>
    %511 = arith.addf %499, %510 : vector<32x128xf32>
    %512 = vector.broadcast %10 : f32 to vector<32x128xf32>
    %513 = arith.mulf %508, %512 : vector<32x128xf32>
    %514 = arith.addf %502, %513 : vector<32x128xf32>
    %515 = vector.broadcast %19 : f32 to vector<32x128xf32>
    %516 = arith.mulf %508, %515 : vector<32x128xf32>
    %517 = arith.addf %505, %516 : vector<32x128xf32>
    %c1_176 = arith.constant 1 : index
    %c3_177 = arith.constant 3 : index
    %c0_178 = arith.constant 0 : index
    %c0_179 = arith.constant 0 : index
    %518 = vector.load %arg1[%c1_176, %c3_177, %c0_178, %c0_179] : memref<5x5x64x128xbf16, #tpu.memory_space<vmem>>, vector<1x1x32x128xbf16>
    %519 = vector.shape_cast %518 : vector<1x1x32x128xbf16> to vector<32x128xbf16>
    %520 = arith.extf %519 : vector<32x128xbf16> to vector<32x128xf32>
    %521 = vector.broadcast %2 : f32 to vector<32x128xf32>
    %522 = arith.mulf %520, %521 : vector<32x128xf32>
    %523 = arith.addf %511, %522 : vector<32x128xf32>
    %524 = vector.broadcast %11 : f32 to vector<32x128xf32>
    %525 = arith.mulf %520, %524 : vector<32x128xf32>
    %526 = arith.addf %514, %525 : vector<32x128xf32>
    %527 = vector.broadcast %20 : f32 to vector<32x128xf32>
    %528 = arith.mulf %520, %527 : vector<32x128xf32>
    %529 = arith.addf %517, %528 : vector<32x128xf32>
    %c2_180 = arith.constant 2 : index
    %c1_181 = arith.constant 1 : index
    %c0_182 = arith.constant 0 : index
    %c0_183 = arith.constant 0 : index
    %530 = vector.load %arg1[%c2_180, %c1_181, %c0_182, %c0_183] : memref<5x5x64x128xbf16, #tpu.memory_space<vmem>>, vector<1x1x32x128xbf16>
    %531 = vector.shape_cast %530 : vector<1x1x32x128xbf16> to vector<32x128xbf16>
    %532 = arith.extf %531 : vector<32x128xbf16> to vector<32x128xf32>
    %533 = vector.broadcast %3 : f32 to vector<32x128xf32>
    %534 = arith.mulf %532, %533 : vector<32x128xf32>
    %535 = arith.addf %523, %534 : vector<32x128xf32>
    %536 = vector.broadcast %12 : f32 to vector<32x128xf32>
    %537 = arith.mulf %532, %536 : vector<32x128xf32>
    %538 = arith.addf %526, %537 : vector<32x128xf32>
    %539 = vector.broadcast %21 : f32 to vector<32x128xf32>
    %540 = arith.mulf %532, %539 : vector<32x128xf32>
    %541 = arith.addf %529, %540 : vector<32x128xf32>
    %c2_184 = arith.constant 2 : index
    %c2_185 = arith.constant 2 : index
    %c0_186 = arith.constant 0 : index
    %c0_187 = arith.constant 0 : index
    %542 = vector.load %arg1[%c2_184, %c2_185, %c0_186, %c0_187] : memref<5x5x64x128xbf16, #tpu.memory_space<vmem>>, vector<1x1x32x128xbf16>
    %543 = vector.shape_cast %542 : vector<1x1x32x128xbf16> to vector<32x128xbf16>
    %544 = arith.extf %543 : vector<32x128xbf16> to vector<32x128xf32>
    %545 = vector.broadcast %4 : f32 to vector<32x128xf32>
    %546 = arith.mulf %544, %545 : vector<32x128xf32>
    %547 = arith.addf %535, %546 : vector<32x128xf32>
    %548 = vector.broadcast %13 : f32 to vector<32x128xf32>
    %549 = arith.mulf %544, %548 : vector<32x128xf32>
    %550 = arith.addf %538, %549 : vector<32x128xf32>
    %551 = vector.broadcast %22 : f32 to vector<32x128xf32>
    %552 = arith.mulf %544, %551 : vector<32x128xf32>
    %553 = arith.addf %541, %552 : vector<32x128xf32>
    %c2_188 = arith.constant 2 : index
    %c3_189 = arith.constant 3 : index
    %c0_190 = arith.constant 0 : index
    %c0_191 = arith.constant 0 : index
    %554 = vector.load %arg1[%c2_188, %c3_189, %c0_190, %c0_191] : memref<5x5x64x128xbf16, #tpu.memory_space<vmem>>, vector<1x1x32x128xbf16>
    %555 = vector.shape_cast %554 : vector<1x1x32x128xbf16> to vector<32x128xbf16>
    %556 = arith.extf %555 : vector<32x128xbf16> to vector<32x128xf32>
    %557 = vector.broadcast %5 : f32 to vector<32x128xf32>
    %558 = arith.mulf %556, %557 : vector<32x128xf32>
    %559 = arith.addf %547, %558 : vector<32x128xf32>
    %560 = vector.broadcast %14 : f32 to vector<32x128xf32>
    %561 = arith.mulf %556, %560 : vector<32x128xf32>
    %562 = arith.addf %550, %561 : vector<32x128xf32>
    %563 = vector.broadcast %23 : f32 to vector<32x128xf32>
    %564 = arith.mulf %556, %563 : vector<32x128xf32>
    %565 = arith.addf %553, %564 : vector<32x128xf32>
    %c3_192 = arith.constant 3 : index
    %c1_193 = arith.constant 1 : index
    %c0_194 = arith.constant 0 : index
    %c0_195 = arith.constant 0 : index
    %566 = vector.load %arg1[%c3_192, %c1_193, %c0_194, %c0_195] : memref<5x5x64x128xbf16, #tpu.memory_space<vmem>>, vector<1x1x32x128xbf16>
    %567 = vector.shape_cast %566 : vector<1x1x32x128xbf16> to vector<32x128xbf16>
    %568 = arith.extf %567 : vector<32x128xbf16> to vector<32x128xf32>
    %569 = vector.broadcast %6 : f32 to vector<32x128xf32>
    %570 = arith.mulf %568, %569 : vector<32x128xf32>
    %571 = arith.addf %559, %570 : vector<32x128xf32>
    %572 = vector.broadcast %15 : f32 to vector<32x128xf32>
    %573 = arith.mulf %568, %572 : vector<32x128xf32>
    %574 = arith.addf %562, %573 : vector<32x128xf32>
    %575 = vector.broadcast %24 : f32 to vector<32x128xf32>
    %576 = arith.mulf %568, %575 : vector<32x128xf32>
    %577 = arith.addf %565, %576 : vector<32x128xf32>
    %c3_196 = arith.constant 3 : index
    %c2_197 = arith.constant 2 : index
    %c0_198 = arith.constant 0 : index
    %c0_199 = arith.constant 0 : index
    %578 = vector.load %arg1[%c3_196, %c2_197, %c0_198, %c0_199] : memref<5x5x64x128xbf16, #tpu.memory_space<vmem>>, vector<1x1x32x128xbf16>
    %579 = vector.shape_cast %578 : vector<1x1x32x128xbf16> to vector<32x128xbf16>
    %580 = arith.extf %579 : vector<32x128xbf16> to vector<32x128xf32>
    %581 = vector.broadcast %7 : f32 to vector<32x128xf32>
    %582 = arith.mulf %580, %581 : vector<32x128xf32>
    %583 = arith.addf %571, %582 : vector<32x128xf32>
    %584 = vector.broadcast %16 : f32 to vector<32x128xf32>
    %585 = arith.mulf %580, %584 : vector<32x128xf32>
    %586 = arith.addf %574, %585 : vector<32x128xf32>
    %587 = vector.broadcast %25 : f32 to vector<32x128xf32>
    %588 = arith.mulf %580, %587 : vector<32x128xf32>
    %589 = arith.addf %577, %588 : vector<32x128xf32>
    %c3_200 = arith.constant 3 : index
    %c3_201 = arith.constant 3 : index
    %c0_202 = arith.constant 0 : index
    %c0_203 = arith.constant 0 : index
    %590 = vector.load %arg1[%c3_200, %c3_201, %c0_202, %c0_203] : memref<5x5x64x128xbf16, #tpu.memory_space<vmem>>, vector<1x1x32x128xbf16>
    %591 = vector.shape_cast %590 : vector<1x1x32x128xbf16> to vector<32x128xbf16>
    %592 = arith.extf %591 : vector<32x128xbf16> to vector<32x128xf32>
    %593 = vector.broadcast %8 : f32 to vector<32x128xf32>
    %594 = arith.mulf %592, %593 : vector<32x128xf32>
    %595 = arith.addf %583, %594 : vector<32x128xf32>
    %596 = vector.broadcast %17 : f32 to vector<32x128xf32>
    %597 = arith.mulf %592, %596 : vector<32x128xf32>
    %598 = arith.addf %586, %597 : vector<32x128xf32>
    %599 = vector.broadcast %26 : f32 to vector<32x128xf32>
    %600 = arith.mulf %592, %599 : vector<32x128xf32>
    %601 = arith.addf %589, %600 : vector<32x128xf32>
    %602 = arith.maximumf %488, %595 : vector<32x128xf32>
    %603 = arith.maximumf %489, %598 : vector<32x128xf32>
    %604 = arith.maximumf %490, %601 : vector<32x128xf32>
    %cst_204 = arith.constant 0.000000e+00 : f32
    %605 = vector.broadcast %cst_204 : f32 to vector<32x128xf32>
    %cst_205 = arith.constant 0.000000e+00 : f32
    %606 = vector.broadcast %cst_205 : f32 to vector<32x128xf32>
    %cst_206 = arith.constant 0.000000e+00 : f32
    %607 = vector.broadcast %cst_206 : f32 to vector<32x128xf32>
    %c1_207 = arith.constant 1 : index
    %c2_208 = arith.constant 2 : index
    %c0_209 = arith.constant 0 : index
    %c0_210 = arith.constant 0 : index
    %608 = vector.load %arg1[%c1_207, %c2_208, %c0_209, %c0_210] : memref<5x5x64x128xbf16, #tpu.memory_space<vmem>>, vector<1x1x32x128xbf16>
    %609 = vector.shape_cast %608 : vector<1x1x32x128xbf16> to vector<32x128xbf16>
    %610 = arith.extf %609 : vector<32x128xbf16> to vector<32x128xf32>
    %611 = vector.broadcast %0 : f32 to vector<32x128xf32>
    %612 = arith.mulf %610, %611 : vector<32x128xf32>
    %613 = arith.addf %605, %612 : vector<32x128xf32>
    %614 = vector.broadcast %9 : f32 to vector<32x128xf32>
    %615 = arith.mulf %610, %614 : vector<32x128xf32>
    %616 = arith.addf %606, %615 : vector<32x128xf32>
    %617 = vector.broadcast %18 : f32 to vector<32x128xf32>
    %618 = arith.mulf %610, %617 : vector<32x128xf32>
    %619 = arith.addf %607, %618 : vector<32x128xf32>
    %c1_211 = arith.constant 1 : index
    %c3_212 = arith.constant 3 : index
    %c0_213 = arith.constant 0 : index
    %c0_214 = arith.constant 0 : index
    %620 = vector.load %arg1[%c1_211, %c3_212, %c0_213, %c0_214] : memref<5x5x64x128xbf16, #tpu.memory_space<vmem>>, vector<1x1x32x128xbf16>
    %621 = vector.shape_cast %620 : vector<1x1x32x128xbf16> to vector<32x128xbf16>
    %622 = arith.extf %621 : vector<32x128xbf16> to vector<32x128xf32>
    %623 = vector.broadcast %1 : f32 to vector<32x128xf32>
    %624 = arith.mulf %622, %623 : vector<32x128xf32>
    %625 = arith.addf %613, %624 : vector<32x128xf32>
    %626 = vector.broadcast %10 : f32 to vector<32x128xf32>
    %627 = arith.mulf %622, %626 : vector<32x128xf32>
    %628 = arith.addf %616, %627 : vector<32x128xf32>
    %629 = vector.broadcast %19 : f32 to vector<32x128xf32>
    %630 = arith.mulf %622, %629 : vector<32x128xf32>
    %631 = arith.addf %619, %630 : vector<32x128xf32>
    %c1_215 = arith.constant 1 : index
    %c4_216 = arith.constant 4 : index
    %c0_217 = arith.constant 0 : index
    %c0_218 = arith.constant 0 : index
    %632 = vector.load %arg1[%c1_215, %c4_216, %c0_217, %c0_218] : memref<5x5x64x128xbf16, #tpu.memory_space<vmem>>, vector<1x1x32x128xbf16>
    %633 = vector.shape_cast %632 : vector<1x1x32x128xbf16> to vector<32x128xbf16>
    %634 = arith.extf %633 : vector<32x128xbf16> to vector<32x128xf32>
    %635 = vector.broadcast %2 : f32 to vector<32x128xf32>
    %636 = arith.mulf %634, %635 : vector<32x128xf32>
    %637 = arith.addf %625, %636 : vector<32x128xf32>
    %638 = vector.broadcast %11 : f32 to vector<32x128xf32>
    %639 = arith.mulf %634, %638 : vector<32x128xf32>
    %640 = arith.addf %628, %639 : vector<32x128xf32>
    %641 = vector.broadcast %20 : f32 to vector<32x128xf32>
    %642 = arith.mulf %634, %641 : vector<32x128xf32>
    %643 = arith.addf %631, %642 : vector<32x128xf32>
    %c2_219 = arith.constant 2 : index
    %c2_220 = arith.constant 2 : index
    %c0_221 = arith.constant 0 : index
    %c0_222 = arith.constant 0 : index
    %644 = vector.load %arg1[%c2_219, %c2_220, %c0_221, %c0_222] : memref<5x5x64x128xbf16, #tpu.memory_space<vmem>>, vector<1x1x32x128xbf16>
    %645 = vector.shape_cast %644 : vector<1x1x32x128xbf16> to vector<32x128xbf16>
    %646 = arith.extf %645 : vector<32x128xbf16> to vector<32x128xf32>
    %647 = vector.broadcast %3 : f32 to vector<32x128xf32>
    %648 = arith.mulf %646, %647 : vector<32x128xf32>
    %649 = arith.addf %637, %648 : vector<32x128xf32>
    %650 = vector.broadcast %12 : f32 to vector<32x128xf32>
    %651 = arith.mulf %646, %650 : vector<32x128xf32>
    %652 = arith.addf %640, %651 : vector<32x128xf32>
    %653 = vector.broadcast %21 : f32 to vector<32x128xf32>
    %654 = arith.mulf %646, %653 : vector<32x128xf32>
    %655 = arith.addf %643, %654 : vector<32x128xf32>
    %c2_223 = arith.constant 2 : index
    %c3_224 = arith.constant 3 : index
    %c0_225 = arith.constant 0 : index
    %c0_226 = arith.constant 0 : index
    %656 = vector.load %arg1[%c2_223, %c3_224, %c0_225, %c0_226] : memref<5x5x64x128xbf16, #tpu.memory_space<vmem>>, vector<1x1x32x128xbf16>
    %657 = vector.shape_cast %656 : vector<1x1x32x128xbf16> to vector<32x128xbf16>
    %658 = arith.extf %657 : vector<32x128xbf16> to vector<32x128xf32>
    %659 = vector.broadcast %4 : f32 to vector<32x128xf32>
    %660 = arith.mulf %658, %659 : vector<32x128xf32>
    %661 = arith.addf %649, %660 : vector<32x128xf32>
    %662 = vector.broadcast %13 : f32 to vector<32x128xf32>
    %663 = arith.mulf %658, %662 : vector<32x128xf32>
    %664 = arith.addf %652, %663 : vector<32x128xf32>
    %665 = vector.broadcast %22 : f32 to vector<32x128xf32>
    %666 = arith.mulf %658, %665 : vector<32x128xf32>
    %667 = arith.addf %655, %666 : vector<32x128xf32>
    %c2_227 = arith.constant 2 : index
    %c4_228 = arith.constant 4 : index
    %c0_229 = arith.constant 0 : index
    %c0_230 = arith.constant 0 : index
    %668 = vector.load %arg1[%c2_227, %c4_228, %c0_229, %c0_230] : memref<5x5x64x128xbf16, #tpu.memory_space<vmem>>, vector<1x1x32x128xbf16>
    %669 = vector.shape_cast %668 : vector<1x1x32x128xbf16> to vector<32x128xbf16>
    %670 = arith.extf %669 : vector<32x128xbf16> to vector<32x128xf32>
    %671 = vector.broadcast %5 : f32 to vector<32x128xf32>
    %672 = arith.mulf %670, %671 : vector<32x128xf32>
    %673 = arith.addf %661, %672 : vector<32x128xf32>
    %674 = vector.broadcast %14 : f32 to vector<32x128xf32>
    %675 = arith.mulf %670, %674 : vector<32x128xf32>
    %676 = arith.addf %664, %675 : vector<32x128xf32>
    %677 = vector.broadcast %23 : f32 to vector<32x128xf32>
    %678 = arith.mulf %670, %677 : vector<32x128xf32>
    %679 = arith.addf %667, %678 : vector<32x128xf32>
    %c3_231 = arith.constant 3 : index
    %c2_232 = arith.constant 2 : index
    %c0_233 = arith.constant 0 : index
    %c0_234 = arith.constant 0 : index
    %680 = vector.load %arg1[%c3_231, %c2_232, %c0_233, %c0_234] : memref<5x5x64x128xbf16, #tpu.memory_space<vmem>>, vector<1x1x32x128xbf16>
    %681 = vector.shape_cast %680 : vector<1x1x32x128xbf16> to vector<32x128xbf16>
    %682 = arith.extf %681 : vector<32x128xbf16> to vector<32x128xf32>
    %683 = vector.broadcast %6 : f32 to vector<32x128xf32>
    %684 = arith.mulf %682, %683 : vector<32x128xf32>
    %685 = arith.addf %673, %684 : vector<32x128xf32>
    %686 = vector.broadcast %15 : f32 to vector<32x128xf32>
    %687 = arith.mulf %682, %686 : vector<32x128xf32>
    %688 = arith.addf %676, %687 : vector<32x128xf32>
    %689 = vector.broadcast %24 : f32 to vector<32x128xf32>
    %690 = arith.mulf %682, %689 : vector<32x128xf32>
    %691 = arith.addf %679, %690 : vector<32x128xf32>
    %c3_235 = arith.constant 3 : index
    %c3_236 = arith.constant 3 : index
    %c0_237 = arith.constant 0 : index
    %c0_238 = arith.constant 0 : index
    %692 = vector.load %arg1[%c3_235, %c3_236, %c0_237, %c0_238] : memref<5x5x64x128xbf16, #tpu.memory_space<vmem>>, vector<1x1x32x128xbf16>
    %693 = vector.shape_cast %692 : vector<1x1x32x128xbf16> to vector<32x128xbf16>
    %694 = arith.extf %693 : vector<32x128xbf16> to vector<32x128xf32>
    %695 = vector.broadcast %7 : f32 to vector<32x128xf32>
    %696 = arith.mulf %694, %695 : vector<32x128xf32>
    %697 = arith.addf %685, %696 : vector<32x128xf32>
    %698 = vector.broadcast %16 : f32 to vector<32x128xf32>
    %699 = arith.mulf %694, %698 : vector<32x128xf32>
    %700 = arith.addf %688, %699 : vector<32x128xf32>
    %701 = vector.broadcast %25 : f32 to vector<32x128xf32>
    %702 = arith.mulf %694, %701 : vector<32x128xf32>
    %703 = arith.addf %691, %702 : vector<32x128xf32>
    %c3_239 = arith.constant 3 : index
    %c4_240 = arith.constant 4 : index
    %c0_241 = arith.constant 0 : index
    %c0_242 = arith.constant 0 : index
    %704 = vector.load %arg1[%c3_239, %c4_240, %c0_241, %c0_242] : memref<5x5x64x128xbf16, #tpu.memory_space<vmem>>, vector<1x1x32x128xbf16>
    %705 = vector.shape_cast %704 : vector<1x1x32x128xbf16> to vector<32x128xbf16>
    %706 = arith.extf %705 : vector<32x128xbf16> to vector<32x128xf32>
    %707 = vector.broadcast %8 : f32 to vector<32x128xf32>
    %708 = arith.mulf %706, %707 : vector<32x128xf32>
    %709 = arith.addf %697, %708 : vector<32x128xf32>
    %710 = vector.broadcast %17 : f32 to vector<32x128xf32>
    %711 = arith.mulf %706, %710 : vector<32x128xf32>
    %712 = arith.addf %700, %711 : vector<32x128xf32>
    %713 = vector.broadcast %26 : f32 to vector<32x128xf32>
    %714 = arith.mulf %706, %713 : vector<32x128xf32>
    %715 = arith.addf %703, %714 : vector<32x128xf32>
    %716 = arith.maximumf %602, %709 : vector<32x128xf32>
    %717 = arith.maximumf %603, %712 : vector<32x128xf32>
    %718 = arith.maximumf %604, %715 : vector<32x128xf32>
    %cst_243 = arith.constant 0.000000e+00 : f32
    %719 = vector.broadcast %cst_243 : f32 to vector<32x128xf32>
    %cst_244 = arith.constant 0.000000e+00 : f32
    %720 = vector.broadcast %cst_244 : f32 to vector<32x128xf32>
    %cst_245 = arith.constant 0.000000e+00 : f32
    %721 = vector.broadcast %cst_245 : f32 to vector<32x128xf32>
    %c2_246 = arith.constant 2 : index
    %c0_247 = arith.constant 0 : index
    %c0_248 = arith.constant 0 : index
    %c0_249 = arith.constant 0 : index
    %722 = vector.load %arg1[%c2_246, %c0_247, %c0_248, %c0_249] : memref<5x5x64x128xbf16, #tpu.memory_space<vmem>>, vector<1x1x32x128xbf16>
    %723 = vector.shape_cast %722 : vector<1x1x32x128xbf16> to vector<32x128xbf16>
    %724 = arith.extf %723 : vector<32x128xbf16> to vector<32x128xf32>
    %725 = vector.broadcast %0 : f32 to vector<32x128xf32>
    %726 = arith.mulf %724, %725 : vector<32x128xf32>
    %727 = arith.addf %719, %726 : vector<32x128xf32>
    %728 = vector.broadcast %9 : f32 to vector<32x128xf32>
    %729 = arith.mulf %724, %728 : vector<32x128xf32>
    %730 = arith.addf %720, %729 : vector<32x128xf32>
    %731 = vector.broadcast %18 : f32 to vector<32x128xf32>
    %732 = arith.mulf %724, %731 : vector<32x128xf32>
    %733 = arith.addf %721, %732 : vector<32x128xf32>
    %c2_250 = arith.constant 2 : index
    %c1_251 = arith.constant 1 : index
    %c0_252 = arith.constant 0 : index
    %c0_253 = arith.constant 0 : index
    %734 = vector.load %arg1[%c2_250, %c1_251, %c0_252, %c0_253] : memref<5x5x64x128xbf16, #tpu.memory_space<vmem>>, vector<1x1x32x128xbf16>
    %735 = vector.shape_cast %734 : vector<1x1x32x128xbf16> to vector<32x128xbf16>
    %736 = arith.extf %735 : vector<32x128xbf16> to vector<32x128xf32>
    %737 = vector.broadcast %1 : f32 to vector<32x128xf32>
    %738 = arith.mulf %736, %737 : vector<32x128xf32>
    %739 = arith.addf %727, %738 : vector<32x128xf32>
    %740 = vector.broadcast %10 : f32 to vector<32x128xf32>
    %741 = arith.mulf %736, %740 : vector<32x128xf32>
    %742 = arith.addf %730, %741 : vector<32x128xf32>
    %743 = vector.broadcast %19 : f32 to vector<32x128xf32>
    %744 = arith.mulf %736, %743 : vector<32x128xf32>
    %745 = arith.addf %733, %744 : vector<32x128xf32>
    %c2_254 = arith.constant 2 : index
    %c2_255 = arith.constant 2 : index
    %c0_256 = arith.constant 0 : index
    %c0_257 = arith.constant 0 : index
    %746 = vector.load %arg1[%c2_254, %c2_255, %c0_256, %c0_257] : memref<5x5x64x128xbf16, #tpu.memory_space<vmem>>, vector<1x1x32x128xbf16>
    %747 = vector.shape_cast %746 : vector<1x1x32x128xbf16> to vector<32x128xbf16>
    %748 = arith.extf %747 : vector<32x128xbf16> to vector<32x128xf32>
    %749 = vector.broadcast %2 : f32 to vector<32x128xf32>
    %750 = arith.mulf %748, %749 : vector<32x128xf32>
    %751 = arith.addf %739, %750 : vector<32x128xf32>
    %752 = vector.broadcast %11 : f32 to vector<32x128xf32>
    %753 = arith.mulf %748, %752 : vector<32x128xf32>
    %754 = arith.addf %742, %753 : vector<32x128xf32>
    %755 = vector.broadcast %20 : f32 to vector<32x128xf32>
    %756 = arith.mulf %748, %755 : vector<32x128xf32>
    %757 = arith.addf %745, %756 : vector<32x128xf32>
    %c3_258 = arith.constant 3 : index
    %c0_259 = arith.constant 0 : index
    %c0_260 = arith.constant 0 : index
    %c0_261 = arith.constant 0 : index
    %758 = vector.load %arg1[%c3_258, %c0_259, %c0_260, %c0_261] : memref<5x5x64x128xbf16, #tpu.memory_space<vmem>>, vector<1x1x32x128xbf16>
    %759 = vector.shape_cast %758 : vector<1x1x32x128xbf16> to vector<32x128xbf16>
    %760 = arith.extf %759 : vector<32x128xbf16> to vector<32x128xf32>
    %761 = vector.broadcast %3 : f32 to vector<32x128xf32>
    %762 = arith.mulf %760, %761 : vector<32x128xf32>
    %763 = arith.addf %751, %762 : vector<32x128xf32>
    %764 = vector.broadcast %12 : f32 to vector<32x128xf32>
    %765 = arith.mulf %760, %764 : vector<32x128xf32>
    %766 = arith.addf %754, %765 : vector<32x128xf32>
    %767 = vector.broadcast %21 : f32 to vector<32x128xf32>
    %768 = arith.mulf %760, %767 : vector<32x128xf32>
    %769 = arith.addf %757, %768 : vector<32x128xf32>
    %c3_262 = arith.constant 3 : index
    %c1_263 = arith.constant 1 : index
    %c0_264 = arith.constant 0 : index
    %c0_265 = arith.constant 0 : index
    %770 = vector.load %arg1[%c3_262, %c1_263, %c0_264, %c0_265] : memref<5x5x64x128xbf16, #tpu.memory_space<vmem>>, vector<1x1x32x128xbf16>
    %771 = vector.shape_cast %770 : vector<1x1x32x128xbf16> to vector<32x128xbf16>
    %772 = arith.extf %771 : vector<32x128xbf16> to vector<32x128xf32>
    %773 = vector.broadcast %4 : f32 to vector<32x128xf32>
    %774 = arith.mulf %772, %773 : vector<32x128xf32>
    %775 = arith.addf %763, %774 : vector<32x128xf32>
    %776 = vector.broadcast %13 : f32 to vector<32x128xf32>
    %777 = arith.mulf %772, %776 : vector<32x128xf32>
    %778 = arith.addf %766, %777 : vector<32x128xf32>
    %779 = vector.broadcast %22 : f32 to vector<32x128xf32>
    %780 = arith.mulf %772, %779 : vector<32x128xf32>
    %781 = arith.addf %769, %780 : vector<32x128xf32>
    %c3_266 = arith.constant 3 : index
    %c2_267 = arith.constant 2 : index
    %c0_268 = arith.constant 0 : index
    %c0_269 = arith.constant 0 : index
    %782 = vector.load %arg1[%c3_266, %c2_267, %c0_268, %c0_269] : memref<5x5x64x128xbf16, #tpu.memory_space<vmem>>, vector<1x1x32x128xbf16>
    %783 = vector.shape_cast %782 : vector<1x1x32x128xbf16> to vector<32x128xbf16>
    %784 = arith.extf %783 : vector<32x128xbf16> to vector<32x128xf32>
    %785 = vector.broadcast %5 : f32 to vector<32x128xf32>
    %786 = arith.mulf %784, %785 : vector<32x128xf32>
    %787 = arith.addf %775, %786 : vector<32x128xf32>
    %788 = vector.broadcast %14 : f32 to vector<32x128xf32>
    %789 = arith.mulf %784, %788 : vector<32x128xf32>
    %790 = arith.addf %778, %789 : vector<32x128xf32>
    %791 = vector.broadcast %23 : f32 to vector<32x128xf32>
    %792 = arith.mulf %784, %791 : vector<32x128xf32>
    %793 = arith.addf %781, %792 : vector<32x128xf32>
    %c4_270 = arith.constant 4 : index
    %c0_271 = arith.constant 0 : index
    %c0_272 = arith.constant 0 : index
    %c0_273 = arith.constant 0 : index
    %794 = vector.load %arg1[%c4_270, %c0_271, %c0_272, %c0_273] : memref<5x5x64x128xbf16, #tpu.memory_space<vmem>>, vector<1x1x32x128xbf16>
    %795 = vector.shape_cast %794 : vector<1x1x32x128xbf16> to vector<32x128xbf16>
    %796 = arith.extf %795 : vector<32x128xbf16> to vector<32x128xf32>
    %797 = vector.broadcast %6 : f32 to vector<32x128xf32>
    %798 = arith.mulf %796, %797 : vector<32x128xf32>
    %799 = arith.addf %787, %798 : vector<32x128xf32>
    %800 = vector.broadcast %15 : f32 to vector<32x128xf32>
    %801 = arith.mulf %796, %800 : vector<32x128xf32>
    %802 = arith.addf %790, %801 : vector<32x128xf32>
    %803 = vector.broadcast %24 : f32 to vector<32x128xf32>
    %804 = arith.mulf %796, %803 : vector<32x128xf32>
    %805 = arith.addf %793, %804 : vector<32x128xf32>
    %c4_274 = arith.constant 4 : index
    %c1_275 = arith.constant 1 : index
    %c0_276 = arith.constant 0 : index
    %c0_277 = arith.constant 0 : index
    %806 = vector.load %arg1[%c4_274, %c1_275, %c0_276, %c0_277] : memref<5x5x64x128xbf16, #tpu.memory_space<vmem>>, vector<1x1x32x128xbf16>
    %807 = vector.shape_cast %806 : vector<1x1x32x128xbf16> to vector<32x128xbf16>
    %808 = arith.extf %807 : vector<32x128xbf16> to vector<32x128xf32>
    %809 = vector.broadcast %7 : f32 to vector<32x128xf32>
    %810 = arith.mulf %808, %809 : vector<32x128xf32>
    %811 = arith.addf %799, %810 : vector<32x128xf32>
    %812 = vector.broadcast %16 : f32 to vector<32x128xf32>
    %813 = arith.mulf %808, %812 : vector<32x128xf32>
    %814 = arith.addf %802, %813 : vector<32x128xf32>
    %815 = vector.broadcast %25 : f32 to vector<32x128xf32>
    %816 = arith.mulf %808, %815 : vector<32x128xf32>
    %817 = arith.addf %805, %816 : vector<32x128xf32>
    %c4_278 = arith.constant 4 : index
    %c2_279 = arith.constant 2 : index
    %c0_280 = arith.constant 0 : index
    %c0_281 = arith.constant 0 : index
    %818 = vector.load %arg1[%c4_278, %c2_279, %c0_280, %c0_281] : memref<5x5x64x128xbf16, #tpu.memory_space<vmem>>, vector<1x1x32x128xbf16>
    %819 = vector.shape_cast %818 : vector<1x1x32x128xbf16> to vector<32x128xbf16>
    %820 = arith.extf %819 : vector<32x128xbf16> to vector<32x128xf32>
    %821 = vector.broadcast %8 : f32 to vector<32x128xf32>
    %822 = arith.mulf %820, %821 : vector<32x128xf32>
    %823 = arith.addf %811, %822 : vector<32x128xf32>
    %824 = vector.broadcast %17 : f32 to vector<32x128xf32>
    %825 = arith.mulf %820, %824 : vector<32x128xf32>
    %826 = arith.addf %814, %825 : vector<32x128xf32>
    %827 = vector.broadcast %26 : f32 to vector<32x128xf32>
    %828 = arith.mulf %820, %827 : vector<32x128xf32>
    %829 = arith.addf %817, %828 : vector<32x128xf32>
    %830 = arith.maximumf %716, %823 : vector<32x128xf32>
    %831 = arith.maximumf %717, %826 : vector<32x128xf32>
    %832 = arith.maximumf %718, %829 : vector<32x128xf32>
    %cst_282 = arith.constant 0.000000e+00 : f32
    %833 = vector.broadcast %cst_282 : f32 to vector<32x128xf32>
    %cst_283 = arith.constant 0.000000e+00 : f32
    %834 = vector.broadcast %cst_283 : f32 to vector<32x128xf32>
    %cst_284 = arith.constant 0.000000e+00 : f32
    %835 = vector.broadcast %cst_284 : f32 to vector<32x128xf32>
    %c2_285 = arith.constant 2 : index
    %c1_286 = arith.constant 1 : index
    %c0_287 = arith.constant 0 : index
    %c0_288 = arith.constant 0 : index
    %836 = vector.load %arg1[%c2_285, %c1_286, %c0_287, %c0_288] : memref<5x5x64x128xbf16, #tpu.memory_space<vmem>>, vector<1x1x32x128xbf16>
    %837 = vector.shape_cast %836 : vector<1x1x32x128xbf16> to vector<32x128xbf16>
    %838 = arith.extf %837 : vector<32x128xbf16> to vector<32x128xf32>
    %839 = vector.broadcast %0 : f32 to vector<32x128xf32>
    %840 = arith.mulf %838, %839 : vector<32x128xf32>
    %841 = arith.addf %833, %840 : vector<32x128xf32>
    %842 = vector.broadcast %9 : f32 to vector<32x128xf32>
    %843 = arith.mulf %838, %842 : vector<32x128xf32>
    %844 = arith.addf %834, %843 : vector<32x128xf32>
    %845 = vector.broadcast %18 : f32 to vector<32x128xf32>
    %846 = arith.mulf %838, %845 : vector<32x128xf32>
    %847 = arith.addf %835, %846 : vector<32x128xf32>
    %c2_289 = arith.constant 2 : index
    %c2_290 = arith.constant 2 : index
    %c0_291 = arith.constant 0 : index
    %c0_292 = arith.constant 0 : index
    %848 = vector.load %arg1[%c2_289, %c2_290, %c0_291, %c0_292] : memref<5x5x64x128xbf16, #tpu.memory_space<vmem>>, vector<1x1x32x128xbf16>
    %849 = vector.shape_cast %848 : vector<1x1x32x128xbf16> to vector<32x128xbf16>
    %850 = arith.extf %849 : vector<32x128xbf16> to vector<32x128xf32>
    %851 = vector.broadcast %1 : f32 to vector<32x128xf32>
    %852 = arith.mulf %850, %851 : vector<32x128xf32>
    %853 = arith.addf %841, %852 : vector<32x128xf32>
    %854 = vector.broadcast %10 : f32 to vector<32x128xf32>
    %855 = arith.mulf %850, %854 : vector<32x128xf32>
    %856 = arith.addf %844, %855 : vector<32x128xf32>
    %857 = vector.broadcast %19 : f32 to vector<32x128xf32>
    %858 = arith.mulf %850, %857 : vector<32x128xf32>
    %859 = arith.addf %847, %858 : vector<32x128xf32>
    %c2_293 = arith.constant 2 : index
    %c3_294 = arith.constant 3 : index
    %c0_295 = arith.constant 0 : index
    %c0_296 = arith.constant 0 : index
    %860 = vector.load %arg1[%c2_293, %c3_294, %c0_295, %c0_296] : memref<5x5x64x128xbf16, #tpu.memory_space<vmem>>, vector<1x1x32x128xbf16>
    %861 = vector.shape_cast %860 : vector<1x1x32x128xbf16> to vector<32x128xbf16>
    %862 = arith.extf %861 : vector<32x128xbf16> to vector<32x128xf32>
    %863 = vector.broadcast %2 : f32 to vector<32x128xf32>
    %864 = arith.mulf %862, %863 : vector<32x128xf32>
    %865 = arith.addf %853, %864 : vector<32x128xf32>
    %866 = vector.broadcast %11 : f32 to vector<32x128xf32>
    %867 = arith.mulf %862, %866 : vector<32x128xf32>
    %868 = arith.addf %856, %867 : vector<32x128xf32>
    %869 = vector.broadcast %20 : f32 to vector<32x128xf32>
    %870 = arith.mulf %862, %869 : vector<32x128xf32>
    %871 = arith.addf %859, %870 : vector<32x128xf32>
    %c3_297 = arith.constant 3 : index
    %c1_298 = arith.constant 1 : index
    %c0_299 = arith.constant 0 : index
    %c0_300 = arith.constant 0 : index
    %872 = vector.load %arg1[%c3_297, %c1_298, %c0_299, %c0_300] : memref<5x5x64x128xbf16, #tpu.memory_space<vmem>>, vector<1x1x32x128xbf16>
    %873 = vector.shape_cast %872 : vector<1x1x32x128xbf16> to vector<32x128xbf16>
    %874 = arith.extf %873 : vector<32x128xbf16> to vector<32x128xf32>
    %875 = vector.broadcast %3 : f32 to vector<32x128xf32>
    %876 = arith.mulf %874, %875 : vector<32x128xf32>
    %877 = arith.addf %865, %876 : vector<32x128xf32>
    %878 = vector.broadcast %12 : f32 to vector<32x128xf32>
    %879 = arith.mulf %874, %878 : vector<32x128xf32>
    %880 = arith.addf %868, %879 : vector<32x128xf32>
    %881 = vector.broadcast %21 : f32 to vector<32x128xf32>
    %882 = arith.mulf %874, %881 : vector<32x128xf32>
    %883 = arith.addf %871, %882 : vector<32x128xf32>
    %c3_301 = arith.constant 3 : index
    %c2_302 = arith.constant 2 : index
    %c0_303 = arith.constant 0 : index
    %c0_304 = arith.constant 0 : index
    %884 = vector.load %arg1[%c3_301, %c2_302, %c0_303, %c0_304] : memref<5x5x64x128xbf16, #tpu.memory_space<vmem>>, vector<1x1x32x128xbf16>
    %885 = vector.shape_cast %884 : vector<1x1x32x128xbf16> to vector<32x128xbf16>
    %886 = arith.extf %885 : vector<32x128xbf16> to vector<32x128xf32>
    %887 = vector.broadcast %4 : f32 to vector<32x128xf32>
    %888 = arith.mulf %886, %887 : vector<32x128xf32>
    %889 = arith.addf %877, %888 : vector<32x128xf32>
    %890 = vector.broadcast %13 : f32 to vector<32x128xf32>
    %891 = arith.mulf %886, %890 : vector<32x128xf32>
    %892 = arith.addf %880, %891 : vector<32x128xf32>
    %893 = vector.broadcast %22 : f32 to vector<32x128xf32>
    %894 = arith.mulf %886, %893 : vector<32x128xf32>
    %895 = arith.addf %883, %894 : vector<32x128xf32>
    %c3_305 = arith.constant 3 : index
    %c3_306 = arith.constant 3 : index
    %c0_307 = arith.constant 0 : index
    %c0_308 = arith.constant 0 : index
    %896 = vector.load %arg1[%c3_305, %c3_306, %c0_307, %c0_308] : memref<5x5x64x128xbf16, #tpu.memory_space<vmem>>, vector<1x1x32x128xbf16>
    %897 = vector.shape_cast %896 : vector<1x1x32x128xbf16> to vector<32x128xbf16>
    %898 = arith.extf %897 : vector<32x128xbf16> to vector<32x128xf32>
    %899 = vector.broadcast %5 : f32 to vector<32x128xf32>
    %900 = arith.mulf %898, %899 : vector<32x128xf32>
    %901 = arith.addf %889, %900 : vector<32x128xf32>
    %902 = vector.broadcast %14 : f32 to vector<32x128xf32>
    %903 = arith.mulf %898, %902 : vector<32x128xf32>
    %904 = arith.addf %892, %903 : vector<32x128xf32>
    %905 = vector.broadcast %23 : f32 to vector<32x128xf32>
    %906 = arith.mulf %898, %905 : vector<32x128xf32>
    %907 = arith.addf %895, %906 : vector<32x128xf32>
    %c4_309 = arith.constant 4 : index
    %c1_310 = arith.constant 1 : index
    %c0_311 = arith.constant 0 : index
    %c0_312 = arith.constant 0 : index
    %908 = vector.load %arg1[%c4_309, %c1_310, %c0_311, %c0_312] : memref<5x5x64x128xbf16, #tpu.memory_space<vmem>>, vector<1x1x32x128xbf16>
    %909 = vector.shape_cast %908 : vector<1x1x32x128xbf16> to vector<32x128xbf16>
    %910 = arith.extf %909 : vector<32x128xbf16> to vector<32x128xf32>
    %911 = vector.broadcast %6 : f32 to vector<32x128xf32>
    %912 = arith.mulf %910, %911 : vector<32x128xf32>
    %913 = arith.addf %901, %912 : vector<32x128xf32>
    %914 = vector.broadcast %15 : f32 to vector<32x128xf32>
    %915 = arith.mulf %910, %914 : vector<32x128xf32>
    %916 = arith.addf %904, %915 : vector<32x128xf32>
    %917 = vector.broadcast %24 : f32 to vector<32x128xf32>
    %918 = arith.mulf %910, %917 : vector<32x128xf32>
    %919 = arith.addf %907, %918 : vector<32x128xf32>
    %c4_313 = arith.constant 4 : index
    %c2_314 = arith.constant 2 : index
    %c0_315 = arith.constant 0 : index
    %c0_316 = arith.constant 0 : index
    %920 = vector.load %arg1[%c4_313, %c2_314, %c0_315, %c0_316] : memref<5x5x64x128xbf16, #tpu.memory_space<vmem>>, vector<1x1x32x128xbf16>
    %921 = vector.shape_cast %920 : vector<1x1x32x128xbf16> to vector<32x128xbf16>
    %922 = arith.extf %921 : vector<32x128xbf16> to vector<32x128xf32>
    %923 = vector.broadcast %7 : f32 to vector<32x128xf32>
    %924 = arith.mulf %922, %923 : vector<32x128xf32>
    %925 = arith.addf %913, %924 : vector<32x128xf32>
    %926 = vector.broadcast %16 : f32 to vector<32x128xf32>
    %927 = arith.mulf %922, %926 : vector<32x128xf32>
    %928 = arith.addf %916, %927 : vector<32x128xf32>
    %929 = vector.broadcast %25 : f32 to vector<32x128xf32>
    %930 = arith.mulf %922, %929 : vector<32x128xf32>
    %931 = arith.addf %919, %930 : vector<32x128xf32>
    %c4_317 = arith.constant 4 : index
    %c3_318 = arith.constant 3 : index
    %c0_319 = arith.constant 0 : index
    %c0_320 = arith.constant 0 : index
    %932 = vector.load %arg1[%c4_317, %c3_318, %c0_319, %c0_320] : memref<5x5x64x128xbf16, #tpu.memory_space<vmem>>, vector<1x1x32x128xbf16>
    %933 = vector.shape_cast %932 : vector<1x1x32x128xbf16> to vector<32x128xbf16>
    %934 = arith.extf %933 : vector<32x128xbf16> to vector<32x128xf32>
    %935 = vector.broadcast %8 : f32 to vector<32x128xf32>
    %936 = arith.mulf %934, %935 : vector<32x128xf32>
    %937 = arith.addf %925, %936 : vector<32x128xf32>
    %938 = vector.broadcast %17 : f32 to vector<32x128xf32>
    %939 = arith.mulf %934, %938 : vector<32x128xf32>
    %940 = arith.addf %928, %939 : vector<32x128xf32>
    %941 = vector.broadcast %26 : f32 to vector<32x128xf32>
    %942 = arith.mulf %934, %941 : vector<32x128xf32>
    %943 = arith.addf %931, %942 : vector<32x128xf32>
    %944 = arith.maximumf %830, %937 : vector<32x128xf32>
    %945 = arith.maximumf %831, %940 : vector<32x128xf32>
    %946 = arith.maximumf %832, %943 : vector<32x128xf32>
    %cst_321 = arith.constant 0.000000e+00 : f32
    %947 = vector.broadcast %cst_321 : f32 to vector<32x128xf32>
    %cst_322 = arith.constant 0.000000e+00 : f32
    %948 = vector.broadcast %cst_322 : f32 to vector<32x128xf32>
    %cst_323 = arith.constant 0.000000e+00 : f32
    %949 = vector.broadcast %cst_323 : f32 to vector<32x128xf32>
    %c2_324 = arith.constant 2 : index
    %c2_325 = arith.constant 2 : index
    %c0_326 = arith.constant 0 : index
    %c0_327 = arith.constant 0 : index
    %950 = vector.load %arg1[%c2_324, %c2_325, %c0_326, %c0_327] : memref<5x5x64x128xbf16, #tpu.memory_space<vmem>>, vector<1x1x32x128xbf16>
    %951 = vector.shape_cast %950 : vector<1x1x32x128xbf16> to vector<32x128xbf16>
    %952 = arith.extf %951 : vector<32x128xbf16> to vector<32x128xf32>
    %953 = vector.broadcast %0 : f32 to vector<32x128xf32>
    %954 = arith.mulf %952, %953 : vector<32x128xf32>
    %955 = arith.addf %947, %954 : vector<32x128xf32>
    %956 = vector.broadcast %9 : f32 to vector<32x128xf32>
    %957 = arith.mulf %952, %956 : vector<32x128xf32>
    %958 = arith.addf %948, %957 : vector<32x128xf32>
    %959 = vector.broadcast %18 : f32 to vector<32x128xf32>
    %960 = arith.mulf %952, %959 : vector<32x128xf32>
    %961 = arith.addf %949, %960 : vector<32x128xf32>
    %c2_328 = arith.constant 2 : index
    %c3_329 = arith.constant 3 : index
    %c0_330 = arith.constant 0 : index
    %c0_331 = arith.constant 0 : index
    %962 = vector.load %arg1[%c2_328, %c3_329, %c0_330, %c0_331] : memref<5x5x64x128xbf16, #tpu.memory_space<vmem>>, vector<1x1x32x128xbf16>
    %963 = vector.shape_cast %962 : vector<1x1x32x128xbf16> to vector<32x128xbf16>
    %964 = arith.extf %963 : vector<32x128xbf16> to vector<32x128xf32>
    %965 = vector.broadcast %1 : f32 to vector<32x128xf32>
    %966 = arith.mulf %964, %965 : vector<32x128xf32>
    %967 = arith.addf %955, %966 : vector<32x128xf32>
    %968 = vector.broadcast %10 : f32 to vector<32x128xf32>
    %969 = arith.mulf %964, %968 : vector<32x128xf32>
    %970 = arith.addf %958, %969 : vector<32x128xf32>
    %971 = vector.broadcast %19 : f32 to vector<32x128xf32>
    %972 = arith.mulf %964, %971 : vector<32x128xf32>
    %973 = arith.addf %961, %972 : vector<32x128xf32>
    %c2_332 = arith.constant 2 : index
    %c4_333 = arith.constant 4 : index
    %c0_334 = arith.constant 0 : index
    %c0_335 = arith.constant 0 : index
    %974 = vector.load %arg1[%c2_332, %c4_333, %c0_334, %c0_335] : memref<5x5x64x128xbf16, #tpu.memory_space<vmem>>, vector<1x1x32x128xbf16>
    %975 = vector.shape_cast %974 : vector<1x1x32x128xbf16> to vector<32x128xbf16>
    %976 = arith.extf %975 : vector<32x128xbf16> to vector<32x128xf32>
    %977 = vector.broadcast %2 : f32 to vector<32x128xf32>
    %978 = arith.mulf %976, %977 : vector<32x128xf32>
    %979 = arith.addf %967, %978 : vector<32x128xf32>
    %980 = vector.broadcast %11 : f32 to vector<32x128xf32>
    %981 = arith.mulf %976, %980 : vector<32x128xf32>
    %982 = arith.addf %970, %981 : vector<32x128xf32>
    %983 = vector.broadcast %20 : f32 to vector<32x128xf32>
    %984 = arith.mulf %976, %983 : vector<32x128xf32>
    %985 = arith.addf %973, %984 : vector<32x128xf32>
    %c3_336 = arith.constant 3 : index
    %c2_337 = arith.constant 2 : index
    %c0_338 = arith.constant 0 : index
    %c0_339 = arith.constant 0 : index
    %986 = vector.load %arg1[%c3_336, %c2_337, %c0_338, %c0_339] : memref<5x5x64x128xbf16, #tpu.memory_space<vmem>>, vector<1x1x32x128xbf16>
    %987 = vector.shape_cast %986 : vector<1x1x32x128xbf16> to vector<32x128xbf16>
    %988 = arith.extf %987 : vector<32x128xbf16> to vector<32x128xf32>
    %989 = vector.broadcast %3 : f32 to vector<32x128xf32>
    %990 = arith.mulf %988, %989 : vector<32x128xf32>
    %991 = arith.addf %979, %990 : vector<32x128xf32>
    %992 = vector.broadcast %12 : f32 to vector<32x128xf32>
    %993 = arith.mulf %988, %992 : vector<32x128xf32>
    %994 = arith.addf %982, %993 : vector<32x128xf32>
    %995 = vector.broadcast %21 : f32 to vector<32x128xf32>
    %996 = arith.mulf %988, %995 : vector<32x128xf32>
    %997 = arith.addf %985, %996 : vector<32x128xf32>
    %c3_340 = arith.constant 3 : index
    %c3_341 = arith.constant 3 : index
    %c0_342 = arith.constant 0 : index
    %c0_343 = arith.constant 0 : index
    %998 = vector.load %arg1[%c3_340, %c3_341, %c0_342, %c0_343] : memref<5x5x64x128xbf16, #tpu.memory_space<vmem>>, vector<1x1x32x128xbf16>
    %999 = vector.shape_cast %998 : vector<1x1x32x128xbf16> to vector<32x128xbf16>
    %1000 = arith.extf %999 : vector<32x128xbf16> to vector<32x128xf32>
    %1001 = vector.broadcast %4 : f32 to vector<32x128xf32>
    %1002 = arith.mulf %1000, %1001 : vector<32x128xf32>
    %1003 = arith.addf %991, %1002 : vector<32x128xf32>
    %1004 = vector.broadcast %13 : f32 to vector<32x128xf32>
    %1005 = arith.mulf %1000, %1004 : vector<32x128xf32>
    %1006 = arith.addf %994, %1005 : vector<32x128xf32>
    %1007 = vector.broadcast %22 : f32 to vector<32x128xf32>
    %1008 = arith.mulf %1000, %1007 : vector<32x128xf32>
    %1009 = arith.addf %997, %1008 : vector<32x128xf32>
    %c3_344 = arith.constant 3 : index
    %c4_345 = arith.constant 4 : index
    %c0_346 = arith.constant 0 : index
    %c0_347 = arith.constant 0 : index
    %1010 = vector.load %arg1[%c3_344, %c4_345, %c0_346, %c0_347] : memref<5x5x64x128xbf16, #tpu.memory_space<vmem>>, vector<1x1x32x128xbf16>
    %1011 = vector.shape_cast %1010 : vector<1x1x32x128xbf16> to vector<32x128xbf16>
    %1012 = arith.extf %1011 : vector<32x128xbf16> to vector<32x128xf32>
    %1013 = vector.broadcast %5 : f32 to vector<32x128xf32>
    %1014 = arith.mulf %1012, %1013 : vector<32x128xf32>
    %1015 = arith.addf %1003, %1014 : vector<32x128xf32>
    %1016 = vector.broadcast %14 : f32 to vector<32x128xf32>
    %1017 = arith.mulf %1012, %1016 : vector<32x128xf32>
    %1018 = arith.addf %1006, %1017 : vector<32x128xf32>
    %1019 = vector.broadcast %23 : f32 to vector<32x128xf32>
    %1020 = arith.mulf %1012, %1019 : vector<32x128xf32>
    %1021 = arith.addf %1009, %1020 : vector<32x128xf32>
    %c4_348 = arith.constant 4 : index
    %c2_349 = arith.constant 2 : index
    %c0_350 = arith.constant 0 : index
    %c0_351 = arith.constant 0 : index
    %1022 = vector.load %arg1[%c4_348, %c2_349, %c0_350, %c0_351] : memref<5x5x64x128xbf16, #tpu.memory_space<vmem>>, vector<1x1x32x128xbf16>
    %1023 = vector.shape_cast %1022 : vector<1x1x32x128xbf16> to vector<32x128xbf16>
    %1024 = arith.extf %1023 : vector<32x128xbf16> to vector<32x128xf32>
    %1025 = vector.broadcast %6 : f32 to vector<32x128xf32>
    %1026 = arith.mulf %1024, %1025 : vector<32x128xf32>
    %1027 = arith.addf %1015, %1026 : vector<32x128xf32>
    %1028 = vector.broadcast %15 : f32 to vector<32x128xf32>
    %1029 = arith.mulf %1024, %1028 : vector<32x128xf32>
    %1030 = arith.addf %1018, %1029 : vector<32x128xf32>
    %1031 = vector.broadcast %24 : f32 to vector<32x128xf32>
    %1032 = arith.mulf %1024, %1031 : vector<32x128xf32>
    %1033 = arith.addf %1021, %1032 : vector<32x128xf32>
    %c4_352 = arith.constant 4 : index
    %c3_353 = arith.constant 3 : index
    %c0_354 = arith.constant 0 : index
    %c0_355 = arith.constant 0 : index
    %1034 = vector.load %arg1[%c4_352, %c3_353, %c0_354, %c0_355] : memref<5x5x64x128xbf16, #tpu.memory_space<vmem>>, vector<1x1x32x128xbf16>
    %1035 = vector.shape_cast %1034 : vector<1x1x32x128xbf16> to vector<32x128xbf16>
    %1036 = arith.extf %1035 : vector<32x128xbf16> to vector<32x128xf32>
    %1037 = vector.broadcast %7 : f32 to vector<32x128xf32>
    %1038 = arith.mulf %1036, %1037 : vector<32x128xf32>
    %1039 = arith.addf %1027, %1038 : vector<32x128xf32>
    %1040 = vector.broadcast %16 : f32 to vector<32x128xf32>
    %1041 = arith.mulf %1036, %1040 : vector<32x128xf32>
    %1042 = arith.addf %1030, %1041 : vector<32x128xf32>
    %1043 = vector.broadcast %25 : f32 to vector<32x128xf32>
    %1044 = arith.mulf %1036, %1043 : vector<32x128xf32>
    %1045 = arith.addf %1033, %1044 : vector<32x128xf32>
    %c4_356 = arith.constant 4 : index
    %c4_357 = arith.constant 4 : index
    %c0_358 = arith.constant 0 : index
    %c0_359 = arith.constant 0 : index
    %1046 = vector.load %arg1[%c4_356, %c4_357, %c0_358, %c0_359] : memref<5x5x64x128xbf16, #tpu.memory_space<vmem>>, vector<1x1x32x128xbf16>
    %1047 = vector.shape_cast %1046 : vector<1x1x32x128xbf16> to vector<32x128xbf16>
    %1048 = arith.extf %1047 : vector<32x128xbf16> to vector<32x128xf32>
    %1049 = vector.broadcast %8 : f32 to vector<32x128xf32>
    %1050 = arith.mulf %1048, %1049 : vector<32x128xf32>
    %1051 = arith.addf %1039, %1050 : vector<32x128xf32>
    %1052 = vector.broadcast %17 : f32 to vector<32x128xf32>
    %1053 = arith.mulf %1048, %1052 : vector<32x128xf32>
    %1054 = arith.addf %1042, %1053 : vector<32x128xf32>
    %1055 = vector.broadcast %26 : f32 to vector<32x128xf32>
    %1056 = arith.mulf %1048, %1055 : vector<32x128xf32>
    %1057 = arith.addf %1045, %1056 : vector<32x128xf32>
    %1058 = arith.maximumf %944, %1051 : vector<32x128xf32>
    %1059 = arith.maximumf %945, %1054 : vector<32x128xf32>
    %1060 = arith.maximumf %946, %1057 : vector<32x128xf32>
    %1061 = vector.broadcast %27 : f32 to vector<32x128xf32>
    %1062 = arith.addf %1058, %1061 : vector<32x128xf32>
    %cst_360 = arith.constant 0.000000e+00 : f32
    %1063 = vector.broadcast %cst_360 : f32 to vector<32x128xf32>
    %1064 = arith.maximumf %1062, %1063 : vector<32x128xf32>
    %1065 = vector.broadcast %28 : f32 to vector<32x128xf32>
    %1066 = arith.addf %1059, %1065 : vector<32x128xf32>
    %cst_361 = arith.constant 0.000000e+00 : f32
    %1067 = vector.broadcast %cst_361 : f32 to vector<32x128xf32>
    %1068 = arith.maximumf %1066, %1067 : vector<32x128xf32>
    %1069 = vector.broadcast %29 : f32 to vector<32x128xf32>
    %1070 = arith.addf %1060, %1069 : vector<32x128xf32>
    %cst_362 = arith.constant 0.000000e+00 : f32
    %1071 = vector.broadcast %cst_362 : f32 to vector<32x128xf32>
    %1072 = arith.maximumf %1070, %1071 : vector<32x128xf32>
    %cst_363 = arith.constant 0xFF800000 : f32
    %1073 = vector.broadcast %cst_363 : f32 to vector<32x128xf32>
    %cst_364 = arith.constant 0xFF800000 : f32
    %1074 = vector.broadcast %cst_364 : f32 to vector<32x128xf32>
    %cst_365 = arith.constant 0xFF800000 : f32
    %1075 = vector.broadcast %cst_365 : f32 to vector<32x128xf32>
    %cst_366 = arith.constant 0.000000e+00 : f32
    %1076 = vector.broadcast %cst_366 : f32 to vector<32x128xf32>
    %cst_367 = arith.constant 0.000000e+00 : f32
    %1077 = vector.broadcast %cst_367 : f32 to vector<32x128xf32>
    %cst_368 = arith.constant 0.000000e+00 : f32
    %1078 = vector.broadcast %cst_368 : f32 to vector<32x128xf32>
    %c0_369 = arith.constant 0 : index
    %c0_370 = arith.constant 0 : index
    %c32 = arith.constant 32 : index
    %c0_371 = arith.constant 0 : index
    %1079 = vector.load %arg1[%c0_369, %c0_370, %c32, %c0_371] : memref<5x5x64x128xbf16, #tpu.memory_space<vmem>>, vector<1x1x32x128xbf16>
    %1080 = vector.shape_cast %1079 : vector<1x1x32x128xbf16> to vector<32x128xbf16>
    %1081 = arith.extf %1080 : vector<32x128xbf16> to vector<32x128xf32>
    %1082 = vector.broadcast %0 : f32 to vector<32x128xf32>
    %1083 = arith.mulf %1081, %1082 : vector<32x128xf32>
    %1084 = arith.addf %1076, %1083 : vector<32x128xf32>
    %1085 = vector.broadcast %9 : f32 to vector<32x128xf32>
    %1086 = arith.mulf %1081, %1085 : vector<32x128xf32>
    %1087 = arith.addf %1077, %1086 : vector<32x128xf32>
    %1088 = vector.broadcast %18 : f32 to vector<32x128xf32>
    %1089 = arith.mulf %1081, %1088 : vector<32x128xf32>
    %1090 = arith.addf %1078, %1089 : vector<32x128xf32>
    %c0_372 = arith.constant 0 : index
    %c1_373 = arith.constant 1 : index
    %c32_374 = arith.constant 32 : index
    %c0_375 = arith.constant 0 : index
    %1091 = vector.load %arg1[%c0_372, %c1_373, %c32_374, %c0_375] : memref<5x5x64x128xbf16, #tpu.memory_space<vmem>>, vector<1x1x32x128xbf16>
    %1092 = vector.shape_cast %1091 : vector<1x1x32x128xbf16> to vector<32x128xbf16>
    %1093 = arith.extf %1092 : vector<32x128xbf16> to vector<32x128xf32>
    %1094 = vector.broadcast %1 : f32 to vector<32x128xf32>
    %1095 = arith.mulf %1093, %1094 : vector<32x128xf32>
    %1096 = arith.addf %1084, %1095 : vector<32x128xf32>
    %1097 = vector.broadcast %10 : f32 to vector<32x128xf32>
    %1098 = arith.mulf %1093, %1097 : vector<32x128xf32>
    %1099 = arith.addf %1087, %1098 : vector<32x128xf32>
    %1100 = vector.broadcast %19 : f32 to vector<32x128xf32>
    %1101 = arith.mulf %1093, %1100 : vector<32x128xf32>
    %1102 = arith.addf %1090, %1101 : vector<32x128xf32>
    %c0_376 = arith.constant 0 : index
    %c2_377 = arith.constant 2 : index
    %c32_378 = arith.constant 32 : index
    %c0_379 = arith.constant 0 : index
    %1103 = vector.load %arg1[%c0_376, %c2_377, %c32_378, %c0_379] : memref<5x5x64x128xbf16, #tpu.memory_space<vmem>>, vector<1x1x32x128xbf16>
    %1104 = vector.shape_cast %1103 : vector<1x1x32x128xbf16> to vector<32x128xbf16>
    %1105 = arith.extf %1104 : vector<32x128xbf16> to vector<32x128xf32>
    %1106 = vector.broadcast %2 : f32 to vector<32x128xf32>
    %1107 = arith.mulf %1105, %1106 : vector<32x128xf32>
    %1108 = arith.addf %1096, %1107 : vector<32x128xf32>
    %1109 = vector.broadcast %11 : f32 to vector<32x128xf32>
    %1110 = arith.mulf %1105, %1109 : vector<32x128xf32>
    %1111 = arith.addf %1099, %1110 : vector<32x128xf32>
    %1112 = vector.broadcast %20 : f32 to vector<32x128xf32>
    %1113 = arith.mulf %1105, %1112 : vector<32x128xf32>
    %1114 = arith.addf %1102, %1113 : vector<32x128xf32>
    %c1_380 = arith.constant 1 : index
    %c0_381 = arith.constant 0 : index
    %c32_382 = arith.constant 32 : index
    %c0_383 = arith.constant 0 : index
    %1115 = vector.load %arg1[%c1_380, %c0_381, %c32_382, %c0_383] : memref<5x5x64x128xbf16, #tpu.memory_space<vmem>>, vector<1x1x32x128xbf16>
    %1116 = vector.shape_cast %1115 : vector<1x1x32x128xbf16> to vector<32x128xbf16>
    %1117 = arith.extf %1116 : vector<32x128xbf16> to vector<32x128xf32>
    %1118 = vector.broadcast %3 : f32 to vector<32x128xf32>
    %1119 = arith.mulf %1117, %1118 : vector<32x128xf32>
    %1120 = arith.addf %1108, %1119 : vector<32x128xf32>
    %1121 = vector.broadcast %12 : f32 to vector<32x128xf32>
    %1122 = arith.mulf %1117, %1121 : vector<32x128xf32>
    %1123 = arith.addf %1111, %1122 : vector<32x128xf32>
    %1124 = vector.broadcast %21 : f32 to vector<32x128xf32>
    %1125 = arith.mulf %1117, %1124 : vector<32x128xf32>
    %1126 = arith.addf %1114, %1125 : vector<32x128xf32>
    %c1_384 = arith.constant 1 : index
    %c1_385 = arith.constant 1 : index
    %c32_386 = arith.constant 32 : index
    %c0_387 = arith.constant 0 : index
    %1127 = vector.load %arg1[%c1_384, %c1_385, %c32_386, %c0_387] : memref<5x5x64x128xbf16, #tpu.memory_space<vmem>>, vector<1x1x32x128xbf16>
    %1128 = vector.shape_cast %1127 : vector<1x1x32x128xbf16> to vector<32x128xbf16>
    %1129 = arith.extf %1128 : vector<32x128xbf16> to vector<32x128xf32>
    %1130 = vector.broadcast %4 : f32 to vector<32x128xf32>
    %1131 = arith.mulf %1129, %1130 : vector<32x128xf32>
    %1132 = arith.addf %1120, %1131 : vector<32x128xf32>
    %1133 = vector.broadcast %13 : f32 to vector<32x128xf32>
    %1134 = arith.mulf %1129, %1133 : vector<32x128xf32>
    %1135 = arith.addf %1123, %1134 : vector<32x128xf32>
    %1136 = vector.broadcast %22 : f32 to vector<32x128xf32>
    %1137 = arith.mulf %1129, %1136 : vector<32x128xf32>
    %1138 = arith.addf %1126, %1137 : vector<32x128xf32>
    %c1_388 = arith.constant 1 : index
    %c2_389 = arith.constant 2 : index
    %c32_390 = arith.constant 32 : index
    %c0_391 = arith.constant 0 : index
    %1139 = vector.load %arg1[%c1_388, %c2_389, %c32_390, %c0_391] : memref<5x5x64x128xbf16, #tpu.memory_space<vmem>>, vector<1x1x32x128xbf16>
    %1140 = vector.shape_cast %1139 : vector<1x1x32x128xbf16> to vector<32x128xbf16>
    %1141 = arith.extf %1140 : vector<32x128xbf16> to vector<32x128xf32>
    %1142 = vector.broadcast %5 : f32 to vector<32x128xf32>
    %1143 = arith.mulf %1141, %1142 : vector<32x128xf32>
    %1144 = arith.addf %1132, %1143 : vector<32x128xf32>
    %1145 = vector.broadcast %14 : f32 to vector<32x128xf32>
    %1146 = arith.mulf %1141, %1145 : vector<32x128xf32>
    %1147 = arith.addf %1135, %1146 : vector<32x128xf32>
    %1148 = vector.broadcast %23 : f32 to vector<32x128xf32>
    %1149 = arith.mulf %1141, %1148 : vector<32x128xf32>
    %1150 = arith.addf %1138, %1149 : vector<32x128xf32>
    %c2_392 = arith.constant 2 : index
    %c0_393 = arith.constant 0 : index
    %c32_394 = arith.constant 32 : index
    %c0_395 = arith.constant 0 : index
    %1151 = vector.load %arg1[%c2_392, %c0_393, %c32_394, %c0_395] : memref<5x5x64x128xbf16, #tpu.memory_space<vmem>>, vector<1x1x32x128xbf16>
    %1152 = vector.shape_cast %1151 : vector<1x1x32x128xbf16> to vector<32x128xbf16>
    %1153 = arith.extf %1152 : vector<32x128xbf16> to vector<32x128xf32>
    %1154 = vector.broadcast %6 : f32 to vector<32x128xf32>
    %1155 = arith.mulf %1153, %1154 : vector<32x128xf32>
    %1156 = arith.addf %1144, %1155 : vector<32x128xf32>
    %1157 = vector.broadcast %15 : f32 to vector<32x128xf32>
    %1158 = arith.mulf %1153, %1157 : vector<32x128xf32>
    %1159 = arith.addf %1147, %1158 : vector<32x128xf32>
    %1160 = vector.broadcast %24 : f32 to vector<32x128xf32>
    %1161 = arith.mulf %1153, %1160 : vector<32x128xf32>
    %1162 = arith.addf %1150, %1161 : vector<32x128xf32>
    %c2_396 = arith.constant 2 : index
    %c1_397 = arith.constant 1 : index
    %c32_398 = arith.constant 32 : index
    %c0_399 = arith.constant 0 : index
    %1163 = vector.load %arg1[%c2_396, %c1_397, %c32_398, %c0_399] : memref<5x5x64x128xbf16, #tpu.memory_space<vmem>>, vector<1x1x32x128xbf16>
    %1164 = vector.shape_cast %1163 : vector<1x1x32x128xbf16> to vector<32x128xbf16>
    %1165 = arith.extf %1164 : vector<32x128xbf16> to vector<32x128xf32>
    %1166 = vector.broadcast %7 : f32 to vector<32x128xf32>
    %1167 = arith.mulf %1165, %1166 : vector<32x128xf32>
    %1168 = arith.addf %1156, %1167 : vector<32x128xf32>
    %1169 = vector.broadcast %16 : f32 to vector<32x128xf32>
    %1170 = arith.mulf %1165, %1169 : vector<32x128xf32>
    %1171 = arith.addf %1159, %1170 : vector<32x128xf32>
    %1172 = vector.broadcast %25 : f32 to vector<32x128xf32>
    %1173 = arith.mulf %1165, %1172 : vector<32x128xf32>
    %1174 = arith.addf %1162, %1173 : vector<32x128xf32>
    %c2_400 = arith.constant 2 : index
    %c2_401 = arith.constant 2 : index
    %c32_402 = arith.constant 32 : index
    %c0_403 = arith.constant 0 : index
    %1175 = vector.load %arg1[%c2_400, %c2_401, %c32_402, %c0_403] : memref<5x5x64x128xbf16, #tpu.memory_space<vmem>>, vector<1x1x32x128xbf16>
    %1176 = vector.shape_cast %1175 : vector<1x1x32x128xbf16> to vector<32x128xbf16>
    %1177 = arith.extf %1176 : vector<32x128xbf16> to vector<32x128xf32>
    %1178 = vector.broadcast %8 : f32 to vector<32x128xf32>
    %1179 = arith.mulf %1177, %1178 : vector<32x128xf32>
    %1180 = arith.addf %1168, %1179 : vector<32x128xf32>
    %1181 = vector.broadcast %17 : f32 to vector<32x128xf32>
    %1182 = arith.mulf %1177, %1181 : vector<32x128xf32>
    %1183 = arith.addf %1171, %1182 : vector<32x128xf32>
    %1184 = vector.broadcast %26 : f32 to vector<32x128xf32>
    %1185 = arith.mulf %1177, %1184 : vector<32x128xf32>
    %1186 = arith.addf %1174, %1185 : vector<32x128xf32>
    %1187 = arith.maximumf %1073, %1180 : vector<32x128xf32>
    %1188 = arith.maximumf %1074, %1183 : vector<32x128xf32>
    %1189 = arith.maximumf %1075, %1186 : vector<32x128xf32>
    %cst_404 = arith.constant 0.000000e+00 : f32
    %1190 = vector.broadcast %cst_404 : f32 to vector<32x128xf32>
    %cst_405 = arith.constant 0.000000e+00 : f32
    %1191 = vector.broadcast %cst_405 : f32 to vector<32x128xf32>
    %cst_406 = arith.constant 0.000000e+00 : f32
    %1192 = vector.broadcast %cst_406 : f32 to vector<32x128xf32>
    %c0_407 = arith.constant 0 : index
    %c1_408 = arith.constant 1 : index
    %c32_409 = arith.constant 32 : index
    %c0_410 = arith.constant 0 : index
    %1193 = vector.load %arg1[%c0_407, %c1_408, %c32_409, %c0_410] : memref<5x5x64x128xbf16, #tpu.memory_space<vmem>>, vector<1x1x32x128xbf16>
    %1194 = vector.shape_cast %1193 : vector<1x1x32x128xbf16> to vector<32x128xbf16>
    %1195 = arith.extf %1194 : vector<32x128xbf16> to vector<32x128xf32>
    %1196 = vector.broadcast %0 : f32 to vector<32x128xf32>
    %1197 = arith.mulf %1195, %1196 : vector<32x128xf32>
    %1198 = arith.addf %1190, %1197 : vector<32x128xf32>
    %1199 = vector.broadcast %9 : f32 to vector<32x128xf32>
    %1200 = arith.mulf %1195, %1199 : vector<32x128xf32>
    %1201 = arith.addf %1191, %1200 : vector<32x128xf32>
    %1202 = vector.broadcast %18 : f32 to vector<32x128xf32>
    %1203 = arith.mulf %1195, %1202 : vector<32x128xf32>
    %1204 = arith.addf %1192, %1203 : vector<32x128xf32>
    %c0_411 = arith.constant 0 : index
    %c2_412 = arith.constant 2 : index
    %c32_413 = arith.constant 32 : index
    %c0_414 = arith.constant 0 : index
    %1205 = vector.load %arg1[%c0_411, %c2_412, %c32_413, %c0_414] : memref<5x5x64x128xbf16, #tpu.memory_space<vmem>>, vector<1x1x32x128xbf16>
    %1206 = vector.shape_cast %1205 : vector<1x1x32x128xbf16> to vector<32x128xbf16>
    %1207 = arith.extf %1206 : vector<32x128xbf16> to vector<32x128xf32>
    %1208 = vector.broadcast %1 : f32 to vector<32x128xf32>
    %1209 = arith.mulf %1207, %1208 : vector<32x128xf32>
    %1210 = arith.addf %1198, %1209 : vector<32x128xf32>
    %1211 = vector.broadcast %10 : f32 to vector<32x128xf32>
    %1212 = arith.mulf %1207, %1211 : vector<32x128xf32>
    %1213 = arith.addf %1201, %1212 : vector<32x128xf32>
    %1214 = vector.broadcast %19 : f32 to vector<32x128xf32>
    %1215 = arith.mulf %1207, %1214 : vector<32x128xf32>
    %1216 = arith.addf %1204, %1215 : vector<32x128xf32>
    %c0_415 = arith.constant 0 : index
    %c3_416 = arith.constant 3 : index
    %c32_417 = arith.constant 32 : index
    %c0_418 = arith.constant 0 : index
    %1217 = vector.load %arg1[%c0_415, %c3_416, %c32_417, %c0_418] : memref<5x5x64x128xbf16, #tpu.memory_space<vmem>>, vector<1x1x32x128xbf16>
    %1218 = vector.shape_cast %1217 : vector<1x1x32x128xbf16> to vector<32x128xbf16>
    %1219 = arith.extf %1218 : vector<32x128xbf16> to vector<32x128xf32>
    %1220 = vector.broadcast %2 : f32 to vector<32x128xf32>
    %1221 = arith.mulf %1219, %1220 : vector<32x128xf32>
    %1222 = arith.addf %1210, %1221 : vector<32x128xf32>
    %1223 = vector.broadcast %11 : f32 to vector<32x128xf32>
    %1224 = arith.mulf %1219, %1223 : vector<32x128xf32>
    %1225 = arith.addf %1213, %1224 : vector<32x128xf32>
    %1226 = vector.broadcast %20 : f32 to vector<32x128xf32>
    %1227 = arith.mulf %1219, %1226 : vector<32x128xf32>
    %1228 = arith.addf %1216, %1227 : vector<32x128xf32>
    %c1_419 = arith.constant 1 : index
    %c1_420 = arith.constant 1 : index
    %c32_421 = arith.constant 32 : index
    %c0_422 = arith.constant 0 : index
    %1229 = vector.load %arg1[%c1_419, %c1_420, %c32_421, %c0_422] : memref<5x5x64x128xbf16, #tpu.memory_space<vmem>>, vector<1x1x32x128xbf16>
    %1230 = vector.shape_cast %1229 : vector<1x1x32x128xbf16> to vector<32x128xbf16>
    %1231 = arith.extf %1230 : vector<32x128xbf16> to vector<32x128xf32>
    %1232 = vector.broadcast %3 : f32 to vector<32x128xf32>
    %1233 = arith.mulf %1231, %1232 : vector<32x128xf32>
    %1234 = arith.addf %1222, %1233 : vector<32x128xf32>
    %1235 = vector.broadcast %12 : f32 to vector<32x128xf32>
    %1236 = arith.mulf %1231, %1235 : vector<32x128xf32>
    %1237 = arith.addf %1225, %1236 : vector<32x128xf32>
    %1238 = vector.broadcast %21 : f32 to vector<32x128xf32>
    %1239 = arith.mulf %1231, %1238 : vector<32x128xf32>
    %1240 = arith.addf %1228, %1239 : vector<32x128xf32>
    %c1_423 = arith.constant 1 : index
    %c2_424 = arith.constant 2 : index
    %c32_425 = arith.constant 32 : index
    %c0_426 = arith.constant 0 : index
    %1241 = vector.load %arg1[%c1_423, %c2_424, %c32_425, %c0_426] : memref<5x5x64x128xbf16, #tpu.memory_space<vmem>>, vector<1x1x32x128xbf16>
    %1242 = vector.shape_cast %1241 : vector<1x1x32x128xbf16> to vector<32x128xbf16>
    %1243 = arith.extf %1242 : vector<32x128xbf16> to vector<32x128xf32>
    %1244 = vector.broadcast %4 : f32 to vector<32x128xf32>
    %1245 = arith.mulf %1243, %1244 : vector<32x128xf32>
    %1246 = arith.addf %1234, %1245 : vector<32x128xf32>
    %1247 = vector.broadcast %13 : f32 to vector<32x128xf32>
    %1248 = arith.mulf %1243, %1247 : vector<32x128xf32>
    %1249 = arith.addf %1237, %1248 : vector<32x128xf32>
    %1250 = vector.broadcast %22 : f32 to vector<32x128xf32>
    %1251 = arith.mulf %1243, %1250 : vector<32x128xf32>
    %1252 = arith.addf %1240, %1251 : vector<32x128xf32>
    %c1_427 = arith.constant 1 : index
    %c3_428 = arith.constant 3 : index
    %c32_429 = arith.constant 32 : index
    %c0_430 = arith.constant 0 : index
    %1253 = vector.load %arg1[%c1_427, %c3_428, %c32_429, %c0_430] : memref<5x5x64x128xbf16, #tpu.memory_space<vmem>>, vector<1x1x32x128xbf16>
    %1254 = vector.shape_cast %1253 : vector<1x1x32x128xbf16> to vector<32x128xbf16>
    %1255 = arith.extf %1254 : vector<32x128xbf16> to vector<32x128xf32>
    %1256 = vector.broadcast %5 : f32 to vector<32x128xf32>
    %1257 = arith.mulf %1255, %1256 : vector<32x128xf32>
    %1258 = arith.addf %1246, %1257 : vector<32x128xf32>
    %1259 = vector.broadcast %14 : f32 to vector<32x128xf32>
    %1260 = arith.mulf %1255, %1259 : vector<32x128xf32>
    %1261 = arith.addf %1249, %1260 : vector<32x128xf32>
    %1262 = vector.broadcast %23 : f32 to vector<32x128xf32>
    %1263 = arith.mulf %1255, %1262 : vector<32x128xf32>
    %1264 = arith.addf %1252, %1263 : vector<32x128xf32>
    %c2_431 = arith.constant 2 : index
    %c1_432 = arith.constant 1 : index
    %c32_433 = arith.constant 32 : index
    %c0_434 = arith.constant 0 : index
    %1265 = vector.load %arg1[%c2_431, %c1_432, %c32_433, %c0_434] : memref<5x5x64x128xbf16, #tpu.memory_space<vmem>>, vector<1x1x32x128xbf16>
    %1266 = vector.shape_cast %1265 : vector<1x1x32x128xbf16> to vector<32x128xbf16>
    %1267 = arith.extf %1266 : vector<32x128xbf16> to vector<32x128xf32>
    %1268 = vector.broadcast %6 : f32 to vector<32x128xf32>
    %1269 = arith.mulf %1267, %1268 : vector<32x128xf32>
    %1270 = arith.addf %1258, %1269 : vector<32x128xf32>
    %1271 = vector.broadcast %15 : f32 to vector<32x128xf32>
    %1272 = arith.mulf %1267, %1271 : vector<32x128xf32>
    %1273 = arith.addf %1261, %1272 : vector<32x128xf32>
    %1274 = vector.broadcast %24 : f32 to vector<32x128xf32>
    %1275 = arith.mulf %1267, %1274 : vector<32x128xf32>
    %1276 = arith.addf %1264, %1275 : vector<32x128xf32>
    %c2_435 = arith.constant 2 : index
    %c2_436 = arith.constant 2 : index
    %c32_437 = arith.constant 32 : index
    %c0_438 = arith.constant 0 : index
    %1277 = vector.load %arg1[%c2_435, %c2_436, %c32_437, %c0_438] : memref<5x5x64x128xbf16, #tpu.memory_space<vmem>>, vector<1x1x32x128xbf16>
    %1278 = vector.shape_cast %1277 : vector<1x1x32x128xbf16> to vector<32x128xbf16>
    %1279 = arith.extf %1278 : vector<32x128xbf16> to vector<32x128xf32>
    %1280 = vector.broadcast %7 : f32 to vector<32x128xf32>
    %1281 = arith.mulf %1279, %1280 : vector<32x128xf32>
    %1282 = arith.addf %1270, %1281 : vector<32x128xf32>
    %1283 = vector.broadcast %16 : f32 to vector<32x128xf32>
    %1284 = arith.mulf %1279, %1283 : vector<32x128xf32>
    %1285 = arith.addf %1273, %1284 : vector<32x128xf32>
    %1286 = vector.broadcast %25 : f32 to vector<32x128xf32>
    %1287 = arith.mulf %1279, %1286 : vector<32x128xf32>
    %1288 = arith.addf %1276, %1287 : vector<32x128xf32>
    %c2_439 = arith.constant 2 : index
    %c3_440 = arith.constant 3 : index
    %c32_441 = arith.constant 32 : index
    %c0_442 = arith.constant 0 : index
    %1289 = vector.load %arg1[%c2_439, %c3_440, %c32_441, %c0_442] : memref<5x5x64x128xbf16, #tpu.memory_space<vmem>>, vector<1x1x32x128xbf16>
    %1290 = vector.shape_cast %1289 : vector<1x1x32x128xbf16> to vector<32x128xbf16>
    %1291 = arith.extf %1290 : vector<32x128xbf16> to vector<32x128xf32>
    %1292 = vector.broadcast %8 : f32 to vector<32x128xf32>
    %1293 = arith.mulf %1291, %1292 : vector<32x128xf32>
    %1294 = arith.addf %1282, %1293 : vector<32x128xf32>
    %1295 = vector.broadcast %17 : f32 to vector<32x128xf32>
    %1296 = arith.mulf %1291, %1295 : vector<32x128xf32>
    %1297 = arith.addf %1285, %1296 : vector<32x128xf32>
    %1298 = vector.broadcast %26 : f32 to vector<32x128xf32>
    %1299 = arith.mulf %1291, %1298 : vector<32x128xf32>
    %1300 = arith.addf %1288, %1299 : vector<32x128xf32>
    %1301 = arith.maximumf %1187, %1294 : vector<32x128xf32>
    %1302 = arith.maximumf %1188, %1297 : vector<32x128xf32>
    %1303 = arith.maximumf %1189, %1300 : vector<32x128xf32>
    %cst_443 = arith.constant 0.000000e+00 : f32
    %1304 = vector.broadcast %cst_443 : f32 to vector<32x128xf32>
    %cst_444 = arith.constant 0.000000e+00 : f32
    %1305 = vector.broadcast %cst_444 : f32 to vector<32x128xf32>
    %cst_445 = arith.constant 0.000000e+00 : f32
    %1306 = vector.broadcast %cst_445 : f32 to vector<32x128xf32>
    %c0_446 = arith.constant 0 : index
    %c2_447 = arith.constant 2 : index
    %c32_448 = arith.constant 32 : index
    %c0_449 = arith.constant 0 : index
    %1307 = vector.load %arg1[%c0_446, %c2_447, %c32_448, %c0_449] : memref<5x5x64x128xbf16, #tpu.memory_space<vmem>>, vector<1x1x32x128xbf16>
    %1308 = vector.shape_cast %1307 : vector<1x1x32x128xbf16> to vector<32x128xbf16>
    %1309 = arith.extf %1308 : vector<32x128xbf16> to vector<32x128xf32>
    %1310 = vector.broadcast %0 : f32 to vector<32x128xf32>
    %1311 = arith.mulf %1309, %1310 : vector<32x128xf32>
    %1312 = arith.addf %1304, %1311 : vector<32x128xf32>
    %1313 = vector.broadcast %9 : f32 to vector<32x128xf32>
    %1314 = arith.mulf %1309, %1313 : vector<32x128xf32>
    %1315 = arith.addf %1305, %1314 : vector<32x128xf32>
    %1316 = vector.broadcast %18 : f32 to vector<32x128xf32>
    %1317 = arith.mulf %1309, %1316 : vector<32x128xf32>
    %1318 = arith.addf %1306, %1317 : vector<32x128xf32>
    %c0_450 = arith.constant 0 : index
    %c3_451 = arith.constant 3 : index
    %c32_452 = arith.constant 32 : index
    %c0_453 = arith.constant 0 : index
    %1319 = vector.load %arg1[%c0_450, %c3_451, %c32_452, %c0_453] : memref<5x5x64x128xbf16, #tpu.memory_space<vmem>>, vector<1x1x32x128xbf16>
    %1320 = vector.shape_cast %1319 : vector<1x1x32x128xbf16> to vector<32x128xbf16>
    %1321 = arith.extf %1320 : vector<32x128xbf16> to vector<32x128xf32>
    %1322 = vector.broadcast %1 : f32 to vector<32x128xf32>
    %1323 = arith.mulf %1321, %1322 : vector<32x128xf32>
    %1324 = arith.addf %1312, %1323 : vector<32x128xf32>
    %1325 = vector.broadcast %10 : f32 to vector<32x128xf32>
    %1326 = arith.mulf %1321, %1325 : vector<32x128xf32>
    %1327 = arith.addf %1315, %1326 : vector<32x128xf32>
    %1328 = vector.broadcast %19 : f32 to vector<32x128xf32>
    %1329 = arith.mulf %1321, %1328 : vector<32x128xf32>
    %1330 = arith.addf %1318, %1329 : vector<32x128xf32>
    %c0_454 = arith.constant 0 : index
    %c4_455 = arith.constant 4 : index
    %c32_456 = arith.constant 32 : index
    %c0_457 = arith.constant 0 : index
    %1331 = vector.load %arg1[%c0_454, %c4_455, %c32_456, %c0_457] : memref<5x5x64x128xbf16, #tpu.memory_space<vmem>>, vector<1x1x32x128xbf16>
    %1332 = vector.shape_cast %1331 : vector<1x1x32x128xbf16> to vector<32x128xbf16>
    %1333 = arith.extf %1332 : vector<32x128xbf16> to vector<32x128xf32>
    %1334 = vector.broadcast %2 : f32 to vector<32x128xf32>
    %1335 = arith.mulf %1333, %1334 : vector<32x128xf32>
    %1336 = arith.addf %1324, %1335 : vector<32x128xf32>
    %1337 = vector.broadcast %11 : f32 to vector<32x128xf32>
    %1338 = arith.mulf %1333, %1337 : vector<32x128xf32>
    %1339 = arith.addf %1327, %1338 : vector<32x128xf32>
    %1340 = vector.broadcast %20 : f32 to vector<32x128xf32>
    %1341 = arith.mulf %1333, %1340 : vector<32x128xf32>
    %1342 = arith.addf %1330, %1341 : vector<32x128xf32>
    %c1_458 = arith.constant 1 : index
    %c2_459 = arith.constant 2 : index
    %c32_460 = arith.constant 32 : index
    %c0_461 = arith.constant 0 : index
    %1343 = vector.load %arg1[%c1_458, %c2_459, %c32_460, %c0_461] : memref<5x5x64x128xbf16, #tpu.memory_space<vmem>>, vector<1x1x32x128xbf16>
    %1344 = vector.shape_cast %1343 : vector<1x1x32x128xbf16> to vector<32x128xbf16>
    %1345 = arith.extf %1344 : vector<32x128xbf16> to vector<32x128xf32>
    %1346 = vector.broadcast %3 : f32 to vector<32x128xf32>
    %1347 = arith.mulf %1345, %1346 : vector<32x128xf32>
    %1348 = arith.addf %1336, %1347 : vector<32x128xf32>
    %1349 = vector.broadcast %12 : f32 to vector<32x128xf32>
    %1350 = arith.mulf %1345, %1349 : vector<32x128xf32>
    %1351 = arith.addf %1339, %1350 : vector<32x128xf32>
    %1352 = vector.broadcast %21 : f32 to vector<32x128xf32>
    %1353 = arith.mulf %1345, %1352 : vector<32x128xf32>
    %1354 = arith.addf %1342, %1353 : vector<32x128xf32>
    %c1_462 = arith.constant 1 : index
    %c3_463 = arith.constant 3 : index
    %c32_464 = arith.constant 32 : index
    %c0_465 = arith.constant 0 : index
    %1355 = vector.load %arg1[%c1_462, %c3_463, %c32_464, %c0_465] : memref<5x5x64x128xbf16, #tpu.memory_space<vmem>>, vector<1x1x32x128xbf16>
    %1356 = vector.shape_cast %1355 : vector<1x1x32x128xbf16> to vector<32x128xbf16>
    %1357 = arith.extf %1356 : vector<32x128xbf16> to vector<32x128xf32>
    %1358 = vector.broadcast %4 : f32 to vector<32x128xf32>
    %1359 = arith.mulf %1357, %1358 : vector<32x128xf32>
    %1360 = arith.addf %1348, %1359 : vector<32x128xf32>
    %1361 = vector.broadcast %13 : f32 to vector<32x128xf32>
    %1362 = arith.mulf %1357, %1361 : vector<32x128xf32>
    %1363 = arith.addf %1351, %1362 : vector<32x128xf32>
    %1364 = vector.broadcast %22 : f32 to vector<32x128xf32>
    %1365 = arith.mulf %1357, %1364 : vector<32x128xf32>
    %1366 = arith.addf %1354, %1365 : vector<32x128xf32>
    %c1_466 = arith.constant 1 : index
    %c4_467 = arith.constant 4 : index
    %c32_468 = arith.constant 32 : index
    %c0_469 = arith.constant 0 : index
    %1367 = vector.load %arg1[%c1_466, %c4_467, %c32_468, %c0_469] : memref<5x5x64x128xbf16, #tpu.memory_space<vmem>>, vector<1x1x32x128xbf16>
    %1368 = vector.shape_cast %1367 : vector<1x1x32x128xbf16> to vector<32x128xbf16>
    %1369 = arith.extf %1368 : vector<32x128xbf16> to vector<32x128xf32>
    %1370 = vector.broadcast %5 : f32 to vector<32x128xf32>
    %1371 = arith.mulf %1369, %1370 : vector<32x128xf32>
    %1372 = arith.addf %1360, %1371 : vector<32x128xf32>
    %1373 = vector.broadcast %14 : f32 to vector<32x128xf32>
    %1374 = arith.mulf %1369, %1373 : vector<32x128xf32>
    %1375 = arith.addf %1363, %1374 : vector<32x128xf32>
    %1376 = vector.broadcast %23 : f32 to vector<32x128xf32>
    %1377 = arith.mulf %1369, %1376 : vector<32x128xf32>
    %1378 = arith.addf %1366, %1377 : vector<32x128xf32>
    %c2_470 = arith.constant 2 : index
    %c2_471 = arith.constant 2 : index
    %c32_472 = arith.constant 32 : index
    %c0_473 = arith.constant 0 : index
    %1379 = vector.load %arg1[%c2_470, %c2_471, %c32_472, %c0_473] : memref<5x5x64x128xbf16, #tpu.memory_space<vmem>>, vector<1x1x32x128xbf16>
    %1380 = vector.shape_cast %1379 : vector<1x1x32x128xbf16> to vector<32x128xbf16>
    %1381 = arith.extf %1380 : vector<32x128xbf16> to vector<32x128xf32>
    %1382 = vector.broadcast %6 : f32 to vector<32x128xf32>
    %1383 = arith.mulf %1381, %1382 : vector<32x128xf32>
    %1384 = arith.addf %1372, %1383 : vector<32x128xf32>
    %1385 = vector.broadcast %15 : f32 to vector<32x128xf32>
    %1386 = arith.mulf %1381, %1385 : vector<32x128xf32>
    %1387 = arith.addf %1375, %1386 : vector<32x128xf32>
    %1388 = vector.broadcast %24 : f32 to vector<32x128xf32>
    %1389 = arith.mulf %1381, %1388 : vector<32x128xf32>
    %1390 = arith.addf %1378, %1389 : vector<32x128xf32>
    %c2_474 = arith.constant 2 : index
    %c3_475 = arith.constant 3 : index
    %c32_476 = arith.constant 32 : index
    %c0_477 = arith.constant 0 : index
    %1391 = vector.load %arg1[%c2_474, %c3_475, %c32_476, %c0_477] : memref<5x5x64x128xbf16, #tpu.memory_space<vmem>>, vector<1x1x32x128xbf16>
    %1392 = vector.shape_cast %1391 : vector<1x1x32x128xbf16> to vector<32x128xbf16>
    %1393 = arith.extf %1392 : vector<32x128xbf16> to vector<32x128xf32>
    %1394 = vector.broadcast %7 : f32 to vector<32x128xf32>
    %1395 = arith.mulf %1393, %1394 : vector<32x128xf32>
    %1396 = arith.addf %1384, %1395 : vector<32x128xf32>
    %1397 = vector.broadcast %16 : f32 to vector<32x128xf32>
    %1398 = arith.mulf %1393, %1397 : vector<32x128xf32>
    %1399 = arith.addf %1387, %1398 : vector<32x128xf32>
    %1400 = vector.broadcast %25 : f32 to vector<32x128xf32>
    %1401 = arith.mulf %1393, %1400 : vector<32x128xf32>
    %1402 = arith.addf %1390, %1401 : vector<32x128xf32>
    %c2_478 = arith.constant 2 : index
    %c4_479 = arith.constant 4 : index
    %c32_480 = arith.constant 32 : index
    %c0_481 = arith.constant 0 : index
    %1403 = vector.load %arg1[%c2_478, %c4_479, %c32_480, %c0_481] : memref<5x5x64x128xbf16, #tpu.memory_space<vmem>>, vector<1x1x32x128xbf16>
    %1404 = vector.shape_cast %1403 : vector<1x1x32x128xbf16> to vector<32x128xbf16>
    %1405 = arith.extf %1404 : vector<32x128xbf16> to vector<32x128xf32>
    %1406 = vector.broadcast %8 : f32 to vector<32x128xf32>
    %1407 = arith.mulf %1405, %1406 : vector<32x128xf32>
    %1408 = arith.addf %1396, %1407 : vector<32x128xf32>
    %1409 = vector.broadcast %17 : f32 to vector<32x128xf32>
    %1410 = arith.mulf %1405, %1409 : vector<32x128xf32>
    %1411 = arith.addf %1399, %1410 : vector<32x128xf32>
    %1412 = vector.broadcast %26 : f32 to vector<32x128xf32>
    %1413 = arith.mulf %1405, %1412 : vector<32x128xf32>
    %1414 = arith.addf %1402, %1413 : vector<32x128xf32>
    %1415 = arith.maximumf %1301, %1408 : vector<32x128xf32>
    %1416 = arith.maximumf %1302, %1411 : vector<32x128xf32>
    %1417 = arith.maximumf %1303, %1414 : vector<32x128xf32>
    %cst_482 = arith.constant 0.000000e+00 : f32
    %1418 = vector.broadcast %cst_482 : f32 to vector<32x128xf32>
    %cst_483 = arith.constant 0.000000e+00 : f32
    %1419 = vector.broadcast %cst_483 : f32 to vector<32x128xf32>
    %cst_484 = arith.constant 0.000000e+00 : f32
    %1420 = vector.broadcast %cst_484 : f32 to vector<32x128xf32>
    %c1_485 = arith.constant 1 : index
    %c0_486 = arith.constant 0 : index
    %c32_487 = arith.constant 32 : index
    %c0_488 = arith.constant 0 : index
    %1421 = vector.load %arg1[%c1_485, %c0_486, %c32_487, %c0_488] : memref<5x5x64x128xbf16, #tpu.memory_space<vmem>>, vector<1x1x32x128xbf16>
    %1422 = vector.shape_cast %1421 : vector<1x1x32x128xbf16> to vector<32x128xbf16>
    %1423 = arith.extf %1422 : vector<32x128xbf16> to vector<32x128xf32>
    %1424 = vector.broadcast %0 : f32 to vector<32x128xf32>
    %1425 = arith.mulf %1423, %1424 : vector<32x128xf32>
    %1426 = arith.addf %1418, %1425 : vector<32x128xf32>
    %1427 = vector.broadcast %9 : f32 to vector<32x128xf32>
    %1428 = arith.mulf %1423, %1427 : vector<32x128xf32>
    %1429 = arith.addf %1419, %1428 : vector<32x128xf32>
    %1430 = vector.broadcast %18 : f32 to vector<32x128xf32>
    %1431 = arith.mulf %1423, %1430 : vector<32x128xf32>
    %1432 = arith.addf %1420, %1431 : vector<32x128xf32>
    %c1_489 = arith.constant 1 : index
    %c1_490 = arith.constant 1 : index
    %c32_491 = arith.constant 32 : index
    %c0_492 = arith.constant 0 : index
    %1433 = vector.load %arg1[%c1_489, %c1_490, %c32_491, %c0_492] : memref<5x5x64x128xbf16, #tpu.memory_space<vmem>>, vector<1x1x32x128xbf16>
    %1434 = vector.shape_cast %1433 : vector<1x1x32x128xbf16> to vector<32x128xbf16>
    %1435 = arith.extf %1434 : vector<32x128xbf16> to vector<32x128xf32>
    %1436 = vector.broadcast %1 : f32 to vector<32x128xf32>
    %1437 = arith.mulf %1435, %1436 : vector<32x128xf32>
    %1438 = arith.addf %1426, %1437 : vector<32x128xf32>
    %1439 = vector.broadcast %10 : f32 to vector<32x128xf32>
    %1440 = arith.mulf %1435, %1439 : vector<32x128xf32>
    %1441 = arith.addf %1429, %1440 : vector<32x128xf32>
    %1442 = vector.broadcast %19 : f32 to vector<32x128xf32>
    %1443 = arith.mulf %1435, %1442 : vector<32x128xf32>
    %1444 = arith.addf %1432, %1443 : vector<32x128xf32>
    %c1_493 = arith.constant 1 : index
    %c2_494 = arith.constant 2 : index
    %c32_495 = arith.constant 32 : index
    %c0_496 = arith.constant 0 : index
    %1445 = vector.load %arg1[%c1_493, %c2_494, %c32_495, %c0_496] : memref<5x5x64x128xbf16, #tpu.memory_space<vmem>>, vector<1x1x32x128xbf16>
    %1446 = vector.shape_cast %1445 : vector<1x1x32x128xbf16> to vector<32x128xbf16>
    %1447 = arith.extf %1446 : vector<32x128xbf16> to vector<32x128xf32>
    %1448 = vector.broadcast %2 : f32 to vector<32x128xf32>
    %1449 = arith.mulf %1447, %1448 : vector<32x128xf32>
    %1450 = arith.addf %1438, %1449 : vector<32x128xf32>
    %1451 = vector.broadcast %11 : f32 to vector<32x128xf32>
    %1452 = arith.mulf %1447, %1451 : vector<32x128xf32>
    %1453 = arith.addf %1441, %1452 : vector<32x128xf32>
    %1454 = vector.broadcast %20 : f32 to vector<32x128xf32>
    %1455 = arith.mulf %1447, %1454 : vector<32x128xf32>
    %1456 = arith.addf %1444, %1455 : vector<32x128xf32>
    %c2_497 = arith.constant 2 : index
    %c0_498 = arith.constant 0 : index
    %c32_499 = arith.constant 32 : index
    %c0_500 = arith.constant 0 : index
    %1457 = vector.load %arg1[%c2_497, %c0_498, %c32_499, %c0_500] : memref<5x5x64x128xbf16, #tpu.memory_space<vmem>>, vector<1x1x32x128xbf16>
    %1458 = vector.shape_cast %1457 : vector<1x1x32x128xbf16> to vector<32x128xbf16>
    %1459 = arith.extf %1458 : vector<32x128xbf16> to vector<32x128xf32>
    %1460 = vector.broadcast %3 : f32 to vector<32x128xf32>
    %1461 = arith.mulf %1459, %1460 : vector<32x128xf32>
    %1462 = arith.addf %1450, %1461 : vector<32x128xf32>
    %1463 = vector.broadcast %12 : f32 to vector<32x128xf32>
    %1464 = arith.mulf %1459, %1463 : vector<32x128xf32>
    %1465 = arith.addf %1453, %1464 : vector<32x128xf32>
    %1466 = vector.broadcast %21 : f32 to vector<32x128xf32>
    %1467 = arith.mulf %1459, %1466 : vector<32x128xf32>
    %1468 = arith.addf %1456, %1467 : vector<32x128xf32>
    %c2_501 = arith.constant 2 : index
    %c1_502 = arith.constant 1 : index
    %c32_503 = arith.constant 32 : index
    %c0_504 = arith.constant 0 : index
    %1469 = vector.load %arg1[%c2_501, %c1_502, %c32_503, %c0_504] : memref<5x5x64x128xbf16, #tpu.memory_space<vmem>>, vector<1x1x32x128xbf16>
    %1470 = vector.shape_cast %1469 : vector<1x1x32x128xbf16> to vector<32x128xbf16>
    %1471 = arith.extf %1470 : vector<32x128xbf16> to vector<32x128xf32>
    %1472 = vector.broadcast %4 : f32 to vector<32x128xf32>
    %1473 = arith.mulf %1471, %1472 : vector<32x128xf32>
    %1474 = arith.addf %1462, %1473 : vector<32x128xf32>
    %1475 = vector.broadcast %13 : f32 to vector<32x128xf32>
    %1476 = arith.mulf %1471, %1475 : vector<32x128xf32>
    %1477 = arith.addf %1465, %1476 : vector<32x128xf32>
    %1478 = vector.broadcast %22 : f32 to vector<32x128xf32>
    %1479 = arith.mulf %1471, %1478 : vector<32x128xf32>
    %1480 = arith.addf %1468, %1479 : vector<32x128xf32>
    %c2_505 = arith.constant 2 : index
    %c2_506 = arith.constant 2 : index
    %c32_507 = arith.constant 32 : index
    %c0_508 = arith.constant 0 : index
    %1481 = vector.load %arg1[%c2_505, %c2_506, %c32_507, %c0_508] : memref<5x5x64x128xbf16, #tpu.memory_space<vmem>>, vector<1x1x32x128xbf16>
    %1482 = vector.shape_cast %1481 : vector<1x1x32x128xbf16> to vector<32x128xbf16>
    %1483 = arith.extf %1482 : vector<32x128xbf16> to vector<32x128xf32>
    %1484 = vector.broadcast %5 : f32 to vector<32x128xf32>
    %1485 = arith.mulf %1483, %1484 : vector<32x128xf32>
    %1486 = arith.addf %1474, %1485 : vector<32x128xf32>
    %1487 = vector.broadcast %14 : f32 to vector<32x128xf32>
    %1488 = arith.mulf %1483, %1487 : vector<32x128xf32>
    %1489 = arith.addf %1477, %1488 : vector<32x128xf32>
    %1490 = vector.broadcast %23 : f32 to vector<32x128xf32>
    %1491 = arith.mulf %1483, %1490 : vector<32x128xf32>
    %1492 = arith.addf %1480, %1491 : vector<32x128xf32>
    %c3_509 = arith.constant 3 : index
    %c0_510 = arith.constant 0 : index
    %c32_511 = arith.constant 32 : index
    %c0_512 = arith.constant 0 : index
    %1493 = vector.load %arg1[%c3_509, %c0_510, %c32_511, %c0_512] : memref<5x5x64x128xbf16, #tpu.memory_space<vmem>>, vector<1x1x32x128xbf16>
    %1494 = vector.shape_cast %1493 : vector<1x1x32x128xbf16> to vector<32x128xbf16>
    %1495 = arith.extf %1494 : vector<32x128xbf16> to vector<32x128xf32>
    %1496 = vector.broadcast %6 : f32 to vector<32x128xf32>
    %1497 = arith.mulf %1495, %1496 : vector<32x128xf32>
    %1498 = arith.addf %1486, %1497 : vector<32x128xf32>
    %1499 = vector.broadcast %15 : f32 to vector<32x128xf32>
    %1500 = arith.mulf %1495, %1499 : vector<32x128xf32>
    %1501 = arith.addf %1489, %1500 : vector<32x128xf32>
    %1502 = vector.broadcast %24 : f32 to vector<32x128xf32>
    %1503 = arith.mulf %1495, %1502 : vector<32x128xf32>
    %1504 = arith.addf %1492, %1503 : vector<32x128xf32>
    %c3_513 = arith.constant 3 : index
    %c1_514 = arith.constant 1 : index
    %c32_515 = arith.constant 32 : index
    %c0_516 = arith.constant 0 : index
    %1505 = vector.load %arg1[%c3_513, %c1_514, %c32_515, %c0_516] : memref<5x5x64x128xbf16, #tpu.memory_space<vmem>>, vector<1x1x32x128xbf16>
    %1506 = vector.shape_cast %1505 : vector<1x1x32x128xbf16> to vector<32x128xbf16>
    %1507 = arith.extf %1506 : vector<32x128xbf16> to vector<32x128xf32>
    %1508 = vector.broadcast %7 : f32 to vector<32x128xf32>
    %1509 = arith.mulf %1507, %1508 : vector<32x128xf32>
    %1510 = arith.addf %1498, %1509 : vector<32x128xf32>
    %1511 = vector.broadcast %16 : f32 to vector<32x128xf32>
    %1512 = arith.mulf %1507, %1511 : vector<32x128xf32>
    %1513 = arith.addf %1501, %1512 : vector<32x128xf32>
    %1514 = vector.broadcast %25 : f32 to vector<32x128xf32>
    %1515 = arith.mulf %1507, %1514 : vector<32x128xf32>
    %1516 = arith.addf %1504, %1515 : vector<32x128xf32>
    %c3_517 = arith.constant 3 : index
    %c2_518 = arith.constant 2 : index
    %c32_519 = arith.constant 32 : index
    %c0_520 = arith.constant 0 : index
    %1517 = vector.load %arg1[%c3_517, %c2_518, %c32_519, %c0_520] : memref<5x5x64x128xbf16, #tpu.memory_space<vmem>>, vector<1x1x32x128xbf16>
    %1518 = vector.shape_cast %1517 : vector<1x1x32x128xbf16> to vector<32x128xbf16>
    %1519 = arith.extf %1518 : vector<32x128xbf16> to vector<32x128xf32>
    %1520 = vector.broadcast %8 : f32 to vector<32x128xf32>
    %1521 = arith.mulf %1519, %1520 : vector<32x128xf32>
    %1522 = arith.addf %1510, %1521 : vector<32x128xf32>
    %1523 = vector.broadcast %17 : f32 to vector<32x128xf32>
    %1524 = arith.mulf %1519, %1523 : vector<32x128xf32>
    %1525 = arith.addf %1513, %1524 : vector<32x128xf32>
    %1526 = vector.broadcast %26 : f32 to vector<32x128xf32>
    %1527 = arith.mulf %1519, %1526 : vector<32x128xf32>
    %1528 = arith.addf %1516, %1527 : vector<32x128xf32>
    %1529 = arith.maximumf %1415, %1522 : vector<32x128xf32>
    %1530 = arith.maximumf %1416, %1525 : vector<32x128xf32>
    %1531 = arith.maximumf %1417, %1528 : vector<32x128xf32>
    %cst_521 = arith.constant 0.000000e+00 : f32
    %1532 = vector.broadcast %cst_521 : f32 to vector<32x128xf32>
    %cst_522 = arith.constant 0.000000e+00 : f32
    %1533 = vector.broadcast %cst_522 : f32 to vector<32x128xf32>
    %cst_523 = arith.constant 0.000000e+00 : f32
    %1534 = vector.broadcast %cst_523 : f32 to vector<32x128xf32>
    %c1_524 = arith.constant 1 : index
    %c1_525 = arith.constant 1 : index
    %c32_526 = arith.constant 32 : index
    %c0_527 = arith.constant 0 : index
    %1535 = vector.load %arg1[%c1_524, %c1_525, %c32_526, %c0_527] : memref<5x5x64x128xbf16, #tpu.memory_space<vmem>>, vector<1x1x32x128xbf16>
    %1536 = vector.shape_cast %1535 : vector<1x1x32x128xbf16> to vector<32x128xbf16>
    %1537 = arith.extf %1536 : vector<32x128xbf16> to vector<32x128xf32>
    %1538 = vector.broadcast %0 : f32 to vector<32x128xf32>
    %1539 = arith.mulf %1537, %1538 : vector<32x128xf32>
    %1540 = arith.addf %1532, %1539 : vector<32x128xf32>
    %1541 = vector.broadcast %9 : f32 to vector<32x128xf32>
    %1542 = arith.mulf %1537, %1541 : vector<32x128xf32>
    %1543 = arith.addf %1533, %1542 : vector<32x128xf32>
    %1544 = vector.broadcast %18 : f32 to vector<32x128xf32>
    %1545 = arith.mulf %1537, %1544 : vector<32x128xf32>
    %1546 = arith.addf %1534, %1545 : vector<32x128xf32>
    %c1_528 = arith.constant 1 : index
    %c2_529 = arith.constant 2 : index
    %c32_530 = arith.constant 32 : index
    %c0_531 = arith.constant 0 : index
    %1547 = vector.load %arg1[%c1_528, %c2_529, %c32_530, %c0_531] : memref<5x5x64x128xbf16, #tpu.memory_space<vmem>>, vector<1x1x32x128xbf16>
    %1548 = vector.shape_cast %1547 : vector<1x1x32x128xbf16> to vector<32x128xbf16>
    %1549 = arith.extf %1548 : vector<32x128xbf16> to vector<32x128xf32>
    %1550 = vector.broadcast %1 : f32 to vector<32x128xf32>
    %1551 = arith.mulf %1549, %1550 : vector<32x128xf32>
    %1552 = arith.addf %1540, %1551 : vector<32x128xf32>
    %1553 = vector.broadcast %10 : f32 to vector<32x128xf32>
    %1554 = arith.mulf %1549, %1553 : vector<32x128xf32>
    %1555 = arith.addf %1543, %1554 : vector<32x128xf32>
    %1556 = vector.broadcast %19 : f32 to vector<32x128xf32>
    %1557 = arith.mulf %1549, %1556 : vector<32x128xf32>
    %1558 = arith.addf %1546, %1557 : vector<32x128xf32>
    %c1_532 = arith.constant 1 : index
    %c3_533 = arith.constant 3 : index
    %c32_534 = arith.constant 32 : index
    %c0_535 = arith.constant 0 : index
    %1559 = vector.load %arg1[%c1_532, %c3_533, %c32_534, %c0_535] : memref<5x5x64x128xbf16, #tpu.memory_space<vmem>>, vector<1x1x32x128xbf16>
    %1560 = vector.shape_cast %1559 : vector<1x1x32x128xbf16> to vector<32x128xbf16>
    %1561 = arith.extf %1560 : vector<32x128xbf16> to vector<32x128xf32>
    %1562 = vector.broadcast %2 : f32 to vector<32x128xf32>
    %1563 = arith.mulf %1561, %1562 : vector<32x128xf32>
    %1564 = arith.addf %1552, %1563 : vector<32x128xf32>
    %1565 = vector.broadcast %11 : f32 to vector<32x128xf32>
    %1566 = arith.mulf %1561, %1565 : vector<32x128xf32>
    %1567 = arith.addf %1555, %1566 : vector<32x128xf32>
    %1568 = vector.broadcast %20 : f32 to vector<32x128xf32>
    %1569 = arith.mulf %1561, %1568 : vector<32x128xf32>
    %1570 = arith.addf %1558, %1569 : vector<32x128xf32>
    %c2_536 = arith.constant 2 : index
    %c1_537 = arith.constant 1 : index
    %c32_538 = arith.constant 32 : index
    %c0_539 = arith.constant 0 : index
    %1571 = vector.load %arg1[%c2_536, %c1_537, %c32_538, %c0_539] : memref<5x5x64x128xbf16, #tpu.memory_space<vmem>>, vector<1x1x32x128xbf16>
    %1572 = vector.shape_cast %1571 : vector<1x1x32x128xbf16> to vector<32x128xbf16>
    %1573 = arith.extf %1572 : vector<32x128xbf16> to vector<32x128xf32>
    %1574 = vector.broadcast %3 : f32 to vector<32x128xf32>
    %1575 = arith.mulf %1573, %1574 : vector<32x128xf32>
    %1576 = arith.addf %1564, %1575 : vector<32x128xf32>
    %1577 = vector.broadcast %12 : f32 to vector<32x128xf32>
    %1578 = arith.mulf %1573, %1577 : vector<32x128xf32>
    %1579 = arith.addf %1567, %1578 : vector<32x128xf32>
    %1580 = vector.broadcast %21 : f32 to vector<32x128xf32>
    %1581 = arith.mulf %1573, %1580 : vector<32x128xf32>
    %1582 = arith.addf %1570, %1581 : vector<32x128xf32>
    %c2_540 = arith.constant 2 : index
    %c2_541 = arith.constant 2 : index
    %c32_542 = arith.constant 32 : index
    %c0_543 = arith.constant 0 : index
    %1583 = vector.load %arg1[%c2_540, %c2_541, %c32_542, %c0_543] : memref<5x5x64x128xbf16, #tpu.memory_space<vmem>>, vector<1x1x32x128xbf16>
    %1584 = vector.shape_cast %1583 : vector<1x1x32x128xbf16> to vector<32x128xbf16>
    %1585 = arith.extf %1584 : vector<32x128xbf16> to vector<32x128xf32>
    %1586 = vector.broadcast %4 : f32 to vector<32x128xf32>
    %1587 = arith.mulf %1585, %1586 : vector<32x128xf32>
    %1588 = arith.addf %1576, %1587 : vector<32x128xf32>
    %1589 = vector.broadcast %13 : f32 to vector<32x128xf32>
    %1590 = arith.mulf %1585, %1589 : vector<32x128xf32>
    %1591 = arith.addf %1579, %1590 : vector<32x128xf32>
    %1592 = vector.broadcast %22 : f32 to vector<32x128xf32>
    %1593 = arith.mulf %1585, %1592 : vector<32x128xf32>
    %1594 = arith.addf %1582, %1593 : vector<32x128xf32>
    %c2_544 = arith.constant 2 : index
    %c3_545 = arith.constant 3 : index
    %c32_546 = arith.constant 32 : index
    %c0_547 = arith.constant 0 : index
    %1595 = vector.load %arg1[%c2_544, %c3_545, %c32_546, %c0_547] : memref<5x5x64x128xbf16, #tpu.memory_space<vmem>>, vector<1x1x32x128xbf16>
    %1596 = vector.shape_cast %1595 : vector<1x1x32x128xbf16> to vector<32x128xbf16>
    %1597 = arith.extf %1596 : vector<32x128xbf16> to vector<32x128xf32>
    %1598 = vector.broadcast %5 : f32 to vector<32x128xf32>
    %1599 = arith.mulf %1597, %1598 : vector<32x128xf32>
    %1600 = arith.addf %1588, %1599 : vector<32x128xf32>
    %1601 = vector.broadcast %14 : f32 to vector<32x128xf32>
    %1602 = arith.mulf %1597, %1601 : vector<32x128xf32>
    %1603 = arith.addf %1591, %1602 : vector<32x128xf32>
    %1604 = vector.broadcast %23 : f32 to vector<32x128xf32>
    %1605 = arith.mulf %1597, %1604 : vector<32x128xf32>
    %1606 = arith.addf %1594, %1605 : vector<32x128xf32>
    %c3_548 = arith.constant 3 : index
    %c1_549 = arith.constant 1 : index
    %c32_550 = arith.constant 32 : index
    %c0_551 = arith.constant 0 : index
    %1607 = vector.load %arg1[%c3_548, %c1_549, %c32_550, %c0_551] : memref<5x5x64x128xbf16, #tpu.memory_space<vmem>>, vector<1x1x32x128xbf16>
    %1608 = vector.shape_cast %1607 : vector<1x1x32x128xbf16> to vector<32x128xbf16>
    %1609 = arith.extf %1608 : vector<32x128xbf16> to vector<32x128xf32>
    %1610 = vector.broadcast %6 : f32 to vector<32x128xf32>
    %1611 = arith.mulf %1609, %1610 : vector<32x128xf32>
    %1612 = arith.addf %1600, %1611 : vector<32x128xf32>
    %1613 = vector.broadcast %15 : f32 to vector<32x128xf32>
    %1614 = arith.mulf %1609, %1613 : vector<32x128xf32>
    %1615 = arith.addf %1603, %1614 : vector<32x128xf32>
    %1616 = vector.broadcast %24 : f32 to vector<32x128xf32>
    %1617 = arith.mulf %1609, %1616 : vector<32x128xf32>
    %1618 = arith.addf %1606, %1617 : vector<32x128xf32>
    %c3_552 = arith.constant 3 : index
    %c2_553 = arith.constant 2 : index
    %c32_554 = arith.constant 32 : index
    %c0_555 = arith.constant 0 : index
    %1619 = vector.load %arg1[%c3_552, %c2_553, %c32_554, %c0_555] : memref<5x5x64x128xbf16, #tpu.memory_space<vmem>>, vector<1x1x32x128xbf16>
    %1620 = vector.shape_cast %1619 : vector<1x1x32x128xbf16> to vector<32x128xbf16>
    %1621 = arith.extf %1620 : vector<32x128xbf16> to vector<32x128xf32>
    %1622 = vector.broadcast %7 : f32 to vector<32x128xf32>
    %1623 = arith.mulf %1621, %1622 : vector<32x128xf32>
    %1624 = arith.addf %1612, %1623 : vector<32x128xf32>
    %1625 = vector.broadcast %16 : f32 to vector<32x128xf32>
    %1626 = arith.mulf %1621, %1625 : vector<32x128xf32>
    %1627 = arith.addf %1615, %1626 : vector<32x128xf32>
    %1628 = vector.broadcast %25 : f32 to vector<32x128xf32>
    %1629 = arith.mulf %1621, %1628 : vector<32x128xf32>
    %1630 = arith.addf %1618, %1629 : vector<32x128xf32>
    %c3_556 = arith.constant 3 : index
    %c3_557 = arith.constant 3 : index
    %c32_558 = arith.constant 32 : index
    %c0_559 = arith.constant 0 : index
    %1631 = vector.load %arg1[%c3_556, %c3_557, %c32_558, %c0_559] : memref<5x5x64x128xbf16, #tpu.memory_space<vmem>>, vector<1x1x32x128xbf16>
    %1632 = vector.shape_cast %1631 : vector<1x1x32x128xbf16> to vector<32x128xbf16>
    %1633 = arith.extf %1632 : vector<32x128xbf16> to vector<32x128xf32>
    %1634 = vector.broadcast %8 : f32 to vector<32x128xf32>
    %1635 = arith.mulf %1633, %1634 : vector<32x128xf32>
    %1636 = arith.addf %1624, %1635 : vector<32x128xf32>
    %1637 = vector.broadcast %17 : f32 to vector<32x128xf32>
    %1638 = arith.mulf %1633, %1637 : vector<32x128xf32>
    %1639 = arith.addf %1627, %1638 : vector<32x128xf32>
    %1640 = vector.broadcast %26 : f32 to vector<32x128xf32>
    %1641 = arith.mulf %1633, %1640 : vector<32x128xf32>
    %1642 = arith.addf %1630, %1641 : vector<32x128xf32>
    %1643 = arith.maximumf %1529, %1636 : vector<32x128xf32>
    %1644 = arith.maximumf %1530, %1639 : vector<32x128xf32>
    %1645 = arith.maximumf %1531, %1642 : vector<32x128xf32>
    %cst_560 = arith.constant 0.000000e+00 : f32
    %1646 = vector.broadcast %cst_560 : f32 to vector<32x128xf32>
    %cst_561 = arith.constant 0.000000e+00 : f32
    %1647 = vector.broadcast %cst_561 : f32 to vector<32x128xf32>
    %cst_562 = arith.constant 0.000000e+00 : f32
    %1648 = vector.broadcast %cst_562 : f32 to vector<32x128xf32>
    %c1_563 = arith.constant 1 : index
    %c2_564 = arith.constant 2 : index
    %c32_565 = arith.constant 32 : index
    %c0_566 = arith.constant 0 : index
    %1649 = vector.load %arg1[%c1_563, %c2_564, %c32_565, %c0_566] : memref<5x5x64x128xbf16, #tpu.memory_space<vmem>>, vector<1x1x32x128xbf16>
    %1650 = vector.shape_cast %1649 : vector<1x1x32x128xbf16> to vector<32x128xbf16>
    %1651 = arith.extf %1650 : vector<32x128xbf16> to vector<32x128xf32>
    %1652 = vector.broadcast %0 : f32 to vector<32x128xf32>
    %1653 = arith.mulf %1651, %1652 : vector<32x128xf32>
    %1654 = arith.addf %1646, %1653 : vector<32x128xf32>
    %1655 = vector.broadcast %9 : f32 to vector<32x128xf32>
    %1656 = arith.mulf %1651, %1655 : vector<32x128xf32>
    %1657 = arith.addf %1647, %1656 : vector<32x128xf32>
    %1658 = vector.broadcast %18 : f32 to vector<32x128xf32>
    %1659 = arith.mulf %1651, %1658 : vector<32x128xf32>
    %1660 = arith.addf %1648, %1659 : vector<32x128xf32>
    %c1_567 = arith.constant 1 : index
    %c3_568 = arith.constant 3 : index
    %c32_569 = arith.constant 32 : index
    %c0_570 = arith.constant 0 : index
    %1661 = vector.load %arg1[%c1_567, %c3_568, %c32_569, %c0_570] : memref<5x5x64x128xbf16, #tpu.memory_space<vmem>>, vector<1x1x32x128xbf16>
    %1662 = vector.shape_cast %1661 : vector<1x1x32x128xbf16> to vector<32x128xbf16>
    %1663 = arith.extf %1662 : vector<32x128xbf16> to vector<32x128xf32>
    %1664 = vector.broadcast %1 : f32 to vector<32x128xf32>
    %1665 = arith.mulf %1663, %1664 : vector<32x128xf32>
    %1666 = arith.addf %1654, %1665 : vector<32x128xf32>
    %1667 = vector.broadcast %10 : f32 to vector<32x128xf32>
    %1668 = arith.mulf %1663, %1667 : vector<32x128xf32>
    %1669 = arith.addf %1657, %1668 : vector<32x128xf32>
    %1670 = vector.broadcast %19 : f32 to vector<32x128xf32>
    %1671 = arith.mulf %1663, %1670 : vector<32x128xf32>
    %1672 = arith.addf %1660, %1671 : vector<32x128xf32>
    %c1_571 = arith.constant 1 : index
    %c4_572 = arith.constant 4 : index
    %c32_573 = arith.constant 32 : index
    %c0_574 = arith.constant 0 : index
    %1673 = vector.load %arg1[%c1_571, %c4_572, %c32_573, %c0_574] : memref<5x5x64x128xbf16, #tpu.memory_space<vmem>>, vector<1x1x32x128xbf16>
    %1674 = vector.shape_cast %1673 : vector<1x1x32x128xbf16> to vector<32x128xbf16>
    %1675 = arith.extf %1674 : vector<32x128xbf16> to vector<32x128xf32>
    %1676 = vector.broadcast %2 : f32 to vector<32x128xf32>
    %1677 = arith.mulf %1675, %1676 : vector<32x128xf32>
    %1678 = arith.addf %1666, %1677 : vector<32x128xf32>
    %1679 = vector.broadcast %11 : f32 to vector<32x128xf32>
    %1680 = arith.mulf %1675, %1679 : vector<32x128xf32>
    %1681 = arith.addf %1669, %1680 : vector<32x128xf32>
    %1682 = vector.broadcast %20 : f32 to vector<32x128xf32>
    %1683 = arith.mulf %1675, %1682 : vector<32x128xf32>
    %1684 = arith.addf %1672, %1683 : vector<32x128xf32>
    %c2_575 = arith.constant 2 : index
    %c2_576 = arith.constant 2 : index
    %c32_577 = arith.constant 32 : index
    %c0_578 = arith.constant 0 : index
    %1685 = vector.load %arg1[%c2_575, %c2_576, %c32_577, %c0_578] : memref<5x5x64x128xbf16, #tpu.memory_space<vmem>>, vector<1x1x32x128xbf16>
    %1686 = vector.shape_cast %1685 : vector<1x1x32x128xbf16> to vector<32x128xbf16>
    %1687 = arith.extf %1686 : vector<32x128xbf16> to vector<32x128xf32>
    %1688 = vector.broadcast %3 : f32 to vector<32x128xf32>
    %1689 = arith.mulf %1687, %1688 : vector<32x128xf32>
    %1690 = arith.addf %1678, %1689 : vector<32x128xf32>
    %1691 = vector.broadcast %12 : f32 to vector<32x128xf32>
    %1692 = arith.mulf %1687, %1691 : vector<32x128xf32>
    %1693 = arith.addf %1681, %1692 : vector<32x128xf32>
    %1694 = vector.broadcast %21 : f32 to vector<32x128xf32>
    %1695 = arith.mulf %1687, %1694 : vector<32x128xf32>
    %1696 = arith.addf %1684, %1695 : vector<32x128xf32>
    %c2_579 = arith.constant 2 : index
    %c3_580 = arith.constant 3 : index
    %c32_581 = arith.constant 32 : index
    %c0_582 = arith.constant 0 : index
    %1697 = vector.load %arg1[%c2_579, %c3_580, %c32_581, %c0_582] : memref<5x5x64x128xbf16, #tpu.memory_space<vmem>>, vector<1x1x32x128xbf16>
    %1698 = vector.shape_cast %1697 : vector<1x1x32x128xbf16> to vector<32x128xbf16>
    %1699 = arith.extf %1698 : vector<32x128xbf16> to vector<32x128xf32>
    %1700 = vector.broadcast %4 : f32 to vector<32x128xf32>
    %1701 = arith.mulf %1699, %1700 : vector<32x128xf32>
    %1702 = arith.addf %1690, %1701 : vector<32x128xf32>
    %1703 = vector.broadcast %13 : f32 to vector<32x128xf32>
    %1704 = arith.mulf %1699, %1703 : vector<32x128xf32>
    %1705 = arith.addf %1693, %1704 : vector<32x128xf32>
    %1706 = vector.broadcast %22 : f32 to vector<32x128xf32>
    %1707 = arith.mulf %1699, %1706 : vector<32x128xf32>
    %1708 = arith.addf %1696, %1707 : vector<32x128xf32>
    %c2_583 = arith.constant 2 : index
    %c4_584 = arith.constant 4 : index
    %c32_585 = arith.constant 32 : index
    %c0_586 = arith.constant 0 : index
    %1709 = vector.load %arg1[%c2_583, %c4_584, %c32_585, %c0_586] : memref<5x5x64x128xbf16, #tpu.memory_space<vmem>>, vector<1x1x32x128xbf16>
    %1710 = vector.shape_cast %1709 : vector<1x1x32x128xbf16> to vector<32x128xbf16>
    %1711 = arith.extf %1710 : vector<32x128xbf16> to vector<32x128xf32>
    %1712 = vector.broadcast %5 : f32 to vector<32x128xf32>
    %1713 = arith.mulf %1711, %1712 : vector<32x128xf32>
    %1714 = arith.addf %1702, %1713 : vector<32x128xf32>
    %1715 = vector.broadcast %14 : f32 to vector<32x128xf32>
    %1716 = arith.mulf %1711, %1715 : vector<32x128xf32>
    %1717 = arith.addf %1705, %1716 : vector<32x128xf32>
    %1718 = vector.broadcast %23 : f32 to vector<32x128xf32>
    %1719 = arith.mulf %1711, %1718 : vector<32x128xf32>
    %1720 = arith.addf %1708, %1719 : vector<32x128xf32>
    %c3_587 = arith.constant 3 : index
    %c2_588 = arith.constant 2 : index
    %c32_589 = arith.constant 32 : index
    %c0_590 = arith.constant 0 : index
    %1721 = vector.load %arg1[%c3_587, %c2_588, %c32_589, %c0_590] : memref<5x5x64x128xbf16, #tpu.memory_space<vmem>>, vector<1x1x32x128xbf16>
    %1722 = vector.shape_cast %1721 : vector<1x1x32x128xbf16> to vector<32x128xbf16>
    %1723 = arith.extf %1722 : vector<32x128xbf16> to vector<32x128xf32>
    %1724 = vector.broadcast %6 : f32 to vector<32x128xf32>
    %1725 = arith.mulf %1723, %1724 : vector<32x128xf32>
    %1726 = arith.addf %1714, %1725 : vector<32x128xf32>
    %1727 = vector.broadcast %15 : f32 to vector<32x128xf32>
    %1728 = arith.mulf %1723, %1727 : vector<32x128xf32>
    %1729 = arith.addf %1717, %1728 : vector<32x128xf32>
    %1730 = vector.broadcast %24 : f32 to vector<32x128xf32>
    %1731 = arith.mulf %1723, %1730 : vector<32x128xf32>
    %1732 = arith.addf %1720, %1731 : vector<32x128xf32>
    %c3_591 = arith.constant 3 : index
    %c3_592 = arith.constant 3 : index
    %c32_593 = arith.constant 32 : index
    %c0_594 = arith.constant 0 : index
    %1733 = vector.load %arg1[%c3_591, %c3_592, %c32_593, %c0_594] : memref<5x5x64x128xbf16, #tpu.memory_space<vmem>>, vector<1x1x32x128xbf16>
    %1734 = vector.shape_cast %1733 : vector<1x1x32x128xbf16> to vector<32x128xbf16>
    %1735 = arith.extf %1734 : vector<32x128xbf16> to vector<32x128xf32>
    %1736 = vector.broadcast %7 : f32 to vector<32x128xf32>
    %1737 = arith.mulf %1735, %1736 : vector<32x128xf32>
    %1738 = arith.addf %1726, %1737 : vector<32x128xf32>
    %1739 = vector.broadcast %16 : f32 to vector<32x128xf32>
    %1740 = arith.mulf %1735, %1739 : vector<32x128xf32>
    %1741 = arith.addf %1729, %1740 : vector<32x128xf32>
    %1742 = vector.broadcast %25 : f32 to vector<32x128xf32>
    %1743 = arith.mulf %1735, %1742 : vector<32x128xf32>
    %1744 = arith.addf %1732, %1743 : vector<32x128xf32>
    %c3_595 = arith.constant 3 : index
    %c4_596 = arith.constant 4 : index
    %c32_597 = arith.constant 32 : index
    %c0_598 = arith.constant 0 : index
    %1745 = vector.load %arg1[%c3_595, %c4_596, %c32_597, %c0_598] : memref<5x5x64x128xbf16, #tpu.memory_space<vmem>>, vector<1x1x32x128xbf16>
    %1746 = vector.shape_cast %1745 : vector<1x1x32x128xbf16> to vector<32x128xbf16>
    %1747 = arith.extf %1746 : vector<32x128xbf16> to vector<32x128xf32>
    %1748 = vector.broadcast %8 : f32 to vector<32x128xf32>
    %1749 = arith.mulf %1747, %1748 : vector<32x128xf32>
    %1750 = arith.addf %1738, %1749 : vector<32x128xf32>
    %1751 = vector.broadcast %17 : f32 to vector<32x128xf32>
    %1752 = arith.mulf %1747, %1751 : vector<32x128xf32>
    %1753 = arith.addf %1741, %1752 : vector<32x128xf32>
    %1754 = vector.broadcast %26 : f32 to vector<32x128xf32>
    %1755 = arith.mulf %1747, %1754 : vector<32x128xf32>
    %1756 = arith.addf %1744, %1755 : vector<32x128xf32>
    %1757 = arith.maximumf %1643, %1750 : vector<32x128xf32>
    %1758 = arith.maximumf %1644, %1753 : vector<32x128xf32>
    %1759 = arith.maximumf %1645, %1756 : vector<32x128xf32>
    %cst_599 = arith.constant 0.000000e+00 : f32
    %1760 = vector.broadcast %cst_599 : f32 to vector<32x128xf32>
    %cst_600 = arith.constant 0.000000e+00 : f32
    %1761 = vector.broadcast %cst_600 : f32 to vector<32x128xf32>
    %cst_601 = arith.constant 0.000000e+00 : f32
    %1762 = vector.broadcast %cst_601 : f32 to vector<32x128xf32>
    %c2_602 = arith.constant 2 : index
    %c0_603 = arith.constant 0 : index
    %c32_604 = arith.constant 32 : index
    %c0_605 = arith.constant 0 : index
    %1763 = vector.load %arg1[%c2_602, %c0_603, %c32_604, %c0_605] : memref<5x5x64x128xbf16, #tpu.memory_space<vmem>>, vector<1x1x32x128xbf16>
    %1764 = vector.shape_cast %1763 : vector<1x1x32x128xbf16> to vector<32x128xbf16>
    %1765 = arith.extf %1764 : vector<32x128xbf16> to vector<32x128xf32>
    %1766 = vector.broadcast %0 : f32 to vector<32x128xf32>
    %1767 = arith.mulf %1765, %1766 : vector<32x128xf32>
    %1768 = arith.addf %1760, %1767 : vector<32x128xf32>
    %1769 = vector.broadcast %9 : f32 to vector<32x128xf32>
    %1770 = arith.mulf %1765, %1769 : vector<32x128xf32>
    %1771 = arith.addf %1761, %1770 : vector<32x128xf32>
    %1772 = vector.broadcast %18 : f32 to vector<32x128xf32>
    %1773 = arith.mulf %1765, %1772 : vector<32x128xf32>
    %1774 = arith.addf %1762, %1773 : vector<32x128xf32>
    %c2_606 = arith.constant 2 : index
    %c1_607 = arith.constant 1 : index
    %c32_608 = arith.constant 32 : index
    %c0_609 = arith.constant 0 : index
    %1775 = vector.load %arg1[%c2_606, %c1_607, %c32_608, %c0_609] : memref<5x5x64x128xbf16, #tpu.memory_space<vmem>>, vector<1x1x32x128xbf16>
    %1776 = vector.shape_cast %1775 : vector<1x1x32x128xbf16> to vector<32x128xbf16>
    %1777 = arith.extf %1776 : vector<32x128xbf16> to vector<32x128xf32>
    %1778 = vector.broadcast %1 : f32 to vector<32x128xf32>
    %1779 = arith.mulf %1777, %1778 : vector<32x128xf32>
    %1780 = arith.addf %1768, %1779 : vector<32x128xf32>
    %1781 = vector.broadcast %10 : f32 to vector<32x128xf32>
    %1782 = arith.mulf %1777, %1781 : vector<32x128xf32>
    %1783 = arith.addf %1771, %1782 : vector<32x128xf32>
    %1784 = vector.broadcast %19 : f32 to vector<32x128xf32>
    %1785 = arith.mulf %1777, %1784 : vector<32x128xf32>
    %1786 = arith.addf %1774, %1785 : vector<32x128xf32>
    %c2_610 = arith.constant 2 : index
    %c2_611 = arith.constant 2 : index
    %c32_612 = arith.constant 32 : index
    %c0_613 = arith.constant 0 : index
    %1787 = vector.load %arg1[%c2_610, %c2_611, %c32_612, %c0_613] : memref<5x5x64x128xbf16, #tpu.memory_space<vmem>>, vector<1x1x32x128xbf16>
    %1788 = vector.shape_cast %1787 : vector<1x1x32x128xbf16> to vector<32x128xbf16>
    %1789 = arith.extf %1788 : vector<32x128xbf16> to vector<32x128xf32>
    %1790 = vector.broadcast %2 : f32 to vector<32x128xf32>
    %1791 = arith.mulf %1789, %1790 : vector<32x128xf32>
    %1792 = arith.addf %1780, %1791 : vector<32x128xf32>
    %1793 = vector.broadcast %11 : f32 to vector<32x128xf32>
    %1794 = arith.mulf %1789, %1793 : vector<32x128xf32>
    %1795 = arith.addf %1783, %1794 : vector<32x128xf32>
    %1796 = vector.broadcast %20 : f32 to vector<32x128xf32>
    %1797 = arith.mulf %1789, %1796 : vector<32x128xf32>
    %1798 = arith.addf %1786, %1797 : vector<32x128xf32>
    %c3_614 = arith.constant 3 : index
    %c0_615 = arith.constant 0 : index
    %c32_616 = arith.constant 32 : index
    %c0_617 = arith.constant 0 : index
    %1799 = vector.load %arg1[%c3_614, %c0_615, %c32_616, %c0_617] : memref<5x5x64x128xbf16, #tpu.memory_space<vmem>>, vector<1x1x32x128xbf16>
    %1800 = vector.shape_cast %1799 : vector<1x1x32x128xbf16> to vector<32x128xbf16>
    %1801 = arith.extf %1800 : vector<32x128xbf16> to vector<32x128xf32>
    %1802 = vector.broadcast %3 : f32 to vector<32x128xf32>
    %1803 = arith.mulf %1801, %1802 : vector<32x128xf32>
    %1804 = arith.addf %1792, %1803 : vector<32x128xf32>
    %1805 = vector.broadcast %12 : f32 to vector<32x128xf32>
    %1806 = arith.mulf %1801, %1805 : vector<32x128xf32>
    %1807 = arith.addf %1795, %1806 : vector<32x128xf32>
    %1808 = vector.broadcast %21 : f32 to vector<32x128xf32>
    %1809 = arith.mulf %1801, %1808 : vector<32x128xf32>
    %1810 = arith.addf %1798, %1809 : vector<32x128xf32>
    %c3_618 = arith.constant 3 : index
    %c1_619 = arith.constant 1 : index
    %c32_620 = arith.constant 32 : index
    %c0_621 = arith.constant 0 : index
    %1811 = vector.load %arg1[%c3_618, %c1_619, %c32_620, %c0_621] : memref<5x5x64x128xbf16, #tpu.memory_space<vmem>>, vector<1x1x32x128xbf16>
    %1812 = vector.shape_cast %1811 : vector<1x1x32x128xbf16> to vector<32x128xbf16>
    %1813 = arith.extf %1812 : vector<32x128xbf16> to vector<32x128xf32>
    %1814 = vector.broadcast %4 : f32 to vector<32x128xf32>
    %1815 = arith.mulf %1813, %1814 : vector<32x128xf32>
    %1816 = arith.addf %1804, %1815 : vector<32x128xf32>
    %1817 = vector.broadcast %13 : f32 to vector<32x128xf32>
    %1818 = arith.mulf %1813, %1817 : vector<32x128xf32>
    %1819 = arith.addf %1807, %1818 : vector<32x128xf32>
    %1820 = vector.broadcast %22 : f32 to vector<32x128xf32>
    %1821 = arith.mulf %1813, %1820 : vector<32x128xf32>
    %1822 = arith.addf %1810, %1821 : vector<32x128xf32>
    %c3_622 = arith.constant 3 : index
    %c2_623 = arith.constant 2 : index
    %c32_624 = arith.constant 32 : index
    %c0_625 = arith.constant 0 : index
    %1823 = vector.load %arg1[%c3_622, %c2_623, %c32_624, %c0_625] : memref<5x5x64x128xbf16, #tpu.memory_space<vmem>>, vector<1x1x32x128xbf16>
    %1824 = vector.shape_cast %1823 : vector<1x1x32x128xbf16> to vector<32x128xbf16>
    %1825 = arith.extf %1824 : vector<32x128xbf16> to vector<32x128xf32>
    %1826 = vector.broadcast %5 : f32 to vector<32x128xf32>
    %1827 = arith.mulf %1825, %1826 : vector<32x128xf32>
    %1828 = arith.addf %1816, %1827 : vector<32x128xf32>
    %1829 = vector.broadcast %14 : f32 to vector<32x128xf32>
    %1830 = arith.mulf %1825, %1829 : vector<32x128xf32>
    %1831 = arith.addf %1819, %1830 : vector<32x128xf32>
    %1832 = vector.broadcast %23 : f32 to vector<32x128xf32>
    %1833 = arith.mulf %1825, %1832 : vector<32x128xf32>
    %1834 = arith.addf %1822, %1833 : vector<32x128xf32>
    %c4_626 = arith.constant 4 : index
    %c0_627 = arith.constant 0 : index
    %c32_628 = arith.constant 32 : index
    %c0_629 = arith.constant 0 : index
    %1835 = vector.load %arg1[%c4_626, %c0_627, %c32_628, %c0_629] : memref<5x5x64x128xbf16, #tpu.memory_space<vmem>>, vector<1x1x32x128xbf16>
    %1836 = vector.shape_cast %1835 : vector<1x1x32x128xbf16> to vector<32x128xbf16>
    %1837 = arith.extf %1836 : vector<32x128xbf16> to vector<32x128xf32>
    %1838 = vector.broadcast %6 : f32 to vector<32x128xf32>
    %1839 = arith.mulf %1837, %1838 : vector<32x128xf32>
    %1840 = arith.addf %1828, %1839 : vector<32x128xf32>
    %1841 = vector.broadcast %15 : f32 to vector<32x128xf32>
    %1842 = arith.mulf %1837, %1841 : vector<32x128xf32>
    %1843 = arith.addf %1831, %1842 : vector<32x128xf32>
    %1844 = vector.broadcast %24 : f32 to vector<32x128xf32>
    %1845 = arith.mulf %1837, %1844 : vector<32x128xf32>
    %1846 = arith.addf %1834, %1845 : vector<32x128xf32>
    %c4_630 = arith.constant 4 : index
    %c1_631 = arith.constant 1 : index
    %c32_632 = arith.constant 32 : index
    %c0_633 = arith.constant 0 : index
    %1847 = vector.load %arg1[%c4_630, %c1_631, %c32_632, %c0_633] : memref<5x5x64x128xbf16, #tpu.memory_space<vmem>>, vector<1x1x32x128xbf16>
    %1848 = vector.shape_cast %1847 : vector<1x1x32x128xbf16> to vector<32x128xbf16>
    %1849 = arith.extf %1848 : vector<32x128xbf16> to vector<32x128xf32>
    %1850 = vector.broadcast %7 : f32 to vector<32x128xf32>
    %1851 = arith.mulf %1849, %1850 : vector<32x128xf32>
    %1852 = arith.addf %1840, %1851 : vector<32x128xf32>
    %1853 = vector.broadcast %16 : f32 to vector<32x128xf32>
    %1854 = arith.mulf %1849, %1853 : vector<32x128xf32>
    %1855 = arith.addf %1843, %1854 : vector<32x128xf32>
    %1856 = vector.broadcast %25 : f32 to vector<32x128xf32>
    %1857 = arith.mulf %1849, %1856 : vector<32x128xf32>
    %1858 = arith.addf %1846, %1857 : vector<32x128xf32>
    %c4_634 = arith.constant 4 : index
    %c2_635 = arith.constant 2 : index
    %c32_636 = arith.constant 32 : index
    %c0_637 = arith.constant 0 : index
    %1859 = vector.load %arg1[%c4_634, %c2_635, %c32_636, %c0_637] : memref<5x5x64x128xbf16, #tpu.memory_space<vmem>>, vector<1x1x32x128xbf16>
    %1860 = vector.shape_cast %1859 : vector<1x1x32x128xbf16> to vector<32x128xbf16>
    %1861 = arith.extf %1860 : vector<32x128xbf16> to vector<32x128xf32>
    %1862 = vector.broadcast %8 : f32 to vector<32x128xf32>
    %1863 = arith.mulf %1861, %1862 : vector<32x128xf32>
    %1864 = arith.addf %1852, %1863 : vector<32x128xf32>
    %1865 = vector.broadcast %17 : f32 to vector<32x128xf32>
    %1866 = arith.mulf %1861, %1865 : vector<32x128xf32>
    %1867 = arith.addf %1855, %1866 : vector<32x128xf32>
    %1868 = vector.broadcast %26 : f32 to vector<32x128xf32>
    %1869 = arith.mulf %1861, %1868 : vector<32x128xf32>
    %1870 = arith.addf %1858, %1869 : vector<32x128xf32>
    %1871 = arith.maximumf %1757, %1864 : vector<32x128xf32>
    %1872 = arith.maximumf %1758, %1867 : vector<32x128xf32>
    %1873 = arith.maximumf %1759, %1870 : vector<32x128xf32>
    %cst_638 = arith.constant 0.000000e+00 : f32
    %1874 = vector.broadcast %cst_638 : f32 to vector<32x128xf32>
    %cst_639 = arith.constant 0.000000e+00 : f32
    %1875 = vector.broadcast %cst_639 : f32 to vector<32x128xf32>
    %cst_640 = arith.constant 0.000000e+00 : f32
    %1876 = vector.broadcast %cst_640 : f32 to vector<32x128xf32>
    %c2_641 = arith.constant 2 : index
    %c1_642 = arith.constant 1 : index
    %c32_643 = arith.constant 32 : index
    %c0_644 = arith.constant 0 : index
    %1877 = vector.load %arg1[%c2_641, %c1_642, %c32_643, %c0_644] : memref<5x5x64x128xbf16, #tpu.memory_space<vmem>>, vector<1x1x32x128xbf16>
    %1878 = vector.shape_cast %1877 : vector<1x1x32x128xbf16> to vector<32x128xbf16>
    %1879 = arith.extf %1878 : vector<32x128xbf16> to vector<32x128xf32>
    %1880 = vector.broadcast %0 : f32 to vector<32x128xf32>
    %1881 = arith.mulf %1879, %1880 : vector<32x128xf32>
    %1882 = arith.addf %1874, %1881 : vector<32x128xf32>
    %1883 = vector.broadcast %9 : f32 to vector<32x128xf32>
    %1884 = arith.mulf %1879, %1883 : vector<32x128xf32>
    %1885 = arith.addf %1875, %1884 : vector<32x128xf32>
    %1886 = vector.broadcast %18 : f32 to vector<32x128xf32>
    %1887 = arith.mulf %1879, %1886 : vector<32x128xf32>
    %1888 = arith.addf %1876, %1887 : vector<32x128xf32>
    %c2_645 = arith.constant 2 : index
    %c2_646 = arith.constant 2 : index
    %c32_647 = arith.constant 32 : index
    %c0_648 = arith.constant 0 : index
    %1889 = vector.load %arg1[%c2_645, %c2_646, %c32_647, %c0_648] : memref<5x5x64x128xbf16, #tpu.memory_space<vmem>>, vector<1x1x32x128xbf16>
    %1890 = vector.shape_cast %1889 : vector<1x1x32x128xbf16> to vector<32x128xbf16>
    %1891 = arith.extf %1890 : vector<32x128xbf16> to vector<32x128xf32>
    %1892 = vector.broadcast %1 : f32 to vector<32x128xf32>
    %1893 = arith.mulf %1891, %1892 : vector<32x128xf32>
    %1894 = arith.addf %1882, %1893 : vector<32x128xf32>
    %1895 = vector.broadcast %10 : f32 to vector<32x128xf32>
    %1896 = arith.mulf %1891, %1895 : vector<32x128xf32>
    %1897 = arith.addf %1885, %1896 : vector<32x128xf32>
    %1898 = vector.broadcast %19 : f32 to vector<32x128xf32>
    %1899 = arith.mulf %1891, %1898 : vector<32x128xf32>
    %1900 = arith.addf %1888, %1899 : vector<32x128xf32>
    %c2_649 = arith.constant 2 : index
    %c3_650 = arith.constant 3 : index
    %c32_651 = arith.constant 32 : index
    %c0_652 = arith.constant 0 : index
    %1901 = vector.load %arg1[%c2_649, %c3_650, %c32_651, %c0_652] : memref<5x5x64x128xbf16, #tpu.memory_space<vmem>>, vector<1x1x32x128xbf16>
    %1902 = vector.shape_cast %1901 : vector<1x1x32x128xbf16> to vector<32x128xbf16>
    %1903 = arith.extf %1902 : vector<32x128xbf16> to vector<32x128xf32>
    %1904 = vector.broadcast %2 : f32 to vector<32x128xf32>
    %1905 = arith.mulf %1903, %1904 : vector<32x128xf32>
    %1906 = arith.addf %1894, %1905 : vector<32x128xf32>
    %1907 = vector.broadcast %11 : f32 to vector<32x128xf32>
    %1908 = arith.mulf %1903, %1907 : vector<32x128xf32>
    %1909 = arith.addf %1897, %1908 : vector<32x128xf32>
    %1910 = vector.broadcast %20 : f32 to vector<32x128xf32>
    %1911 = arith.mulf %1903, %1910 : vector<32x128xf32>
    %1912 = arith.addf %1900, %1911 : vector<32x128xf32>
    %c3_653 = arith.constant 3 : index
    %c1_654 = arith.constant 1 : index
    %c32_655 = arith.constant 32 : index
    %c0_656 = arith.constant 0 : index
    %1913 = vector.load %arg1[%c3_653, %c1_654, %c32_655, %c0_656] : memref<5x5x64x128xbf16, #tpu.memory_space<vmem>>, vector<1x1x32x128xbf16>
    %1914 = vector.shape_cast %1913 : vector<1x1x32x128xbf16> to vector<32x128xbf16>
    %1915 = arith.extf %1914 : vector<32x128xbf16> to vector<32x128xf32>
    %1916 = vector.broadcast %3 : f32 to vector<32x128xf32>
    %1917 = arith.mulf %1915, %1916 : vector<32x128xf32>
    %1918 = arith.addf %1906, %1917 : vector<32x128xf32>
    %1919 = vector.broadcast %12 : f32 to vector<32x128xf32>
    %1920 = arith.mulf %1915, %1919 : vector<32x128xf32>
    %1921 = arith.addf %1909, %1920 : vector<32x128xf32>
    %1922 = vector.broadcast %21 : f32 to vector<32x128xf32>
    %1923 = arith.mulf %1915, %1922 : vector<32x128xf32>
    %1924 = arith.addf %1912, %1923 : vector<32x128xf32>
    %c3_657 = arith.constant 3 : index
    %c2_658 = arith.constant 2 : index
    %c32_659 = arith.constant 32 : index
    %c0_660 = arith.constant 0 : index
    %1925 = vector.load %arg1[%c3_657, %c2_658, %c32_659, %c0_660] : memref<5x5x64x128xbf16, #tpu.memory_space<vmem>>, vector<1x1x32x128xbf16>
    %1926 = vector.shape_cast %1925 : vector<1x1x32x128xbf16> to vector<32x128xbf16>
    %1927 = arith.extf %1926 : vector<32x128xbf16> to vector<32x128xf32>
    %1928 = vector.broadcast %4 : f32 to vector<32x128xf32>
    %1929 = arith.mulf %1927, %1928 : vector<32x128xf32>
    %1930 = arith.addf %1918, %1929 : vector<32x128xf32>
    %1931 = vector.broadcast %13 : f32 to vector<32x128xf32>
    %1932 = arith.mulf %1927, %1931 : vector<32x128xf32>
    %1933 = arith.addf %1921, %1932 : vector<32x128xf32>
    %1934 = vector.broadcast %22 : f32 to vector<32x128xf32>
    %1935 = arith.mulf %1927, %1934 : vector<32x128xf32>
    %1936 = arith.addf %1924, %1935 : vector<32x128xf32>
    %c3_661 = arith.constant 3 : index
    %c3_662 = arith.constant 3 : index
    %c32_663 = arith.constant 32 : index
    %c0_664 = arith.constant 0 : index
    %1937 = vector.load %arg1[%c3_661, %c3_662, %c32_663, %c0_664] : memref<5x5x64x128xbf16, #tpu.memory_space<vmem>>, vector<1x1x32x128xbf16>
    %1938 = vector.shape_cast %1937 : vector<1x1x32x128xbf16> to vector<32x128xbf16>
    %1939 = arith.extf %1938 : vector<32x128xbf16> to vector<32x128xf32>
    %1940 = vector.broadcast %5 : f32 to vector<32x128xf32>
    %1941 = arith.mulf %1939, %1940 : vector<32x128xf32>
    %1942 = arith.addf %1930, %1941 : vector<32x128xf32>
    %1943 = vector.broadcast %14 : f32 to vector<32x128xf32>
    %1944 = arith.mulf %1939, %1943 : vector<32x128xf32>
    %1945 = arith.addf %1933, %1944 : vector<32x128xf32>
    %1946 = vector.broadcast %23 : f32 to vector<32x128xf32>
    %1947 = arith.mulf %1939, %1946 : vector<32x128xf32>
    %1948 = arith.addf %1936, %1947 : vector<32x128xf32>
    %c4_665 = arith.constant 4 : index
    %c1_666 = arith.constant 1 : index
    %c32_667 = arith.constant 32 : index
    %c0_668 = arith.constant 0 : index
    %1949 = vector.load %arg1[%c4_665, %c1_666, %c32_667, %c0_668] : memref<5x5x64x128xbf16, #tpu.memory_space<vmem>>, vector<1x1x32x128xbf16>
    %1950 = vector.shape_cast %1949 : vector<1x1x32x128xbf16> to vector<32x128xbf16>
    %1951 = arith.extf %1950 : vector<32x128xbf16> to vector<32x128xf32>
    %1952 = vector.broadcast %6 : f32 to vector<32x128xf32>
    %1953 = arith.mulf %1951, %1952 : vector<32x128xf32>
    %1954 = arith.addf %1942, %1953 : vector<32x128xf32>
    %1955 = vector.broadcast %15 : f32 to vector<32x128xf32>
    %1956 = arith.mulf %1951, %1955 : vector<32x128xf32>
    %1957 = arith.addf %1945, %1956 : vector<32x128xf32>
    %1958 = vector.broadcast %24 : f32 to vector<32x128xf32>
    %1959 = arith.mulf %1951, %1958 : vector<32x128xf32>
    %1960 = arith.addf %1948, %1959 : vector<32x128xf32>
    %c4_669 = arith.constant 4 : index
    %c2_670 = arith.constant 2 : index
    %c32_671 = arith.constant 32 : index
    %c0_672 = arith.constant 0 : index
    %1961 = vector.load %arg1[%c4_669, %c2_670, %c32_671, %c0_672] : memref<5x5x64x128xbf16, #tpu.memory_space<vmem>>, vector<1x1x32x128xbf16>
    %1962 = vector.shape_cast %1961 : vector<1x1x32x128xbf16> to vector<32x128xbf16>
    %1963 = arith.extf %1962 : vector<32x128xbf16> to vector<32x128xf32>
    %1964 = vector.broadcast %7 : f32 to vector<32x128xf32>
    %1965 = arith.mulf %1963, %1964 : vector<32x128xf32>
    %1966 = arith.addf %1954, %1965 : vector<32x128xf32>
    %1967 = vector.broadcast %16 : f32 to vector<32x128xf32>
    %1968 = arith.mulf %1963, %1967 : vector<32x128xf32>
    %1969 = arith.addf %1957, %1968 : vector<32x128xf32>
    %1970 = vector.broadcast %25 : f32 to vector<32x128xf32>
    %1971 = arith.mulf %1963, %1970 : vector<32x128xf32>
    %1972 = arith.addf %1960, %1971 : vector<32x128xf32>
    %c4_673 = arith.constant 4 : index
    %c3_674 = arith.constant 3 : index
    %c32_675 = arith.constant 32 : index
    %c0_676 = arith.constant 0 : index
    %1973 = vector.load %arg1[%c4_673, %c3_674, %c32_675, %c0_676] : memref<5x5x64x128xbf16, #tpu.memory_space<vmem>>, vector<1x1x32x128xbf16>
    %1974 = vector.shape_cast %1973 : vector<1x1x32x128xbf16> to vector<32x128xbf16>
    %1975 = arith.extf %1974 : vector<32x128xbf16> to vector<32x128xf32>
    %1976 = vector.broadcast %8 : f32 to vector<32x128xf32>
    %1977 = arith.mulf %1975, %1976 : vector<32x128xf32>
    %1978 = arith.addf %1966, %1977 : vector<32x128xf32>
    %1979 = vector.broadcast %17 : f32 to vector<32x128xf32>
    %1980 = arith.mulf %1975, %1979 : vector<32x128xf32>
    %1981 = arith.addf %1969, %1980 : vector<32x128xf32>
    %1982 = vector.broadcast %26 : f32 to vector<32x128xf32>
    %1983 = arith.mulf %1975, %1982 : vector<32x128xf32>
    %1984 = arith.addf %1972, %1983 : vector<32x128xf32>
    %1985 = arith.maximumf %1871, %1978 : vector<32x128xf32>
    %1986 = arith.maximumf %1872, %1981 : vector<32x128xf32>
    %1987 = arith.maximumf %1873, %1984 : vector<32x128xf32>
    %cst_677 = arith.constant 0.000000e+00 : f32
    %1988 = vector.broadcast %cst_677 : f32 to vector<32x128xf32>
    %cst_678 = arith.constant 0.000000e+00 : f32
    %1989 = vector.broadcast %cst_678 : f32 to vector<32x128xf32>
    %cst_679 = arith.constant 0.000000e+00 : f32
    %1990 = vector.broadcast %cst_679 : f32 to vector<32x128xf32>
    %c2_680 = arith.constant 2 : index
    %c2_681 = arith.constant 2 : index
    %c32_682 = arith.constant 32 : index
    %c0_683 = arith.constant 0 : index
    %1991 = vector.load %arg1[%c2_680, %c2_681, %c32_682, %c0_683] : memref<5x5x64x128xbf16, #tpu.memory_space<vmem>>, vector<1x1x32x128xbf16>
    %1992 = vector.shape_cast %1991 : vector<1x1x32x128xbf16> to vector<32x128xbf16>
    %1993 = arith.extf %1992 : vector<32x128xbf16> to vector<32x128xf32>
    %1994 = vector.broadcast %0 : f32 to vector<32x128xf32>
    %1995 = arith.mulf %1993, %1994 : vector<32x128xf32>
    %1996 = arith.addf %1988, %1995 : vector<32x128xf32>
    %1997 = vector.broadcast %9 : f32 to vector<32x128xf32>
    %1998 = arith.mulf %1993, %1997 : vector<32x128xf32>
    %1999 = arith.addf %1989, %1998 : vector<32x128xf32>
    %2000 = vector.broadcast %18 : f32 to vector<32x128xf32>
    %2001 = arith.mulf %1993, %2000 : vector<32x128xf32>
    %2002 = arith.addf %1990, %2001 : vector<32x128xf32>
    %c2_684 = arith.constant 2 : index
    %c3_685 = arith.constant 3 : index
    %c32_686 = arith.constant 32 : index
    %c0_687 = arith.constant 0 : index
    %2003 = vector.load %arg1[%c2_684, %c3_685, %c32_686, %c0_687] : memref<5x5x64x128xbf16, #tpu.memory_space<vmem>>, vector<1x1x32x128xbf16>
    %2004 = vector.shape_cast %2003 : vector<1x1x32x128xbf16> to vector<32x128xbf16>
    %2005 = arith.extf %2004 : vector<32x128xbf16> to vector<32x128xf32>
    %2006 = vector.broadcast %1 : f32 to vector<32x128xf32>
    %2007 = arith.mulf %2005, %2006 : vector<32x128xf32>
    %2008 = arith.addf %1996, %2007 : vector<32x128xf32>
    %2009 = vector.broadcast %10 : f32 to vector<32x128xf32>
    %2010 = arith.mulf %2005, %2009 : vector<32x128xf32>
    %2011 = arith.addf %1999, %2010 : vector<32x128xf32>
    %2012 = vector.broadcast %19 : f32 to vector<32x128xf32>
    %2013 = arith.mulf %2005, %2012 : vector<32x128xf32>
    %2014 = arith.addf %2002, %2013 : vector<32x128xf32>
    %c2_688 = arith.constant 2 : index
    %c4_689 = arith.constant 4 : index
    %c32_690 = arith.constant 32 : index
    %c0_691 = arith.constant 0 : index
    %2015 = vector.load %arg1[%c2_688, %c4_689, %c32_690, %c0_691] : memref<5x5x64x128xbf16, #tpu.memory_space<vmem>>, vector<1x1x32x128xbf16>
    %2016 = vector.shape_cast %2015 : vector<1x1x32x128xbf16> to vector<32x128xbf16>
    %2017 = arith.extf %2016 : vector<32x128xbf16> to vector<32x128xf32>
    %2018 = vector.broadcast %2 : f32 to vector<32x128xf32>
    %2019 = arith.mulf %2017, %2018 : vector<32x128xf32>
    %2020 = arith.addf %2008, %2019 : vector<32x128xf32>
    %2021 = vector.broadcast %11 : f32 to vector<32x128xf32>
    %2022 = arith.mulf %2017, %2021 : vector<32x128xf32>
    %2023 = arith.addf %2011, %2022 : vector<32x128xf32>
    %2024 = vector.broadcast %20 : f32 to vector<32x128xf32>
    %2025 = arith.mulf %2017, %2024 : vector<32x128xf32>
    %2026 = arith.addf %2014, %2025 : vector<32x128xf32>
    %c3_692 = arith.constant 3 : index
    %c2_693 = arith.constant 2 : index
    %c32_694 = arith.constant 32 : index
    %c0_695 = arith.constant 0 : index
    %2027 = vector.load %arg1[%c3_692, %c2_693, %c32_694, %c0_695] : memref<5x5x64x128xbf16, #tpu.memory_space<vmem>>, vector<1x1x32x128xbf16>
    %2028 = vector.shape_cast %2027 : vector<1x1x32x128xbf16> to vector<32x128xbf16>
    %2029 = arith.extf %2028 : vector<32x128xbf16> to vector<32x128xf32>
    %2030 = vector.broadcast %3 : f32 to vector<32x128xf32>
    %2031 = arith.mulf %2029, %2030 : vector<32x128xf32>
    %2032 = arith.addf %2020, %2031 : vector<32x128xf32>
    %2033 = vector.broadcast %12 : f32 to vector<32x128xf32>
    %2034 = arith.mulf %2029, %2033 : vector<32x128xf32>
    %2035 = arith.addf %2023, %2034 : vector<32x128xf32>
    %2036 = vector.broadcast %21 : f32 to vector<32x128xf32>
    %2037 = arith.mulf %2029, %2036 : vector<32x128xf32>
    %2038 = arith.addf %2026, %2037 : vector<32x128xf32>
    %c3_696 = arith.constant 3 : index
    %c3_697 = arith.constant 3 : index
    %c32_698 = arith.constant 32 : index
    %c0_699 = arith.constant 0 : index
    %2039 = vector.load %arg1[%c3_696, %c3_697, %c32_698, %c0_699] : memref<5x5x64x128xbf16, #tpu.memory_space<vmem>>, vector<1x1x32x128xbf16>
    %2040 = vector.shape_cast %2039 : vector<1x1x32x128xbf16> to vector<32x128xbf16>
    %2041 = arith.extf %2040 : vector<32x128xbf16> to vector<32x128xf32>
    %2042 = vector.broadcast %4 : f32 to vector<32x128xf32>
    %2043 = arith.mulf %2041, %2042 : vector<32x128xf32>
    %2044 = arith.addf %2032, %2043 : vector<32x128xf32>
    %2045 = vector.broadcast %13 : f32 to vector<32x128xf32>
    %2046 = arith.mulf %2041, %2045 : vector<32x128xf32>
    %2047 = arith.addf %2035, %2046 : vector<32x128xf32>
    %2048 = vector.broadcast %22 : f32 to vector<32x128xf32>
    %2049 = arith.mulf %2041, %2048 : vector<32x128xf32>
    %2050 = arith.addf %2038, %2049 : vector<32x128xf32>
    %c3_700 = arith.constant 3 : index
    %c4_701 = arith.constant 4 : index
    %c32_702 = arith.constant 32 : index
    %c0_703 = arith.constant 0 : index
    %2051 = vector.load %arg1[%c3_700, %c4_701, %c32_702, %c0_703] : memref<5x5x64x128xbf16, #tpu.memory_space<vmem>>, vector<1x1x32x128xbf16>
    %2052 = vector.shape_cast %2051 : vector<1x1x32x128xbf16> to vector<32x128xbf16>
    %2053 = arith.extf %2052 : vector<32x128xbf16> to vector<32x128xf32>
    %2054 = vector.broadcast %5 : f32 to vector<32x128xf32>
    %2055 = arith.mulf %2053, %2054 : vector<32x128xf32>
    %2056 = arith.addf %2044, %2055 : vector<32x128xf32>
    %2057 = vector.broadcast %14 : f32 to vector<32x128xf32>
    %2058 = arith.mulf %2053, %2057 : vector<32x128xf32>
    %2059 = arith.addf %2047, %2058 : vector<32x128xf32>
    %2060 = vector.broadcast %23 : f32 to vector<32x128xf32>
    %2061 = arith.mulf %2053, %2060 : vector<32x128xf32>
    %2062 = arith.addf %2050, %2061 : vector<32x128xf32>
    %c4_704 = arith.constant 4 : index
    %c2_705 = arith.constant 2 : index
    %c32_706 = arith.constant 32 : index
    %c0_707 = arith.constant 0 : index
    %2063 = vector.load %arg1[%c4_704, %c2_705, %c32_706, %c0_707] : memref<5x5x64x128xbf16, #tpu.memory_space<vmem>>, vector<1x1x32x128xbf16>
    %2064 = vector.shape_cast %2063 : vector<1x1x32x128xbf16> to vector<32x128xbf16>
    %2065 = arith.extf %2064 : vector<32x128xbf16> to vector<32x128xf32>
    %2066 = vector.broadcast %6 : f32 to vector<32x128xf32>
    %2067 = arith.mulf %2065, %2066 : vector<32x128xf32>
    %2068 = arith.addf %2056, %2067 : vector<32x128xf32>
    %2069 = vector.broadcast %15 : f32 to vector<32x128xf32>
    %2070 = arith.mulf %2065, %2069 : vector<32x128xf32>
    %2071 = arith.addf %2059, %2070 : vector<32x128xf32>
    %2072 = vector.broadcast %24 : f32 to vector<32x128xf32>
    %2073 = arith.mulf %2065, %2072 : vector<32x128xf32>
    %2074 = arith.addf %2062, %2073 : vector<32x128xf32>
    %c4_708 = arith.constant 4 : index
    %c3_709 = arith.constant 3 : index
    %c32_710 = arith.constant 32 : index
    %c0_711 = arith.constant 0 : index
    %2075 = vector.load %arg1[%c4_708, %c3_709, %c32_710, %c0_711] : memref<5x5x64x128xbf16, #tpu.memory_space<vmem>>, vector<1x1x32x128xbf16>
    %2076 = vector.shape_cast %2075 : vector<1x1x32x128xbf16> to vector<32x128xbf16>
    %2077 = arith.extf %2076 : vector<32x128xbf16> to vector<32x128xf32>
    %2078 = vector.broadcast %7 : f32 to vector<32x128xf32>
    %2079 = arith.mulf %2077, %2078 : vector<32x128xf32>
    %2080 = arith.addf %2068, %2079 : vector<32x128xf32>
    %2081 = vector.broadcast %16 : f32 to vector<32x128xf32>
    %2082 = arith.mulf %2077, %2081 : vector<32x128xf32>
    %2083 = arith.addf %2071, %2082 : vector<32x128xf32>
    %2084 = vector.broadcast %25 : f32 to vector<32x128xf32>
    %2085 = arith.mulf %2077, %2084 : vector<32x128xf32>
    %2086 = arith.addf %2074, %2085 : vector<32x128xf32>
    %c4_712 = arith.constant 4 : index
    %c4_713 = arith.constant 4 : index
    %c32_714 = arith.constant 32 : index
    %c0_715 = arith.constant 0 : index
    %2087 = vector.load %arg1[%c4_712, %c4_713, %c32_714, %c0_715] : memref<5x5x64x128xbf16, #tpu.memory_space<vmem>>, vector<1x1x32x128xbf16>
    %2088 = vector.shape_cast %2087 : vector<1x1x32x128xbf16> to vector<32x128xbf16>
    %2089 = arith.extf %2088 : vector<32x128xbf16> to vector<32x128xf32>
    %2090 = vector.broadcast %8 : f32 to vector<32x128xf32>
    %2091 = arith.mulf %2089, %2090 : vector<32x128xf32>
    %2092 = arith.addf %2080, %2091 : vector<32x128xf32>
    %2093 = vector.broadcast %17 : f32 to vector<32x128xf32>
    %2094 = arith.mulf %2089, %2093 : vector<32x128xf32>
    %2095 = arith.addf %2083, %2094 : vector<32x128xf32>
    %2096 = vector.broadcast %26 : f32 to vector<32x128xf32>
    %2097 = arith.mulf %2089, %2096 : vector<32x128xf32>
    %2098 = arith.addf %2086, %2097 : vector<32x128xf32>
    %2099 = arith.maximumf %1985, %2092 : vector<32x128xf32>
    %2100 = arith.maximumf %1986, %2095 : vector<32x128xf32>
    %2101 = arith.maximumf %1987, %2098 : vector<32x128xf32>
    %2102 = vector.broadcast %27 : f32 to vector<32x128xf32>
    %2103 = arith.addf %2099, %2102 : vector<32x128xf32>
    %cst_716 = arith.constant 0.000000e+00 : f32
    %2104 = vector.broadcast %cst_716 : f32 to vector<32x128xf32>
    %2105 = arith.maximumf %2103, %2104 : vector<32x128xf32>
    %2106 = vector.broadcast %28 : f32 to vector<32x128xf32>
    %2107 = arith.addf %2100, %2106 : vector<32x128xf32>
    %cst_717 = arith.constant 0.000000e+00 : f32
    %2108 = vector.broadcast %cst_717 : f32 to vector<32x128xf32>
    %2109 = arith.maximumf %2107, %2108 : vector<32x128xf32>
    %2110 = vector.broadcast %29 : f32 to vector<32x128xf32>
    %2111 = arith.addf %2101, %2110 : vector<32x128xf32>
    %cst_718 = arith.constant 0.000000e+00 : f32
    %2112 = vector.broadcast %cst_718 : f32 to vector<32x128xf32>
    %2113 = arith.maximumf %2111, %2112 : vector<32x128xf32>
    %2114 = tpu.concatenate %1064, %2105, %1068, %2109, %1072, %2113 in 0 : vector<32x128xf32>, vector<32x128xf32>, vector<32x128xf32>, vector<32x128xf32>, vector<32x128xf32>, vector<32x128xf32> -> vector<192x128xf32>
    %cst_719 = arith.constant dense<0.000000e+00> : vector<10x128xf32>
    %2115 = tpu.matmul %30, %2114, %cst_719 {dimension_numbers = #tpu.dot_dimension_numbers<[1], [0], [0], [1], [0, 0, 1, 1], [], []>} : vector<10x192xf32>, vector<192x128xf32>, vector<10x128xf32> -> vector<10x128xf32>
    %2116 = vector.broadcast %31 : vector<10x1xf32> to vector<10x128xf32>
    %2117 = arith.addf %2115, %2116 : vector<10x128xf32>
    %cst_720 = arith.constant dense<0xFF800000> : vector<128xf32>
    %2118 = vector.multi_reduction <maximumf>, %2117, %cst_720 [0] : vector<10x128xf32> to vector<128xf32>
    %2119 = vector.shape_cast %2118 : vector<128xf32> to vector<1x128xf32>
    %2120 = vector.broadcast %2119 : vector<1x128xf32> to vector<10x128xf32>
    %2121 = arith.subf %2117, %2120 : vector<10x128xf32>
    %2122 = math.exp %2121 : vector<10x128xf32>
    %cst_721 = arith.constant dense<0.000000e+00> : vector<128xf32>
    %2123 = vector.multi_reduction <add>, %2122, %cst_721 [0] : vector<10x128xf32> to vector<128xf32>
    %2124 = vector.shape_cast %2123 : vector<128xf32> to vector<1x128xf32>
    %2125 = math.log %2124 : vector<1x128xf32>
    %2126 = vector.broadcast %2125 : vector<1x128xf32> to vector<10x128xf32>
    %2127 = arith.subf %2121, %2126 : vector<10x128xf32>
    %c0_722 = arith.constant 0 : index
    %c0_723 = arith.constant 0 : index
    %2128 = vector.load %arg6[%c0_722, %c0_723] : memref<10x128xf32, #tpu.memory_space<vmem>>, vector<10x128xf32>
    tpu.vector_store %arg6[%c0_722, %c0_723], %2127 {strides = array<i32>} : memref<10x128xf32, #tpu.memory_space<vmem>>, vector<10x128xf32>,
    return
  }
  func.func @transform_0(%arg0: i32) -> (i32, i32, i32, i32) {
    %c0_i32 = arith.constant 0 : i32
    %c0_i32_0 = arith.constant 0 : i32
    %c0_i32_1 = arith.constant 0 : i32
    %c0_i32_2 = arith.constant 0 : i32
    return %c0_i32, %c0_i32_0, %c0_i32_1, %arg0 : i32, i32, i32, i32
  }
  func.func @transform_1(%arg0: i32) -> i32 {
    %c0_i32 = arith.constant 0 : i32
    %c0_i32_0 = arith.constant 0 : i32
    return %c0_i32 : i32
  }
  func.func @transform_2(%arg0: i32) -> i32 {
    %c0_i32 = arith.constant 0 : i32
    %c0_i32_0 = arith.constant 0 : i32
    return %c0_i32 : i32
  }
  func.func @transform_3(%arg0: i32) -> (i32, i32) {
    %c0_i32 = arith.constant 0 : i32
    %c0_i32_0 = arith.constant 0 : i32
    %c0_i32_1 = arith.constant 0 : i32
    return %c0_i32, %c0_i32_0 : i32, i32
  }
  func.func @transform_4(%arg0: i32) -> (i32, i32) {
    %c0_i32 = arith.constant 0 : i32
    %c0_i32_0 = arith.constant 0 : i32
    %c0_i32_1 = arith.constant 0 : i32
    return %c0_i32, %c0_i32_0 : i32, i32
  }
  func.func @transform_5(%arg0: i32) -> (i32, i32) {
    %c0_i32 = arith.constant 0 : i32
    %c0_i32_0 = arith.constant 0 : i32
    return %c0_i32, %arg0 : i32, i32
  }
}

</mosaic_0001>

<llo_original>
// kernel: tpu_custom_call.1
$region0: #{tpu_custom_call.1}
  #allocation0 [shape = 'u32[]', space=smem, size = 0x4, offset = 0x4, fixed_abs, tag = 'smem constant byte address 0x4 - core index']
  #allocation1 [shape = 'u32[144,128]{1,0:T(1,128)}', space=vmem, size = 0x12000, scoped, tag = 'internal scratch']
  %s0 = inlined_call_operand.hbm [shape: bf16[5,5,64,128], index: 0, kind: input, shape index: {}]
  %s1 = inlined_call_operand.vmem [shape: f32[27], index: 1, kind: input, shape index: {}]
  %s2 = inlined_call_operand.vmem [shape: f32[3], index: 2, kind: input, shape index: {}]
  %s3 = inlined_call_operand.hbm [shape: f32[10,192], index: 3, kind: input, shape index: {}]
  %s4 = inlined_call_operand.vmem [shape: f32[10,1], index: 4, kind: input, shape index: {}]
  %s5 = inlined_call_operand.hbm [shape: f32[10,128], index: 5, kind: output, shape index: {}]
  %s6 = sld [smem:[#allocation0]]
  $region46: #{tpu_custom_call.1} parent=0
    _
  %s8 = ssub.s32 1, %s6
  %s9 = scalar_select 0, %s8, %s6
  $region1: #{tpu_custom_call.1} parent=0
    #allocation2 [shape = 'u8[409600]{0}', space=vmem, size = 0x64000, scoped, tag = 'input window, operand 0, single buffered']
    #allocation3 [shape = 's32[1]{0}', space=sflag, size = 0x4, scoped, tag = 'scoped memory for tpu_custom_call.1']
    #allocation4 [shape = 's32[1]{0}', space=sflag, size = 0x4, scoped, tag = 'scoped memory for tpu_custom_call.1']
    #allocation5 [shape = 's32[1]{0}', space=sflag, size = 0x4, scoped, tag = 'scoped memory for tpu_custom_call.1']
    #allocation6 [shape = 'u8[512]{0}', space=smem, size = 0x200, scoped, tag = 'input window, operand 1, single buffered']
    #allocation7 [shape = 'u8[512]{0}', space=smem, size = 0x200, scoped, tag = 'input window, operand 2, single buffered']
    #allocation8 [shape = 's32[1]{0}', space=sflag, size = 0x4, scoped, tag = 'scoped memory for tpu_custom_call.1']
    #allocation9 [shape = 'u8[16384]{0}', space=vmem, size = 0x4000, scoped, tag = 'input window, operand 3, single buffered']
    #allocation10 [shape = 's32[1]{0}', space=sflag, size = 0x4, scoped, tag = 'scoped memory for tpu_custom_call.1']
    #allocation11 [shape = 'u8[8192]{0}', space=vmem, size = 0x2000, scoped, tag = 'output window, operand 0, single buffered']
    %10 = vsyncpa [#allocation3], 0
    %11 = vsyncpa [#allocation5], 0
    %12 = vsyncpa [#allocation8], 0
    %13 = vsyncpa [#allocation10], 0
    %14 = vsyncpa [#allocation4], 0
    // Predicated region
    $region2: #{tpu_custom_call.1} parent=1 // pred_check
      _
    $region3: #{tpu_custom_call.1} parent=1 // pred_check_branch
      %16 = sbr.rel (0) target = $region5
    $region4: #{tpu_custom_call.1} parent=1 // pred_region
      %s18 = ssub.s32 12800, 12800
      %19 = vsyncadd [#allocation3], %s18
      %s20 = sshll.u32 [#allocation2], 4
      %s21 = int_to_ptr.vmem [resolvable:$true] %s20
      %26 = dma.hbm_to_vmem [thread:$0]  %s0, 12800, %s21, [#allocation3], 64, 64, 4
    $region5: #{tpu_custom_call.1} parent=1 // pred_fallthru
      _
    // Predicated region
    $region6: #{tpu_custom_call.1} parent=1 // pred_check
      _
    $region7: #{tpu_custom_call.1} parent=1 // pred_check_branch
      %28 = sbr.rel (0) target = $region9
    $region8: #{tpu_custom_call.1} parent=1 // pred_region
      %s30 = ssub.s32 16, 16
      %31 = vsyncadd [#allocation5], %s30
      %s33 = sshll.u32 %s1, 4
      %s34 = int_to_ptr.vmem [resolvable:$true] %s33
      %36 = dma.vmem_to_smem %s34, 16, [#allocation6], [#allocation5]
    $region9: #{tpu_custom_call.1} parent=1 // pred_fallthru
      _
    // Predicated region
    $region10: #{tpu_custom_call.1} parent=1 // pred_check
      _
    $region11: #{tpu_custom_call.1} parent=1 // pred_check_branch
      %38 = sbr.rel (0) target = $region13
    $region12: #{tpu_custom_call.1} parent=1 // pred_region
      %s40 = ssub.s32 16, 16
      %41 = vsyncadd [#allocation8], %s40
      %s43 = sshll.u32 %s2, 4
      %s44 = int_to_ptr.vmem [resolvable:$true] %s43
      %46 = dma.vmem_to_smem %s44, 16, [#allocation7], [#allocation8]
    $region13: #{tpu_custom_call.1} parent=1 // pred_fallthru
      _
    // Predicated region
    $region14: #{tpu_custom_call.1} parent=1 // pred_check
      _
    $region15: #{tpu_custom_call.1} parent=1 // pred_check_branch
      %48 = sbr.rel (0) target = $region17
    $region16: #{tpu_custom_call.1} parent=1 // pred_region
      %s50 = ssub.s32 512, 512
      %51 = vsyncadd [#allocation10], %s50
      %s52 = sshll.u32 [#allocation9], 4
      %s53 = int_to_ptr.vmem [resolvable:$true] %s52
      %58 = dma.hbm_to_vmem [thread:$0]  %s3, 512, %s53, [#allocation10], 256, 256, 16
    $region17: #{tpu_custom_call.1} parent=1 // pred_fallthru
      _
    // Predicated region
    $region18: #{tpu_custom_call.1} parent=1 // pred_check
      _
    $region19: #{tpu_custom_call.1} parent=1 // pred_check_branch
      %60 = sbr.rel (0) target = $region21
    $region20: #{tpu_custom_call.1} parent=1 // pred_region
      _
    $region21: #{tpu_custom_call.1} parent=1 // pred_fallthru
      _
    // Predicated region
    $region22: #{tpu_custom_call.1} parent=1 // pred_check
      _
    $region23: #{tpu_custom_call.1} parent=1 // pred_check_branch
      %62 = sbr.rel (0) target = $region25
    $region24: #{tpu_custom_call.1} parent=1 // pred_region
      %63 = dma.done [#allocation3], 12800
    $region25: #{tpu_custom_call.1} parent=1 // pred_fallthru
      _
    // Predicated region
    $region26: #{tpu_custom_call.1} parent=1 // pred_check
      _
    $region27: #{tpu_custom_call.1} parent=1 // pred_check_branch
      %65 = sbr.rel (0) target = $region29
    $region28: #{tpu_custom_call.1} parent=1 // pred_region
      %66 = dma.done [#allocation5], 16
    $region29: #{tpu_custom_call.1} parent=1 // pred_fallthru
      _
    // Predicated region
    $region30: #{tpu_custom_call.1} parent=1 // pred_check
      _
    $region31: #{tpu_custom_call.1} parent=1 // pred_check_branch
      %68 = sbr.rel (0) target = $region33
    $region32: #{tpu_custom_call.1} parent=1 // pred_region
      %69 = dma.done [#allocation8], 16
    $region33: #{tpu_custom_call.1} parent=1 // pred_fallthru
      _
    // Predicated region
    $region34: #{tpu_custom_call.1} parent=1 // pred_check
      _
    $region35: #{tpu_custom_call.1} parent=1 // pred_check_branch
      %71 = sbr.rel (0) target = $region37
    $region36: #{tpu_custom_call.1} parent=1 // pred_region
      %72 = dma.done [#allocation10], 512
    $region37: #{tpu_custom_call.1} parent=1 // pred_fallthru
      _
    %73 = sfence
    %s74 = sld [smem:[#allocation6]]
    %s75 = sld [smem:[#allocation6 + $0x1]]
    %s76 = sld [smem:[#allocation6 + $0x2]]
    %s77 = sld [smem:[#allocation6 + $0x3]]
    %s78 = sld [smem:[#allocation6 + $0x4]]
    %s79 = sld [smem:[#allocation6 + $0x5]]
    %s80 = sld [smem:[#allocation6 + $0x6]]
    %s81 = sld [smem:[#allocation6 + $0x7]]
    %s82 = sld [smem:[#allocation6 + $0x8]]
    %s83 = sld [smem:[#allocation6 + $0x9]]
    %s84 = sld [smem:[#allocation6 + $0xa]]
    %s85 = sld [smem:[#allocation6 + $0xb]]
    %s86 = sld [smem:[#allocation6 + $0xc]]
    %s87 = sld [smem:[#allocation6 + $0xd]]
    %s88 = sld [smem:[#allocation6 + $0xe]]
    %s89 = sld [smem:[#allocation6 + $0xf]]
    %s90 = sld [smem:[#allocation6 + $0x10]]
    %s91 = sld [smem:[#allocation6 + $0x11]]
    %s92 = sld [smem:[#allocation6 + $0x12]]
    %s93 = sld [smem:[#allocation6 + $0x13]]
    %s94 = sld [smem:[#allocation6 + $0x14]]
    %s95 = sld [smem:[#allocation6 + $0x15]]
    %s96 = sld [smem:[#allocation6 + $0x16]]
    %s97 = sld [smem:[#allocation6 + $0x17]]
    %s98 = sld [smem:[#allocation6 + $0x18]]
    %s99 = sld [smem:[#allocation6 + $0x19]]
    %s100 = sld [smem:[#allocation6 + $0x1a]]
    %s101 = sld [smem:[#allocation7]]
    %s102 = sld [smem:[#allocation7 + $0x1]]
    %s103 = sld [smem:[#allocation7 + $0x2]]
    %v104 = vld [vmem:[#allocation9] sm:$0xff]
    %v105 = vld [vmem:[#allocation9 + $0x8] sm:$0xff]
    %v106 = vld [vmem:[#allocation9 + $0x10] sm:$0x3]
    %v107 = vld [vmem:[#allocation9 + $0x18] sm:$0x3]
    %v108 = vld [vmem:[%s4] sm:$0xff]
    %v109 = vld [vmem:[%s4 + $0x8] sm:$0x3]
    %v110 = vld [vmem:[#allocation2] sm:$0xf]
    %v111 = vld [vmem:[#allocation2 + $0x4] sm:$0xf]
    %v112 = vld [vmem:[#allocation2 + $0x8] sm:$0xf]
    %v113 = vld [vmem:[#allocation2 + $0xc] sm:$0xf]
    %v114 = vunpack.c.l.bf16 %v110
    %v115 = vunpack.c.l.bf16 %v111
    %v116 = vunpack.c.l.bf16 %v112
    %v117 = vunpack.c.l.bf16 %v113
    %v118 = vstv %s74
    %v119 = vmul.f32 %v114, %v118
    %v120 = vmul.f32 %v115, %v118
    %v121 = vmul.f32 %v116, %v118
    %v122 = vmul.f32 %v117, %v118
    %v123 = vadd.f32 %v119, 0.0
    %v124 = vadd.f32 %v120, 0.0
    %v125 = vadd.f32 %v121, 0.0
    %v126 = vadd.f32 %v122, 0.0
    %v127 = vstv %s83
    %v128 = vmul.f32 %v114, %v127
    %v129 = vmul.f32 %v115, %v127
    %v130 = vmul.f32 %v116, %v127
    %v131 = vmul.f32 %v117, %v127
    %v132 = vadd.f32 %v128, 0.0
    %v133 = vadd.f32 %v129, 0.0
    %v134 = vadd.f32 %v130, 0.0
    %v135 = vadd.f32 %v131, 0.0
    %v136 = vstv %s92
    %v137 = vmul.f32 %v114, %v136
    %v138 = vmul.f32 %v115, %v136
    %v139 = vmul.f32 %v116, %v136
    %v140 = vmul.f32 %v117, %v136
    %v141 = vadd.f32 %v137, 0.0
    %v142 = vadd.f32 %v138, 0.0
    %v143 = vadd.f32 %v139, 0.0
    %v144 = vadd.f32 %v140, 0.0
    %s145 = scalar_lea.vmem [#allocation2], 32
    %v146 = vld [vmem:[%s145] sm:$0xf]
    %v147 = vld [vmem:[%s145 + $0x4] sm:$0xf]
    %v148 = vld [vmem:[%s145 + $0x8] sm:$0xf]
    %v149 = vld [vmem:[%s145 + $0xc] sm:$0xf]
    %v150 = vunpack.c.l.bf16 %v146
    %v151 = vunpack.c.l.bf16 %v147
    %v152 = vunpack.c.l.bf16 %v148
    %v153 = vunpack.c.l.bf16 %v149
    %v154 = vstv %s75
    %v155 = vmul.f32 %v150, %v154
    %v156 = vmul.f32 %v151, %v154
    %v157 = vmul.f32 %v152, %v154
    %v158 = vmul.f32 %v153, %v154
    %v159 = vadd.f32 %v123, %v155
    %v160 = vadd.f32 %v124, %v156
    %v161 = vadd.f32 %v125, %v157
    %v162 = vadd.f32 %v126, %v158
    %v163 = vstv %s84
    %v164 = vmul.f32 %v150, %v163
    %v165 = vmul.f32 %v151, %v163
    %v166 = vmul.f32 %v152, %v163
    %v167 = vmul.f32 %v153, %v163
    %v168 = vadd.f32 %v132, %v164
    %v169 = vadd.f32 %v133, %v165
    %v170 = vadd.f32 %v134, %v166
    %v171 = vadd.f32 %v135, %v167
    %v172 = vstv %s93
    %v173 = vmul.f32 %v150, %v172
    %v174 = vmul.f32 %v151, %v172
    %v175 = vmul.f32 %v152, %v172
    %v176 = vmul.f32 %v153, %v172
    %v177 = vadd.f32 %v141, %v173
    %v178 = vadd.f32 %v142, %v174
    %v179 = vadd.f32 %v143, %v175
    %v180 = vadd.f32 %v144, %v176
    %s181 = scalar_lea.vmem [#allocation2], 64
    %v182 = vld [vmem:[%s181] sm:$0xf]
    %v183 = vld [vmem:[%s181 + $0x4] sm:$0xf]
    %v184 = vld [vmem:[%s181 + $0x8] sm:$0xf]
    %v185 = vld [vmem:[%s181 + $0xc] sm:$0xf]
    %v186 = vunpack.c.l.bf16 %v182
    %v187 = vunpack.c.l.bf16 %v183
    %v188 = vunpack.c.l.bf16 %v184
    %v189 = vunpack.c.l.bf16 %v185
    %v190 = vstv %s76
    %v191 = vmul.f32 %v186, %v190
    %v192 = vmul.f32 %v187, %v190
    %v193 = vmul.f32 %v188, %v190
    %v194 = vmul.f32 %v189, %v190
    %v195 = vadd.f32 %v159, %v191
    %v196 = vadd.f32 %v160, %v192
    %v197 = vadd.f32 %v161, %v193
    %v198 = vadd.f32 %v162, %v194
    %v199 = vstv %s85
    %v200 = vmul.f32 %v186, %v199
    %v201 = vmul.f32 %v187, %v199
    %v202 = vmul.f32 %v188, %v199
    %v203 = vmul.f32 %v189, %v199
    %v204 = vadd.f32 %v168, %v200
    %v205 = vadd.f32 %v169, %v201
    %v206 = vadd.f32 %v170, %v202
    %v207 = vadd.f32 %v171, %v203
    %v208 = vstv %s94
    %v209 = vmul.f32 %v186, %v208
    %v210 = vmul.f32 %v187, %v208
    %v211 = vmul.f32 %v188, %v208
    %v212 = vmul.f32 %v189, %v208
    %v213 = vadd.f32 %v177, %v209
    %v214 = vadd.f32 %v178, %v210
    %v215 = vadd.f32 %v179, %v211
    %v216 = vadd.f32 %v180, %v212
    %s217 = scalar_lea.vmem [#allocation2], 160
    %v218 = vld [vmem:[%s217] sm:$0xf]
    %v219 = vld [vmem:[%s217 + $0x4] sm:$0xf]
    %v220 = vld [vmem:[%s217 + $0x8] sm:$0xf]
    %v221 = vld [vmem:[%s217 + $0xc] sm:$0xf]
    %v222 = vunpack.c.l.bf16 %v218
    %v223 = vunpack.c.l.bf16 %v219
    %v224 = vunpack.c.l.bf16 %v220
    %v225 = vunpack.c.l.bf16 %v221
    %v226 = vstv %s77
    %v227 = vmul.f32 %v222, %v226
    %v228 = vmul.f32 %v223, %v226
    %v229 = vmul.f32 %v224, %v226
    %v230 = vmul.f32 %v225, %v226
    %v231 = vadd.f32 %v195, %v227
    %v232 = vadd.f32 %v196, %v228
    %v233 = vadd.f32 %v197, %v229
    %v234 = vadd.f32 %v198, %v230
    %v235 = vstv %s86
    %v236 = vmul.f32 %v222, %v235
    %v237 = vmul.f32 %v223, %v235
    %v238 = vmul.f32 %v224, %v235
    %v239 = vmul.f32 %v225, %v235
    %v240 = vadd.f32 %v204, %v236
    %v241 = vadd.f32 %v205, %v237
    %v242 = vadd.f32 %v206, %v238
    %v243 = vadd.f32 %v207, %v239
    %v244 = vstv %s95
    %v245 = vmul.f32 %v222, %v244
    %v246 = vmul.f32 %v223, %v244
    %v247 = vmul.f32 %v224, %v244
    %v248 = vmul.f32 %v225, %v244
    %v249 = vadd.f32 %v213, %v245
    %v250 = vadd.f32 %v214, %v246
    %v251 = vadd.f32 %v215, %v247
    %v252 = vadd.f32 %v216, %v248
    %s253 = scalar_lea.vmem [#allocation2], 192
    %v254 = vld [vmem:[%s253] sm:$0xf]
    %v255 = vld [vmem:[%s253 + $0x4] sm:$0xf]
    %v256 = vld [vmem:[%s253 + $0x8] sm:$0xf]
    %v257 = vld [vmem:[%s253 + $0xc] sm:$0xf]
    %v258 = vunpack.c.l.bf16 %v254
    %v259 = vunpack.c.l.bf16 %v255
    %v260 = vunpack.c.l.bf16 %v256
    %v261 = vunpack.c.l.bf16 %v257
    %v262 = vstv %s78
    %v263 = vmul.f32 %v258, %v262
    %v264 = vmul.f32 %v259, %v262
    %v265 = vmul.f32 %v260, %v262
    %v266 = vmul.f32 %v261, %v262
    %v267 = vadd.f32 %v231, %v263
    %v268 = vadd.f32 %v232, %v264
    %v269 = vadd.f32 %v233, %v265
    %v270 = vadd.f32 %v234, %v266
    %v271 = vstv %s87
    %v272 = vmul.f32 %v258, %v271
    %v273 = vmul.f32 %v259, %v271
    %v274 = vmul.f32 %v260, %v271
    %v275 = vmul.f32 %v261, %v271
    %v276 = vadd.f32 %v240, %v272
    %v277 = vadd.f32 %v241, %v273
    %v278 = vadd.f32 %v242, %v274
    %v279 = vadd.f32 %v243, %v275
    %v280 = vstv %s96
    %v281 = vmul.f32 %v258, %v280
    %v282 = vmul.f32 %v259, %v280
    %v283 = vmul.f32 %v260, %v280
    %v284 = vmul.f32 %v261, %v280
    %v285 = vadd.f32 %v249, %v281
    %v286 = vadd.f32 %v250, %v282
    %v287 = vadd.f32 %v251, %v283
    %v288 = vadd.f32 %v252, %v284
    %s289 = scalar_lea.vmem [#allocation2], 224
    %v290 = vld [vmem:[%s289] sm:$0xf]
    %v291 = vld [vmem:[%s289 + $0x4] sm:$0xf]
    %v292 = vld [vmem:[%s289 + $0x8] sm:$0xf]
    %v293 = vld [vmem:[%s289 + $0xc] sm:$0xf]
    %v294 = vunpack.c.l.bf16 %v290
    %v295 = vunpack.c.l.bf16 %v291
    %v296 = vunpack.c.l.bf16 %v292
    %v297 = vunpack.c.l.bf16 %v293
    %v298 = vstv %s79
    %v299 = vmul.f32 %v294, %v298
    %v300 = vmul.f32 %v295, %v298
    %v301 = vmul.f32 %v296, %v298
    %v302 = vmul.f32 %v297, %v298
    %v303 = vadd.f32 %v267, %v299
    %v304 = vadd.f32 %v268, %v300
    %v305 = vadd.f32 %v269, %v301
    %v306 = vadd.f32 %v270, %v302
    %v307 = vstv %s88
    %v308 = vmul.f32 %v294, %v307
    %v309 = vmul.f32 %v295, %v307
    %v310 = vmul.f32 %v296, %v307
    %v311 = vmul.f32 %v297, %v307
    %v312 = vadd.f32 %v276, %v308
    %v313 = vadd.f32 %v277, %v309
    %v314 = vadd.f32 %v278, %v310
    %v315 = vadd.f32 %v279, %v311
    %v316 = vstv %s97
    %v317 = vmul.f32 %v294, %v316
    %v318 = vmul.f32 %v295, %v316
    %v319 = vmul.f32 %v296, %v316
    %v320 = vmul.f32 %v297, %v316
    %v321 = vadd.f32 %v285, %v317
    %v322 = vadd.f32 %v286, %v318
    %v323 = vadd.f32 %v287, %v319
    %v324 = vadd.f32 %v288, %v320
    %s325 = scalar_lea.vmem [#allocation2], 320
    %v326 = vld [vmem:[%s325] sm:$0xf]
    %v327 = vld [vmem:[%s325 + $0x4] sm:$0xf]
    %v328 = vld [vmem:[%s325 + $0x8] sm:$0xf]
    %v329 = vld [vmem:[%s325 + $0xc] sm:$0xf]
    %v330 = vunpack.c.l.bf16 %v326
    %v331 = vunpack.c.l.bf16 %v327
    %v332 = vunpack.c.l.bf16 %v328
    %v333 = vunpack.c.l.bf16 %v329
    %v334 = vstv %s80
    %v335 = vmul.f32 %v330, %v334
    %v336 = vmul.f32 %v331, %v334
    %v337 = vmul.f32 %v332, %v334
    %v338 = vmul.f32 %v333, %v334
    %v339 = vadd.f32 %v303, %v335
    %v340 = vadd.f32 %v304, %v336
    %v341 = vadd.f32 %v305, %v337
    %v342 = vadd.f32 %v306, %v338
    %v343 = vstv %s89
    %v344 = vmul.f32 %v330, %v343
    %v345 = vmul.f32 %v331, %v343
    %v346 = vmul.f32 %v332, %v343
    %v347 = vmul.f32 %v333, %v343
    %v348 = vadd.f32 %v312, %v344
    %v349 = vadd.f32 %v313, %v345
    %v350 = vadd.f32 %v314, %v346
    %v351 = vadd.f32 %v315, %v347
    %v352 = vstv %s98
    %v353 = vmul.f32 %v330, %v352
    %v354 = vmul.f32 %v331, %v352
    %v355 = vmul.f32 %v332, %v352
    %v356 = vmul.f32 %v333, %v352
    %v357 = vadd.f32 %v321, %v353
    %v358 = vadd.f32 %v322, %v354
    %v359 = vadd.f32 %v323, %v355
    %v360 = vadd.f32 %v324, %v356
    %s361 = scalar_lea.vmem [#allocation2], 352
    %v362 = vld [vmem:[%s361] sm:$0xf]
    %v363 = vld [vmem:[%s361 + $0x4] sm:$0xf]
    %v364 = vld [vmem:[%s361 + $0x8] sm:$0xf]
    %v365 = vld [vmem:[%s361 + $0xc] sm:$0xf]
    %v366 = vunpack.c.l.bf16 %v362
    %v367 = vunpack.c.l.bf16 %v363
    %v368 = vunpack.c.l.bf16 %v364
    %v369 = vunpack.c.l.bf16 %v365
    %v370 = vstv %s81
    %v371 = vmul.f32 %v366, %v370
    %v372 = vmul.f32 %v367, %v370
    %v373 = vmul.f32 %v368, %v370
    %v374 = vmul.f32 %v369, %v370
    %v375 = vadd.f32 %v339, %v371
    %v376 = vadd.f32 %v340, %v372
    %v377 = vadd.f32 %v341, %v373
    %v378 = vadd.f32 %v342, %v374
    %v379 = vstv %s90
    %v380 = vmul.f32 %v366, %v379
    %v381 = vmul.f32 %v367, %v379
    %v382 = vmul.f32 %v368, %v379
    %v383 = vmul.f32 %v369, %v379
    %v384 = vadd.f32 %v348, %v380
    %v385 = vadd.f32 %v349, %v381
    %v386 = vadd.f32 %v350, %v382
    %v387 = vadd.f32 %v351, %v383
    %v388 = vstv %s99
    %v389 = vmul.f32 %v366, %v388
    %v390 = vmul.f32 %v367, %v388
    %v391 = vmul.f32 %v368, %v388
    %v392 = vmul.f32 %v369, %v388
    %v393 = vadd.f32 %v357, %v389
    %v394 = vadd.f32 %v358, %v390
    %v395 = vadd.f32 %v359, %v391
    %v396 = vadd.f32 %v360, %v392
    %s397 = scalar_lea.vmem [#allocation2], 384
    %v398 = vld [vmem:[%s397] sm:$0xf]
    %v399 = vld [vmem:[%s397 + $0x4] sm:$0xf]
    %v400 = vld [vmem:[%s397 + $0x8] sm:$0xf]
    %v401 = vld [vmem:[%s397 + $0xc] sm:$0xf]
    %v402 = vunpack.c.l.bf16 %v398
    %v403 = vunpack.c.l.bf16 %v399
    %v404 = vunpack.c.l.bf16 %v400
    %v405 = vunpack.c.l.bf16 %v401
    %v406 = vstv %s82
    %v407 = vmul.f32 %v402, %v406
    %v408 = vmul.f32 %v403, %v406
    %v409 = vmul.f32 %v404, %v406
    %v410 = vmul.f32 %v405, %v406
    %v411 = vadd.f32 %v375, %v407
    %v412 = vadd.f32 %v376, %v408
    %v413 = vadd.f32 %v377, %v409
    %v414 = vadd.f32 %v378, %v410
    %v415 = vstv %s91
    %v416 = vmul.f32 %v402, %v415
    %v417 = vmul.f32 %v403, %v415
    %v418 = vmul.f32 %v404, %v415
    %v419 = vmul.f32 %v405, %v415
    %v420 = vadd.f32 %v384, %v416
    %v421 = vadd.f32 %v385, %v417
    %v422 = vadd.f32 %v386, %v418
    %v423 = vadd.f32 %v387, %v419
    %v424 = vstv %s100
    %v425 = vmul.f32 %v402, %v424
    %v426 = vmul.f32 %v403, %v424
    %v427 = vmul.f32 %v404, %v424
    %v428 = vmul.f32 %v405, %v424
    %v429 = vadd.f32 %v393, %v425
    %v430 = vadd.f32 %v394, %v426
    %v431 = vadd.f32 %v395, %v427
    %v432 = vadd.f32 %v396, %v428
    %v433 = vmul.f32 %v150, %v118
    %v434 = vmul.f32 %v151, %v118
    %v435 = vmul.f32 %v152, %v118
    %v436 = vmul.f32 %v153, %v118
    %v437 = vadd.f32 %v433, 0.0
    %v438 = vadd.f32 %v434, 0.0
    %v439 = vadd.f32 %v435, 0.0
    %v440 = vadd.f32 %v436, 0.0
    %v441 = vmul.f32 %v150, %v127
    %v442 = vmul.f32 %v151, %v127
    %v443 = vmul.f32 %v152, %v127
    %v444 = vmul.f32 %v153, %v127
    %v445 = vadd.f32 %v441, 0.0
    %v446 = vadd.f32 %v442, 0.0
    %v447 = vadd.f32 %v443, 0.0
    %v448 = vadd.f32 %v444, 0.0
    %v449 = vmul.f32 %v150, %v136
    %v450 = vmul.f32 %v151, %v136
    %v451 = vmul.f32 %v152, %v136
    %v452 = vmul.f32 %v153, %v136
    %v453 = vadd.f32 %v449, 0.0
    %v454 = vadd.f32 %v450, 0.0
    %v455 = vadd.f32 %v451, 0.0
    %v456 = vadd.f32 %v452, 0.0
    %v457 = vmul.f32 %v186, %v154
    %v458 = vmul.f32 %v187, %v154
    %v459 = vmul.f32 %v188, %v154
    %v460 = vmul.f32 %v189, %v154
    %v461 = vadd.f32 %v437, %v457
    %v462 = vadd.f32 %v438, %v458
    %v463 = vadd.f32 %v439, %v459
    %v464 = vadd.f32 %v440, %v460
    %v465 = vmul.f32 %v186, %v163
    %v466 = vmul.f32 %v187, %v163
    %v467 = vmul.f32 %v188, %v163
    %v468 = vmul.f32 %v189, %v163
    %v469 = vadd.f32 %v445, %v465
    %v470 = vadd.f32 %v446, %v466
    %v471 = vadd.f32 %v447, %v467
    %v472 = vadd.f32 %v448, %v468
    %v473 = vmul.f32 %v186, %v172
    %v474 = vmul.f32 %v187, %v172
    %v475 = vmul.f32 %v188, %v172
    %v476 = vmul.f32 %v189, %v172
    %v477 = vadd.f32 %v453, %v473
    %v478 = vadd.f32 %v454, %v474
    %v479 = vadd.f32 %v455, %v475
    %v480 = vadd.f32 %v456, %v476
    %s481 = scalar_lea.vmem [#allocation2], 96
    %v482 = vld [vmem:[%s481] sm:$0xf]
    %v483 = vld [vmem:[%s481 + $0x4] sm:$0xf]
    %v484 = vld [vmem:[%s481 + $0x8] sm:$0xf]
    %v485 = vld [vmem:[%s481 + $0xc] sm:$0xf]
    %v486 = vunpack.c.l.bf16 %v482
    %v487 = vunpack.c.l.bf16 %v483
    %v488 = vunpack.c.l.bf16 %v484
    %v489 = vunpack.c.l.bf16 %v485
    %v490 = vmul.f32 %v486, %v190
    %v491 = vmul.f32 %v487, %v190
    %v492 = vmul.f32 %v488, %v190
    %v493 = vmul.f32 %v489, %v190
    %v494 = vadd.f32 %v461, %v490
    %v495 = vadd.f32 %v462, %v491
    %v496 = vadd.f32 %v463, %v492
    %v497 = vadd.f32 %v464, %v493
    %v498 = vmul.f32 %v486, %v199
    %v499 = vmul.f32 %v487, %v199
    %v500 = vmul.f32 %v488, %v199
    %v501 = vmul.f32 %v489, %v199
    %v502 = vadd.f32 %v469, %v498
    %v503 = vadd.f32 %v470, %v499
    %v504 = vadd.f32 %v471, %v500
    %v505 = vadd.f32 %v472, %v501
    %v506 = vmul.f32 %v486, %v208
    %v507 = vmul.f32 %v487, %v208
    %v508 = vmul.f32 %v488, %v208
    %v509 = vmul.f32 %v489, %v208
    %v510 = vadd.f32 %v477, %v506
    %v511 = vadd.f32 %v478, %v507
    %v512 = vadd.f32 %v479, %v508
    %v513 = vadd.f32 %v480, %v509
    %v514 = vmul.f32 %v258, %v226
    %v515 = vmul.f32 %v259, %v226
    %v516 = vmul.f32 %v260, %v226
    %v517 = vmul.f32 %v261, %v226
    %v518 = vadd.f32 %v494, %v514
    %v519 = vadd.f32 %v495, %v515
    %v520 = vadd.f32 %v496, %v516
    %v521 = vadd.f32 %v497, %v517
    %v522 = vmul.f32 %v258, %v235
    %v523 = vmul.f32 %v259, %v235
    %v524 = vmul.f32 %v260, %v235
    %v525 = vmul.f32 %v261, %v235
    %v526 = vadd.f32 %v502, %v522
    %v527 = vadd.f32 %v503, %v523
    %v528 = vadd.f32 %v504, %v524
    %v529 = vadd.f32 %v505, %v525
    %v530 = vmul.f32 %v258, %v244
    %v531 = vmul.f32 %v259, %v244
    %v532 = vmul.f32 %v260, %v244
    %v533 = vmul.f32 %v261, %v244
    %v534 = vadd.f32 %v510, %v530
    %v535 = vadd.f32 %v511, %v531
    %v536 = vadd.f32 %v512, %v532
    %v537 = vadd.f32 %v513, %v533
    %v538 = vmul.f32 %v294, %v262
    %v539 = vmul.f32 %v295, %v262
    %v540 = vmul.f32 %v296, %v262
    %v541 = vmul.f32 %v297, %v262
    %v542 = vadd.f32 %v518, %v538
    %v543 = vadd.f32 %v519, %v539
    %v544 = vadd.f32 %v520, %v540
    %v545 = vadd.f32 %v521, %v541
    %v546 = vmul.f32 %v294, %v271
    %v547 = vmul.f32 %v295, %v271
    %v548 = vmul.f32 %v296, %v271
    %v549 = vmul.f32 %v297, %v271
    %v550 = vadd.f32 %v526, %v546
    %v551 = vadd.f32 %v527, %v547
    %v552 = vadd.f32 %v528, %v548
    %v553 = vadd.f32 %v529, %v549
    %v554 = vmul.f32 %v294, %v280
    %v555 = vmul.f32 %v295, %v280
    %v556 = vmul.f32 %v296, %v280
    %v557 = vmul.f32 %v297, %v280
    %v558 = vadd.f32 %v534, %v554
    %v559 = vadd.f32 %v535, %v555
    %v560 = vadd.f32 %v536, %v556
    %v561 = vadd.f32 %v537, %v557
    %s562 = scalar_lea.vmem [#allocation2], 256
    %v563 = vld [vmem:[%s562] sm:$0xf]
    %v564 = vld [vmem:[%s562 + $0x4] sm:$0xf]
    %v565 = vld [vmem:[%s562 + $0x8] sm:$0xf]
    %v566 = vld [vmem:[%s562 + $0xc] sm:$0xf]
    %v567 = vunpack.c.l.bf16 %v563
    %v568 = vunpack.c.l.bf16 %v564
    %v569 = vunpack.c.l.bf16 %v565
    %v570 = vunpack.c.l.bf16 %v566
    %v571 = vmul.f32 %v567, %v298
    %v572 = vmul.f32 %v568, %v298
    %v573 = vmul.f32 %v569, %v298
    %v574 = vmul.f32 %v570, %v298
    %v575 = vadd.f32 %v542, %v571
    %v576 = vadd.f32 %v543, %v572
    %v577 = vadd.f32 %v544, %v573
    %v578 = vadd.f32 %v545, %v574
    %v579 = vmul.f32 %v567, %v307
    %v580 = vmul.f32 %v568, %v307
    %v581 = vmul.f32 %v569, %v307
    %v582 = vmul.f32 %v570, %v307
    %v583 = vadd.f32 %v550, %v579
    %v584 = vadd.f32 %v551, %v580
    %v585 = vadd.f32 %v552, %v581
    %v586 = vadd.f32 %v553, %v582
    %v587 = vmul.f32 %v567, %v316
    %v588 = vmul.f32 %v568, %v316
    %v589 = vmul.f32 %v569, %v316
    %v590 = vmul.f32 %v570, %v316
    %v591 = vadd.f32 %v558, %v587
    %v592 = vadd.f32 %v559, %v588
    %v593 = vadd.f32 %v560, %v589
    %v594 = vadd.f32 %v561, %v590
    %v595 = vmul.f32 %v366, %v334
    %v596 = vmul.f32 %v367, %v334
    %v597 = vmul.f32 %v368, %v334
    %v598 = vmul.f32 %v369, %v334
    %v599 = vadd.f32 %v575, %v595
    %v600 = vadd.f32 %v576, %v596
    %v601 = vadd.f32 %v577, %v597
    %v602 = vadd.f32 %v578, %v598
    %v603 = vmul.f32 %v366, %v343
    %v604 = vmul.f32 %v367, %v343
    %v605 = vmul.f32 %v368, %v343
    %v606 = vmul.f32 %v369, %v343
    %v607 = vadd.f32 %v583, %v603
    %v608 = vadd.f32 %v584, %v604
    %v609 = vadd.f32 %v585, %v605
    %v610 = vadd.f32 %v586, %v606
    %v611 = vmul.f32 %v366, %v352
    %v612 = vmul.f32 %v367, %v352
    %v613 = vmul.f32 %v368, %v352
    %v614 = vmul.f32 %v369, %v352
    %v615 = vadd.f32 %v591, %v611
    %v616 = vadd.f32 %v592, %v612
    %v617 = vadd.f32 %v593, %v613
    %v618 = vadd.f32 %v594, %v614
    %v619 = vmul.f32 %v402, %v370
    %v620 = vmul.f32 %v403, %v370
    %v621 = vmul.f32 %v404, %v370
    %v622 = vmul.f32 %v405, %v370
    %v623 = vadd.f32 %v599, %v619
    %v624 = vadd.f32 %v600, %v620
    %v625 = vadd.f32 %v601, %v621
    %v626 = vadd.f32 %v602, %v622
    %v627 = vmul.f32 %v402, %v379
    %v628 = vmul.f32 %v403, %v379
    %v629 = vmul.f32 %v404, %v379
    %v630 = vmul.f32 %v405, %v379
    %v631 = vadd.f32 %v607, %v627
    %v632 = vadd.f32 %v608, %v628
    %v633 = vadd.f32 %v609, %v629
    %v634 = vadd.f32 %v610, %v630
    %v635 = vmul.f32 %v402, %v388
    %v636 = vmul.f32 %v403, %v388
    %v637 = vmul.f32 %v404, %v388
    %v638 = vmul.f32 %v405, %v388
    %v639 = vadd.f32 %v615, %v635
    %v640 = vadd.f32 %v616, %v636
    %v641 = vadd.f32 %v617, %v637
    %v642 = vadd.f32 %v618, %v638
    %s643 = scalar_lea.vmem [#allocation2], 416
    %v644 = vld [vmem:[%s643] sm:$0xf]
    %v645 = vld [vmem:[%s643 + $0x4] sm:$0xf]
    %v646 = vld [vmem:[%s643 + $0x8] sm:$0xf]
    %v647 = vld [vmem:[%s643 + $0xc] sm:$0xf]
    %v648 = vunpack.c.l.bf16 %v644
    %v649 = vunpack.c.l.bf16 %v645
    %v650 = vunpack.c.l.bf16 %v646
    %v651 = vunpack.c.l.bf16 %v647
    %v652 = vmul.f32 %v648, %v406
    %v653 = vmul.f32 %v649, %v406
    %v654 = vmul.f32 %v650, %v406
    %v655 = vmul.f32 %v651, %v406
    %v656 = vadd.f32 %v623, %v652
    %v657 = vadd.f32 %v624, %v653
    %v658 = vadd.f32 %v625, %v654
    %v659 = vadd.f32 %v626, %v655
    %v660 = vmul.f32 %v648, %v415
    %v661 = vmul.f32 %v649, %v415
    %v662 = vmul.f32 %v650, %v415
    %v663 = vmul.f32 %v651, %v415
    %v664 = vadd.f32 %v631, %v660
    %v665 = vadd.f32 %v632, %v661
    %v666 = vadd.f32 %v633, %v662
    %v667 = vadd.f32 %v634, %v663
    %v668 = vmul.f32 %v648, %v424
    %v669 = vmul.f32 %v649, %v424
    %v670 = vmul.f32 %v650, %v424
    %v671 = vmul.f32 %v651, %v424
    %v672 = vadd.f32 %v639, %v668
    %v673 = vadd.f32 %v640, %v669
    %v674 = vadd.f32 %v641, %v670
    %v675 = vadd.f32 %v642, %v671
    %v676 = vmax.f32 %v411, %v656
    %v677 = vmax.f32 %v412, %v657
    %v678 = vmax.f32 %v413, %v658
    %v679 = vmax.f32 %v414, %v659
    %v680 = vmax.f32 %v420, %v664
    %v681 = vmax.f32 %v421, %v665
    %v682 = vmax.f32 %v422, %v666
    %v683 = vmax.f32 %v423, %v667
    %v684 = vmax.f32 %v429, %v672
    %v685 = vmax.f32 %v430, %v673
    %v686 = vmax.f32 %v431, %v674
    %v687 = vmax.f32 %v432, %v675
    %v688 = vmul.f32 %v186, %v118
    %v689 = vmul.f32 %v187, %v118
    %v690 = vmul.f32 %v188, %v118
    %v691 = vmul.f32 %v189, %v118
    %v692 = vadd.f32 %v688, 0.0
    %v693 = vadd.f32 %v689, 0.0
    %v694 = vadd.f32 %v690, 0.0
    %v695 = vadd.f32 %v691, 0.0
    %v696 = vmul.f32 %v186, %v127
    %v697 = vmul.f32 %v187, %v127
    %v698 = vmul.f32 %v188, %v127
    %v699 = vmul.f32 %v189, %v127
    %v700 = vadd.f32 %v696, 0.0
    %v701 = vadd.f32 %v697, 0.0
    %v702 = vadd.f32 %v698, 0.0
    %v703 = vadd.f32 %v699, 0.0
    %v704 = vmul.f32 %v186, %v136
    %v705 = vmul.f32 %v187, %v136
    %v706 = vmul.f32 %v188, %v136
    %v707 = vmul.f32 %v189, %v136
    %v708 = vadd.f32 %v704, 0.0
    %v709 = vadd.f32 %v705, 0.0
    %v710 = vadd.f32 %v706, 0.0
    %v711 = vadd.f32 %v707, 0.0
    %v712 = vmul.f32 %v486, %v154
    %v713 = vmul.f32 %v487, %v154
    %v714 = vmul.f32 %v488, %v154
    %v715 = vmul.f32 %v489, %v154
    %v716 = vadd.f32 %v692, %v712
    %v717 = vadd.f32 %v693, %v713
    %v718 = vadd.f32 %v694, %v714
    %v719 = vadd.f32 %v695, %v715
    %v720 = vmul.f32 %v486, %v163
    %v721 = vmul.f32 %v487, %v163
    %v722 = vmul.f32 %v488, %v163
    %v723 = vmul.f32 %v489, %v163
    %v724 = vadd.f32 %v700, %v720
    %v725 = vadd.f32 %v701, %v721
    %v726 = vadd.f32 %v702, %v722
    %v727 = vadd.f32 %v703, %v723
    %v728 = vmul.f32 %v486, %v172
    %v729 = vmul.f32 %v487, %v172
    %v730 = vmul.f32 %v488, %v172
    %v731 = vmul.f32 %v489, %v172
    %v732 = vadd.f32 %v708, %v728
    %v733 = vadd.f32 %v709, %v729
    %v734 = vadd.f32 %v710, %v730
    %v735 = vadd.f32 %v711, %v731
    %s736 = scalar_lea.vmem [#allocation2], 128
    %v737 = vld [vmem:[%s736] sm:$0xf]
    %v738 = vld [vmem:[%s736 + $0x4] sm:$0xf]
    %v739 = vld [vmem:[%s736 + $0x8] sm:$0xf]
    %v740 = vld [vmem:[%s736 + $0xc] sm:$0xf]
    %v741 = vunpack.c.l.bf16 %v737
    %v742 = vunpack.c.l.bf16 %v738
    %v743 = vunpack.c.l.bf16 %v739
    %v744 = vunpack.c.l.bf16 %v740
    %v745 = vmul.f32 %v741, %v190
    %v746 = vmul.f32 %v742, %v190
    %v747 = vmul.f32 %v743, %v190
    %v748 = vmul.f32 %v744, %v190
    %v749 = vadd.f32 %v716, %v745
    %v750 = vadd.f32 %v717, %v746
    %v751 = vadd.f32 %v718, %v747
    %v752 = vadd.f32 %v719, %v748
    %v753 = vmul.f32 %v741, %v199
    %v754 = vmul.f32 %v742, %v199
    %v755 = vmul.f32 %v743, %v199
    %v756 = vmul.f32 %v744, %v199
    %v757 = vadd.f32 %v724, %v753
    %v758 = vadd.f32 %v725, %v754
    %v759 = vadd.f32 %v726, %v755
    %v760 = vadd.f32 %v727, %v756
    %v761 = vmul.f32 %v741, %v208
    %v762 = vmul.f32 %v742, %v208
    %v763 = vmul.f32 %v743, %v208
    %v764 = vmul.f32 %v744, %v208
    %v765 = vadd.f32 %v732, %v761
    %v766 = vadd.f32 %v733, %v762
    %v767 = vadd.f32 %v734, %v763
    %v768 = vadd.f32 %v735, %v764
    %v769 = vmul.f32 %v294, %v226
    %v770 = vmul.f32 %v295, %v226
    %v771 = vmul.f32 %v296, %v226
    %v772 = vmul.f32 %v297, %v226
    %v773 = vadd.f32 %v749, %v769
    %v774 = vadd.f32 %v750, %v770
    %v775 = vadd.f32 %v751, %v771
    %v776 = vadd.f32 %v752, %v772
    %v777 = vmul.f32 %v294, %v235
    %v778 = vmul.f32 %v295, %v235
    %v779 = vmul.f32 %v296, %v235
    %v780 = vmul.f32 %v297, %v235
    %v781 = vadd.f32 %v757, %v777
    %v782 = vadd.f32 %v758, %v778
    %v783 = vadd.f32 %v759, %v779
    %v784 = vadd.f32 %v760, %v780
    %v785 = vmul.f32 %v294, %v244
    %v786 = vmul.f32 %v295, %v244
    %v787 = vmul.f32 %v296, %v244
    %v788 = vmul.f32 %v297, %v244
    %v789 = vadd.f32 %v765, %v785
    %v790 = vadd.f32 %v766, %v786
    %v791 = vadd.f32 %v767, %v787
    %v792 = vadd.f32 %v768, %v788
    %v793 = vmul.f32 %v567, %v262
    %v794 = vmul.f32 %v568, %v262
    %v795 = vmul.f32 %v569, %v262
    %v796 = vmul.f32 %v570, %v262
    %v797 = vadd.f32 %v773, %v793
    %v798 = vadd.f32 %v774, %v794
    %v799 = vadd.f32 %v775, %v795
    %v800 = vadd.f32 %v776, %v796
    %v801 = vmul.f32 %v567, %v271
    %v802 = vmul.f32 %v568, %v271
    %v803 = vmul.f32 %v569, %v271
    %v804 = vmul.f32 %v570, %v271
    %v805 = vadd.f32 %v781, %v801
    %v806 = vadd.f32 %v782, %v802
    %v807 = vadd.f32 %v783, %v803
    %v808 = vadd.f32 %v784, %v804
    %v809 = vmul.f32 %v567, %v280
    %v810 = vmul.f32 %v568, %v280
    %v811 = vmul.f32 %v569, %v280
    %v812 = vmul.f32 %v570, %v280
    %v813 = vadd.f32 %v789, %v809
    %v814 = vadd.f32 %v790, %v810
    %v815 = vadd.f32 %v791, %v811
    %v816 = vadd.f32 %v792, %v812
    %s817 = scalar_lea.vmem [#allocation2], 288
    %v818 = vld [vmem:[%s817] sm:$0xf]
    %v819 = vld [vmem:[%s817 + $0x4] sm:$0xf]
    %v820 = vld [vmem:[%s817 + $0x8] sm:$0xf]
    %v821 = vld [vmem:[%s817 + $0xc] sm:$0xf]
    %v822 = vunpack.c.l.bf16 %v818
    %v823 = vunpack.c.l.bf16 %v819
    %v824 = vunpack.c.l.bf16 %v820
    %v825 = vunpack.c.l.bf16 %v821
    %v826 = vmul.f32 %v822, %v298
    %v827 = vmul.f32 %v823, %v298
    %v828 = vmul.f32 %v824, %v298
    %v829 = vmul.f32 %v825, %v298
    %v830 = vadd.f32 %v797, %v826
    %v831 = vadd.f32 %v798, %v827
    %v832 = vadd.f32 %v799, %v828
    %v833 = vadd.f32 %v800, %v829
    %v834 = vmul.f32 %v822, %v307
    %v835 = vmul.f32 %v823, %v307
    %v836 = vmul.f32 %v824, %v307
    %v837 = vmul.f32 %v825, %v307
    %v838 = vadd.f32 %v805, %v834
    %v839 = vadd.f32 %v806, %v835
    %v840 = vadd.f32 %v807, %v836
    %v841 = vadd.f32 %v808, %v837
    %v842 = vmul.f32 %v822, %v316
    %v843 = vmul.f32 %v823, %v316
    %v844 = vmul.f32 %v824, %v316
    %v845 = vmul.f32 %v825, %v316
    %v846 = vadd.f32 %v813, %v842
    %v847 = vadd.f32 %v814, %v843
    %v848 = vadd.f32 %v815, %v844
    %v849 = vadd.f32 %v816, %v845
    %v850 = vmul.f32 %v402, %v334
    %v851 = vmul.f32 %v403, %v334
    %v852 = vmul.f32 %v404, %v334
    %v853 = vmul.f32 %v405, %v334
    %v854 = vadd.f32 %v830, %v850
    %v855 = vadd.f32 %v831, %v851
    %v856 = vadd.f32 %v832, %v852
    %v857 = vadd.f32 %v833, %v853
    %v858 = vmul.f32 %v402, %v343
    %v859 = vmul.f32 %v403, %v343
    %v860 = vmul.f32 %v404, %v343
    %v861 = vmul.f32 %v405, %v343
    %v862 = vadd.f32 %v838, %v858
    %v863 = vadd.f32 %v839, %v859
    %v864 = vadd.f32 %v840, %v860
    %v865 = vadd.f32 %v841, %v861
    %v866 = vmul.f32 %v402, %v352
    %v867 = vmul.f32 %v403, %v352
    %v868 = vmul.f32 %v404, %v352
    %v869 = vmul.f32 %v405, %v352
    %v870 = vadd.f32 %v846, %v866
    %v871 = vadd.f32 %v847, %v867
    %v872 = vadd.f32 %v848, %v868
    %v873 = vadd.f32 %v849, %v869
    %v874 = vmul.f32 %v648, %v370
    %v875 = vmul.f32 %v649, %v370
    %v876 = vmul.f32 %v650, %v370
    %v877 = vmul.f32 %v651, %v370
    %v878 = vadd.f32 %v854, %v874
    %v879 = vadd.f32 %v855, %v875
    %v880 = vadd.f32 %v856, %v876
    %v881 = vadd.f32 %v857, %v877
    %v882 = vmul.f32 %v648, %v379
    %v883 = vmul.f32 %v649, %v379
    %v884 = vmul.f32 %v650, %v379
    %v885 = vmul.f32 %v651, %v379
    %v886 = vadd.f32 %v862, %v882
    %v887 = vadd.f32 %v863, %v883
    %v888 = vadd.f32 %v864, %v884
    %v889 = vadd.f32 %v865, %v885
    %v890 = vmul.f32 %v648, %v388
    %v891 = vmul.f32 %v649, %v388
    %v892 = vmul.f32 %v650, %v388
    %v893 = vmul.f32 %v651, %v388
    %v894 = vadd.f32 %v870, %v890
    %v895 = vadd.f32 %v871, %v891
    %v896 = vadd.f32 %v872, %v892
    %v897 = vadd.f32 %v873, %v893
    %s898 = scalar_lea.vmem [#allocation2], 448
    %v899 = vld [vmem:[%s898] sm:$0xf]
    %v900 = vld [vmem:[%s898 + $0x4] sm:$0xf]
    %v901 = vld [vmem:[%s898 + $0x8] sm:$0xf]
    %v902 = vld [vmem:[%s898 + $0xc] sm:$0xf]
    %v903 = vunpack.c.l.bf16 %v899
    %v904 = vunpack.c.l.bf16 %v900
    %v905 = vunpack.c.l.bf16 %v901
    %v906 = vunpack.c.l.bf16 %v902
    %v907 = vmul.f32 %v903, %v406
    %v908 = vmul.f32 %v904, %v406
    %v909 = vmul.f32 %v905, %v406
    %v910 = vmul.f32 %v906, %v406
    %v911 = vadd.f32 %v878, %v907
    %v912 = vadd.f32 %v879, %v908
    %v913 = vadd.f32 %v880, %v909
    %v914 = vadd.f32 %v881, %v910
    %v915 = vmul.f32 %v903, %v415
    %v916 = vmul.f32 %v904, %v415
    %v917 = vmul.f32 %v905, %v415
    %v918 = vmul.f32 %v906, %v415
    %v919 = vadd.f32 %v886, %v915
    %v920 = vadd.f32 %v887, %v916
    %v921 = vadd.f32 %v888, %v917
    %v922 = vadd.f32 %v889, %v918
    %v923 = vmul.f32 %v903, %v424
    %v924 = vmul.f32 %v904, %v424
    %v925 = vmul.f32 %v905, %v424
    %v926 = vmul.f32 %v906, %v424
    %v927 = vadd.f32 %v894, %v923
    %v928 = vadd.f32 %v895, %v924
    %v929 = vadd.f32 %v896, %v925
    %v930 = vadd.f32 %v897, %v926
    %v931 = vmax.f32 %v676, %v911
    %v932 = vmax.f32 %v677, %v912
    %v933 = vmax.f32 %v678, %v913
    %v934 = vmax.f32 %v679, %v914
    %v935 = vmax.f32 %v680, %v919
    %v936 = vmax.f32 %v681, %v920
    %v937 = vmax.f32 %v682, %v921
    %v938 = vmax.f32 %v683, %v922
    %v939 = vmax.f32 %v684, %v927
    %v940 = vmax.f32 %v685, %v928
    %v941 = vmax.f32 %v686, %v929
    %v942 = vmax.f32 %v687, %v930
    %v943 = vmul.f32 %v222, %v118
    %v944 = vmul.f32 %v223, %v118
    %v945 = vmul.f32 %v224, %v118
    %v946 = vmul.f32 %v225, %v118
    %v947 = vadd.f32 %v943, 0.0
    %v948 = vadd.f32 %v944, 0.0
    %v949 = vadd.f32 %v945, 0.0
    %v950 = vadd.f32 %v946, 0.0
    %v951 = vmul.f32 %v222, %v127
    %v952 = vmul.f32 %v223, %v127
    %v953 = vmul.f32 %v224, %v127
    %v954 = vmul.f32 %v225, %v127
    %v955 = vadd.f32 %v951, 0.0
    %v956 = vadd.f32 %v952, 0.0
    %v957 = vadd.f32 %v953, 0.0
    %v958 = vadd.f32 %v954, 0.0
    %v959 = vmul.f32 %v222, %v136
    %v960 = vmul.f32 %v223, %v136
    %v961 = vmul.f32 %v224, %v136
    %v962 = vmul.f32 %v225, %v136
    %v963 = vadd.f32 %v959, 0.0
    %v964 = vadd.f32 %v960, 0.0
    %v965 = vadd.f32 %v961, 0.0
    %v966 = vadd.f32 %v962, 0.0
    %v967 = vmul.f32 %v258, %v154
    %v968 = vmul.f32 %v259, %v154
    %v969 = vmul.f32 %v260, %v154
    %v970 = vmul.f32 %v261, %v154
    %v971 = vadd.f32 %v947, %v967
    %v972 = vadd.f32 %v948, %v968
    %v973 = vadd.f32 %v949, %v969
    %v974 = vadd.f32 %v950, %v970
    %v975 = vmul.f32 %v258, %v163
    %v976 = vmul.f32 %v259, %v163
    %v977 = vmul.f32 %v260, %v163
    %v978 = vmul.f32 %v261, %v163
    %v979 = vadd.f32 %v955, %v975
    %v980 = vadd.f32 %v956, %v976
    %v981 = vadd.f32 %v957, %v977
    %v982 = vadd.f32 %v958, %v978
    %v983 = vmul.f32 %v258, %v172
    %v984 = vmul.f32 %v259, %v172
    %v985 = vmul.f32 %v260, %v172
    %v986 = vmul.f32 %v261, %v172
    %v987 = vadd.f32 %v963, %v983
    %v988 = vadd.f32 %v964, %v984
    %v989 = vadd.f32 %v965, %v985
    %v990 = vadd.f32 %v966, %v986
    %v991 = vmul.f32 %v294, %v190
    %v992 = vmul.f32 %v295, %v190
    %v993 = vmul.f32 %v296, %v190
    %v994 = vmul.f32 %v297, %v190
    %v995 = vadd.f32 %v971, %v991
    %v996 = vadd.f32 %v972, %v992
    %v997 = vadd.f32 %v973, %v993
    %v998 = vadd.f32 %v974, %v994
    %v999 = vmul.f32 %v294, %v199
    %v1000 = vmul.f32 %v295, %v199
    %v1001 = vmul.f32 %v296, %v199
    %v1002 = vmul.f32 %v297, %v199
    %v1003 = vadd.f32 %v979, %v999
    %v1004 = vadd.f32 %v980, %v1000
    %v1005 = vadd.f32 %v981, %v1001
    %v1006 = vadd.f32 %v982, %v1002
    %v1007 = vmul.f32 %v294, %v208
    %v1008 = vmul.f32 %v295, %v208
    %v1009 = vmul.f32 %v296, %v208
    %v1010 = vmul.f32 %v297, %v208
    %v1011 = vadd.f32 %v987, %v1007
    %v1012 = vadd.f32 %v988, %v1008
    %v1013 = vadd.f32 %v989, %v1009
    %v1014 = vadd.f32 %v990, %v1010
    %v1015 = vmul.f32 %v330, %v226
    %v1016 = vmul.f32 %v331, %v226
    %v1017 = vmul.f32 %v332, %v226
    %v1018 = vmul.f32 %v333, %v226
    %v1019 = vadd.f32 %v995, %v1015
    %v1020 = vadd.f32 %v996, %v1016
    %v1021 = vadd.f32 %v997, %v1017
    %v1022 = vadd.f32 %v998, %v1018
    %v1023 = vmul.f32 %v330, %v235
    %v1024 = vmul.f32 %v331, %v235
    %v1025 = vmul.f32 %v332, %v235
    %v1026 = vmul.f32 %v333, %v235
    %v1027 = vadd.f32 %v1003, %v1023
    %v1028 = vadd.f32 %v1004, %v1024
    %v1029 = vadd.f32 %v1005, %v1025
    %v1030 = vadd.f32 %v1006, %v1026
    %v1031 = vmul.f32 %v330, %v244
    %v1032 = vmul.f32 %v331, %v244
    %v1033 = vmul.f32 %v332, %v244
    %v1034 = vmul.f32 %v333, %v244
    %v1035 = vadd.f32 %v1011, %v1031
    %v1036 = vadd.f32 %v1012, %v1032
    %v1037 = vadd.f32 %v1013, %v1033
    %v1038 = vadd.f32 %v1014, %v1034
    %v1039 = vmul.f32 %v366, %v262
    %v1040 = vmul.f32 %v367, %v262
    %v1041 = vmul.f32 %v368, %v262
    %v1042 = vmul.f32 %v369, %v262
    %v1043 = vadd.f32 %v1019, %v1039
    %v1044 = vadd.f32 %v1020, %v1040
    %v1045 = vadd.f32 %v1021, %v1041
    %v1046 = vadd.f32 %v1022, %v1042
    %v1047 = vmul.f32 %v366, %v271
    %v1048 = vmul.f32 %v367, %v271
    %v1049 = vmul.f32 %v368, %v271
    %v1050 = vmul.f32 %v369, %v271
    %v1051 = vadd.f32 %v1027, %v1047
    %v1052 = vadd.f32 %v1028, %v1048
    %v1053 = vadd.f32 %v1029, %v1049
    %v1054 = vadd.f32 %v1030, %v1050
    %v1055 = vmul.f32 %v366, %v280
    %v1056 = vmul.f32 %v367, %v280
    %v1057 = vmul.f32 %v368, %v280
    %v1058 = vmul.f32 %v369, %v280
    %v1059 = vadd.f32 %v1035, %v1055
    %v1060 = vadd.f32 %v1036, %v1056
    %v1061 = vadd.f32 %v1037, %v1057
    %v1062 = vadd.f32 %v1038, %v1058
    %v1063 = vmul.f32 %v402, %v298
    %v1064 = vmul.f32 %v403, %v298
    %v1065 = vmul.f32 %v404, %v298
    %v1066 = vmul.f32 %v405, %v298
    %v1067 = vadd.f32 %v1043, %v1063
    %v1068 = vadd.f32 %v1044, %v1064
    %v1069 = vadd.f32 %v1045, %v1065
    %v1070 = vadd.f32 %v1046, %v1066
    %v1071 = vmul.f32 %v402, %v307
    %v1072 = vmul.f32 %v403, %v307
    %v1073 = vmul.f32 %v404, %v307
    %v1074 = vmul.f32 %v405, %v307
    %v1075 = vadd.f32 %v1051, %v1071
    %v1076 = vadd.f32 %v1052, %v1072
    %v1077 = vadd.f32 %v1053, %v1073
    %v1078 = vadd.f32 %v1054, %v1074
    %v1079 = vmul.f32 %v402, %v316
    %v1080 = vmul.f32 %v403, %v316
    %v1081 = vmul.f32 %v404, %v316
    %v1082 = vmul.f32 %v405, %v316
    %v1083 = vadd.f32 %v1059, %v1079
    %v1084 = vadd.f32 %v1060, %v1080
    %v1085 = vadd.f32 %v1061, %v1081
    %v1086 = vadd.f32 %v1062, %v1082
    %s1087 = scalar_lea.vmem [#allocation2], 480
    %v1088 = vld [vmem:[%s1087] sm:$0xf]
    %v1089 = vld [vmem:[%s1087 + $0x4] sm:$0xf]
    %v1090 = vld [vmem:[%s1087 + $0x8] sm:$0xf]
    %v1091 = vld [vmem:[%s1087 + $0xc] sm:$0xf]
    %v1092 = vunpack.c.l.bf16 %v1088
    %v1093 = vunpack.c.l.bf16 %v1089
    %v1094 = vunpack.c.l.bf16 %v1090
    %v1095 = vunpack.c.l.bf16 %v1091
    %v1096 = vmul.f32 %v1092, %v334
    %v1097 = vmul.f32 %v1093, %v334
    %v1098 = vmul.f32 %v1094, %v334
    %v1099 = vmul.f32 %v1095, %v334
    %v1100 = vadd.f32 %v1067, %v1096
    %v1101 = vadd.f32 %v1068, %v1097
    %v1102 = vadd.f32 %v1069, %v1098
    %v1103 = vadd.f32 %v1070, %v1099
    %v1104 = vmul.f32 %v1092, %v343
    %v1105 = vmul.f32 %v1093, %v343
    %v1106 = vmul.f32 %v1094, %v343
    %v1107 = vmul.f32 %v1095, %v343
    %v1108 = vadd.f32 %v1075, %v1104
    %v1109 = vadd.f32 %v1076, %v1105
    %v1110 = vadd.f32 %v1077, %v1106
    %v1111 = vadd.f32 %v1078, %v1107
    %v1112 = vmul.f32 %v1092, %v352
    %v1113 = vmul.f32 %v1093, %v352
    %v1114 = vmul.f32 %v1094, %v352
    %v1115 = vmul.f32 %v1095, %v352
    %v1116 = vadd.f32 %v1083, %v1112
    %v1117 = vadd.f32 %v1084, %v1113
    %v1118 = vadd.f32 %v1085, %v1114
    %v1119 = vadd.f32 %v1086, %v1115
    %s1120 = scalar_lea.vmem [#allocation2], 512
    %v1121 = vld [vmem:[%s1120] sm:$0xf]
    %v1122 = vld [vmem:[%s1120 + $0x4] sm:$0xf]
    %v1123 = vld [vmem:[%s1120 + $0x8] sm:$0xf]
    %v1124 = vld [vmem:[%s1120 + $0xc] sm:$0xf]
    %v1125 = vunpack.c.l.bf16 %v1121
    %v1126 = vunpack.c.l.bf16 %v1122
    %v1127 = vunpack.c.l.bf16 %v1123
    %v1128 = vunpack.c.l.bf16 %v1124
    %v1129 = vmul.f32 %v1125, %v370
    %v1130 = vmul.f32 %v1126, %v370
    %v1131 = vmul.f32 %v1127, %v370
    %v1132 = vmul.f32 %v1128, %v370
    %v1133 = vadd.f32 %v1100, %v1129
    %v1134 = vadd.f32 %v1101, %v1130
    %v1135 = vadd.f32 %v1102, %v1131
    %v1136 = vadd.f32 %v1103, %v1132
    %v1137 = vmul.f32 %v1125, %v379
    %v1138 = vmul.f32 %v1126, %v379
    %v1139 = vmul.f32 %v1127, %v379
    %v1140 = vmul.f32 %v1128, %v379
    %v1141 = vadd.f32 %v1108, %v1137
    %v1142 = vadd.f32 %v1109, %v1138
    %v1143 = vadd.f32 %v1110, %v1139
    %v1144 = vadd.f32 %v1111, %v1140
    %v1145 = vmul.f32 %v1125, %v388
    %v1146 = vmul.f32 %v1126, %v388
    %v1147 = vmul.f32 %v1127, %v388
    %v1148 = vmul.f32 %v1128, %v388
    %v1149 = vadd.f32 %v1116, %v1145
    %v1150 = vadd.f32 %v1117, %v1146
    %v1151 = vadd.f32 %v1118, %v1147
    %v1152 = vadd.f32 %v1119, %v1148
    %s1153 = scalar_lea.vmem [#allocation2], 544
    %v1154 = vld [vmem:[%s1153] sm:$0xf]
    %v1155 = vld [vmem:[%s1153 + $0x4] sm:$0xf]
    %v1156 = vld [vmem:[%s1153 + $0x8] sm:$0xf]
    %v1157 = vld [vmem:[%s1153 + $0xc] sm:$0xf]
    %v1158 = vunpack.c.l.bf16 %v1154
    %v1159 = vunpack.c.l.bf16 %v1155
    %v1160 = vunpack.c.l.bf16 %v1156
    %v1161 = vunpack.c.l.bf16 %v1157
    %v1162 = vmul.f32 %v1158, %v406
    %v1163 = vmul.f32 %v1159, %v406
    %v1164 = vmul.f32 %v1160, %v406
    %v1165 = vmul.f32 %v1161, %v406
    %v1166 = vadd.f32 %v1133, %v1162
    %v1167 = vadd.f32 %v1134, %v1163
    %v1168 = vadd.f32 %v1135, %v1164
    %v1169 = vadd.f32 %v1136, %v1165
    %v1170 = vmul.f32 %v1158, %v415
    %v1171 = vmul.f32 %v1159, %v415
    %v1172 = vmul.f32 %v1160, %v415
    %v1173 = vmul.f32 %v1161, %v415
    %v1174 = vadd.f32 %v1141, %v1170
    %v1175 = vadd.f32 %v1142, %v1171
    %v1176 = vadd.f32 %v1143, %v1172
    %v1177 = vadd.f32 %v1144, %v1173
    %v1178 = vmul.f32 %v1158, %v424
    %v1179 = vmul.f32 %v1159, %v424
    %v1180 = vmul.f32 %v1160, %v424
    %v1181 = vmul.f32 %v1161, %v424
    %v1182 = vadd.f32 %v1149, %v1178
    %v1183 = vadd.f32 %v1150, %v1179
    %v1184 = vadd.f32 %v1151, %v1180
    %v1185 = vadd.f32 %v1152, %v1181
    %v1186 = vmax.f32 %v931, %v1166
    %v1187 = vmax.f32 %v932, %v1167
    %v1188 = vmax.f32 %v933, %v1168
    %v1189 = vmax.f32 %v934, %v1169
    %v1190 = vmax.f32 %v935, %v1174
    %v1191 = vmax.f32 %v936, %v1175
    %v1192 = vmax.f32 %v937, %v1176
    %v1193 = vmax.f32 %v938, %v1177
    %v1194 = vmax.f32 %v939, %v1182
    %v1195 = vmax.f32 %v940, %v1183
    %v1196 = vmax.f32 %v941, %v1184
    %v1197 = vmax.f32 %v942, %v1185
    %v1198 = vmul.f32 %v258, %v118
    %v1199 = vmul.f32 %v259, %v118
    %v1200 = vmul.f32 %v260, %v118
    %v1201 = vmul.f32 %v261, %v118
    %v1202 = vadd.f32 %v1198, 0.0
    %v1203 = vadd.f32 %v1199, 0.0
    %v1204 = vadd.f32 %v1200, 0.0
    %v1205 = vadd.f32 %v1201, 0.0
    %v1206 = vmul.f32 %v258, %v127
    %v1207 = vmul.f32 %v259, %v127
    %v1208 = vmul.f32 %v260, %v127
    %v1209 = vmul.f32 %v261, %v127
    %v1210 = vadd.f32 %v1206, 0.0
    %v1211 = vadd.f32 %v1207, 0.0
    %v1212 = vadd.f32 %v1208, 0.0
    %v1213 = vadd.f32 %v1209, 0.0
    %v1214 = vmul.f32 %v258, %v136
    %v1215 = vmul.f32 %v259, %v136
    %v1216 = vmul.f32 %v260, %v136
    %v1217 = vmul.f32 %v261, %v136
    %v1218 = vadd.f32 %v1214, 0.0
    %v1219 = vadd.f32 %v1215, 0.0
    %v1220 = vadd.f32 %v1216, 0.0
    %v1221 = vadd.f32 %v1217, 0.0
    %v1222 = vmul.f32 %v294, %v154
    %v1223 = vmul.f32 %v295, %v154
    %v1224 = vmul.f32 %v296, %v154
    %v1225 = vmul.f32 %v297, %v154
    %v1226 = vadd.f32 %v1202, %v1222
    %v1227 = vadd.f32 %v1203, %v1223
    %v1228 = vadd.f32 %v1204, %v1224
    %v1229 = vadd.f32 %v1205, %v1225
    %v1230 = vmul.f32 %v294, %v163
    %v1231 = vmul.f32 %v295, %v163
    %v1232 = vmul.f32 %v296, %v163
    %v1233 = vmul.f32 %v297, %v163
    %v1234 = vadd.f32 %v1210, %v1230
    %v1235 = vadd.f32 %v1211, %v1231
    %v1236 = vadd.f32 %v1212, %v1232
    %v1237 = vadd.f32 %v1213, %v1233
    %v1238 = vmul.f32 %v294, %v172
    %v1239 = vmul.f32 %v295, %v172
    %v1240 = vmul.f32 %v296, %v172
    %v1241 = vmul.f32 %v297, %v172
    %v1242 = vadd.f32 %v1218, %v1238
    %v1243 = vadd.f32 %v1219, %v1239
    %v1244 = vadd.f32 %v1220, %v1240
    %v1245 = vadd.f32 %v1221, %v1241
    %v1246 = vmul.f32 %v567, %v190
    %v1247 = vmul.f32 %v568, %v190
    %v1248 = vmul.f32 %v569, %v190
    %v1249 = vmul.f32 %v570, %v190
    %v1250 = vadd.f32 %v1226, %v1246
    %v1251 = vadd.f32 %v1227, %v1247
    %v1252 = vadd.f32 %v1228, %v1248
    %v1253 = vadd.f32 %v1229, %v1249
    %v1254 = vmul.f32 %v567, %v199
    %v1255 = vmul.f32 %v568, %v199
    %v1256 = vmul.f32 %v569, %v199
    %v1257 = vmul.f32 %v570, %v199
    %v1258 = vadd.f32 %v1234, %v1254
    %v1259 = vadd.f32 %v1235, %v1255
    %v1260 = vadd.f32 %v1236, %v1256
    %v1261 = vadd.f32 %v1237, %v1257
    %v1262 = vmul.f32 %v567, %v208
    %v1263 = vmul.f32 %v568, %v208
    %v1264 = vmul.f32 %v569, %v208
    %v1265 = vmul.f32 %v570, %v208
    %v1266 = vadd.f32 %v1242, %v1262
    %v1267 = vadd.f32 %v1243, %v1263
    %v1268 = vadd.f32 %v1244, %v1264
    %v1269 = vadd.f32 %v1245, %v1265
    %v1270 = vmul.f32 %v366, %v226
    %v1271 = vmul.f32 %v367, %v226
    %v1272 = vmul.f32 %v368, %v226
    %v1273 = vmul.f32 %v369, %v226
    %v1274 = vadd.f32 %v1250, %v1270
    %v1275 = vadd.f32 %v1251, %v1271
    %v1276 = vadd.f32 %v1252, %v1272
    %v1277 = vadd.f32 %v1253, %v1273
    %v1278 = vmul.f32 %v366, %v235
    %v1279 = vmul.f32 %v367, %v235
    %v1280 = vmul.f32 %v368, %v235
    %v1281 = vmul.f32 %v369, %v235
    %v1282 = vadd.f32 %v1258, %v1278
    %v1283 = vadd.f32 %v1259, %v1279
    %v1284 = vadd.f32 %v1260, %v1280
    %v1285 = vadd.f32 %v1261, %v1281
    %v1286 = vmul.f32 %v366, %v244
    %v1287 = vmul.f32 %v367, %v244
    %v1288 = vmul.f32 %v368, %v244
    %v1289 = vmul.f32 %v369, %v244
    %v1290 = vadd.f32 %v1266, %v1286
    %v1291 = vadd.f32 %v1267, %v1287
    %v1292 = vadd.f32 %v1268, %v1288
    %v1293 = vadd.f32 %v1269, %v1289
    %v1294 = vmul.f32 %v402, %v262
    %v1295 = vmul.f32 %v403, %v262
    %v1296 = vmul.f32 %v404, %v262
    %v1297 = vmul.f32 %v405, %v262
    %v1298 = vadd.f32 %v1274, %v1294
    %v1299 = vadd.f32 %v1275, %v1295
    %v1300 = vadd.f32 %v1276, %v1296
    %v1301 = vadd.f32 %v1277, %v1297
    %v1302 = vmul.f32 %v402, %v271
    %v1303 = vmul.f32 %v403, %v271
    %v1304 = vmul.f32 %v404, %v271
    %v1305 = vmul.f32 %v405, %v271
    %v1306 = vadd.f32 %v1282, %v1302
    %v1307 = vadd.f32 %v1283, %v1303
    %v1308 = vadd.f32 %v1284, %v1304
    %v1309 = vadd.f32 %v1285, %v1305
    %v1310 = vmul.f32 %v402, %v280
    %v1311 = vmul.f32 %v403, %v280
    %v1312 = vmul.f32 %v404, %v280
    %v1313 = vmul.f32 %v405, %v280
    %v1314 = vadd.f32 %v1290, %v1310
    %v1315 = vadd.f32 %v1291, %v1311
    %v1316 = vadd.f32 %v1292, %v1312
    %v1317 = vadd.f32 %v1293, %v1313
    %v1318 = vmul.f32 %v648, %v298
    %v1319 = vmul.f32 %v649, %v298
    %v1320 = vmul.f32 %v650, %v298
    %v1321 = vmul.f32 %v651, %v298
    %v1322 = vadd.f32 %v1298, %v1318
    %v1323 = vadd.f32 %v1299, %v1319
    %v1324 = vadd.f32 %v1300, %v1320
    %v1325 = vadd.f32 %v1301, %v1321
    %v1326 = vmul.f32 %v648, %v307
    %v1327 = vmul.f32 %v649, %v307
    %v1328 = vmul.f32 %v650, %v307
    %v1329 = vmul.f32 %v651, %v307
    %v1330 = vadd.f32 %v1306, %v1326
    %v1331 = vadd.f32 %v1307, %v1327
    %v1332 = vadd.f32 %v1308, %v1328
    %v1333 = vadd.f32 %v1309, %v1329
    %v1334 = vmul.f32 %v648, %v316
    %v1335 = vmul.f32 %v649, %v316
    %v1336 = vmul.f32 %v650, %v316
    %v1337 = vmul.f32 %v651, %v316
    %v1338 = vadd.f32 %v1314, %v1334
    %v1339 = vadd.f32 %v1315, %v1335
    %v1340 = vadd.f32 %v1316, %v1336
    %v1341 = vadd.f32 %v1317, %v1337
    %v1342 = vmul.f32 %v1125, %v334
    %v1343 = vmul.f32 %v1126, %v334
    %v1344 = vmul.f32 %v1127, %v334
    %v1345 = vmul.f32 %v1128, %v334
    %v1346 = vadd.f32 %v1322, %v1342
    %v1347 = vadd.f32 %v1323, %v1343
    %v1348 = vadd.f32 %v1324, %v1344
    %v1349 = vadd.f32 %v1325, %v1345
    %v1350 = vmul.f32 %v1125, %v343
    %v1351 = vmul.f32 %v1126, %v343
    %v1352 = vmul.f32 %v1127, %v343
    %v1353 = vmul.f32 %v1128, %v343
    %v1354 = vadd.f32 %v1330, %v1350
    %v1355 = vadd.f32 %v1331, %v1351
    %v1356 = vadd.f32 %v1332, %v1352
    %v1357 = vadd.f32 %v1333, %v1353
    %v1358 = vmul.f32 %v1125, %v352
    %v1359 = vmul.f32 %v1126, %v352
    %v1360 = vmul.f32 %v1127, %v352
    %v1361 = vmul.f32 %v1128, %v352
    %v1362 = vadd.f32 %v1338, %v1358
    %v1363 = vadd.f32 %v1339, %v1359
    %v1364 = vadd.f32 %v1340, %v1360
    %v1365 = vadd.f32 %v1341, %v1361
    %v1366 = vmul.f32 %v1158, %v370
    %v1367 = vmul.f32 %v1159, %v370
    %v1368 = vmul.f32 %v1160, %v370
    %v1369 = vmul.f32 %v1161, %v370
    %v1370 = vadd.f32 %v1346, %v1366
    %v1371 = vadd.f32 %v1347, %v1367
    %v1372 = vadd.f32 %v1348, %v1368
    %v1373 = vadd.f32 %v1349, %v1369
    %v1374 = vmul.f32 %v1158, %v379
    %v1375 = vmul.f32 %v1159, %v379
    %v1376 = vmul.f32 %v1160, %v379
    %v1377 = vmul.f32 %v1161, %v379
    %v1378 = vadd.f32 %v1354, %v1374
    %v1379 = vadd.f32 %v1355, %v1375
    %v1380 = vadd.f32 %v1356, %v1376
    %v1381 = vadd.f32 %v1357, %v1377
    %v1382 = vmul.f32 %v1158, %v388
    %v1383 = vmul.f32 %v1159, %v388
    %v1384 = vmul.f32 %v1160, %v388
    %v1385 = vmul.f32 %v1161, %v388
    %v1386 = vadd.f32 %v1362, %v1382
    %v1387 = vadd.f32 %v1363, %v1383
    %v1388 = vadd.f32 %v1364, %v1384
    %v1389 = vadd.f32 %v1365, %v1385
    %s1390 = scalar_lea.vmem [#allocation2], 576
    %v1391 = vld [vmem:[%s1390] sm:$0xf]
    %v1392 = vld [vmem:[%s1390 + $0x4] sm:$0xf]
    %v1393 = vld [vmem:[%s1390 + $0x8] sm:$0xf]
    %v1394 = vld [vmem:[%s1390 + $0xc] sm:$0xf]
    %v1395 = vunpack.c.l.bf16 %v1391
    %v1396 = vunpack.c.l.bf16 %v1392
    %v1397 = vunpack.c.l.bf16 %v1393
    %v1398 = vunpack.c.l.bf16 %v1394
    %v1399 = vmul.f32 %v1395, %v406
    %v1400 = vmul.f32 %v1396, %v406
    %v1401 = vmul.f32 %v1397, %v406
    %v1402 = vmul.f32 %v1398, %v406
    %v1403 = vadd.f32 %v1370, %v1399
    %v1404 = vadd.f32 %v1371, %v1400
    %v1405 = vadd.f32 %v1372, %v1401
    %v1406 = vadd.f32 %v1373, %v1402
    %v1407 = vmul.f32 %v1395, %v415
    %v1408 = vmul.f32 %v1396, %v415
    %v1409 = vmul.f32 %v1397, %v415
    %v1410 = vmul.f32 %v1398, %v415
    %v1411 = vadd.f32 %v1378, %v1407
    %v1412 = vadd.f32 %v1379, %v1408
    %v1413 = vadd.f32 %v1380, %v1409
    %v1414 = vadd.f32 %v1381, %v1410
    %v1415 = vmul.f32 %v1395, %v424
    %v1416 = vmul.f32 %v1396, %v424
    %v1417 = vmul.f32 %v1397, %v424
    %v1418 = vmul.f32 %v1398, %v424
    %v1419 = vadd.f32 %v1386, %v1415
    %v1420 = vadd.f32 %v1387, %v1416
    %v1421 = vadd.f32 %v1388, %v1417
    %v1422 = vadd.f32 %v1389, %v1418
    %v1423 = vmax.f32 %v1186, %v1403
    %v1424 = vmax.f32 %v1187, %v1404
    %v1425 = vmax.f32 %v1188, %v1405
    %v1426 = vmax.f32 %v1189, %v1406
    %v1427 = vmax.f32 %v1190, %v1411
    %v1428 = vmax.f32 %v1191, %v1412
    %v1429 = vmax.f32 %v1192, %v1413
    %v1430 = vmax.f32 %v1193, %v1414
    %v1431 = vmax.f32 %v1194, %v1419
    %v1432 = vmax.f32 %v1195, %v1420
    %v1433 = vmax.f32 %v1196, %v1421
    %v1434 = vmax.f32 %v1197, %v1422
    %v1435 = vmul.f32 %v294, %v118
    %v1436 = vmul.f32 %v295, %v118
    %v1437 = vmul.f32 %v296, %v118
    %v1438 = vmul.f32 %v297, %v118
    %v1439 = vadd.f32 %v1435, 0.0
    %v1440 = vadd.f32 %v1436, 0.0
    %v1441 = vadd.f32 %v1437, 0.0
    %v1442 = vadd.f32 %v1438, 0.0
    %v1443 = vmul.f32 %v294, %v127
    %v1444 = vmul.f32 %v295, %v127
    %v1445 = vmul.f32 %v296, %v127
    %v1446 = vmul.f32 %v297, %v127
    %v1447 = vadd.f32 %v1443, 0.0
    %v1448 = vadd.f32 %v1444, 0.0
    %v1449 = vadd.f32 %v1445, 0.0
    %v1450 = vadd.f32 %v1446, 0.0
    %v1451 = vmul.f32 %v294, %v136
    %v1452 = vmul.f32 %v295, %v136
    %v1453 = vmul.f32 %v296, %v136
    %v1454 = vmul.f32 %v297, %v136
    %v1455 = vadd.f32 %v1451, 0.0
    %v1456 = vadd.f32 %v1452, 0.0
    %v1457 = vadd.f32 %v1453, 0.0
    %v1458 = vadd.f32 %v1454, 0.0
    %v1459 = vmul.f32 %v567, %v154
    %v1460 = vmul.f32 %v568, %v154
    %v1461 = vmul.f32 %v569, %v154
    %v1462 = vmul.f32 %v570, %v154
    %v1463 = vadd.f32 %v1439, %v1459
    %v1464 = vadd.f32 %v1440, %v1460
    %v1465 = vadd.f32 %v1441, %v1461
    %v1466 = vadd.f32 %v1442, %v1462
    %v1467 = vmul.f32 %v567, %v163
    %v1468 = vmul.f32 %v568, %v163
    %v1469 = vmul.f32 %v569, %v163
    %v1470 = vmul.f32 %v570, %v163
    %v1471 = vadd.f32 %v1447, %v1467
    %v1472 = vadd.f32 %v1448, %v1468
    %v1473 = vadd.f32 %v1449, %v1469
    %v1474 = vadd.f32 %v1450, %v1470
    %v1475 = vmul.f32 %v567, %v172
    %v1476 = vmul.f32 %v568, %v172
    %v1477 = vmul.f32 %v569, %v172
    %v1478 = vmul.f32 %v570, %v172
    %v1479 = vadd.f32 %v1455, %v1475
    %v1480 = vadd.f32 %v1456, %v1476
    %v1481 = vadd.f32 %v1457, %v1477
    %v1482 = vadd.f32 %v1458, %v1478
    %v1483 = vmul.f32 %v822, %v190
    %v1484 = vmul.f32 %v823, %v190
    %v1485 = vmul.f32 %v824, %v190
    %v1486 = vmul.f32 %v825, %v190
    %v1487 = vadd.f32 %v1463, %v1483
    %v1488 = vadd.f32 %v1464, %v1484
    %v1489 = vadd.f32 %v1465, %v1485
    %v1490 = vadd.f32 %v1466, %v1486
    %v1491 = vmul.f32 %v822, %v199
    %v1492 = vmul.f32 %v823, %v199
    %v1493 = vmul.f32 %v824, %v199
    %v1494 = vmul.f32 %v825, %v199
    %v1495 = vadd.f32 %v1471, %v1491
    %v1496 = vadd.f32 %v1472, %v1492
    %v1497 = vadd.f32 %v1473, %v1493
    %v1498 = vadd.f32 %v1474, %v1494
    %v1499 = vmul.f32 %v822, %v208
    %v1500 = vmul.f32 %v823, %v208
    %v1501 = vmul.f32 %v824, %v208
    %v1502 = vmul.f32 %v825, %v208
    %v1503 = vadd.f32 %v1479, %v1499
    %v1504 = vadd.f32 %v1480, %v1500
    %v1505 = vadd.f32 %v1481, %v1501
    %v1506 = vadd.f32 %v1482, %v1502
    %v1507 = vmul.f32 %v402, %v226
    %v1508 = vmul.f32 %v403, %v226
    %v1509 = vmul.f32 %v404, %v226
    %v1510 = vmul.f32 %v405, %v226
    %v1511 = vadd.f32 %v1487, %v1507
    %v1512 = vadd.f32 %v1488, %v1508
    %v1513 = vadd.f32 %v1489, %v1509
    %v1514 = vadd.f32 %v1490, %v1510
    %v1515 = vmul.f32 %v402, %v235
    %v1516 = vmul.f32 %v403, %v235
    %v1517 = vmul.f32 %v404, %v235
    %v1518 = vmul.f32 %v405, %v235
    %v1519 = vadd.f32 %v1495, %v1515
    %v1520 = vadd.f32 %v1496, %v1516
    %v1521 = vadd.f32 %v1497, %v1517
    %v1522 = vadd.f32 %v1498, %v1518
    %v1523 = vmul.f32 %v402, %v244
    %v1524 = vmul.f32 %v403, %v244
    %v1525 = vmul.f32 %v404, %v244
    %v1526 = vmul.f32 %v405, %v244
    %v1527 = vadd.f32 %v1503, %v1523
    %v1528 = vadd.f32 %v1504, %v1524
    %v1529 = vadd.f32 %v1505, %v1525
    %v1530 = vadd.f32 %v1506, %v1526
    %v1531 = vmul.f32 %v648, %v262
    %v1532 = vmul.f32 %v649, %v262
    %v1533 = vmul.f32 %v650, %v262
    %v1534 = vmul.f32 %v651, %v262
    %v1535 = vadd.f32 %v1511, %v1531
    %v1536 = vadd.f32 %v1512, %v1532
    %v1537 = vadd.f32 %v1513, %v1533
    %v1538 = vadd.f32 %v1514, %v1534
    %v1539 = vmul.f32 %v648, %v271
    %v1540 = vmul.f32 %v649, %v271
    %v1541 = vmul.f32 %v650, %v271
    %v1542 = vmul.f32 %v651, %v271
    %v1543 = vadd.f32 %v1519, %v1539
    %v1544 = vadd.f32 %v1520, %v1540
    %v1545 = vadd.f32 %v1521, %v1541
    %v1546 = vadd.f32 %v1522, %v1542
    %v1547 = vmul.f32 %v648, %v280
    %v1548 = vmul.f32 %v649, %v280
    %v1549 = vmul.f32 %v650, %v280
    %v1550 = vmul.f32 %v651, %v280
    %v1551 = vadd.f32 %v1527, %v1547
    %v1552 = vadd.f32 %v1528, %v1548
    %v1553 = vadd.f32 %v1529, %v1549
    %v1554 = vadd.f32 %v1530, %v1550
    %v1555 = vmul.f32 %v903, %v298
    %v1556 = vmul.f32 %v904, %v298
    %v1557 = vmul.f32 %v905, %v298
    %v1558 = vmul.f32 %v906, %v298
    %v1559 = vadd.f32 %v1535, %v1555
    %v1560 = vadd.f32 %v1536, %v1556
    %v1561 = vadd.f32 %v1537, %v1557
    %v1562 = vadd.f32 %v1538, %v1558
    %v1563 = vmul.f32 %v903, %v307
    %v1564 = vmul.f32 %v904, %v307
    %v1565 = vmul.f32 %v905, %v307
    %v1566 = vmul.f32 %v906, %v307
    %v1567 = vadd.f32 %v1543, %v1563
    %v1568 = vadd.f32 %v1544, %v1564
    %v1569 = vadd.f32 %v1545, %v1565
    %v1570 = vadd.f32 %v1546, %v1566
    %v1571 = vmul.f32 %v903, %v316
    %v1572 = vmul.f32 %v904, %v316
    %v1573 = vmul.f32 %v905, %v316
    %v1574 = vmul.f32 %v906, %v316
    %v1575 = vadd.f32 %v1551, %v1571
    %v1576 = vadd.f32 %v1552, %v1572
    %v1577 = vadd.f32 %v1553, %v1573
    %v1578 = vadd.f32 %v1554, %v1574
    %v1579 = vmul.f32 %v1158, %v334
    %v1580 = vmul.f32 %v1159, %v334
    %v1581 = vmul.f32 %v1160, %v334
    %v1582 = vmul.f32 %v1161, %v334
    %v1583 = vadd.f32 %v1559, %v1579
    %v1584 = vadd.f32 %v1560, %v1580
    %v1585 = vadd.f32 %v1561, %v1581
    %v1586 = vadd.f32 %v1562, %v1582
    %v1587 = vmul.f32 %v1158, %v343
    %v1588 = vmul.f32 %v1159, %v343
    %v1589 = vmul.f32 %v1160, %v343
    %v1590 = vmul.f32 %v1161, %v343
    %v1591 = vadd.f32 %v1567, %v1587
    %v1592 = vadd.f32 %v1568, %v1588
    %v1593 = vadd.f32 %v1569, %v1589
    %v1594 = vadd.f32 %v1570, %v1590
    %v1595 = vmul.f32 %v1158, %v352
    %v1596 = vmul.f32 %v1159, %v352
    %v1597 = vmul.f32 %v1160, %v352
    %v1598 = vmul.f32 %v1161, %v352
    %v1599 = vadd.f32 %v1575, %v1595
    %v1600 = vadd.f32 %v1576, %v1596
    %v1601 = vadd.f32 %v1577, %v1597
    %v1602 = vadd.f32 %v1578, %v1598
    %v1603 = vmul.f32 %v1395, %v370
    %v1604 = vmul.f32 %v1396, %v370
    %v1605 = vmul.f32 %v1397, %v370
    %v1606 = vmul.f32 %v1398, %v370
    %v1607 = vadd.f32 %v1583, %v1603
    %v1608 = vadd.f32 %v1584, %v1604
    %v1609 = vadd.f32 %v1585, %v1605
    %v1610 = vadd.f32 %v1586, %v1606
    %v1611 = vmul.f32 %v1395, %v379
    %v1612 = vmul.f32 %v1396, %v379
    %v1613 = vmul.f32 %v1397, %v379
    %v1614 = vmul.f32 %v1398, %v379
    %v1615 = vadd.f32 %v1591, %v1611
    %v1616 = vadd.f32 %v1592, %v1612
    %v1617 = vadd.f32 %v1593, %v1613
    %v1618 = vadd.f32 %v1594, %v1614
    %v1619 = vmul.f32 %v1395, %v388
    %v1620 = vmul.f32 %v1396, %v388
    %v1621 = vmul.f32 %v1397, %v388
    %v1622 = vmul.f32 %v1398, %v388
    %v1623 = vadd.f32 %v1599, %v1619
    %v1624 = vadd.f32 %v1600, %v1620
    %v1625 = vadd.f32 %v1601, %v1621
    %v1626 = vadd.f32 %v1602, %v1622
    %s1627 = scalar_lea.vmem [#allocation2], 608
    %v1628 = vld [vmem:[%s1627] sm:$0xf]
    %v1629 = vld [vmem:[%s1627 + $0x4] sm:$0xf]
    %v1630 = vld [vmem:[%s1627 + $0x8] sm:$0xf]
    %v1631 = vld [vmem:[%s1627 + $0xc] sm:$0xf]
    %v1632 = vunpack.c.l.bf16 %v1628
    %v1633 = vunpack.c.l.bf16 %v1629
    %v1634 = vunpack.c.l.bf16 %v1630
    %v1635 = vunpack.c.l.bf16 %v1631
    %v1636 = vmul.f32 %v1632, %v406
    %v1637 = vmul.f32 %v1633, %v406
    %v1638 = vmul.f32 %v1634, %v406
    %v1639 = vmul.f32 %v1635, %v406
    %v1640 = vadd.f32 %v1607, %v1636
    %v1641 = vadd.f32 %v1608, %v1637
    %v1642 = vadd.f32 %v1609, %v1638
    %v1643 = vadd.f32 %v1610, %v1639
    %v1644 = vmul.f32 %v1632, %v415
    %v1645 = vmul.f32 %v1633, %v415
    %v1646 = vmul.f32 %v1634, %v415
    %v1647 = vmul.f32 %v1635, %v415
    %v1648 = vadd.f32 %v1615, %v1644
    %v1649 = vadd.f32 %v1616, %v1645
    %v1650 = vadd.f32 %v1617, %v1646
    %v1651 = vadd.f32 %v1618, %v1647
    %v1652 = vmul.f32 %v1632, %v424
    %v1653 = vmul.f32 %v1633, %v424
    %v1654 = vmul.f32 %v1634, %v424
    %v1655 = vmul.f32 %v1635, %v424
    %v1656 = vadd.f32 %v1623, %v1652
    %v1657 = vadd.f32 %v1624, %v1653
    %v1658 = vadd.f32 %v1625, %v1654
    %v1659 = vadd.f32 %v1626, %v1655
    %v1660 = vmax.f32 %v1423, %v1640
    %v1661 = vmax.f32 %v1424, %v1641
    %v1662 = vmax.f32 %v1425, %v1642
    %v1663 = vmax.f32 %v1426, %v1643
    %v1664 = vmax.f32 %v1427, %v1648
    %v1665 = vmax.f32 %v1428, %v1649
    %v1666 = vmax.f32 %v1429, %v1650
    %v1667 = vmax.f32 %v1430, %v1651
    %v1668 = vmax.f32 %v1431, %v1656
    %v1669 = vmax.f32 %v1432, %v1657
    %v1670 = vmax.f32 %v1433, %v1658
    %v1671 = vmax.f32 %v1434, %v1659
    %v1672 = vmul.f32 %v330, %v118
    %v1673 = vmul.f32 %v331, %v118
    %v1674 = vmul.f32 %v332, %v118
    %v1675 = vmul.f32 %v333, %v118
    %v1676 = vadd.f32 %v1672, 0.0
    %v1677 = vadd.f32 %v1673, 0.0
    %v1678 = vadd.f32 %v1674, 0.0
    %v1679 = vadd.f32 %v1675, 0.0
    %v1680 = vmul.f32 %v330, %v127
    %v1681 = vmul.f32 %v331, %v127
    %v1682 = vmul.f32 %v332, %v127
    %v1683 = vmul.f32 %v333, %v127
    %v1684 = vadd.f32 %v1680, 0.0
    %v1685 = vadd.f32 %v1681, 0.0
    %v1686 = vadd.f32 %v1682, 0.0
    %v1687 = vadd.f32 %v1683, 0.0
    %v1688 = vmul.f32 %v330, %v136
    %v1689 = vmul.f32 %v331, %v136
    %v1690 = vmul.f32 %v332, %v136
    %v1691 = vmul.f32 %v333, %v136
    %v1692 = vadd.f32 %v1688, 0.0
    %v1693 = vadd.f32 %v1689, 0.0
    %v1694 = vadd.f32 %v1690, 0.0
    %v1695 = vadd.f32 %v1691, 0.0
    %v1696 = vmul.f32 %v366, %v154
    %v1697 = vmul.f32 %v367, %v154
    %v1698 = vmul.f32 %v368, %v154
    %v1699 = vmul.f32 %v369, %v154
    %v1700 = vadd.f32 %v1676, %v1696
    %v1701 = vadd.f32 %v1677, %v1697
    %v1702 = vadd.f32 %v1678, %v1698
    %v1703 = vadd.f32 %v1679, %v1699
    %v1704 = vmul.f32 %v366, %v163
    %v1705 = vmul.f32 %v367, %v163
    %v1706 = vmul.f32 %v368, %v163
    %v1707 = vmul.f32 %v369, %v163
    %v1708 = vadd.f32 %v1684, %v1704
    %v1709 = vadd.f32 %v1685, %v1705
    %v1710 = vadd.f32 %v1686, %v1706
    %v1711 = vadd.f32 %v1687, %v1707
    %v1712 = vmul.f32 %v366, %v172
    %v1713 = vmul.f32 %v367, %v172
    %v1714 = vmul.f32 %v368, %v172
    %v1715 = vmul.f32 %v369, %v172
    %v1716 = vadd.f32 %v1692, %v1712
    %v1717 = vadd.f32 %v1693, %v1713
    %v1718 = vadd.f32 %v1694, %v1714
    %v1719 = vadd.f32 %v1695, %v1715
    %v1720 = vmul.f32 %v402, %v190
    %v1721 = vmul.f32 %v403, %v190
    %v1722 = vmul.f32 %v404, %v190
    %v1723 = vmul.f32 %v405, %v190
    %v1724 = vadd.f32 %v1700, %v1720
    %v1725 = vadd.f32 %v1701, %v1721
    %v1726 = vadd.f32 %v1702, %v1722
    %v1727 = vadd.f32 %v1703, %v1723
    %v1728 = vmul.f32 %v402, %v199
    %v1729 = vmul.f32 %v403, %v199
    %v1730 = vmul.f32 %v404, %v199
    %v1731 = vmul.f32 %v405, %v199
    %v1732 = vadd.f32 %v1708, %v1728
    %v1733 = vadd.f32 %v1709, %v1729
    %v1734 = vadd.f32 %v1710, %v1730
    %v1735 = vadd.f32 %v1711, %v1731
    %v1736 = vmul.f32 %v402, %v208
    %v1737 = vmul.f32 %v403, %v208
    %v1738 = vmul.f32 %v404, %v208
    %v1739 = vmul.f32 %v405, %v208
    %v1740 = vadd.f32 %v1716, %v1736
    %v1741 = vadd.f32 %v1717, %v1737
    %v1742 = vadd.f32 %v1718, %v1738
    %v1743 = vadd.f32 %v1719, %v1739
    %v1744 = vmul.f32 %v1092, %v226
    %v1745 = vmul.f32 %v1093, %v226
    %v1746 = vmul.f32 %v1094, %v226
    %v1747 = vmul.f32 %v1095, %v226
    %v1748 = vadd.f32 %v1724, %v1744
    %v1749 = vadd.f32 %v1725, %v1745
    %v1750 = vadd.f32 %v1726, %v1746
    %v1751 = vadd.f32 %v1727, %v1747
    %v1752 = vmul.f32 %v1092, %v235
    %v1753 = vmul.f32 %v1093, %v235
    %v1754 = vmul.f32 %v1094, %v235
    %v1755 = vmul.f32 %v1095, %v235
    %v1756 = vadd.f32 %v1732, %v1752
    %v1757 = vadd.f32 %v1733, %v1753
    %v1758 = vadd.f32 %v1734, %v1754
    %v1759 = vadd.f32 %v1735, %v1755
    %v1760 = vmul.f32 %v1092, %v244
    %v1761 = vmul.f32 %v1093, %v244
    %v1762 = vmul.f32 %v1094, %v244
    %v1763 = vmul.f32 %v1095, %v244
    %v1764 = vadd.f32 %v1740, %v1760
    %v1765 = vadd.f32 %v1741, %v1761
    %v1766 = vadd.f32 %v1742, %v1762
    %v1767 = vadd.f32 %v1743, %v1763
    %v1768 = vmul.f32 %v1125, %v262
    %v1769 = vmul.f32 %v1126, %v262
    %v1770 = vmul.f32 %v1127, %v262
    %v1771 = vmul.f32 %v1128, %v262
    %v1772 = vadd.f32 %v1748, %v1768
    %v1773 = vadd.f32 %v1749, %v1769
    %v1774 = vadd.f32 %v1750, %v1770
    %v1775 = vadd.f32 %v1751, %v1771
    %v1776 = vmul.f32 %v1125, %v271
    %v1777 = vmul.f32 %v1126, %v271
    %v1778 = vmul.f32 %v1127, %v271
    %v1779 = vmul.f32 %v1128, %v271
    %v1780 = vadd.f32 %v1756, %v1776
    %v1781 = vadd.f32 %v1757, %v1777
    %v1782 = vadd.f32 %v1758, %v1778
    %v1783 = vadd.f32 %v1759, %v1779
    %v1784 = vmul.f32 %v1125, %v280
    %v1785 = vmul.f32 %v1126, %v280
    %v1786 = vmul.f32 %v1127, %v280
    %v1787 = vmul.f32 %v1128, %v280
    %v1788 = vadd.f32 %v1764, %v1784
    %v1789 = vadd.f32 %v1765, %v1785
    %v1790 = vadd.f32 %v1766, %v1786
    %v1791 = vadd.f32 %v1767, %v1787
    %v1792 = vmul.f32 %v1158, %v298
    %v1793 = vmul.f32 %v1159, %v298
    %v1794 = vmul.f32 %v1160, %v298
    %v1795 = vmul.f32 %v1161, %v298
    %v1796 = vadd.f32 %v1772, %v1792
    %v1797 = vadd.f32 %v1773, %v1793
    %v1798 = vadd.f32 %v1774, %v1794
    %v1799 = vadd.f32 %v1775, %v1795
    %v1800 = vmul.f32 %v1158, %v307
    %v1801 = vmul.f32 %v1159, %v307
    %v1802 = vmul.f32 %v1160, %v307
    %v1803 = vmul.f32 %v1161, %v307
    %v1804 = vadd.f32 %v1780, %v1800
    %v1805 = vadd.f32 %v1781, %v1801
    %v1806 = vadd.f32 %v1782, %v1802
    %v1807 = vadd.f32 %v1783, %v1803
    %v1808 = vmul.f32 %v1158, %v316
    %v1809 = vmul.f32 %v1159, %v316
    %v1810 = vmul.f32 %v1160, %v316
    %v1811 = vmul.f32 %v1161, %v316
    %v1812 = vadd.f32 %v1788, %v1808
    %v1813 = vadd.f32 %v1789, %v1809
    %v1814 = vadd.f32 %v1790, %v1810
    %v1815 = vadd.f32 %v1791, %v1811
    %s1816 = scalar_lea.vmem [#allocation2], 640
    %v1817 = vld [vmem:[%s1816] sm:$0xf]
    %v1818 = vld [vmem:[%s1816 + $0x4] sm:$0xf]
    %v1819 = vld [vmem:[%s1816 + $0x8] sm:$0xf]
    %v1820 = vld [vmem:[%s1816 + $0xc] sm:$0xf]
    %v1821 = vunpack.c.l.bf16 %v1817
    %v1822 = vunpack.c.l.bf16 %v1818
    %v1823 = vunpack.c.l.bf16 %v1819
    %v1824 = vunpack.c.l.bf16 %v1820
    %v1825 = vmul.f32 %v1821, %v334
    %v1826 = vmul.f32 %v1822, %v334
    %v1827 = vmul.f32 %v1823, %v334
    %v1828 = vmul.f32 %v1824, %v334
    %v1829 = vadd.f32 %v1796, %v1825
    %v1830 = vadd.f32 %v1797, %v1826
    %v1831 = vadd.f32 %v1798, %v1827
    %v1832 = vadd.f32 %v1799, %v1828
    %v1833 = vmul.f32 %v1821, %v343
    %v1834 = vmul.f32 %v1822, %v343
    %v1835 = vmul.f32 %v1823, %v343
    %v1836 = vmul.f32 %v1824, %v343
    %v1837 = vadd.f32 %v1804, %v1833
    %v1838 = vadd.f32 %v1805, %v1834
    %v1839 = vadd.f32 %v1806, %v1835
    %v1840 = vadd.f32 %v1807, %v1836
    %v1841 = vmul.f32 %v1821, %v352
    %v1842 = vmul.f32 %v1822, %v352
    %v1843 = vmul.f32 %v1823, %v352
    %v1844 = vmul.f32 %v1824, %v352
    %v1845 = vadd.f32 %v1812, %v1841
    %v1846 = vadd.f32 %v1813, %v1842
    %v1847 = vadd.f32 %v1814, %v1843
    %v1848 = vadd.f32 %v1815, %v1844
    %s1849 = scalar_lea.vmem [#allocation2], 672
    %v1850 = vld [vmem:[%s1849] sm:$0xf]
    %v1851 = vld [vmem:[%s1849 + $0x4] sm:$0xf]
    %v1852 = vld [vmem:[%s1849 + $0x8] sm:$0xf]
    %v1853 = vld [vmem:[%s1849 + $0xc] sm:$0xf]
    %v1854 = vunpack.c.l.bf16 %v1850
    %v1855 = vunpack.c.l.bf16 %v1851
    %v1856 = vunpack.c.l.bf16 %v1852
    %v1857 = vunpack.c.l.bf16 %v1853
    %v1858 = vmul.f32 %v1854, %v370
    %v1859 = vmul.f32 %v1855, %v370
    %v1860 = vmul.f32 %v1856, %v370
    %v1861 = vmul.f32 %v1857, %v370
    %v1862 = vadd.f32 %v1829, %v1858
    %v1863 = vadd.f32 %v1830, %v1859
    %v1864 = vadd.f32 %v1831, %v1860
    %v1865 = vadd.f32 %v1832, %v1861
    %v1866 = vmul.f32 %v1854, %v379
    %v1867 = vmul.f32 %v1855, %v379
    %v1868 = vmul.f32 %v1856, %v379
    %v1869 = vmul.f32 %v1857, %v379
    %v1870 = vadd.f32 %v1837, %v1866
    %v1871 = vadd.f32 %v1838, %v1867
    %v1872 = vadd.f32 %v1839, %v1868
    %v1873 = vadd.f32 %v1840, %v1869
    %v1874 = vmul.f32 %v1854, %v388
    %v1875 = vmul.f32 %v1855, %v388
    %v1876 = vmul.f32 %v1856, %v388
    %v1877 = vmul.f32 %v1857, %v388
    %v1878 = vadd.f32 %v1845, %v1874
    %v1879 = vadd.f32 %v1846, %v1875
    %v1880 = vadd.f32 %v1847, %v1876
    %v1881 = vadd.f32 %v1848, %v1877
    %s1882 = scalar_lea.vmem [#allocation2], 704
    %v1883 = vld [vmem:[%s1882] sm:$0xf]
    %v1884 = vld [vmem:[%s1882 + $0x4] sm:$0xf]
    %v1885 = vld [vmem:[%s1882 + $0x8] sm:$0xf]
    %v1886 = vld [vmem:[%s1882 + $0xc] sm:$0xf]
    %v1887 = vunpack.c.l.bf16 %v1883
    %v1888 = vunpack.c.l.bf16 %v1884
    %v1889 = vunpack.c.l.bf16 %v1885
    %v1890 = vunpack.c.l.bf16 %v1886
    %v1891 = vmul.f32 %v1887, %v406
    %v1892 = vmul.f32 %v1888, %v406
    %v1893 = vmul.f32 %v1889, %v406
    %v1894 = vmul.f32 %v1890, %v406
    %v1895 = vadd.f32 %v1862, %v1891
    %v1896 = vadd.f32 %v1863, %v1892
    %v1897 = vadd.f32 %v1864, %v1893
    %v1898 = vadd.f32 %v1865, %v1894
    %v1899 = vmul.f32 %v1887, %v415
    %v1900 = vmul.f32 %v1888, %v415
    %v1901 = vmul.f32 %v1889, %v415
    %v1902 = vmul.f32 %v1890, %v415
    %v1903 = vadd.f32 %v1870, %v1899
    %v1904 = vadd.f32 %v1871, %v1900
    %v1905 = vadd.f32 %v1872, %v1901
    %v1906 = vadd.f32 %v1873, %v1902
    %v1907 = vmul.f32 %v1887, %v424
    %v1908 = vmul.f32 %v1888, %v424
    %v1909 = vmul.f32 %v1889, %v424
    %v1910 = vmul.f32 %v1890, %v424
    %v1911 = vadd.f32 %v1878, %v1907
    %v1912 = vadd.f32 %v1879, %v1908
    %v1913 = vadd.f32 %v1880, %v1909
    %v1914 = vadd.f32 %v1881, %v1910
    %v1915 = vmax.f32 %v1660, %v1895
    %v1916 = vmax.f32 %v1661, %v1896
    %v1917 = vmax.f32 %v1662, %v1897
    %v1918 = vmax.f32 %v1663, %v1898
    %v1919 = vmax.f32 %v1664, %v1903
    %v1920 = vmax.f32 %v1665, %v1904
    %v1921 = vmax.f32 %v1666, %v1905
    %v1922 = vmax.f32 %v1667, %v1906
    %v1923 = vmax.f32 %v1668, %v1911
    %v1924 = vmax.f32 %v1669, %v1912
    %v1925 = vmax.f32 %v1670, %v1913
    %v1926 = vmax.f32 %v1671, %v1914
    %v1927 = vmul.f32 %v366, %v118
    %v1928 = vmul.f32 %v367, %v118
    %v1929 = vmul.f32 %v368, %v118
    %v1930 = vmul.f32 %v369, %v118
    %v1931 = vadd.f32 %v1927, 0.0
    %v1932 = vadd.f32 %v1928, 0.0
    %v1933 = vadd.f32 %v1929, 0.0
    %v1934 = vadd.f32 %v1930, 0.0
    %v1935 = vmul.f32 %v366, %v127
    %v1936 = vmul.f32 %v367, %v127
    %v1937 = vmul.f32 %v368, %v127
    %v1938 = vmul.f32 %v369, %v127
    %v1939 = vadd.f32 %v1935, 0.0
    %v1940 = vadd.f32 %v1936, 0.0
    %v1941 = vadd.f32 %v1937, 0.0
    %v1942 = vadd.f32 %v1938, 0.0
    %v1943 = vmul.f32 %v366, %v136
    %v1944 = vmul.f32 %v367, %v136
    %v1945 = vmul.f32 %v368, %v136
    %v1946 = vmul.f32 %v369, %v136
    %v1947 = vadd.f32 %v1943, 0.0
    %v1948 = vadd.f32 %v1944, 0.0
    %v1949 = vadd.f32 %v1945, 0.0
    %v1950 = vadd.f32 %v1946, 0.0
    %v1951 = vmul.f32 %v402, %v154
    %v1952 = vmul.f32 %v403, %v154
    %v1953 = vmul.f32 %v404, %v154
    %v1954 = vmul.f32 %v405, %v154
    %v1955 = vadd.f32 %v1931, %v1951
    %v1956 = vadd.f32 %v1932, %v1952
    %v1957 = vadd.f32 %v1933, %v1953
    %v1958 = vadd.f32 %v1934, %v1954
    %v1959 = vmul.f32 %v402, %v163
    %v1960 = vmul.f32 %v403, %v163
    %v1961 = vmul.f32 %v404, %v163
    %v1962 = vmul.f32 %v405, %v163
    %v1963 = vadd.f32 %v1939, %v1959
    %v1964 = vadd.f32 %v1940, %v1960
    %v1965 = vadd.f32 %v1941, %v1961
    %v1966 = vadd.f32 %v1942, %v1962
    %v1967 = vmul.f32 %v402, %v172
    %v1968 = vmul.f32 %v403, %v172
    %v1969 = vmul.f32 %v404, %v172
    %v1970 = vmul.f32 %v405, %v172
    %v1971 = vadd.f32 %v1947, %v1967
    %v1972 = vadd.f32 %v1948, %v1968
    %v1973 = vadd.f32 %v1949, %v1969
    %v1974 = vadd.f32 %v1950, %v1970
    %v1975 = vmul.f32 %v648, %v190
    %v1976 = vmul.f32 %v649, %v190
    %v1977 = vmul.f32 %v650, %v190
    %v1978 = vmul.f32 %v651, %v190
    %v1979 = vadd.f32 %v1955, %v1975
    %v1980 = vadd.f32 %v1956, %v1976
    %v1981 = vadd.f32 %v1957, %v1977
    %v1982 = vadd.f32 %v1958, %v1978
    %v1983 = vmul.f32 %v648, %v199
    %v1984 = vmul.f32 %v649, %v199
    %v1985 = vmul.f32 %v650, %v199
    %v1986 = vmul.f32 %v651, %v199
    %v1987 = vadd.f32 %v1963, %v1983
    %v1988 = vadd.f32 %v1964, %v1984
    %v1989 = vadd.f32 %v1965, %v1985
    %v1990 = vadd.f32 %v1966, %v1986
    %v1991 = vmul.f32 %v648, %v208
    %v1992 = vmul.f32 %v649, %v208
    %v1993 = vmul.f32 %v650, %v208
    %v1994 = vmul.f32 %v651, %v208
    %v1995 = vadd.f32 %v1971, %v1991
    %v1996 = vadd.f32 %v1972, %v1992
    %v1997 = vadd.f32 %v1973, %v1993
    %v1998 = vadd.f32 %v1974, %v1994
    %v1999 = vmul.f32 %v1125, %v226
    %v2000 = vmul.f32 %v1126, %v226
    %v2001 = vmul.f32 %v1127, %v226
    %v2002 = vmul.f32 %v1128, %v226
    %v2003 = vadd.f32 %v1979, %v1999
    %v2004 = vadd.f32 %v1980, %v2000
    %v2005 = vadd.f32 %v1981, %v2001
    %v2006 = vadd.f32 %v1982, %v2002
    %v2007 = vmul.f32 %v1125, %v235
    %v2008 = vmul.f32 %v1126, %v235
    %v2009 = vmul.f32 %v1127, %v235
    %v2010 = vmul.f32 %v1128, %v235
    %v2011 = vadd.f32 %v1987, %v2007
    %v2012 = vadd.f32 %v1988, %v2008
    %v2013 = vadd.f32 %v1989, %v2009
    %v2014 = vadd.f32 %v1990, %v2010
    %v2015 = vmul.f32 %v1125, %v244
    %v2016 = vmul.f32 %v1126, %v244
    %v2017 = vmul.f32 %v1127, %v244
    %v2018 = vmul.f32 %v1128, %v244
    %v2019 = vadd.f32 %v1995, %v2015
    %v2020 = vadd.f32 %v1996, %v2016
    %v2021 = vadd.f32 %v1997, %v2017
    %v2022 = vadd.f32 %v1998, %v2018
    %v2023 = vmul.f32 %v1158, %v262
    %v2024 = vmul.f32 %v1159, %v262
    %v2025 = vmul.f32 %v1160, %v262
    %v2026 = vmul.f32 %v1161, %v262
    %v2027 = vadd.f32 %v2003, %v2023
    %v2028 = vadd.f32 %v2004, %v2024
    %v2029 = vadd.f32 %v2005, %v2025
    %v2030 = vadd.f32 %v2006, %v2026
    %v2031 = vmul.f32 %v1158, %v271
    %v2032 = vmul.f32 %v1159, %v271
    %v2033 = vmul.f32 %v1160, %v271
    %v2034 = vmul.f32 %v1161, %v271
    %v2035 = vadd.f32 %v2011, %v2031
    %v2036 = vadd.f32 %v2012, %v2032
    %v2037 = vadd.f32 %v2013, %v2033
    %v2038 = vadd.f32 %v2014, %v2034
    %v2039 = vmul.f32 %v1158, %v280
    %v2040 = vmul.f32 %v1159, %v280
    %v2041 = vmul.f32 %v1160, %v280
    %v2042 = vmul.f32 %v1161, %v280
    %v2043 = vadd.f32 %v2019, %v2039
    %v2044 = vadd.f32 %v2020, %v2040
    %v2045 = vadd.f32 %v2021, %v2041
    %v2046 = vadd.f32 %v2022, %v2042
    %v2047 = vmul.f32 %v1395, %v298
    %v2048 = vmul.f32 %v1396, %v298
    %v2049 = vmul.f32 %v1397, %v298
    %v2050 = vmul.f32 %v1398, %v298
    %v2051 = vadd.f32 %v2027, %v2047
    %v2052 = vadd.f32 %v2028, %v2048
    %v2053 = vadd.f32 %v2029, %v2049
    %v2054 = vadd.f32 %v2030, %v2050
    %v2055 = vmul.f32 %v1395, %v307
    %v2056 = vmul.f32 %v1396, %v307
    %v2057 = vmul.f32 %v1397, %v307
    %v2058 = vmul.f32 %v1398, %v307
    %v2059 = vadd.f32 %v2035, %v2055
    %v2060 = vadd.f32 %v2036, %v2056
    %v2061 = vadd.f32 %v2037, %v2057
    %v2062 = vadd.f32 %v2038, %v2058
    %v2063 = vmul.f32 %v1395, %v316
    %v2064 = vmul.f32 %v1396, %v316
    %v2065 = vmul.f32 %v1397, %v316
    %v2066 = vmul.f32 %v1398, %v316
    %v2067 = vadd.f32 %v2043, %v2063
    %v2068 = vadd.f32 %v2044, %v2064
    %v2069 = vadd.f32 %v2045, %v2065
    %v2070 = vadd.f32 %v2046, %v2066
    %v2071 = vmul.f32 %v1854, %v334
    %v2072 = vmul.f32 %v1855, %v334
    %v2073 = vmul.f32 %v1856, %v334
    %v2074 = vmul.f32 %v1857, %v334
    %v2075 = vadd.f32 %v2051, %v2071
    %v2076 = vadd.f32 %v2052, %v2072
    %v2077 = vadd.f32 %v2053, %v2073
    %v2078 = vadd.f32 %v2054, %v2074
    %v2079 = vmul.f32 %v1854, %v343
    %v2080 = vmul.f32 %v1855, %v343
    %v2081 = vmul.f32 %v1856, %v343
    %v2082 = vmul.f32 %v1857, %v343
    %v2083 = vadd.f32 %v2059, %v2079
    %v2084 = vadd.f32 %v2060, %v2080
    %v2085 = vadd.f32 %v2061, %v2081
    %v2086 = vadd.f32 %v2062, %v2082
    %v2087 = vmul.f32 %v1854, %v352
    %v2088 = vmul.f32 %v1855, %v352
    %v2089 = vmul.f32 %v1856, %v352
    %v2090 = vmul.f32 %v1857, %v352
    %v2091 = vadd.f32 %v2067, %v2087
    %v2092 = vadd.f32 %v2068, %v2088
    %v2093 = vadd.f32 %v2069, %v2089
    %v2094 = vadd.f32 %v2070, %v2090
    %v2095 = vmul.f32 %v1887, %v370
    %v2096 = vmul.f32 %v1888, %v370
    %v2097 = vmul.f32 %v1889, %v370
    %v2098 = vmul.f32 %v1890, %v370
    %v2099 = vadd.f32 %v2075, %v2095
    %v2100 = vadd.f32 %v2076, %v2096
    %v2101 = vadd.f32 %v2077, %v2097
    %v2102 = vadd.f32 %v2078, %v2098
    %v2103 = vmul.f32 %v1887, %v379
    %v2104 = vmul.f32 %v1888, %v379
    %v2105 = vmul.f32 %v1889, %v379
    %v2106 = vmul.f32 %v1890, %v379
    %v2107 = vadd.f32 %v2083, %v2103
    %v2108 = vadd.f32 %v2084, %v2104
    %v2109 = vadd.f32 %v2085, %v2105
    %v2110 = vadd.f32 %v2086, %v2106
    %v2111 = vmul.f32 %v1887, %v388
    %v2112 = vmul.f32 %v1888, %v388
    %v2113 = vmul.f32 %v1889, %v388
    %v2114 = vmul.f32 %v1890, %v388
    %v2115 = vadd.f32 %v2091, %v2111
    %v2116 = vadd.f32 %v2092, %v2112
    %v2117 = vadd.f32 %v2093, %v2113
    %v2118 = vadd.f32 %v2094, %v2114
    %s2119 = scalar_lea.vmem [#allocation2], 736
    %v2120 = vld [vmem:[%s2119] sm:$0xf]
    %v2121 = vld [vmem:[%s2119 + $0x4] sm:$0xf]
    %v2122 = vld [vmem:[%s2119 + $0x8] sm:$0xf]
    %v2123 = vld [vmem:[%s2119 + $0xc] sm:$0xf]
    %v2124 = vunpack.c.l.bf16 %v2120
    %v2125 = vunpack.c.l.bf16 %v2121
    %v2126 = vunpack.c.l.bf16 %v2122
    %v2127 = vunpack.c.l.bf16 %v2123
    %v2128 = vmul.f32 %v2124, %v406
    %v2129 = vmul.f32 %v2125, %v406
    %v2130 = vmul.f32 %v2126, %v406
    %v2131 = vmul.f32 %v2127, %v406
    %v2132 = vadd.f32 %v2099, %v2128
    %v2133 = vadd.f32 %v2100, %v2129
    %v2134 = vadd.f32 %v2101, %v2130
    %v2135 = vadd.f32 %v2102, %v2131
    %v2136 = vmul.f32 %v2124, %v415
    %v2137 = vmul.f32 %v2125, %v415
    %v2138 = vmul.f32 %v2126, %v415
    %v2139 = vmul.f32 %v2127, %v415
    %v2140 = vadd.f32 %v2107, %v2136
    %v2141 = vadd.f32 %v2108, %v2137
    %v2142 = vadd.f32 %v2109, %v2138
    %v2143 = vadd.f32 %v2110, %v2139
    %v2144 = vmul.f32 %v2124, %v424
    %v2145 = vmul.f32 %v2125, %v424
    %v2146 = vmul.f32 %v2126, %v424
    %v2147 = vmul.f32 %v2127, %v424
    %v2148 = vadd.f32 %v2115, %v2144
    %v2149 = vadd.f32 %v2116, %v2145
    %v2150 = vadd.f32 %v2117, %v2146
    %v2151 = vadd.f32 %v2118, %v2147
    %v2152 = vmax.f32 %v1915, %v2132
    %v2153 = vmax.f32 %v1916, %v2133
    %v2154 = vmax.f32 %v1917, %v2134
    %v2155 = vmax.f32 %v1918, %v2135
    %v2156 = vmax.f32 %v1919, %v2140
    %v2157 = vmax.f32 %v1920, %v2141
    %v2158 = vmax.f32 %v1921, %v2142
    %v2159 = vmax.f32 %v1922, %v2143
    %v2160 = vmax.f32 %v1923, %v2148
    %v2161 = vmax.f32 %v1924, %v2149
    %v2162 = vmax.f32 %v1925, %v2150
    %v2163 = vmax.f32 %v1926, %v2151
    %v2164 = vmul.f32 %v402, %v118
    %v2165 = vmul.f32 %v403, %v118
    %v2166 = vmul.f32 %v404, %v118
    %v2167 = vmul.f32 %v405, %v118
    %v2168 = vadd.f32 %v2164, 0.0
    %v2169 = vadd.f32 %v2165, 0.0
    %v2170 = vadd.f32 %v2166, 0.0
    %v2171 = vadd.f32 %v2167, 0.0
    %v2172 = vmul.f32 %v402, %v127
    %v2173 = vmul.f32 %v403, %v127
    %v2174 = vmul.f32 %v404, %v127
    %v2175 = vmul.f32 %v405, %v127
    %v2176 = vadd.f32 %v2172, 0.0
    %v2177 = vadd.f32 %v2173, 0.0
    %v2178 = vadd.f32 %v2174, 0.0
    %v2179 = vadd.f32 %v2175, 0.0
    %v2180 = vmul.f32 %v402, %v136
    %v2181 = vmul.f32 %v403, %v136
    %v2182 = vmul.f32 %v404, %v136
    %v2183 = vmul.f32 %v405, %v136
    %v2184 = vadd.f32 %v2180, 0.0
    %v2185 = vadd.f32 %v2181, 0.0
    %v2186 = vadd.f32 %v2182, 0.0
    %v2187 = vadd.f32 %v2183, 0.0
    %v2188 = vmul.f32 %v648, %v154
    %v2189 = vmul.f32 %v649, %v154
    %v2190 = vmul.f32 %v650, %v154
    %v2191 = vmul.f32 %v651, %v154
    %v2192 = vadd.f32 %v2168, %v2188
    %v2193 = vadd.f32 %v2169, %v2189
    %v2194 = vadd.f32 %v2170, %v2190
    %v2195 = vadd.f32 %v2171, %v2191
    %v2196 = vmul.f32 %v648, %v163
    %v2197 = vmul.f32 %v649, %v163
    %v2198 = vmul.f32 %v650, %v163
    %v2199 = vmul.f32 %v651, %v163
    %v2200 = vadd.f32 %v2176, %v2196
    %v2201 = vadd.f32 %v2177, %v2197
    %v2202 = vadd.f32 %v2178, %v2198
    %v2203 = vadd.f32 %v2179, %v2199
    %v2204 = vmul.f32 %v648, %v172
    %v2205 = vmul.f32 %v649, %v172
    %v2206 = vmul.f32 %v650, %v172
    %v2207 = vmul.f32 %v651, %v172
    %v2208 = vadd.f32 %v2184, %v2204
    %v2209 = vadd.f32 %v2185, %v2205
    %v2210 = vadd.f32 %v2186, %v2206
    %v2211 = vadd.f32 %v2187, %v2207
    %v2212 = vmul.f32 %v903, %v190
    %v2213 = vmul.f32 %v904, %v190
    %v2214 = vmul.f32 %v905, %v190
    %v2215 = vmul.f32 %v906, %v190
    %v2216 = vadd.f32 %v2192, %v2212
    %v2217 = vadd.f32 %v2193, %v2213
    %v2218 = vadd.f32 %v2194, %v2214
    %v2219 = vadd.f32 %v2195, %v2215
    %v2220 = vmul.f32 %v903, %v199
    %v2221 = vmul.f32 %v904, %v199
    %v2222 = vmul.f32 %v905, %v199
    %v2223 = vmul.f32 %v906, %v199
    %v2224 = vadd.f32 %v2200, %v2220
    %v2225 = vadd.f32 %v2201, %v2221
    %v2226 = vadd.f32 %v2202, %v2222
    %v2227 = vadd.f32 %v2203, %v2223
    %v2228 = vmul.f32 %v903, %v208
    %v2229 = vmul.f32 %v904, %v208
    %v2230 = vmul.f32 %v905, %v208
    %v2231 = vmul.f32 %v906, %v208
    %v2232 = vadd.f32 %v2208, %v2228
    %v2233 = vadd.f32 %v2209, %v2229
    %v2234 = vadd.f32 %v2210, %v2230
    %v2235 = vadd.f32 %v2211, %v2231
    %v2236 = vmul.f32 %v1158, %v226
    %v2237 = vmul.f32 %v1159, %v226
    %v2238 = vmul.f32 %v1160, %v226
    %v2239 = vmul.f32 %v1161, %v226
    %v2240 = vadd.f32 %v2216, %v2236
    %v2241 = vadd.f32 %v2217, %v2237
    %v2242 = vadd.f32 %v2218, %v2238
    %v2243 = vadd.f32 %v2219, %v2239
    %v2244 = vmul.f32 %v1158, %v235
    %v2245 = vmul.f32 %v1159, %v235
    %v2246 = vmul.f32 %v1160, %v235
    %v2247 = vmul.f32 %v1161, %v235
    %v2248 = vadd.f32 %v2224, %v2244
    %v2249 = vadd.f32 %v2225, %v2245
    %v2250 = vadd.f32 %v2226, %v2246
    %v2251 = vadd.f32 %v2227, %v2247
    %v2252 = vmul.f32 %v1158, %v244
    %v2253 = vmul.f32 %v1159, %v244
    %v2254 = vmul.f32 %v1160, %v244
    %v2255 = vmul.f32 %v1161, %v244
    %v2256 = vadd.f32 %v2232, %v2252
    %v2257 = vadd.f32 %v2233, %v2253
    %v2258 = vadd.f32 %v2234, %v2254
    %v2259 = vadd.f32 %v2235, %v2255
    %v2260 = vmul.f32 %v1395, %v262
    %v2261 = vmul.f32 %v1396, %v262
    %v2262 = vmul.f32 %v1397, %v262
    %v2263 = vmul.f32 %v1398, %v262
    %v2264 = vadd.f32 %v2240, %v2260
    %v2265 = vadd.f32 %v2241, %v2261
    %v2266 = vadd.f32 %v2242, %v2262
    %v2267 = vadd.f32 %v2243, %v2263
    %v2268 = vmul.f32 %v1395, %v271
    %v2269 = vmul.f32 %v1396, %v271
    %v2270 = vmul.f32 %v1397, %v271
    %v2271 = vmul.f32 %v1398, %v271
    %v2272 = vadd.f32 %v2248, %v2268
    %v2273 = vadd.f32 %v2249, %v2269
    %v2274 = vadd.f32 %v2250, %v2270
    %v2275 = vadd.f32 %v2251, %v2271
    %v2276 = vmul.f32 %v1395, %v280
    %v2277 = vmul.f32 %v1396, %v280
    %v2278 = vmul.f32 %v1397, %v280
    %v2279 = vmul.f32 %v1398, %v280
    %v2280 = vadd.f32 %v2256, %v2276
    %v2281 = vadd.f32 %v2257, %v2277
    %v2282 = vadd.f32 %v2258, %v2278
    %v2283 = vadd.f32 %v2259, %v2279
    %v2284 = vmul.f32 %v1632, %v298
    %v2285 = vmul.f32 %v1633, %v298
    %v2286 = vmul.f32 %v1634, %v298
    %v2287 = vmul.f32 %v1635, %v298
    %v2288 = vadd.f32 %v2264, %v2284
    %v2289 = vadd.f32 %v2265, %v2285
    %v2290 = vadd.f32 %v2266, %v2286
    %v2291 = vadd.f32 %v2267, %v2287
    %v2292 = vmul.f32 %v1632, %v307
    %v2293 = vmul.f32 %v1633, %v307
    %v2294 = vmul.f32 %v1634, %v307
    %v2295 = vmul.f32 %v1635, %v307
    %v2296 = vadd.f32 %v2272, %v2292
    %v2297 = vadd.f32 %v2273, %v2293
    %v2298 = vadd.f32 %v2274, %v2294
    %v2299 = vadd.f32 %v2275, %v2295
    %v2300 = vmul.f32 %v1632, %v316
    %v2301 = vmul.f32 %v1633, %v316
    %v2302 = vmul.f32 %v1634, %v316
    %v2303 = vmul.f32 %v1635, %v316
    %v2304 = vadd.f32 %v2280, %v2300
    %v2305 = vadd.f32 %v2281, %v2301
    %v2306 = vadd.f32 %v2282, %v2302
    %v2307 = vadd.f32 %v2283, %v2303
    %v2308 = vmul.f32 %v1887, %v334
    %v2309 = vmul.f32 %v1888, %v334
    %v2310 = vmul.f32 %v1889, %v334
    %v2311 = vmul.f32 %v1890, %v334
    %v2312 = vadd.f32 %v2288, %v2308
    %v2313 = vadd.f32 %v2289, %v2309
    %v2314 = vadd.f32 %v2290, %v2310
    %v2315 = vadd.f32 %v2291, %v2311
    %v2316 = vmul.f32 %v1887, %v343
    %v2317 = vmul.f32 %v1888, %v343
    %v2318 = vmul.f32 %v1889, %v343
    %v2319 = vmul.f32 %v1890, %v343
    %v2320 = vadd.f32 %v2296, %v2316
    %v2321 = vadd.f32 %v2297, %v2317
    %v2322 = vadd.f32 %v2298, %v2318
    %v2323 = vadd.f32 %v2299, %v2319
    %v2324 = vmul.f32 %v1887, %v352
    %v2325 = vmul.f32 %v1888, %v352
    %v2326 = vmul.f32 %v1889, %v352
    %v2327 = vmul.f32 %v1890, %v352
    %v2328 = vadd.f32 %v2304, %v2324
    %v2329 = vadd.f32 %v2305, %v2325
    %v2330 = vadd.f32 %v2306, %v2326
    %v2331 = vadd.f32 %v2307, %v2327
    %v2332 = vmul.f32 %v2124, %v370
    %v2333 = vmul.f32 %v2125, %v370
    %v2334 = vmul.f32 %v2126, %v370
    %v2335 = vmul.f32 %v2127, %v370
    %v2336 = vadd.f32 %v2312, %v2332
    %v2337 = vadd.f32 %v2313, %v2333
    %v2338 = vadd.f32 %v2314, %v2334
    %v2339 = vadd.f32 %v2315, %v2335
    %v2340 = vmul.f32 %v2124, %v379
    %v2341 = vmul.f32 %v2125, %v379
    %v2342 = vmul.f32 %v2126, %v379
    %v2343 = vmul.f32 %v2127, %v379
    %v2344 = vadd.f32 %v2320, %v2340
    %v2345 = vadd.f32 %v2321, %v2341
    %v2346 = vadd.f32 %v2322, %v2342
    %v2347 = vadd.f32 %v2323, %v2343
    %v2348 = vmul.f32 %v2124, %v388
    %v2349 = vmul.f32 %v2125, %v388
    %v2350 = vmul.f32 %v2126, %v388
    %v2351 = vmul.f32 %v2127, %v388
    %v2352 = vadd.f32 %v2328, %v2348
    %v2353 = vadd.f32 %v2329, %v2349
    %v2354 = vadd.f32 %v2330, %v2350
    %v2355 = vadd.f32 %v2331, %v2351
    %s2356 = scalar_lea.vmem [#allocation2], 768
    %v2357 = vld [vmem:[%s2356] sm:$0xf]
    %v2358 = vld [vmem:[%s2356 + $0x4] sm:$0xf]
    %v2359 = vld [vmem:[%s2356 + $0x8] sm:$0xf]
    %v2360 = vld [vmem:[%s2356 + $0xc] sm:$0xf]
    %v2361 = vunpack.c.l.bf16 %v2357
    %v2362 = vunpack.c.l.bf16 %v2358
    %v2363 = vunpack.c.l.bf16 %v2359
    %v2364 = vunpack.c.l.bf16 %v2360
    %v2365 = vmul.f32 %v2361, %v406
    %v2366 = vmul.f32 %v2362, %v406
    %v2367 = vmul.f32 %v2363, %v406
    %v2368 = vmul.f32 %v2364, %v406
    %v2369 = vadd.f32 %v2336, %v2365
    %v2370 = vadd.f32 %v2337, %v2366
    %v2371 = vadd.f32 %v2338, %v2367
    %v2372 = vadd.f32 %v2339, %v2368
    %v2373 = vmul.f32 %v2361, %v415
    %v2374 = vmul.f32 %v2362, %v415
    %v2375 = vmul.f32 %v2363, %v415
    %v2376 = vmul.f32 %v2364, %v415
    %v2377 = vadd.f32 %v2344, %v2373
    %v2378 = vadd.f32 %v2345, %v2374
    %v2379 = vadd.f32 %v2346, %v2375
    %v2380 = vadd.f32 %v2347, %v2376
    %v2381 = vmul.f32 %v2361, %v424
    %v2382 = vmul.f32 %v2362, %v424
    %v2383 = vmul.f32 %v2363, %v424
    %v2384 = vmul.f32 %v2364, %v424
    %v2385 = vadd.f32 %v2352, %v2381
    %v2386 = vadd.f32 %v2353, %v2382
    %v2387 = vadd.f32 %v2354, %v2383
    %v2388 = vadd.f32 %v2355, %v2384
    %v2389 = vmax.f32 %v2152, %v2369
    %v2390 = vmax.f32 %v2153, %v2370
    %v2391 = vmax.f32 %v2154, %v2371
    %v2392 = vmax.f32 %v2155, %v2372
    %v2393 = vmax.f32 %v2156, %v2377
    %v2394 = vmax.f32 %v2157, %v2378
    %v2395 = vmax.f32 %v2158, %v2379
    %v2396 = vmax.f32 %v2159, %v2380
    %v2397 = vmax.f32 %v2160, %v2385
    %v2398 = vmax.f32 %v2161, %v2386
    %v2399 = vmax.f32 %v2162, %v2387
    %v2400 = vmax.f32 %v2163, %v2388
    %v2401 = vstv %s101
    %v2402 = vadd.f32 %v2389, %v2401
    %v2403 = vadd.f32 %v2390, %v2401
    %v2404 = vadd.f32 %v2391, %v2401
    %v2405 = vadd.f32 %v2392, %v2401
    %v2406 = vmax.f32 %v2402, 0.0
    %v2407 = vmax.f32 %v2403, 0.0
    %v2408 = vmax.f32 %v2404, 0.0
    %v2409 = vmax.f32 %v2405, 0.0
    %v2410 = vstv %s102
    %v2411 = vadd.f32 %v2393, %v2410
    %v2412 = vadd.f32 %v2394, %v2410
    %v2413 = vadd.f32 %v2395, %v2410
    %v2414 = vadd.f32 %v2396, %v2410
    %v2415 = vmax.f32 %v2411, 0.0
    %v2416 = vmax.f32 %v2412, 0.0
    %v2417 = vmax.f32 %v2413, 0.0
    %v2418 = vmax.f32 %v2414, 0.0
    %v2419 = vstv %s103
    %v2420 = vadd.f32 %v2397, %v2419
    %v2421 = vadd.f32 %v2398, %v2419
    %v2422 = vadd.f32 %v2399, %v2419
    %v2423 = vadd.f32 %v2400, %v2419
    %v2424 = vmax.f32 %v2420, 0.0
    %v2425 = vmax.f32 %v2421, 0.0
    %v2426 = vmax.f32 %v2422, 0.0
    %v2427 = vmax.f32 %v2423, 0.0
    %v2428 = vld [vmem:[#allocation2 + $0x10] sm:$0xf]
    %v2429 = vld [vmem:[#allocation2 + $0x14] sm:$0xf]
    %v2430 = vld [vmem:[#allocation2 + $0x18] sm:$0xf]
    %v2431 = vld [vmem:[#allocation2 + $0x1c] sm:$0xf]
    %v2432 = vunpack.c.l.bf16 %v2428
    %v2433 = vunpack.c.l.bf16 %v2429
    %v2434 = vunpack.c.l.bf16 %v2430
    %v2435 = vunpack.c.l.bf16 %v2431
    %v2436 = vmul.f32 %v2432, %v118
    %v2437 = vmul.f32 %v2433, %v118
    %v2438 = vmul.f32 %v2434, %v118
    %v2439 = vmul.f32 %v2435, %v118
    %v2440 = vadd.f32 %v2436, 0.0
    %v2441 = vadd.f32 %v2437, 0.0
    %v2442 = vadd.f32 %v2438, 0.0
    %v2443 = vadd.f32 %v2439, 0.0
    %v2444 = vmul.f32 %v2432, %v127
    %v2445 = vmul.f32 %v2433, %v127
    %v2446 = vmul.f32 %v2434, %v127
    %v2447 = vmul.f32 %v2435, %v127
    %v2448 = vadd.f32 %v2444, 0.0
    %v2449 = vadd.f32 %v2445, 0.0
    %v2450 = vadd.f32 %v2446, 0.0
    %v2451 = vadd.f32 %v2447, 0.0
    %v2452 = vmul.f32 %v2432, %v136
    %v2453 = vmul.f32 %v2433, %v136
    %v2454 = vmul.f32 %v2434, %v136
    %v2455 = vmul.f32 %v2435, %v136
    %v2456 = vadd.f32 %v2452, 0.0
    %v2457 = vadd.f32 %v2453, 0.0
    %v2458 = vadd.f32 %v2454, 0.0
    %v2459 = vadd.f32 %v2455, 0.0
    %v2460 = vld [vmem:[%s145 + $0x10] sm:$0xf]
    %v2461 = vld [vmem:[%s145 + $0x14] sm:$0xf]
    %v2462 = vld [vmem:[%s145 + $0x18] sm:$0xf]
    %v2463 = vld [vmem:[%s145 + $0x1c] sm:$0xf]
    %v2464 = vunpack.c.l.bf16 %v2460
    %v2465 = vunpack.c.l.bf16 %v2461
    %v2466 = vunpack.c.l.bf16 %v2462
    %v2467 = vunpack.c.l.bf16 %v2463
    %v2468 = vmul.f32 %v2464, %v154
    %v2469 = vmul.f32 %v2465, %v154
    %v2470 = vmul.f32 %v2466, %v154
    %v2471 = vmul.f32 %v2467, %v154
    %v2472 = vadd.f32 %v2440, %v2468
    %v2473 = vadd.f32 %v2441, %v2469
    %v2474 = vadd.f32 %v2442, %v2470
    %v2475 = vadd.f32 %v2443, %v2471
    %v2476 = vmul.f32 %v2464, %v163
    %v2477 = vmul.f32 %v2465, %v163
    %v2478 = vmul.f32 %v2466, %v163
    %v2479 = vmul.f32 %v2467, %v163
    %v2480 = vadd.f32 %v2448, %v2476
    %v2481 = vadd.f32 %v2449, %v2477
    %v2482 = vadd.f32 %v2450, %v2478
    %v2483 = vadd.f32 %v2451, %v2479
    %v2484 = vmul.f32 %v2464, %v172
    %v2485 = vmul.f32 %v2465, %v172
    %v2486 = vmul.f32 %v2466, %v172
    %v2487 = vmul.f32 %v2467, %v172
    %v2488 = vadd.f32 %v2456, %v2484
    %v2489 = vadd.f32 %v2457, %v2485
    %v2490 = vadd.f32 %v2458, %v2486
    %v2491 = vadd.f32 %v2459, %v2487
    %v2492 = vld [vmem:[%s181 + $0x10] sm:$0xf]
    %v2493 = vld [vmem:[%s181 + $0x14] sm:$0xf]
    %v2494 = vld [vmem:[%s181 + $0x18] sm:$0xf]
    %v2495 = vld [vmem:[%s181 + $0x1c] sm:$0xf]
    %v2496 = vunpack.c.l.bf16 %v2492
    %v2497 = vunpack.c.l.bf16 %v2493
    %v2498 = vunpack.c.l.bf16 %v2494
    %v2499 = vunpack.c.l.bf16 %v2495
    %v2500 = vmul.f32 %v2496, %v190
    %v2501 = vmul.f32 %v2497, %v190
    %v2502 = vmul.f32 %v2498, %v190
    %v2503 = vmul.f32 %v2499, %v190
    %v2504 = vadd.f32 %v2472, %v2500
    %v2505 = vadd.f32 %v2473, %v2501
    %v2506 = vadd.f32 %v2474, %v2502
    %v2507 = vadd.f32 %v2475, %v2503
    %v2508 = vmul.f32 %v2496, %v199
    %v2509 = vmul.f32 %v2497, %v199
    %v2510 = vmul.f32 %v2498, %v199
    %v2511 = vmul.f32 %v2499, %v199
    %v2512 = vadd.f32 %v2480, %v2508
    %v2513 = vadd.f32 %v2481, %v2509
    %v2514 = vadd.f32 %v2482, %v2510
    %v2515 = vadd.f32 %v2483, %v2511
    %v2516 = vmul.f32 %v2496, %v208
    %v2517 = vmul.f32 %v2497, %v208
    %v2518 = vmul.f32 %v2498, %v208
    %v2519 = vmul.f32 %v2499, %v208
    %v2520 = vadd.f32 %v2488, %v2516
    %v2521 = vadd.f32 %v2489, %v2517
    %v2522 = vadd.f32 %v2490, %v2518
    %v2523 = vadd.f32 %v2491, %v2519
    %v2524 = vld [vmem:[%s217 + $0x10] sm:$0xf]
    %v2525 = vld [vmem:[%s217 + $0x14] sm:$0xf]
    %v2526 = vld [vmem:[%s217 + $0x18] sm:$0xf]
    %v2527 = vld [vmem:[%s217 + $0x1c] sm:$0xf]
    %v2528 = vunpack.c.l.bf16 %v2524
    %v2529 = vunpack.c.l.bf16 %v2525
    %v2530 = vunpack.c.l.bf16 %v2526
    %v2531 = vunpack.c.l.bf16 %v2527
    %v2532 = vmul.f32 %v2528, %v226
    %v2533 = vmul.f32 %v2529, %v226
    %v2534 = vmul.f32 %v2530, %v226
    %v2535 = vmul.f32 %v2531, %v226
    %v2536 = vadd.f32 %v2504, %v2532
    %v2537 = vadd.f32 %v2505, %v2533
    %v2538 = vadd.f32 %v2506, %v2534
    %v2539 = vadd.f32 %v2507, %v2535
    %v2540 = vmul.f32 %v2528, %v235
    %v2541 = vmul.f32 %v2529, %v235
    %v2542 = vmul.f32 %v2530, %v235
    %v2543 = vmul.f32 %v2531, %v235
    %v2544 = vadd.f32 %v2512, %v2540
    %v2545 = vadd.f32 %v2513, %v2541
    %v2546 = vadd.f32 %v2514, %v2542
    %v2547 = vadd.f32 %v2515, %v2543
    %v2548 = vmul.f32 %v2528, %v244
    %v2549 = vmul.f32 %v2529, %v244
    %v2550 = vmul.f32 %v2530, %v244
    %v2551 = vmul.f32 %v2531, %v244
    %v2552 = vadd.f32 %v2520, %v2548
    %v2553 = vadd.f32 %v2521, %v2549
    %v2554 = vadd.f32 %v2522, %v2550
    %v2555 = vadd.f32 %v2523, %v2551
    %v2556 = vld [vmem:[%s253 + $0x10] sm:$0xf]
    %v2557 = vld [vmem:[%s253 + $0x14] sm:$0xf]
    %v2558 = vld [vmem:[%s253 + $0x18] sm:$0xf]
    %v2559 = vld [vmem:[%s253 + $0x1c] sm:$0xf]
    %v2560 = vunpack.c.l.bf16 %v2556
    %v2561 = vunpack.c.l.bf16 %v2557
    %v2562 = vunpack.c.l.bf16 %v2558
    %v2563 = vunpack.c.l.bf16 %v2559
    %v2564 = vmul.f32 %v2560, %v262
    %v2565 = vmul.f32 %v2561, %v262
    %v2566 = vmul.f32 %v2562, %v262
    %v2567 = vmul.f32 %v2563, %v262
    %v2568 = vadd.f32 %v2536, %v2564
    %v2569 = vadd.f32 %v2537, %v2565
    %v2570 = vadd.f32 %v2538, %v2566
    %v2571 = vadd.f32 %v2539, %v2567
    %v2572 = vmul.f32 %v2560, %v271
    %v2573 = vmul.f32 %v2561, %v271
    %v2574 = vmul.f32 %v2562, %v271
    %v2575 = vmul.f32 %v2563, %v271
    %v2576 = vadd.f32 %v2544, %v2572
    %v2577 = vadd.f32 %v2545, %v2573
    %v2578 = vadd.f32 %v2546, %v2574
    %v2579 = vadd.f32 %v2547, %v2575
    %v2580 = vmul.f32 %v2560, %v280
    %v2581 = vmul.f32 %v2561, %v280
    %v2582 = vmul.f32 %v2562, %v280
    %v2583 = vmul.f32 %v2563, %v280
    %v2584 = vadd.f32 %v2552, %v2580
    %v2585 = vadd.f32 %v2553, %v2581
    %v2586 = vadd.f32 %v2554, %v2582
    %v2587 = vadd.f32 %v2555, %v2583
    %v2588 = vld [vmem:[%s289 + $0x10] sm:$0xf]
    %v2589 = vld [vmem:[%s289 + $0x14] sm:$0xf]
    %v2590 = vld [vmem:[%s289 + $0x18] sm:$0xf]
    %v2591 = vld [vmem:[%s289 + $0x1c] sm:$0xf]
    %v2592 = vunpack.c.l.bf16 %v2588
    %v2593 = vunpack.c.l.bf16 %v2589
    %v2594 = vunpack.c.l.bf16 %v2590
    %v2595 = vunpack.c.l.bf16 %v2591
    %v2596 = vmul.f32 %v2592, %v298
    %v2597 = vmul.f32 %v2593, %v298
    %v2598 = vmul.f32 %v2594, %v298
    %v2599 = vmul.f32 %v2595, %v298
    %v2600 = vadd.f32 %v2568, %v2596
    %v2601 = vadd.f32 %v2569, %v2597
    %v2602 = vadd.f32 %v2570, %v2598
    %v2603 = vadd.f32 %v2571, %v2599
    %v2604 = vmul.f32 %v2592, %v307
    %v2605 = vmul.f32 %v2593, %v307
    %v2606 = vmul.f32 %v2594, %v307
    %v2607 = vmul.f32 %v2595, %v307
    %v2608 = vadd.f32 %v2576, %v2604
    %v2609 = vadd.f32 %v2577, %v2605
    %v2610 = vadd.f32 %v2578, %v2606
    %v2611 = vadd.f32 %v2579, %v2607
    %v2612 = vmul.f32 %v2592, %v316
    %v2613 = vmul.f32 %v2593, %v316
    %v2614 = vmul.f32 %v2594, %v316
    %v2615 = vmul.f32 %v2595, %v316
    %v2616 = vadd.f32 %v2584, %v2612
    %v2617 = vadd.f32 %v2585, %v2613
    %v2618 = vadd.f32 %v2586, %v2614
    %v2619 = vadd.f32 %v2587, %v2615
    %v2620 = vld [vmem:[%s325 + $0x10] sm:$0xf]
    %v2621 = vld [vmem:[%s325 + $0x14] sm:$0xf]
    %v2622 = vld [vmem:[%s325 + $0x18] sm:$0xf]
    %v2623 = vld [vmem:[%s325 + $0x1c] sm:$0xf]
    %v2624 = vunpack.c.l.bf16 %v2620
    %v2625 = vunpack.c.l.bf16 %v2621
    %v2626 = vunpack.c.l.bf16 %v2622
    %v2627 = vunpack.c.l.bf16 %v2623
    %v2628 = vmul.f32 %v2624, %v334
    %v2629 = vmul.f32 %v2625, %v334
    %v2630 = vmul.f32 %v2626, %v334
    %v2631 = vmul.f32 %v2627, %v334
    %v2632 = vadd.f32 %v2600, %v2628
    %v2633 = vadd.f32 %v2601, %v2629
    %v2634 = vadd.f32 %v2602, %v2630
    %v2635 = vadd.f32 %v2603, %v2631
    %v2636 = vmul.f32 %v2624, %v343
    %v2637 = vmul.f32 %v2625, %v343
    %v2638 = vmul.f32 %v2626, %v343
    %v2639 = vmul.f32 %v2627, %v343
    %v2640 = vadd.f32 %v2608, %v2636
    %v2641 = vadd.f32 %v2609, %v2637
    %v2642 = vadd.f32 %v2610, %v2638
    %v2643 = vadd.f32 %v2611, %v2639
    %v2644 = vmul.f32 %v2624, %v352
    %v2645 = vmul.f32 %v2625, %v352
    %v2646 = vmul.f32 %v2626, %v352
    %v2647 = vmul.f32 %v2627, %v352
    %v2648 = vadd.f32 %v2616, %v2644
    %v2649 = vadd.f32 %v2617, %v2645
    %v2650 = vadd.f32 %v2618, %v2646
    %v2651 = vadd.f32 %v2619, %v2647
    %v2652 = vld [vmem:[%s361 + $0x10] sm:$0xf]
    %v2653 = vld [vmem:[%s361 + $0x14] sm:$0xf]
    %v2654 = vld [vmem:[%s361 + $0x18] sm:$0xf]
    %v2655 = vld [vmem:[%s361 + $0x1c] sm:$0xf]
    %v2656 = vunpack.c.l.bf16 %v2652
    %v2657 = vunpack.c.l.bf16 %v2653
    %v2658 = vunpack.c.l.bf16 %v2654
    %v2659 = vunpack.c.l.bf16 %v2655
    %v2660 = vmul.f32 %v2656, %v370
    %v2661 = vmul.f32 %v2657, %v370
    %v2662 = vmul.f32 %v2658, %v370
    %v2663 = vmul.f32 %v2659, %v370
    %v2664 = vadd.f32 %v2632, %v2660
    %v2665 = vadd.f32 %v2633, %v2661
    %v2666 = vadd.f32 %v2634, %v2662
    %v2667 = vadd.f32 %v2635, %v2663
    %v2668 = vmul.f32 %v2656, %v379
    %v2669 = vmul.f32 %v2657, %v379
    %v2670 = vmul.f32 %v2658, %v379
    %v2671 = vmul.f32 %v2659, %v379
    %v2672 = vadd.f32 %v2640, %v2668
    %v2673 = vadd.f32 %v2641, %v2669
    %v2674 = vadd.f32 %v2642, %v2670
    %v2675 = vadd.f32 %v2643, %v2671
    %v2676 = vmul.f32 %v2656, %v388
    %v2677 = vmul.f32 %v2657, %v388
    %v2678 = vmul.f32 %v2658, %v388
    %v2679 = vmul.f32 %v2659, %v388
    %v2680 = vadd.f32 %v2648, %v2676
    %v2681 = vadd.f32 %v2649, %v2677
    %v2682 = vadd.f32 %v2650, %v2678
    %v2683 = vadd.f32 %v2651, %v2679
    %v2684 = vld [vmem:[%s397 + $0x10] sm:$0xf]
    %v2685 = vld [vmem:[%s397 + $0x14] sm:$0xf]
    %v2686 = vld [vmem:[%s397 + $0x18] sm:$0xf]
    %v2687 = vld [vmem:[%s397 + $0x1c] sm:$0xf]
    %v2688 = vunpack.c.l.bf16 %v2684
    %v2689 = vunpack.c.l.bf16 %v2685
    %v2690 = vunpack.c.l.bf16 %v2686
    %v2691 = vunpack.c.l.bf16 %v2687
    %v2692 = vmul.f32 %v2688, %v406
    %v2693 = vmul.f32 %v2689, %v406
    %v2694 = vmul.f32 %v2690, %v406
    %v2695 = vmul.f32 %v2691, %v406
    %v2696 = vadd.f32 %v2664, %v2692
    %v2697 = vadd.f32 %v2665, %v2693
    %v2698 = vadd.f32 %v2666, %v2694
    %v2699 = vadd.f32 %v2667, %v2695
    %v2700 = vmul.f32 %v2688, %v415
    %v2701 = vmul.f32 %v2689, %v415
    %v2702 = vmul.f32 %v2690, %v415
    %v2703 = vmul.f32 %v2691, %v415
    %v2704 = vadd.f32 %v2672, %v2700
    %v2705 = vadd.f32 %v2673, %v2701
    %v2706 = vadd.f32 %v2674, %v2702
    %v2707 = vadd.f32 %v2675, %v2703
    %v2708 = vmul.f32 %v2688, %v424
    %v2709 = vmul.f32 %v2689, %v424
    %v2710 = vmul.f32 %v2690, %v424
    %v2711 = vmul.f32 %v2691, %v424
    %v2712 = vadd.f32 %v2680, %v2708
    %v2713 = vadd.f32 %v2681, %v2709
    %v2714 = vadd.f32 %v2682, %v2710
    %v2715 = vadd.f32 %v2683, %v2711
    %v2716 = vmul.f32 %v2464, %v118
    %v2717 = vmul.f32 %v2465, %v118
    %v2718 = vmul.f32 %v2466, %v118
    %v2719 = vmul.f32 %v2467, %v118
    %v2720 = vadd.f32 %v2716, 0.0
    %v2721 = vadd.f32 %v2717, 0.0
    %v2722 = vadd.f32 %v2718, 0.0
    %v2723 = vadd.f32 %v2719, 0.0
    %v2724 = vmul.f32 %v2464, %v127
    %v2725 = vmul.f32 %v2465, %v127
    %v2726 = vmul.f32 %v2466, %v127
    %v2727 = vmul.f32 %v2467, %v127
    %v2728 = vadd.f32 %v2724, 0.0
    %v2729 = vadd.f32 %v2725, 0.0
    %v2730 = vadd.f32 %v2726, 0.0
    %v2731 = vadd.f32 %v2727, 0.0
    %v2732 = vmul.f32 %v2464, %v136
    %v2733 = vmul.f32 %v2465, %v136
    %v2734 = vmul.f32 %v2466, %v136
    %v2735 = vmul.f32 %v2467, %v136
    %v2736 = vadd.f32 %v2732, 0.0
    %v2737 = vadd.f32 %v2733, 0.0
    %v2738 = vadd.f32 %v2734, 0.0
    %v2739 = vadd.f32 %v2735, 0.0
    %v2740 = vmul.f32 %v2496, %v154
    %v2741 = vmul.f32 %v2497, %v154
    %v2742 = vmul.f32 %v2498, %v154
    %v2743 = vmul.f32 %v2499, %v154
    %v2744 = vadd.f32 %v2720, %v2740
    %v2745 = vadd.f32 %v2721, %v2741
    %v2746 = vadd.f32 %v2722, %v2742
    %v2747 = vadd.f32 %v2723, %v2743
    %v2748 = vmul.f32 %v2496, %v163
    %v2749 = vmul.f32 %v2497, %v163
    %v2750 = vmul.f32 %v2498, %v163
    %v2751 = vmul.f32 %v2499, %v163
    %v2752 = vadd.f32 %v2728, %v2748
    %v2753 = vadd.f32 %v2729, %v2749
    %v2754 = vadd.f32 %v2730, %v2750
    %v2755 = vadd.f32 %v2731, %v2751
    %v2756 = vmul.f32 %v2496, %v172
    %v2757 = vmul.f32 %v2497, %v172
    %v2758 = vmul.f32 %v2498, %v172
    %v2759 = vmul.f32 %v2499, %v172
    %v2760 = vadd.f32 %v2736, %v2756
    %v2761 = vadd.f32 %v2737, %v2757
    %v2762 = vadd.f32 %v2738, %v2758
    %v2763 = vadd.f32 %v2739, %v2759
    %v2764 = vld [vmem:[%s481 + $0x10] sm:$0xf]
    %v2765 = vld [vmem:[%s481 + $0x14] sm:$0xf]
    %v2766 = vld [vmem:[%s481 + $0x18] sm:$0xf]
    %v2767 = vld [vmem:[%s481 + $0x1c] sm:$0xf]
    %v2768 = vunpack.c.l.bf16 %v2764
    %v2769 = vunpack.c.l.bf16 %v2765
    %v2770 = vunpack.c.l.bf16 %v2766
    %v2771 = vunpack.c.l.bf16 %v2767
    %v2772 = vmul.f32 %v2768, %v190
    %v2773 = vmul.f32 %v2769, %v190
    %v2774 = vmul.f32 %v2770, %v190
    %v2775 = vmul.f32 %v2771, %v190
    %v2776 = vadd.f32 %v2744, %v2772
    %v2777 = vadd.f32 %v2745, %v2773
    %v2778 = vadd.f32 %v2746, %v2774
    %v2779 = vadd.f32 %v2747, %v2775
    %v2780 = vmul.f32 %v2768, %v199
    %v2781 = vmul.f32 %v2769, %v199
    %v2782 = vmul.f32 %v2770, %v199
    %v2783 = vmul.f32 %v2771, %v199
    %v2784 = vadd.f32 %v2752, %v2780
    %v2785 = vadd.f32 %v2753, %v2781
    %v2786 = vadd.f32 %v2754, %v2782
    %v2787 = vadd.f32 %v2755, %v2783
    %v2788 = vmul.f32 %v2768, %v208
    %v2789 = vmul.f32 %v2769, %v208
    %v2790 = vmul.f32 %v2770, %v208
    %v2791 = vmul.f32 %v2771, %v208
    %v2792 = vadd.f32 %v2760, %v2788
    %v2793 = vadd.f32 %v2761, %v2789
    %v2794 = vadd.f32 %v2762, %v2790
    %v2795 = vadd.f32 %v2763, %v2791
    %v2796 = vmul.f32 %v2560, %v226
    %v2797 = vmul.f32 %v2561, %v226
    %v2798 = vmul.f32 %v2562, %v226
    %v2799 = vmul.f32 %v2563, %v226
    %v2800 = vadd.f32 %v2776, %v2796
    %v2801 = vadd.f32 %v2777, %v2797
    %v2802 = vadd.f32 %v2778, %v2798
    %v2803 = vadd.f32 %v2779, %v2799
    %v2804 = vmul.f32 %v2560, %v235
    %v2805 = vmul.f32 %v2561, %v235
    %v2806 = vmul.f32 %v2562, %v235
    %v2807 = vmul.f32 %v2563, %v235
    %v2808 = vadd.f32 %v2784, %v2804
    %v2809 = vadd.f32 %v2785, %v2805
    %v2810 = vadd.f32 %v2786, %v2806
    %v2811 = vadd.f32 %v2787, %v2807
    %v2812 = vmul.f32 %v2560, %v244
    %v2813 = vmul.f32 %v2561, %v244
    %v2814 = vmul.f32 %v2562, %v244
    %v2815 = vmul.f32 %v2563, %v244
    %v2816 = vadd.f32 %v2792, %v2812
    %v2817 = vadd.f32 %v2793, %v2813
    %v2818 = vadd.f32 %v2794, %v2814
    %v2819 = vadd.f32 %v2795, %v2815
    %v2820 = vmul.f32 %v2592, %v262
    %v2821 = vmul.f32 %v2593, %v262
    %v2822 = vmul.f32 %v2594, %v262
    %v2823 = vmul.f32 %v2595, %v262
    %v2824 = vadd.f32 %v2800, %v2820
    %v2825 = vadd.f32 %v2801, %v2821
    %v2826 = vadd.f32 %v2802, %v2822
    %v2827 = vadd.f32 %v2803, %v2823
    %v2828 = vmul.f32 %v2592, %v271
    %v2829 = vmul.f32 %v2593, %v271
    %v2830 = vmul.f32 %v2594, %v271
    %v2831 = vmul.f32 %v2595, %v271
    %v2832 = vadd.f32 %v2808, %v2828
    %v2833 = vadd.f32 %v2809, %v2829
    %v2834 = vadd.f32 %v2810, %v2830
    %v2835 = vadd.f32 %v2811, %v2831
    %v2836 = vmul.f32 %v2592, %v280
    %v2837 = vmul.f32 %v2593, %v280
    %v2838 = vmul.f32 %v2594, %v280
    %v2839 = vmul.f32 %v2595, %v280
    %v2840 = vadd.f32 %v2816, %v2836
    %v2841 = vadd.f32 %v2817, %v2837
    %v2842 = vadd.f32 %v2818, %v2838
    %v2843 = vadd.f32 %v2819, %v2839
    %v2844 = vld [vmem:[%s562 + $0x10] sm:$0xf]
    %v2845 = vld [vmem:[%s562 + $0x14] sm:$0xf]
    %v2846 = vld [vmem:[%s562 + $0x18] sm:$0xf]
    %v2847 = vld [vmem:[%s562 + $0x1c] sm:$0xf]
    %v2848 = vunpack.c.l.bf16 %v2844
    %v2849 = vunpack.c.l.bf16 %v2845
    %v2850 = vunpack.c.l.bf16 %v2846
    %v2851 = vunpack.c.l.bf16 %v2847
    %v2852 = vmul.f32 %v2848, %v298
    %v2853 = vmul.f32 %v2849, %v298
    %v2854 = vmul.f32 %v2850, %v298
    %v2855 = vmul.f32 %v2851, %v298
    %v2856 = vadd.f32 %v2824, %v2852
    %v2857 = vadd.f32 %v2825, %v2853
    %v2858 = vadd.f32 %v2826, %v2854
    %v2859 = vadd.f32 %v2827, %v2855
    %v2860 = vmul.f32 %v2848, %v307
    %v2861 = vmul.f32 %v2849, %v307
    %v2862 = vmul.f32 %v2850, %v307
    %v2863 = vmul.f32 %v2851, %v307
    %v2864 = vadd.f32 %v2832, %v2860
    %v2865 = vadd.f32 %v2833, %v2861
    %v2866 = vadd.f32 %v2834, %v2862
    %v2867 = vadd.f32 %v2835, %v2863
    %v2868 = vmul.f32 %v2848, %v316
    %v2869 = vmul.f32 %v2849, %v316
    %v2870 = vmul.f32 %v2850, %v316
    %v2871 = vmul.f32 %v2851, %v316
    %v2872 = vadd.f32 %v2840, %v2868
    %v2873 = vadd.f32 %v2841, %v2869
    %v2874 = vadd.f32 %v2842, %v2870
    %v2875 = vadd.f32 %v2843, %v2871
    %v2876 = vmul.f32 %v2656, %v334
    %v2877 = vmul.f32 %v2657, %v334
    %v2878 = vmul.f32 %v2658, %v334
    %v2879 = vmul.f32 %v2659, %v334
    %v2880 = vadd.f32 %v2856, %v2876
    %v2881 = vadd.f32 %v2857, %v2877
    %v2882 = vadd.f32 %v2858, %v2878
    %v2883 = vadd.f32 %v2859, %v2879
    %v2884 = vmul.f32 %v2656, %v343
    %v2885 = vmul.f32 %v2657, %v343
    %v2886 = vmul.f32 %v2658, %v343
    %v2887 = vmul.f32 %v2659, %v343
    %v2888 = vadd.f32 %v2864, %v2884
    %v2889 = vadd.f32 %v2865, %v2885
    %v2890 = vadd.f32 %v2866, %v2886
    %v2891 = vadd.f32 %v2867, %v2887
    %v2892 = vmul.f32 %v2656, %v352
    %v2893 = vmul.f32 %v2657, %v352
    %v2894 = vmul.f32 %v2658, %v352
    %v2895 = vmul.f32 %v2659, %v352
    %v2896 = vadd.f32 %v2872, %v2892
    %v2897 = vadd.f32 %v2873, %v2893
    %v2898 = vadd.f32 %v2874, %v2894
    %v2899 = vadd.f32 %v2875, %v2895
    %v2900 = vmul.f32 %v2688, %v370
    %v2901 = vmul.f32 %v2689, %v370
    %v2902 = vmul.f32 %v2690, %v370
    %v2903 = vmul.f32 %v2691, %v370
    %v2904 = vadd.f32 %v2880, %v2900
    %v2905 = vadd.f32 %v2881, %v2901
    %v2906 = vadd.f32 %v2882, %v2902
    %v2907 = vadd.f32 %v2883, %v2903
    %v2908 = vmul.f32 %v2688, %v379
    %v2909 = vmul.f32 %v2689, %v379
    %v2910 = vmul.f32 %v2690, %v379
    %v2911 = vmul.f32 %v2691, %v379
    %v2912 = vadd.f32 %v2888, %v2908
    %v2913 = vadd.f32 %v2889, %v2909
    %v2914 = vadd.f32 %v2890, %v2910
    %v2915 = vadd.f32 %v2891, %v2911
    %v2916 = vmul.f32 %v2688, %v388
    %v2917 = vmul.f32 %v2689, %v388
    %v2918 = vmul.f32 %v2690, %v388
    %v2919 = vmul.f32 %v2691, %v388
    %v2920 = vadd.f32 %v2896, %v2916
    %v2921 = vadd.f32 %v2897, %v2917
    %v2922 = vadd.f32 %v2898, %v2918
    %v2923 = vadd.f32 %v2899, %v2919
    %v2924 = vld [vmem:[%s643 + $0x10] sm:$0xf]
    %v2925 = vld [vmem:[%s643 + $0x14] sm:$0xf]
    %v2926 = vld [vmem:[%s643 + $0x18] sm:$0xf]
    %v2927 = vld [vmem:[%s643 + $0x1c] sm:$0xf]
    %v2928 = vunpack.c.l.bf16 %v2924
    %v2929 = vunpack.c.l.bf16 %v2925
    %v2930 = vunpack.c.l.bf16 %v2926
    %v2931 = vunpack.c.l.bf16 %v2927
    %v2932 = vmul.f32 %v2928, %v406
    %v2933 = vmul.f32 %v2929, %v406
    %v2934 = vmul.f32 %v2930, %v406
    %v2935 = vmul.f32 %v2931, %v406
    %v2936 = vadd.f32 %v2904, %v2932
    %v2937 = vadd.f32 %v2905, %v2933
    %v2938 = vadd.f32 %v2906, %v2934
    %v2939 = vadd.f32 %v2907, %v2935
    %v2940 = vmul.f32 %v2928, %v415
    %v2941 = vmul.f32 %v2929, %v415
    %v2942 = vmul.f32 %v2930, %v415
    %v2943 = vmul.f32 %v2931, %v415
    %v2944 = vadd.f32 %v2912, %v2940
    %v2945 = vadd.f32 %v2913, %v2941
    %v2946 = vadd.f32 %v2914, %v2942
    %v2947 = vadd.f32 %v2915, %v2943
    %v2948 = vmul.f32 %v2928, %v424
    %v2949 = vmul.f32 %v2929, %v424
    %v2950 = vmul.f32 %v2930, %v424
    %v2951 = vmul.f32 %v2931, %v424
    %v2952 = vadd.f32 %v2920, %v2948
    %v2953 = vadd.f32 %v2921, %v2949
    %v2954 = vadd.f32 %v2922, %v2950
    %v2955 = vadd.f32 %v2923, %v2951
    %v2956 = vmax.f32 %v2696, %v2936
    %v2957 = vmax.f32 %v2697, %v2937
    %v2958 = vmax.f32 %v2698, %v2938
    %v2959 = vmax.f32 %v2699, %v2939
    %v2960 = vmax.f32 %v2704, %v2944
    %v2961 = vmax.f32 %v2705, %v2945
    %v2962 = vmax.f32 %v2706, %v2946
    %v2963 = vmax.f32 %v2707, %v2947
    %v2964 = vmax.f32 %v2712, %v2952
    %v2965 = vmax.f32 %v2713, %v2953
    %v2966 = vmax.f32 %v2714, %v2954
    %v2967 = vmax.f32 %v2715, %v2955
    %v2968 = vmul.f32 %v2496, %v118
    %v2969 = vmul.f32 %v2497, %v118
    %v2970 = vmul.f32 %v2498, %v118
    %v2971 = vmul.f32 %v2499, %v118
    %v2972 = vadd.f32 %v2968, 0.0
    %v2973 = vadd.f32 %v2969, 0.0
    %v2974 = vadd.f32 %v2970, 0.0
    %v2975 = vadd.f32 %v2971, 0.0
    %v2976 = vmul.f32 %v2496, %v127
    %v2977 = vmul.f32 %v2497, %v127
    %v2978 = vmul.f32 %v2498, %v127
    %v2979 = vmul.f32 %v2499, %v127
    %v2980 = vadd.f32 %v2976, 0.0
    %v2981 = vadd.f32 %v2977, 0.0
    %v2982 = vadd.f32 %v2978, 0.0
    %v2983 = vadd.f32 %v2979, 0.0
    %v2984 = vmul.f32 %v2496, %v136
    %v2985 = vmul.f32 %v2497, %v136
    %v2986 = vmul.f32 %v2498, %v136
    %v2987 = vmul.f32 %v2499, %v136
    %v2988 = vadd.f32 %v2984, 0.0
    %v2989 = vadd.f32 %v2985, 0.0
    %v2990 = vadd.f32 %v2986, 0.0
    %v2991 = vadd.f32 %v2987, 0.0
    %v2992 = vmul.f32 %v2768, %v154
    %v2993 = vmul.f32 %v2769, %v154
    %v2994 = vmul.f32 %v2770, %v154
    %v2995 = vmul.f32 %v2771, %v154
    %v2996 = vadd.f32 %v2972, %v2992
    %v2997 = vadd.f32 %v2973, %v2993
    %v2998 = vadd.f32 %v2974, %v2994
    %v2999 = vadd.f32 %v2975, %v2995
    %v3000 = vmul.f32 %v2768, %v163
    %v3001 = vmul.f32 %v2769, %v163
    %v3002 = vmul.f32 %v2770, %v163
    %v3003 = vmul.f32 %v2771, %v163
    %v3004 = vadd.f32 %v2980, %v3000
    %v3005 = vadd.f32 %v2981, %v3001
    %v3006 = vadd.f32 %v2982, %v3002
    %v3007 = vadd.f32 %v2983, %v3003
    %v3008 = vmul.f32 %v2768, %v172
    %v3009 = vmul.f32 %v2769, %v172
    %v3010 = vmul.f32 %v2770, %v172
    %v3011 = vmul.f32 %v2771, %v172
    %v3012 = vadd.f32 %v2988, %v3008
    %v3013 = vadd.f32 %v2989, %v3009
    %v3014 = vadd.f32 %v2990, %v3010
    %v3015 = vadd.f32 %v2991, %v3011
    %v3016 = vld [vmem:[%s736 + $0x10] sm:$0xf]
    %v3017 = vld [vmem:[%s736 + $0x14] sm:$0xf]
    %v3018 = vld [vmem:[%s736 + $0x18] sm:$0xf]
    %v3019 = vld [vmem:[%s736 + $0x1c] sm:$0xf]
    %v3020 = vunpack.c.l.bf16 %v3016
    %v3021 = vunpack.c.l.bf16 %v3017
    %v3022 = vunpack.c.l.bf16 %v3018
    %v3023 = vunpack.c.l.bf16 %v3019
    %v3024 = vmul.f32 %v3020, %v190
    %v3025 = vmul.f32 %v3021, %v190
    %v3026 = vmul.f32 %v3022, %v190
    %v3027 = vmul.f32 %v3023, %v190
    %v3028 = vadd.f32 %v2996, %v3024
    %v3029 = vadd.f32 %v2997, %v3025
    %v3030 = vadd.f32 %v2998, %v3026
    %v3031 = vadd.f32 %v2999, %v3027
    %v3032 = vmul.f32 %v3020, %v199
    %v3033 = vmul.f32 %v3021, %v199
    %v3034 = vmul.f32 %v3022, %v199
    %v3035 = vmul.f32 %v3023, %v199
    %v3036 = vadd.f32 %v3004, %v3032
    %v3037 = vadd.f32 %v3005, %v3033
    %v3038 = vadd.f32 %v3006, %v3034
    %v3039 = vadd.f32 %v3007, %v3035
    %v3040 = vmul.f32 %v3020, %v208
    %v3041 = vmul.f32 %v3021, %v208
    %v3042 = vmul.f32 %v3022, %v208
    %v3043 = vmul.f32 %v3023, %v208
    %v3044 = vadd.f32 %v3012, %v3040
    %v3045 = vadd.f32 %v3013, %v3041
    %v3046 = vadd.f32 %v3014, %v3042
    %v3047 = vadd.f32 %v3015, %v3043
    %v3048 = vmul.f32 %v2592, %v226
    %v3049 = vmul.f32 %v2593, %v226
    %v3050 = vmul.f32 %v2594, %v226
    %v3051 = vmul.f32 %v2595, %v226
    %v3052 = vadd.f32 %v3028, %v3048
    %v3053 = vadd.f32 %v3029, %v3049
    %v3054 = vadd.f32 %v3030, %v3050
    %v3055 = vadd.f32 %v3031, %v3051
    %v3056 = vmul.f32 %v2592, %v235
    %v3057 = vmul.f32 %v2593, %v235
    %v3058 = vmul.f32 %v2594, %v235
    %v3059 = vmul.f32 %v2595, %v235
    %v3060 = vadd.f32 %v3036, %v3056
    %v3061 = vadd.f32 %v3037, %v3057
    %v3062 = vadd.f32 %v3038, %v3058
    %v3063 = vadd.f32 %v3039, %v3059
    %v3064 = vmul.f32 %v2592, %v244
    %v3065 = vmul.f32 %v2593, %v244
    %v3066 = vmul.f32 %v2594, %v244
    %v3067 = vmul.f32 %v2595, %v244
    %v3068 = vadd.f32 %v3044, %v3064
    %v3069 = vadd.f32 %v3045, %v3065
    %v3070 = vadd.f32 %v3046, %v3066
    %v3071 = vadd.f32 %v3047, %v3067
    %v3072 = vmul.f32 %v2848, %v262
    %v3073 = vmul.f32 %v2849, %v262
    %v3074 = vmul.f32 %v2850, %v262
    %v3075 = vmul.f32 %v2851, %v262
    %v3076 = vadd.f32 %v3052, %v3072
    %v3077 = vadd.f32 %v3053, %v3073
    %v3078 = vadd.f32 %v3054, %v3074
    %v3079 = vadd.f32 %v3055, %v3075
    %v3080 = vmul.f32 %v2848, %v271
    %v3081 = vmul.f32 %v2849, %v271
    %v3082 = vmul.f32 %v2850, %v271
    %v3083 = vmul.f32 %v2851, %v271
    %v3084 = vadd.f32 %v3060, %v3080
    %v3085 = vadd.f32 %v3061, %v3081
    %v3086 = vadd.f32 %v3062, %v3082
    %v3087 = vadd.f32 %v3063, %v3083
    %v3088 = vmul.f32 %v2848, %v280
    %v3089 = vmul.f32 %v2849, %v280
    %v3090 = vmul.f32 %v2850, %v280
    %v3091 = vmul.f32 %v2851, %v280
    %v3092 = vadd.f32 %v3068, %v3088
    %v3093 = vadd.f32 %v3069, %v3089
    %v3094 = vadd.f32 %v3070, %v3090
    %v3095 = vadd.f32 %v3071, %v3091
    %v3096 = vld [vmem:[%s817 + $0x10] sm:$0xf]
    %v3097 = vld [vmem:[%s817 + $0x14] sm:$0xf]
    %v3098 = vld [vmem:[%s817 + $0x18] sm:$0xf]
    %v3099 = vld [vmem:[%s817 + $0x1c] sm:$0xf]
    %v3100 = vunpack.c.l.bf16 %v3096
    %v3101 = vunpack.c.l.bf16 %v3097
    %v3102 = vunpack.c.l.bf16 %v3098
    %v3103 = vunpack.c.l.bf16 %v3099
    %v3104 = vmul.f32 %v3100, %v298
    %v3105 = vmul.f32 %v3101, %v298
    %v3106 = vmul.f32 %v3102, %v298
    %v3107 = vmul.f32 %v3103, %v298
    %v3108 = vadd.f32 %v3076, %v3104
    %v3109 = vadd.f32 %v3077, %v3105
    %v3110 = vadd.f32 %v3078, %v3106
    %v3111 = vadd.f32 %v3079, %v3107
    %v3112 = vmul.f32 %v3100, %v307
    %v3113 = vmul.f32 %v3101, %v307
    %v3114 = vmul.f32 %v3102, %v307
    %v3115 = vmul.f32 %v3103, %v307
    %v3116 = vadd.f32 %v3084, %v3112
    %v3117 = vadd.f32 %v3085, %v3113
    %v3118 = vadd.f32 %v3086, %v3114
    %v3119 = vadd.f32 %v3087, %v3115
    %v3120 = vmul.f32 %v3100, %v316
    %v3121 = vmul.f32 %v3101, %v316
    %v3122 = vmul.f32 %v3102, %v316
    %v3123 = vmul.f32 %v3103, %v316
    %v3124 = vadd.f32 %v3092, %v3120
    %v3125 = vadd.f32 %v3093, %v3121
    %v3126 = vadd.f32 %v3094, %v3122
    %v3127 = vadd.f32 %v3095, %v3123
    %v3128 = vmul.f32 %v2688, %v334
    %v3129 = vmul.f32 %v2689, %v334
    %v3130 = vmul.f32 %v2690, %v334
    %v3131 = vmul.f32 %v2691, %v334
    %v3132 = vadd.f32 %v3108, %v3128
    %v3133 = vadd.f32 %v3109, %v3129
    %v3134 = vadd.f32 %v3110, %v3130
    %v3135 = vadd.f32 %v3111, %v3131
    %v3136 = vmul.f32 %v2688, %v343
    %v3137 = vmul.f32 %v2689, %v343
    %v3138 = vmul.f32 %v2690, %v343
    %v3139 = vmul.f32 %v2691, %v343
    %v3140 = vadd.f32 %v3116, %v3136
    %v3141 = vadd.f32 %v3117, %v3137
    %v3142 = vadd.f32 %v3118, %v3138
    %v3143 = vadd.f32 %v3119, %v3139
    %v3144 = vmul.f32 %v2688, %v352
    %v3145 = vmul.f32 %v2689, %v352
    %v3146 = vmul.f32 %v2690, %v352
    %v3147 = vmul.f32 %v2691, %v352
    %v3148 = vadd.f32 %v3124, %v3144
    %v3149 = vadd.f32 %v3125, %v3145
    %v3150 = vadd.f32 %v3126, %v3146
    %v3151 = vadd.f32 %v3127, %v3147
    %v3152 = vmul.f32 %v2928, %v370
    %v3153 = vmul.f32 %v2929, %v370
    %v3154 = vmul.f32 %v2930, %v370
    %v3155 = vmul.f32 %v2931, %v370
    %v3156 = vadd.f32 %v3132, %v3152
    %v3157 = vadd.f32 %v3133, %v3153
    %v3158 = vadd.f32 %v3134, %v3154
    %v3159 = vadd.f32 %v3135, %v3155
    %v3160 = vmul.f32 %v2928, %v379
    %v3161 = vmul.f32 %v2929, %v379
    %v3162 = vmul.f32 %v2930, %v379
    %v3163 = vmul.f32 %v2931, %v379
    %v3164 = vadd.f32 %v3140, %v3160
    %v3165 = vadd.f32 %v3141, %v3161
    %v3166 = vadd.f32 %v3142, %v3162
    %v3167 = vadd.f32 %v3143, %v3163
    %v3168 = vmul.f32 %v2928, %v388
    %v3169 = vmul.f32 %v2929, %v388
    %v3170 = vmul.f32 %v2930, %v388
    %v3171 = vmul.f32 %v2931, %v388
    %v3172 = vadd.f32 %v3148, %v3168
    %v3173 = vadd.f32 %v3149, %v3169
    %v3174 = vadd.f32 %v3150, %v3170
    %v3175 = vadd.f32 %v3151, %v3171
    %v3176 = vld [vmem:[%s898 + $0x10] sm:$0xf]
    %v3177 = vld [vmem:[%s898 + $0x14] sm:$0xf]
    %v3178 = vld [vmem:[%s898 + $0x18] sm:$0xf]
    %v3179 = vld [vmem:[%s898 + $0x1c] sm:$0xf]
    %v3180 = vunpack.c.l.bf16 %v3176
    %v3181 = vunpack.c.l.bf16 %v3177
    %v3182 = vunpack.c.l.bf16 %v3178
    %v3183 = vunpack.c.l.bf16 %v3179
    %v3184 = vmul.f32 %v3180, %v406
    %v3185 = vmul.f32 %v3181, %v406
    %v3186 = vmul.f32 %v3182, %v406
    %v3187 = vmul.f32 %v3183, %v406
    %v3188 = vadd.f32 %v3156, %v3184
    %v3189 = vadd.f32 %v3157, %v3185
    %v3190 = vadd.f32 %v3158, %v3186
    %v3191 = vadd.f32 %v3159, %v3187
    %v3192 = vmul.f32 %v3180, %v415
    %v3193 = vmul.f32 %v3181, %v415
    %v3194 = vmul.f32 %v3182, %v415
    %v3195 = vmul.f32 %v3183, %v415
    %v3196 = vadd.f32 %v3164, %v3192
    %v3197 = vadd.f32 %v3165, %v3193
    %v3198 = vadd.f32 %v3166, %v3194
    %v3199 = vadd.f32 %v3167, %v3195
    %v3200 = vmul.f32 %v3180, %v424
    %v3201 = vmul.f32 %v3181, %v424
    %v3202 = vmul.f32 %v3182, %v424
    %v3203 = vmul.f32 %v3183, %v424
    %v3204 = vadd.f32 %v3172, %v3200
    %v3205 = vadd.f32 %v3173, %v3201
    %v3206 = vadd.f32 %v3174, %v3202
    %v3207 = vadd.f32 %v3175, %v3203
    %v3208 = vmax.f32 %v2956, %v3188
    %v3209 = vmax.f32 %v2957, %v3189
    %v3210 = vmax.f32 %v2958, %v3190
    %v3211 = vmax.f32 %v2959, %v3191
    %v3212 = vmax.f32 %v2960, %v3196
    %v3213 = vmax.f32 %v2961, %v3197
    %v3214 = vmax.f32 %v2962, %v3198
    %v3215 = vmax.f32 %v2963, %v3199
    %v3216 = vmax.f32 %v2964, %v3204
    %v3217 = vmax.f32 %v2965, %v3205
    %v3218 = vmax.f32 %v2966, %v3206
    %v3219 = vmax.f32 %v2967, %v3207
    %v3220 = vmul.f32 %v2528, %v118
    %v3221 = vmul.f32 %v2529, %v118
    %v3222 = vmul.f32 %v2530, %v118
    %v3223 = vmul.f32 %v2531, %v118
    %v3224 = vadd.f32 %v3220, 0.0
    %v3225 = vadd.f32 %v3221, 0.0
    %v3226 = vadd.f32 %v3222, 0.0
    %v3227 = vadd.f32 %v3223, 0.0
    %v3228 = vmul.f32 %v2528, %v127
    %v3229 = vmul.f32 %v2529, %v127
    %v3230 = vmul.f32 %v2530, %v127
    %v3231 = vmul.f32 %v2531, %v127
    %v3232 = vadd.f32 %v3228, 0.0
    %v3233 = vadd.f32 %v3229, 0.0
    %v3234 = vadd.f32 %v3230, 0.0
    %v3235 = vadd.f32 %v3231, 0.0
    %v3236 = vmul.f32 %v2528, %v136
    %v3237 = vmul.f32 %v2529, %v136
    %v3238 = vmul.f32 %v2530, %v136
    %v3239 = vmul.f32 %v2531, %v136
    %v3240 = vadd.f32 %v3236, 0.0
    %v3241 = vadd.f32 %v3237, 0.0
    %v3242 = vadd.f32 %v3238, 0.0
    %v3243 = vadd.f32 %v3239, 0.0
    %v3244 = vmul.f32 %v2560, %v154
    %v3245 = vmul.f32 %v2561, %v154
    %v3246 = vmul.f32 %v2562, %v154
    %v3247 = vmul.f32 %v2563, %v154
    %v3248 = vadd.f32 %v3224, %v3244
    %v3249 = vadd.f32 %v3225, %v3245
    %v3250 = vadd.f32 %v3226, %v3246
    %v3251 = vadd.f32 %v3227, %v3247
    %v3252 = vmul.f32 %v2560, %v163
    %v3253 = vmul.f32 %v2561, %v163
    %v3254 = vmul.f32 %v2562, %v163
    %v3255 = vmul.f32 %v2563, %v163
    %v3256 = vadd.f32 %v3232, %v3252
    %v3257 = vadd.f32 %v3233, %v3253
    %v3258 = vadd.f32 %v3234, %v3254
    %v3259 = vadd.f32 %v3235, %v3255
    %v3260 = vmul.f32 %v2560, %v172
    %v3261 = vmul.f32 %v2561, %v172
    %v3262 = vmul.f32 %v2562, %v172
    %v3263 = vmul.f32 %v2563, %v172
    %v3264 = vadd.f32 %v3240, %v3260
    %v3265 = vadd.f32 %v3241, %v3261
    %v3266 = vadd.f32 %v3242, %v3262
    %v3267 = vadd.f32 %v3243, %v3263
    %v3268 = vmul.f32 %v2592, %v190
    %v3269 = vmul.f32 %v2593, %v190
    %v3270 = vmul.f32 %v2594, %v190
    %v3271 = vmul.f32 %v2595, %v190
    %v3272 = vadd.f32 %v3248, %v3268
    %v3273 = vadd.f32 %v3249, %v3269
    %v3274 = vadd.f32 %v3250, %v3270
    %v3275 = vadd.f32 %v3251, %v3271
    %v3276 = vmul.f32 %v2592, %v199
    %v3277 = vmul.f32 %v2593, %v199
    %v3278 = vmul.f32 %v2594, %v199
    %v3279 = vmul.f32 %v2595, %v199
    %v3280 = vadd.f32 %v3256, %v3276
    %v3281 = vadd.f32 %v3257, %v3277
    %v3282 = vadd.f32 %v3258, %v3278
    %v3283 = vadd.f32 %v3259, %v3279
    %v3284 = vmul.f32 %v2592, %v208
    %v3285 = vmul.f32 %v2593, %v208
    %v3286 = vmul.f32 %v2594, %v208
    %v3287 = vmul.f32 %v2595, %v208
    %v3288 = vadd.f32 %v3264, %v3284
    %v3289 = vadd.f32 %v3265, %v3285
    %v3290 = vadd.f32 %v3266, %v3286
    %v3291 = vadd.f32 %v3267, %v3287
    %v3292 = vmul.f32 %v2624, %v226
    %v3293 = vmul.f32 %v2625, %v226
    %v3294 = vmul.f32 %v2626, %v226
    %v3295 = vmul.f32 %v2627, %v226
    %v3296 = vadd.f32 %v3272, %v3292
    %v3297 = vadd.f32 %v3273, %v3293
    %v3298 = vadd.f32 %v3274, %v3294
    %v3299 = vadd.f32 %v3275, %v3295
    %v3300 = vmul.f32 %v2624, %v235
    %v3301 = vmul.f32 %v2625, %v235
    %v3302 = vmul.f32 %v2626, %v235
    %v3303 = vmul.f32 %v2627, %v235
    %v3304 = vadd.f32 %v3280, %v3300
    %v3305 = vadd.f32 %v3281, %v3301
    %v3306 = vadd.f32 %v3282, %v3302
    %v3307 = vadd.f32 %v3283, %v3303
    %v3308 = vmul.f32 %v2624, %v244
    %v3309 = vmul.f32 %v2625, %v244
    %v3310 = vmul.f32 %v2626, %v244
    %v3311 = vmul.f32 %v2627, %v244
    %v3312 = vadd.f32 %v3288, %v3308
    %v3313 = vadd.f32 %v3289, %v3309
    %v3314 = vadd.f32 %v3290, %v3310
    %v3315 = vadd.f32 %v3291, %v3311
    %v3316 = vmul.f32 %v2656, %v262
    %v3317 = vmul.f32 %v2657, %v262
    %v3318 = vmul.f32 %v2658, %v262
    %v3319 = vmul.f32 %v2659, %v262
    %v3320 = vadd.f32 %v3296, %v3316
    %v3321 = vadd.f32 %v3297, %v3317
    %v3322 = vadd.f32 %v3298, %v3318
    %v3323 = vadd.f32 %v3299, %v3319
    %v3324 = vmul.f32 %v2656, %v271
    %v3325 = vmul.f32 %v2657, %v271
    %v3326 = vmul.f32 %v2658, %v271
    %v3327 = vmul.f32 %v2659, %v271
    %v3328 = vadd.f32 %v3304, %v3324
    %v3329 = vadd.f32 %v3305, %v3325
    %v3330 = vadd.f32 %v3306, %v3326
    %v3331 = vadd.f32 %v3307, %v3327
    %v3332 = vmul.f32 %v2656, %v280
    %v3333 = vmul.f32 %v2657, %v280
    %v3334 = vmul.f32 %v2658, %v280
    %v3335 = vmul.f32 %v2659, %v280
    %v3336 = vadd.f32 %v3312, %v3332
    %v3337 = vadd.f32 %v3313, %v3333
    %v3338 = vadd.f32 %v3314, %v3334
    %v3339 = vadd.f32 %v3315, %v3335
    %v3340 = vmul.f32 %v2688, %v298
    %v3341 = vmul.f32 %v2689, %v298
    %v3342 = vmul.f32 %v2690, %v298
    %v3343 = vmul.f32 %v2691, %v298
    %v3344 = vadd.f32 %v3320, %v3340
    %v3345 = vadd.f32 %v3321, %v3341
    %v3346 = vadd.f32 %v3322, %v3342
    %v3347 = vadd.f32 %v3323, %v3343
    %v3348 = vmul.f32 %v2688, %v307
    %v3349 = vmul.f32 %v2689, %v307
    %v3350 = vmul.f32 %v2690, %v307
    %v3351 = vmul.f32 %v2691, %v307
    %v3352 = vadd.f32 %v3328, %v3348
    %v3353 = vadd.f32 %v3329, %v3349
    %v3354 = vadd.f32 %v3330, %v3350
    %v3355 = vadd.f32 %v3331, %v3351
    %v3356 = vmul.f32 %v2688, %v316
    %v3357 = vmul.f32 %v2689, %v316
    %v3358 = vmul.f32 %v2690, %v316
    %v3359 = vmul.f32 %v2691, %v316
    %v3360 = vadd.f32 %v3336, %v3356
    %v3361 = vadd.f32 %v3337, %v3357
    %v3362 = vadd.f32 %v3338, %v3358
    %v3363 = vadd.f32 %v3339, %v3359
    %v3364 = vld [vmem:[%s1087 + $0x10] sm:$0xf]
    %v3365 = vld [vmem:[%s1087 + $0x14] sm:$0xf]
    %v3366 = vld [vmem:[%s1087 + $0x18] sm:$0xf]
    %v3367 = vld [vmem:[%s1087 + $0x1c] sm:$0xf]
    %v3368 = vunpack.c.l.bf16 %v3364
    %v3369 = vunpack.c.l.bf16 %v3365
    %v3370 = vunpack.c.l.bf16 %v3366
    %v3371 = vunpack.c.l.bf16 %v3367
    %v3372 = vmul.f32 %v3368, %v334
    %v3373 = vmul.f32 %v3369, %v334
    %v3374 = vmul.f32 %v3370, %v334
    %v3375 = vmul.f32 %v3371, %v334
    %v3376 = vadd.f32 %v3344, %v3372
    %v3377 = vadd.f32 %v3345, %v3373
    %v3378 = vadd.f32 %v3346, %v3374
    %v3379 = vadd.f32 %v3347, %v3375
    %v3380 = vmul.f32 %v3368, %v343
    %v3381 = vmul.f32 %v3369, %v343
    %v3382 = vmul.f32 %v3370, %v343
    %v3383 = vmul.f32 %v3371, %v343
    %v3384 = vadd.f32 %v3352, %v3380
    %v3385 = vadd.f32 %v3353, %v3381
    %v3386 = vadd.f32 %v3354, %v3382
    %v3387 = vadd.f32 %v3355, %v3383
    %v3388 = vmul.f32 %v3368, %v352
    %v3389 = vmul.f32 %v3369, %v352
    %v3390 = vmul.f32 %v3370, %v352
    %v3391 = vmul.f32 %v3371, %v352
    %v3392 = vadd.f32 %v3360, %v3388
    %v3393 = vadd.f32 %v3361, %v3389
    %v3394 = vadd.f32 %v3362, %v3390
    %v3395 = vadd.f32 %v3363, %v3391
    %v3396 = vld [vmem:[%s1120 + $0x10] sm:$0xf]
    %v3397 = vld [vmem:[%s1120 + $0x14] sm:$0xf]
    %v3398 = vld [vmem:[%s1120 + $0x18] sm:$0xf]
    %v3399 = vld [vmem:[%s1120 + $0x1c] sm:$0xf]
    %v3400 = vunpack.c.l.bf16 %v3396
    %v3401 = vunpack.c.l.bf16 %v3397
    %v3402 = vunpack.c.l.bf16 %v3398
    %v3403 = vunpack.c.l.bf16 %v3399
    %v3404 = vmul.f32 %v3400, %v370
    %v3405 = vmul.f32 %v3401, %v370
    %v3406 = vmul.f32 %v3402, %v370
    %v3407 = vmul.f32 %v3403, %v370
    %v3408 = vadd.f32 %v3376, %v3404
    %v3409 = vadd.f32 %v3377, %v3405
    %v3410 = vadd.f32 %v3378, %v3406
    %v3411 = vadd.f32 %v3379, %v3407
    %v3412 = vmul.f32 %v3400, %v379
    %v3413 = vmul.f32 %v3401, %v379
    %v3414 = vmul.f32 %v3402, %v379
    %v3415 = vmul.f32 %v3403, %v379
    %v3416 = vadd.f32 %v3384, %v3412
    %v3417 = vadd.f32 %v3385, %v3413
    %v3418 = vadd.f32 %v3386, %v3414
    %v3419 = vadd.f32 %v3387, %v3415
    %v3420 = vmul.f32 %v3400, %v388
    %v3421 = vmul.f32 %v3401, %v388
    %v3422 = vmul.f32 %v3402, %v388
    %v3423 = vmul.f32 %v3403, %v388
    %v3424 = vadd.f32 %v3392, %v3420
    %v3425 = vadd.f32 %v3393, %v3421
    %v3426 = vadd.f32 %v3394, %v3422
    %v3427 = vadd.f32 %v3395, %v3423
    %v3428 = vld [vmem:[%s1153 + $0x10] sm:$0xf]
    %v3429 = vld [vmem:[%s1153 + $0x14] sm:$0xf]
    %v3430 = vld [vmem:[%s1153 + $0x18] sm:$0xf]
    %v3431 = vld [vmem:[%s1153 + $0x1c] sm:$0xf]
    %v3432 = vunpack.c.l.bf16 %v3428
    %v3433 = vunpack.c.l.bf16 %v3429
    %v3434 = vunpack.c.l.bf16 %v3430
    %v3435 = vunpack.c.l.bf16 %v3431
    %v3436 = vmul.f32 %v3432, %v406
    %v3437 = vmul.f32 %v3433, %v406
    %v3438 = vmul.f32 %v3434, %v406
    %v3439 = vmul.f32 %v3435, %v406
    %v3440 = vadd.f32 %v3408, %v3436
    %v3441 = vadd.f32 %v3409, %v3437
    %v3442 = vadd.f32 %v3410, %v3438
    %v3443 = vadd.f32 %v3411, %v3439
    %v3444 = vmul.f32 %v3432, %v415
    %v3445 = vmul.f32 %v3433, %v415
    %v3446 = vmul.f32 %v3434, %v415
    %v3447 = vmul.f32 %v3435, %v415
    %v3448 = vadd.f32 %v3416, %v3444
    %v3449 = vadd.f32 %v3417, %v3445
    %v3450 = vadd.f32 %v3418, %v3446
    %v3451 = vadd.f32 %v3419, %v3447
    %v3452 = vmul.f32 %v3432, %v424
    %v3453 = vmul.f32 %v3433, %v424
    %v3454 = vmul.f32 %v3434, %v424
    %v3455 = vmul.f32 %v3435, %v424
    %v3456 = vadd.f32 %v3424, %v3452
    %v3457 = vadd.f32 %v3425, %v3453
    %v3458 = vadd.f32 %v3426, %v3454
    %v3459 = vadd.f32 %v3427, %v3455
    %v3460 = vmax.f32 %v3208, %v3440
    %v3461 = vmax.f32 %v3209, %v3441
    %v3462 = vmax.f32 %v3210, %v3442
    %v3463 = vmax.f32 %v3211, %v3443
    %v3464 = vmax.f32 %v3212, %v3448
    %v3465 = vmax.f32 %v3213, %v3449
    %v3466 = vmax.f32 %v3214, %v3450
    %v3467 = vmax.f32 %v3215, %v3451
    %v3468 = vmax.f32 %v3216, %v3456
    %v3469 = vmax.f32 %v3217, %v3457
    %v3470 = vmax.f32 %v3218, %v3458
    %v3471 = vmax.f32 %v3219, %v3459
    %v3472 = vmul.f32 %v2560, %v118
    %v3473 = vmul.f32 %v2561, %v118
    %v3474 = vmul.f32 %v2562, %v118
    %v3475 = vmul.f32 %v2563, %v118
    %v3476 = vadd.f32 %v3472, 0.0
    %v3477 = vadd.f32 %v3473, 0.0
    %v3478 = vadd.f32 %v3474, 0.0
    %v3479 = vadd.f32 %v3475, 0.0
    %v3480 = vmul.f32 %v2560, %v127
    %v3481 = vmul.f32 %v2561, %v127
    %v3482 = vmul.f32 %v2562, %v127
    %v3483 = vmul.f32 %v2563, %v127
    %v3484 = vadd.f32 %v3480, 0.0
    %v3485 = vadd.f32 %v3481, 0.0
    %v3486 = vadd.f32 %v3482, 0.0
    %v3487 = vadd.f32 %v3483, 0.0
    %v3488 = vmul.f32 %v2560, %v136
    %v3489 = vmul.f32 %v2561, %v136
    %v3490 = vmul.f32 %v2562, %v136
    %v3491 = vmul.f32 %v2563, %v136
    %v3492 = vadd.f32 %v3488, 0.0
    %v3493 = vadd.f32 %v3489, 0.0
    %v3494 = vadd.f32 %v3490, 0.0
    %v3495 = vadd.f32 %v3491, 0.0
    %v3496 = vmul.f32 %v2592, %v154
    %v3497 = vmul.f32 %v2593, %v154
    %v3498 = vmul.f32 %v2594, %v154
    %v3499 = vmul.f32 %v2595, %v154
    %v3500 = vadd.f32 %v3476, %v3496
    %v3501 = vadd.f32 %v3477, %v3497
    %v3502 = vadd.f32 %v3478, %v3498
    %v3503 = vadd.f32 %v3479, %v3499
    %v3504 = vmul.f32 %v2592, %v163
    %v3505 = vmul.f32 %v2593, %v163
    %v3506 = vmul.f32 %v2594, %v163
    %v3507 = vmul.f32 %v2595, %v163
    %v3508 = vadd.f32 %v3484, %v3504
    %v3509 = vadd.f32 %v3485, %v3505
    %v3510 = vadd.f32 %v3486, %v3506
    %v3511 = vadd.f32 %v3487, %v3507
    %v3512 = vmul.f32 %v2592, %v172
    %v3513 = vmul.f32 %v2593, %v172
    %v3514 = vmul.f32 %v2594, %v172
    %v3515 = vmul.f32 %v2595, %v172
    %v3516 = vadd.f32 %v3492, %v3512
    %v3517 = vadd.f32 %v3493, %v3513
    %v3518 = vadd.f32 %v3494, %v3514
    %v3519 = vadd.f32 %v3495, %v3515
    %v3520 = vmul.f32 %v2848, %v190
    %v3521 = vmul.f32 %v2849, %v190
    %v3522 = vmul.f32 %v2850, %v190
    %v3523 = vmul.f32 %v2851, %v190
    %v3524 = vadd.f32 %v3500, %v3520
    %v3525 = vadd.f32 %v3501, %v3521
    %v3526 = vadd.f32 %v3502, %v3522
    %v3527 = vadd.f32 %v3503, %v3523
    %v3528 = vmul.f32 %v2848, %v199
    %v3529 = vmul.f32 %v2849, %v199
    %v3530 = vmul.f32 %v2850, %v199
    %v3531 = vmul.f32 %v2851, %v199
    %v3532 = vadd.f32 %v3508, %v3528
    %v3533 = vadd.f32 %v3509, %v3529
    %v3534 = vadd.f32 %v3510, %v3530
    %v3535 = vadd.f32 %v3511, %v3531
    %v3536 = vmul.f32 %v2848, %v208
    %v3537 = vmul.f32 %v2849, %v208
    %v3538 = vmul.f32 %v2850, %v208
    %v3539 = vmul.f32 %v2851, %v208
    %v3540 = vadd.f32 %v3516, %v3536
    %v3541 = vadd.f32 %v3517, %v3537
    %v3542 = vadd.f32 %v3518, %v3538
    %v3543 = vadd.f32 %v3519, %v3539
    %v3544 = vmul.f32 %v2656, %v226
    %v3545 = vmul.f32 %v2657, %v226
    %v3546 = vmul.f32 %v2658, %v226
    %v3547 = vmul.f32 %v2659, %v226
    %v3548 = vadd.f32 %v3524, %v3544
    %v3549 = vadd.f32 %v3525, %v3545
    %v3550 = vadd.f32 %v3526, %v3546
    %v3551 = vadd.f32 %v3527, %v3547
    %v3552 = vmul.f32 %v2656, %v235
    %v3553 = vmul.f32 %v2657, %v235
    %v3554 = vmul.f32 %v2658, %v235
    %v3555 = vmul.f32 %v2659, %v235
    %v3556 = vadd.f32 %v3532, %v3552
    %v3557 = vadd.f32 %v3533, %v3553
    %v3558 = vadd.f32 %v3534, %v3554
    %v3559 = vadd.f32 %v3535, %v3555
    %v3560 = vmul.f32 %v2656, %v244
    %v3561 = vmul.f32 %v2657, %v244
    %v3562 = vmul.f32 %v2658, %v244
    %v3563 = vmul.f32 %v2659, %v244
    %v3564 = vadd.f32 %v3540, %v3560
    %v3565 = vadd.f32 %v3541, %v3561
    %v3566 = vadd.f32 %v3542, %v3562
    %v3567 = vadd.f32 %v3543, %v3563
    %v3568 = vmul.f32 %v2688, %v262
    %v3569 = vmul.f32 %v2689, %v262
    %v3570 = vmul.f32 %v2690, %v262
    %v3571 = vmul.f32 %v2691, %v262
    %v3572 = vadd.f32 %v3548, %v3568
    %v3573 = vadd.f32 %v3549, %v3569
    %v3574 = vadd.f32 %v3550, %v3570
    %v3575 = vadd.f32 %v3551, %v3571
    %v3576 = vmul.f32 %v2688, %v271
    %v3577 = vmul.f32 %v2689, %v271
    %v3578 = vmul.f32 %v2690, %v271
    %v3579 = vmul.f32 %v2691, %v271
    %v3580 = vadd.f32 %v3556, %v3576
    %v3581 = vadd.f32 %v3557, %v3577
    %v3582 = vadd.f32 %v3558, %v3578
    %v3583 = vadd.f32 %v3559, %v3579
    %v3584 = vmul.f32 %v2688, %v280
    %v3585 = vmul.f32 %v2689, %v280
    %v3586 = vmul.f32 %v2690, %v280
    %v3587 = vmul.f32 %v2691, %v280
    %v3588 = vadd.f32 %v3564, %v3584
    %v3589 = vadd.f32 %v3565, %v3585
    %v3590 = vadd.f32 %v3566, %v3586
    %v3591 = vadd.f32 %v3567, %v3587
    %v3592 = vmul.f32 %v2928, %v298
    %v3593 = vmul.f32 %v2929, %v298
    %v3594 = vmul.f32 %v2930, %v298
    %v3595 = vmul.f32 %v2931, %v298
    %v3596 = vadd.f32 %v3572, %v3592
    %v3597 = vadd.f32 %v3573, %v3593
    %v3598 = vadd.f32 %v3574, %v3594
    %v3599 = vadd.f32 %v3575, %v3595
    %v3600 = vmul.f32 %v2928, %v307
    %v3601 = vmul.f32 %v2929, %v307
    %v3602 = vmul.f32 %v2930, %v307
    %v3603 = vmul.f32 %v2931, %v307
    %v3604 = vadd.f32 %v3580, %v3600
    %v3605 = vadd.f32 %v3581, %v3601
    %v3606 = vadd.f32 %v3582, %v3602
    %v3607 = vadd.f32 %v3583, %v3603
    %v3608 = vmul.f32 %v2928, %v316
    %v3609 = vmul.f32 %v2929, %v316
    %v3610 = vmul.f32 %v2930, %v316
    %v3611 = vmul.f32 %v2931, %v316
    %v3612 = vadd.f32 %v3588, %v3608
    %v3613 = vadd.f32 %v3589, %v3609
    %v3614 = vadd.f32 %v3590, %v3610
    %v3615 = vadd.f32 %v3591, %v3611
    %v3616 = vmul.f32 %v3400, %v334
    %v3617 = vmul.f32 %v3401, %v334
    %v3618 = vmul.f32 %v3402, %v334
    %v3619 = vmul.f32 %v3403, %v334
    %v3620 = vadd.f32 %v3596, %v3616
    %v3621 = vadd.f32 %v3597, %v3617
    %v3622 = vadd.f32 %v3598, %v3618
    %v3623 = vadd.f32 %v3599, %v3619
    %v3624 = vmul.f32 %v3400, %v343
    %v3625 = vmul.f32 %v3401, %v343
    %v3626 = vmul.f32 %v3402, %v343
    %v3627 = vmul.f32 %v3403, %v343
    %v3628 = vadd.f32 %v3604, %v3624
    %v3629 = vadd.f32 %v3605, %v3625
    %v3630 = vadd.f32 %v3606, %v3626
    %v3631 = vadd.f32 %v3607, %v3627
    %v3632 = vmul.f32 %v3400, %v352
    %v3633 = vmul.f32 %v3401, %v352
    %v3634 = vmul.f32 %v3402, %v352
    %v3635 = vmul.f32 %v3403, %v352
    %v3636 = vadd.f32 %v3612, %v3632
    %v3637 = vadd.f32 %v3613, %v3633
    %v3638 = vadd.f32 %v3614, %v3634
    %v3639 = vadd.f32 %v3615, %v3635
    %v3640 = vmul.f32 %v3432, %v370
    %v3641 = vmul.f32 %v3433, %v370
    %v3642 = vmul.f32 %v3434, %v370
    %v3643 = vmul.f32 %v3435, %v370
    %v3644 = vadd.f32 %v3620, %v3640
    %v3645 = vadd.f32 %v3621, %v3641
    %v3646 = vadd.f32 %v3622, %v3642
    %v3647 = vadd.f32 %v3623, %v3643
    %v3648 = vmul.f32 %v3432, %v379
    %v3649 = vmul.f32 %v3433, %v379
    %v3650 = vmul.f32 %v3434, %v379
    %v3651 = vmul.f32 %v3435, %v379
    %v3652 = vadd.f32 %v3628, %v3648
    %v3653 = vadd.f32 %v3629, %v3649
    %v3654 = vadd.f32 %v3630, %v3650
    %v3655 = vadd.f32 %v3631, %v3651
    %v3656 = vmul.f32 %v3432, %v388
    %v3657 = vmul.f32 %v3433, %v388
    %v3658 = vmul.f32 %v3434, %v388
    %v3659 = vmul.f32 %v3435, %v388
    %v3660 = vadd.f32 %v3636, %v3656
    %v3661 = vadd.f32 %v3637, %v3657
    %v3662 = vadd.f32 %v3638, %v3658
    %v3663 = vadd.f32 %v3639, %v3659
    %v3664 = vld [vmem:[%s1390 + $0x10] sm:$0xf]
    %v3665 = vld [vmem:[%s1390 + $0x14] sm:$0xf]
    %v3666 = vld [vmem:[%s1390 + $0x18] sm:$0xf]
    %v3667 = vld [vmem:[%s1390 + $0x1c] sm:$0xf]
    %v3668 = vunpack.c.l.bf16 %v3664
    %v3669 = vunpack.c.l.bf16 %v3665
    %v3670 = vunpack.c.l.bf16 %v3666
    %v3671 = vunpack.c.l.bf16 %v3667
    %v3672 = vmul.f32 %v3668, %v406
    %v3673 = vmul.f32 %v3669, %v406
    %v3674 = vmul.f32 %v3670, %v406
    %v3675 = vmul.f32 %v3671, %v406
    %v3676 = vadd.f32 %v3644, %v3672
    %v3677 = vadd.f32 %v3645, %v3673
    %v3678 = vadd.f32 %v3646, %v3674
    %v3679 = vadd.f32 %v3647, %v3675
    %v3680 = vmul.f32 %v3668, %v415
    %v3681 = vmul.f32 %v3669, %v415
    %v3682 = vmul.f32 %v3670, %v415
    %v3683 = vmul.f32 %v3671, %v415
    %v3684 = vadd.f32 %v3652, %v3680
    %v3685 = vadd.f32 %v3653, %v3681
    %v3686 = vadd.f32 %v3654, %v3682
    %v3687 = vadd.f32 %v3655, %v3683
    %v3688 = vmul.f32 %v3668, %v424
    %v3689 = vmul.f32 %v3669, %v424
    %v3690 = vmul.f32 %v3670, %v424
    %v3691 = vmul.f32 %v3671, %v424
    %v3692 = vadd.f32 %v3660, %v3688
    %v3693 = vadd.f32 %v3661, %v3689
    %v3694 = vadd.f32 %v3662, %v3690
    %v3695 = vadd.f32 %v3663, %v3691
    %v3696 = vmax.f32 %v3460, %v3676
    %v3697 = vmax.f32 %v3461, %v3677
    %v3698 = vmax.f32 %v3462, %v3678
    %v3699 = vmax.f32 %v3463, %v3679
    %v3700 = vmax.f32 %v3464, %v3684
    %v3701 = vmax.f32 %v3465, %v3685
    %v3702 = vmax.f32 %v3466, %v3686
    %v3703 = vmax.f32 %v3467, %v3687
    %v3704 = vmax.f32 %v3468, %v3692
    %v3705 = vmax.f32 %v3469, %v3693
    %v3706 = vmax.f32 %v3470, %v3694
    %v3707 = vmax.f32 %v3471, %v3695
    %v3708 = vmul.f32 %v2592, %v118
    %v3709 = vmul.f32 %v2593, %v118
    %v3710 = vmul.f32 %v2594, %v118
    %v3711 = vmul.f32 %v2595, %v118
    %v3712 = vadd.f32 %v3708, 0.0
    %v3713 = vadd.f32 %v3709, 0.0
    %v3714 = vadd.f32 %v3710, 0.0
    %v3715 = vadd.f32 %v3711, 0.0
    %v3716 = vmul.f32 %v2592, %v127
    %v3717 = vmul.f32 %v2593, %v127
    %v3718 = vmul.f32 %v2594, %v127
    %v3719 = vmul.f32 %v2595, %v127
    %v3720 = vadd.f32 %v3716, 0.0
    %v3721 = vadd.f32 %v3717, 0.0
    %v3722 = vadd.f32 %v3718, 0.0
    %v3723 = vadd.f32 %v3719, 0.0
    %v3724 = vmul.f32 %v2592, %v136
    %v3725 = vmul.f32 %v2593, %v136
    %v3726 = vmul.f32 %v2594, %v136
    %v3727 = vmul.f32 %v2595, %v136
    %v3728 = vadd.f32 %v3724, 0.0
    %v3729 = vadd.f32 %v3725, 0.0
    %v3730 = vadd.f32 %v3726, 0.0
    %v3731 = vadd.f32 %v3727, 0.0
    %v3732 = vmul.f32 %v2848, %v154
    %v3733 = vmul.f32 %v2849, %v154
    %v3734 = vmul.f32 %v2850, %v154
    %v3735 = vmul.f32 %v2851, %v154
    %v3736 = vadd.f32 %v3712, %v3732
    %v3737 = vadd.f32 %v3713, %v3733
    %v3738 = vadd.f32 %v3714, %v3734
    %v3739 = vadd.f32 %v3715, %v3735
    %v3740 = vmul.f32 %v2848, %v163
    %v3741 = vmul.f32 %v2849, %v163
    %v3742 = vmul.f32 %v2850, %v163
    %v3743 = vmul.f32 %v2851, %v163
    %v3744 = vadd.f32 %v3720, %v3740
    %v3745 = vadd.f32 %v3721, %v3741
    %v3746 = vadd.f32 %v3722, %v3742
    %v3747 = vadd.f32 %v3723, %v3743
    %v3748 = vmul.f32 %v2848, %v172
    %v3749 = vmul.f32 %v2849, %v172
    %v3750 = vmul.f32 %v2850, %v172
    %v3751 = vmul.f32 %v2851, %v172
    %v3752 = vadd.f32 %v3728, %v3748
    %v3753 = vadd.f32 %v3729, %v3749
    %v3754 = vadd.f32 %v3730, %v3750
    %v3755 = vadd.f32 %v3731, %v3751
    %v3756 = vmul.f32 %v3100, %v190
    %v3757 = vmul.f32 %v3101, %v190
    %v3758 = vmul.f32 %v3102, %v190
    %v3759 = vmul.f32 %v3103, %v190
    %v3760 = vadd.f32 %v3736, %v3756
    %v3761 = vadd.f32 %v3737, %v3757
    %v3762 = vadd.f32 %v3738, %v3758
    %v3763 = vadd.f32 %v3739, %v3759
    %v3764 = vmul.f32 %v3100, %v199
    %v3765 = vmul.f32 %v3101, %v199
    %v3766 = vmul.f32 %v3102, %v199
    %v3767 = vmul.f32 %v3103, %v199
    %v3768 = vadd.f32 %v3744, %v3764
    %v3769 = vadd.f32 %v3745, %v3765
    %v3770 = vadd.f32 %v3746, %v3766
    %v3771 = vadd.f32 %v3747, %v3767
    %v3772 = vmul.f32 %v3100, %v208
    %v3773 = vmul.f32 %v3101, %v208
    %v3774 = vmul.f32 %v3102, %v208
    %v3775 = vmul.f32 %v3103, %v208
    %v3776 = vadd.f32 %v3752, %v3772
    %v3777 = vadd.f32 %v3753, %v3773
    %v3778 = vadd.f32 %v3754, %v3774
    %v3779 = vadd.f32 %v3755, %v3775
    %v3780 = vmul.f32 %v2688, %v226
    %v3781 = vmul.f32 %v2689, %v226
    %v3782 = vmul.f32 %v2690, %v226
    %v3783 = vmul.f32 %v2691, %v226
    %v3784 = vadd.f32 %v3760, %v3780
    %v3785 = vadd.f32 %v3761, %v3781
    %v3786 = vadd.f32 %v3762, %v3782
    %v3787 = vadd.f32 %v3763, %v3783
    %v3788 = vmul.f32 %v2688, %v235
    %v3789 = vmul.f32 %v2689, %v235
    %v3790 = vmul.f32 %v2690, %v235
    %v3791 = vmul.f32 %v2691, %v235
    %v3792 = vadd.f32 %v3768, %v3788
    %v3793 = vadd.f32 %v3769, %v3789
    %v3794 = vadd.f32 %v3770, %v3790
    %v3795 = vadd.f32 %v3771, %v3791
    %v3796 = vmul.f32 %v2688, %v244
    %v3797 = vmul.f32 %v2689, %v244
    %v3798 = vmul.f32 %v2690, %v244
    %v3799 = vmul.f32 %v2691, %v244
    %v3800 = vadd.f32 %v3776, %v3796
    %v3801 = vadd.f32 %v3777, %v3797
    %v3802 = vadd.f32 %v3778, %v3798
    %v3803 = vadd.f32 %v3779, %v3799
    %v3804 = vmul.f32 %v2928, %v262
    %v3805 = vmul.f32 %v2929, %v262
    %v3806 = vmul.f32 %v2930, %v262
    %v3807 = vmul.f32 %v2931, %v262
    %v3808 = vadd.f32 %v3784, %v3804
    %v3809 = vadd.f32 %v3785, %v3805
    %v3810 = vadd.f32 %v3786, %v3806
    %v3811 = vadd.f32 %v3787, %v3807
    %v3812 = vmul.f32 %v2928, %v271
    %v3813 = vmul.f32 %v2929, %v271
    %v3814 = vmul.f32 %v2930, %v271
    %v3815 = vmul.f32 %v2931, %v271
    %v3816 = vadd.f32 %v3792, %v3812
    %v3817 = vadd.f32 %v3793, %v3813
    %v3818 = vadd.f32 %v3794, %v3814
    %v3819 = vadd.f32 %v3795, %v3815
    %v3820 = vmul.f32 %v2928, %v280
    %v3821 = vmul.f32 %v2929, %v280
    %v3822 = vmul.f32 %v2930, %v280
    %v3823 = vmul.f32 %v2931, %v280
    %v3824 = vadd.f32 %v3800, %v3820
    %v3825 = vadd.f32 %v3801, %v3821
    %v3826 = vadd.f32 %v3802, %v3822
    %v3827 = vadd.f32 %v3803, %v3823
    %v3828 = vmul.f32 %v3180, %v298
    %v3829 = vmul.f32 %v3181, %v298
    %v3830 = vmul.f32 %v3182, %v298
    %v3831 = vmul.f32 %v3183, %v298
    %v3832 = vadd.f32 %v3808, %v3828
    %v3833 = vadd.f32 %v3809, %v3829
    %v3834 = vadd.f32 %v3810, %v3830
    %v3835 = vadd.f32 %v3811, %v3831
    %v3836 = vmul.f32 %v3180, %v307
    %v3837 = vmul.f32 %v3181, %v307
    %v3838 = vmul.f32 %v3182, %v307
    %v3839 = vmul.f32 %v3183, %v307
    %v3840 = vadd.f32 %v3816, %v3836
    %v3841 = vadd.f32 %v3817, %v3837
    %v3842 = vadd.f32 %v3818, %v3838
    %v3843 = vadd.f32 %v3819, %v3839
    %v3844 = vmul.f32 %v3180, %v316
    %v3845 = vmul.f32 %v3181, %v316
    %v3846 = vmul.f32 %v3182, %v316
    %v3847 = vmul.f32 %v3183, %v316
    %v3848 = vadd.f32 %v3824, %v3844
    %v3849 = vadd.f32 %v3825, %v3845
    %v3850 = vadd.f32 %v3826, %v3846
    %v3851 = vadd.f32 %v3827, %v3847
    %v3852 = vmul.f32 %v3432, %v334
    %v3853 = vmul.f32 %v3433, %v334
    %v3854 = vmul.f32 %v3434, %v334
    %v3855 = vmul.f32 %v3435, %v334
    %v3856 = vadd.f32 %v3832, %v3852
    %v3857 = vadd.f32 %v3833, %v3853
    %v3858 = vadd.f32 %v3834, %v3854
    %v3859 = vadd.f32 %v3835, %v3855
    %v3860 = vmul.f32 %v3432, %v343
    %v3861 = vmul.f32 %v3433, %v343
    %v3862 = vmul.f32 %v3434, %v343
    %v3863 = vmul.f32 %v3435, %v343
    %v3864 = vadd.f32 %v3840, %v3860
    %v3865 = vadd.f32 %v3841, %v3861
    %v3866 = vadd.f32 %v3842, %v3862
    %v3867 = vadd.f32 %v3843, %v3863
    %v3868 = vmul.f32 %v3432, %v352
    %v3869 = vmul.f32 %v3433, %v352
    %v3870 = vmul.f32 %v3434, %v352
    %v3871 = vmul.f32 %v3435, %v352
    %v3872 = vadd.f32 %v3848, %v3868
    %v3873 = vadd.f32 %v3849, %v3869
    %v3874 = vadd.f32 %v3850, %v3870
    %v3875 = vadd.f32 %v3851, %v3871
    %v3876 = vmul.f32 %v3668, %v370
    %v3877 = vmul.f32 %v3669, %v370
    %v3878 = vmul.f32 %v3670, %v370
    %v3879 = vmul.f32 %v3671, %v370
    %v3880 = vadd.f32 %v3856, %v3876
    %v3881 = vadd.f32 %v3857, %v3877
    %v3882 = vadd.f32 %v3858, %v3878
    %v3883 = vadd.f32 %v3859, %v3879
    %v3884 = vmul.f32 %v3668, %v379
    %v3885 = vmul.f32 %v3669, %v379
    %v3886 = vmul.f32 %v3670, %v379
    %v3887 = vmul.f32 %v3671, %v379
    %v3888 = vadd.f32 %v3864, %v3884
    %v3889 = vadd.f32 %v3865, %v3885
    %v3890 = vadd.f32 %v3866, %v3886
    %v3891 = vadd.f32 %v3867, %v3887
    %v3892 = vmul.f32 %v3668, %v388
    %v3893 = vmul.f32 %v3669, %v388
    %v3894 = vmul.f32 %v3670, %v388
    %v3895 = vmul.f32 %v3671, %v388
    %v3896 = vadd.f32 %v3872, %v3892
    %v3897 = vadd.f32 %v3873, %v3893
    %v3898 = vadd.f32 %v3874, %v3894
    %v3899 = vadd.f32 %v3875, %v3895
    %v3900 = vld [vmem:[%s1627 + $0x10] sm:$0xf]
    %v3901 = vld [vmem:[%s1627 + $0x14] sm:$0xf]
    %v3902 = vld [vmem:[%s1627 + $0x18] sm:$0xf]
    %v3903 = vld [vmem:[%s1627 + $0x1c] sm:$0xf]
    %v3904 = vunpack.c.l.bf16 %v3900
    %v3905 = vunpack.c.l.bf16 %v3901
    %v3906 = vunpack.c.l.bf16 %v3902
    %v3907 = vunpack.c.l.bf16 %v3903
    %v3908 = vmul.f32 %v3904, %v406
    %v3909 = vmul.f32 %v3905, %v406
    %v3910 = vmul.f32 %v3906, %v406
    %v3911 = vmul.f32 %v3907, %v406
    %v3912 = vadd.f32 %v3880, %v3908
    %v3913 = vadd.f32 %v3881, %v3909
    %v3914 = vadd.f32 %v3882, %v3910
    %v3915 = vadd.f32 %v3883, %v3911
    %v3916 = vmul.f32 %v3904, %v415
    %v3917 = vmul.f32 %v3905, %v415
    %v3918 = vmul.f32 %v3906, %v415
    %v3919 = vmul.f32 %v3907, %v415
    %v3920 = vadd.f32 %v3888, %v3916
    %v3921 = vadd.f32 %v3889, %v3917
    %v3922 = vadd.f32 %v3890, %v3918
    %v3923 = vadd.f32 %v3891, %v3919
    %v3924 = vmul.f32 %v3904, %v424
    %v3925 = vmul.f32 %v3905, %v424
    %v3926 = vmul.f32 %v3906, %v424
    %v3927 = vmul.f32 %v3907, %v424
    %v3928 = vadd.f32 %v3896, %v3924
    %v3929 = vadd.f32 %v3897, %v3925
    %v3930 = vadd.f32 %v3898, %v3926
    %v3931 = vadd.f32 %v3899, %v3927
    %v3932 = vmax.f32 %v3696, %v3912
    %v3933 = vmax.f32 %v3697, %v3913
    %v3934 = vmax.f32 %v3698, %v3914
    %v3935 = vmax.f32 %v3699, %v3915
    %v3936 = vmax.f32 %v3700, %v3920
    %v3937 = vmax.f32 %v3701, %v3921
    %v3938 = vmax.f32 %v3702, %v3922
    %v3939 = vmax.f32 %v3703, %v3923
    %v3940 = vmax.f32 %v3704, %v3928
    %v3941 = vmax.f32 %v3705, %v3929
    %v3942 = vmax.f32 %v3706, %v3930
    %v3943 = vmax.f32 %v3707, %v3931
    %v3944 = vmul.f32 %v2624, %v118
    %v3945 = vmul.f32 %v2625, %v118
    %v3946 = vmul.f32 %v2626, %v118
    %v3947 = vmul.f32 %v2627, %v118
    %v3948 = vadd.f32 %v3944, 0.0
    %v3949 = vadd.f32 %v3945, 0.0
    %v3950 = vadd.f32 %v3946, 0.0
    %v3951 = vadd.f32 %v3947, 0.0
    %v3952 = vmul.f32 %v2624, %v127
    %v3953 = vmul.f32 %v2625, %v127
    %v3954 = vmul.f32 %v2626, %v127
    %v3955 = vmul.f32 %v2627, %v127
    %v3956 = vadd.f32 %v3952, 0.0
    %v3957 = vadd.f32 %v3953, 0.0
    %v3958 = vadd.f32 %v3954, 0.0
    %v3959 = vadd.f32 %v3955, 0.0
    %v3960 = vmul.f32 %v2624, %v136
    %v3961 = vmul.f32 %v2625, %v136
    %v3962 = vmul.f32 %v2626, %v136
    %v3963 = vmul.f32 %v2627, %v136
    %v3964 = vadd.f32 %v3960, 0.0
    %v3965 = vadd.f32 %v3961, 0.0
    %v3966 = vadd.f32 %v3962, 0.0
    %v3967 = vadd.f32 %v3963, 0.0
    %v3968 = vmul.f32 %v2656, %v154
    %v3969 = vmul.f32 %v2657, %v154
    %v3970 = vmul.f32 %v2658, %v154
    %v3971 = vmul.f32 %v2659, %v154
    %v3972 = vadd.f32 %v3948, %v3968
    %v3973 = vadd.f32 %v3949, %v3969
    %v3974 = vadd.f32 %v3950, %v3970
    %v3975 = vadd.f32 %v3951, %v3971
    %v3976 = vmul.f32 %v2656, %v163
    %v3977 = vmul.f32 %v2657, %v163
    %v3978 = vmul.f32 %v2658, %v163
    %v3979 = vmul.f32 %v2659, %v163
    %v3980 = vadd.f32 %v3956, %v3976
    %v3981 = vadd.f32 %v3957, %v3977
    %v3982 = vadd.f32 %v3958, %v3978
    %v3983 = vadd.f32 %v3959, %v3979
    %v3984 = vmul.f32 %v2656, %v172
    %v3985 = vmul.f32 %v2657, %v172
    %v3986 = vmul.f32 %v2658, %v172
    %v3987 = vmul.f32 %v2659, %v172
    %v3988 = vadd.f32 %v3964, %v3984
    %v3989 = vadd.f32 %v3965, %v3985
    %v3990 = vadd.f32 %v3966, %v3986
    %v3991 = vadd.f32 %v3967, %v3987
    %v3992 = vmul.f32 %v2688, %v190
    %v3993 = vmul.f32 %v2689, %v190
    %v3994 = vmul.f32 %v2690, %v190
    %v3995 = vmul.f32 %v2691, %v190
    %v3996 = vadd.f32 %v3972, %v3992
    %v3997 = vadd.f32 %v3973, %v3993
    %v3998 = vadd.f32 %v3974, %v3994
    %v3999 = vadd.f32 %v3975, %v3995
    %v4000 = vmul.f32 %v2688, %v199
    %v4001 = vmul.f32 %v2689, %v199
    %v4002 = vmul.f32 %v2690, %v199
    %v4003 = vmul.f32 %v2691, %v199
    %v4004 = vadd.f32 %v3980, %v4000
    %v4005 = vadd.f32 %v3981, %v4001
    %v4006 = vadd.f32 %v3982, %v4002
    %v4007 = vadd.f32 %v3983, %v4003
    %v4008 = vmul.f32 %v2688, %v208
    %v4009 = vmul.f32 %v2689, %v208
    %v4010 = vmul.f32 %v2690, %v208
    %v4011 = vmul.f32 %v2691, %v208
    %v4012 = vadd.f32 %v3988, %v4008
    %v4013 = vadd.f32 %v3989, %v4009
    %v4014 = vadd.f32 %v3990, %v4010
    %v4015 = vadd.f32 %v3991, %v4011
    %v4016 = vmul.f32 %v3368, %v226
    %v4017 = vmul.f32 %v3369, %v226
    %v4018 = vmul.f32 %v3370, %v226
    %v4019 = vmul.f32 %v3371, %v226
    %v4020 = vadd.f32 %v3996, %v4016
    %v4021 = vadd.f32 %v3997, %v4017
    %v4022 = vadd.f32 %v3998, %v4018
    %v4023 = vadd.f32 %v3999, %v4019
    %v4024 = vmul.f32 %v3368, %v235
    %v4025 = vmul.f32 %v3369, %v235
    %v4026 = vmul.f32 %v3370, %v235
    %v4027 = vmul.f32 %v3371, %v235
    %v4028 = vadd.f32 %v4004, %v4024
    %v4029 = vadd.f32 %v4005, %v4025
    %v4030 = vadd.f32 %v4006, %v4026
    %v4031 = vadd.f32 %v4007, %v4027
    %v4032 = vmul.f32 %v3368, %v244
    %v4033 = vmul.f32 %v3369, %v244
    %v4034 = vmul.f32 %v3370, %v244
    %v4035 = vmul.f32 %v3371, %v244
    %v4036 = vadd.f32 %v4012, %v4032
    %v4037 = vadd.f32 %v4013, %v4033
    %v4038 = vadd.f32 %v4014, %v4034
    %v4039 = vadd.f32 %v4015, %v4035
    %v4040 = vmul.f32 %v3400, %v262
    %v4041 = vmul.f32 %v3401, %v262
    %v4042 = vmul.f32 %v3402, %v262
    %v4043 = vmul.f32 %v3403, %v262
    %v4044 = vadd.f32 %v4020, %v4040
    %v4045 = vadd.f32 %v4021, %v4041
    %v4046 = vadd.f32 %v4022, %v4042
    %v4047 = vadd.f32 %v4023, %v4043
    %v4048 = vmul.f32 %v3400, %v271
    %v4049 = vmul.f32 %v3401, %v271
    %v4050 = vmul.f32 %v3402, %v271
    %v4051 = vmul.f32 %v3403, %v271
    %v4052 = vadd.f32 %v4028, %v4048
    %v4053 = vadd.f32 %v4029, %v4049
    %v4054 = vadd.f32 %v4030, %v4050
    %v4055 = vadd.f32 %v4031, %v4051
    %v4056 = vmul.f32 %v3400, %v280
    %v4057 = vmul.f32 %v3401, %v280
    %v4058 = vmul.f32 %v3402, %v280
    %v4059 = vmul.f32 %v3403, %v280
    %v4060 = vadd.f32 %v4036, %v4056
    %v4061 = vadd.f32 %v4037, %v4057
    %v4062 = vadd.f32 %v4038, %v4058
    %v4063 = vadd.f32 %v4039, %v4059
    %v4064 = vmul.f32 %v3432, %v298
    %v4065 = vmul.f32 %v3433, %v298
    %v4066 = vmul.f32 %v3434, %v298
    %v4067 = vmul.f32 %v3435, %v298
    %v4068 = vadd.f32 %v4044, %v4064
    %v4069 = vadd.f32 %v4045, %v4065
    %v4070 = vadd.f32 %v4046, %v4066
    %v4071 = vadd.f32 %v4047, %v4067
    %v4072 = vmul.f32 %v3432, %v307
    %v4073 = vmul.f32 %v3433, %v307
    %v4074 = vmul.f32 %v3434, %v307
    %v4075 = vmul.f32 %v3435, %v307
    %v4076 = vadd.f32 %v4052, %v4072
    %v4077 = vadd.f32 %v4053, %v4073
    %v4078 = vadd.f32 %v4054, %v4074
    %v4079 = vadd.f32 %v4055, %v4075
    %v4080 = vmul.f32 %v3432, %v316
    %v4081 = vmul.f32 %v3433, %v316
    %v4082 = vmul.f32 %v3434, %v316
    %v4083 = vmul.f32 %v3435, %v316
    %v4084 = vadd.f32 %v4060, %v4080
    %v4085 = vadd.f32 %v4061, %v4081
    %v4086 = vadd.f32 %v4062, %v4082
    %v4087 = vadd.f32 %v4063, %v4083
    %v4088 = vld [vmem:[%s1816 + $0x10] sm:$0xf]
    %v4089 = vld [vmem:[%s1816 + $0x14] sm:$0xf]
    %v4090 = vld [vmem:[%s1816 + $0x18] sm:$0xf]
    %v4091 = vld [vmem:[%s1816 + $0x1c] sm:$0xf]
    %v4092 = vunpack.c.l.bf16 %v4088
    %v4093 = vunpack.c.l.bf16 %v4089
    %v4094 = vunpack.c.l.bf16 %v4090
    %v4095 = vunpack.c.l.bf16 %v4091
    %v4096 = vmul.f32 %v4092, %v334
    %v4097 = vmul.f32 %v4093, %v334
    %v4098 = vmul.f32 %v4094, %v334
    %v4099 = vmul.f32 %v4095, %v334
    %v4100 = vadd.f32 %v4068, %v4096
    %v4101 = vadd.f32 %v4069, %v4097
    %v4102 = vadd.f32 %v4070, %v4098
    %v4103 = vadd.f32 %v4071, %v4099
    %v4104 = vmul.f32 %v4092, %v343
    %v4105 = vmul.f32 %v4093, %v343
    %v4106 = vmul.f32 %v4094, %v343
    %v4107 = vmul.f32 %v4095, %v343
    %v4108 = vadd.f32 %v4076, %v4104
    %v4109 = vadd.f32 %v4077, %v4105
    %v4110 = vadd.f32 %v4078, %v4106
    %v4111 = vadd.f32 %v4079, %v4107
    %v4112 = vmul.f32 %v4092, %v352
    %v4113 = vmul.f32 %v4093, %v352
    %v4114 = vmul.f32 %v4094, %v352
    %v4115 = vmul.f32 %v4095, %v352
    %v4116 = vadd.f32 %v4084, %v4112
    %v4117 = vadd.f32 %v4085, %v4113
    %v4118 = vadd.f32 %v4086, %v4114
    %v4119 = vadd.f32 %v4087, %v4115
    %v4120 = vld [vmem:[%s1849 + $0x10] sm:$0xf]
    %v4121 = vld [vmem:[%s1849 + $0x14] sm:$0xf]
    %v4122 = vld [vmem:[%s1849 + $0x18] sm:$0xf]
    %v4123 = vld [vmem:[%s1849 + $0x1c] sm:$0xf]
    %v4124 = vunpack.c.l.bf16 %v4120
    %v4125 = vunpack.c.l.bf16 %v4121
    %v4126 = vunpack.c.l.bf16 %v4122
    %v4127 = vunpack.c.l.bf16 %v4123
    %v4128 = vmul.f32 %v4124, %v370
    %v4129 = vmul.f32 %v4125, %v370
    %v4130 = vmul.f32 %v4126, %v370
    %v4131 = vmul.f32 %v4127, %v370
    %v4132 = vadd.f32 %v4100, %v4128
    %v4133 = vadd.f32 %v4101, %v4129
    %v4134 = vadd.f32 %v4102, %v4130
    %v4135 = vadd.f32 %v4103, %v4131
    %v4136 = vmul.f32 %v4124, %v379
    %v4137 = vmul.f32 %v4125, %v379
    %v4138 = vmul.f32 %v4126, %v379
    %v4139 = vmul.f32 %v4127, %v379
    %v4140 = vadd.f32 %v4108, %v4136
    %v4141 = vadd.f32 %v4109, %v4137
    %v4142 = vadd.f32 %v4110, %v4138
    %v4143 = vadd.f32 %v4111, %v4139
    %v4144 = vmul.f32 %v4124, %v388
    %v4145 = vmul.f32 %v4125, %v388
    %v4146 = vmul.f32 %v4126, %v388
    %v4147 = vmul.f32 %v4127, %v388
    %v4148 = vadd.f32 %v4116, %v4144
    %v4149 = vadd.f32 %v4117, %v4145
    %v4150 = vadd.f32 %v4118, %v4146
    %v4151 = vadd.f32 %v4119, %v4147
    %v4152 = vld [vmem:[%s1882 + $0x10] sm:$0xf]
    %v4153 = vld [vmem:[%s1882 + $0x14] sm:$0xf]
    %v4154 = vld [vmem:[%s1882 + $0x18] sm:$0xf]
    %v4155 = vld [vmem:[%s1882 + $0x1c] sm:$0xf]
    %v4156 = vunpack.c.l.bf16 %v4152
    %v4157 = vunpack.c.l.bf16 %v4153
    %v4158 = vunpack.c.l.bf16 %v4154
    %v4159 = vunpack.c.l.bf16 %v4155
    %v4160 = vmul.f32 %v4156, %v406
    %v4161 = vmul.f32 %v4157, %v406
    %v4162 = vmul.f32 %v4158, %v406
    %v4163 = vmul.f32 %v4159, %v406
    %v4164 = vadd.f32 %v4132, %v4160
    %v4165 = vadd.f32 %v4133, %v4161
    %v4166 = vadd.f32 %v4134, %v4162
    %v4167 = vadd.f32 %v4135, %v4163
    %v4168 = vmul.f32 %v4156, %v415
    %v4169 = vmul.f32 %v4157, %v415
    %v4170 = vmul.f32 %v4158, %v415
    %v4171 = vmul.f32 %v4159, %v415
    %v4172 = vadd.f32 %v4140, %v4168
    %v4173 = vadd.f32 %v4141, %v4169
    %v4174 = vadd.f32 %v4142, %v4170
    %v4175 = vadd.f32 %v4143, %v4171
    %v4176 = vmul.f32 %v4156, %v424
    %v4177 = vmul.f32 %v4157, %v424
    %v4178 = vmul.f32 %v4158, %v424
    %v4179 = vmul.f32 %v4159, %v424
    %v4180 = vadd.f32 %v4148, %v4176
    %v4181 = vadd.f32 %v4149, %v4177
    %v4182 = vadd.f32 %v4150, %v4178
    %v4183 = vadd.f32 %v4151, %v4179
    %v4184 = vmax.f32 %v3932, %v4164
    %v4185 = vmax.f32 %v3933, %v4165
    %v4186 = vmax.f32 %v3934, %v4166
    %v4187 = vmax.f32 %v3935, %v4167
    %v4188 = vmax.f32 %v3936, %v4172
    %v4189 = vmax.f32 %v3937, %v4173
    %v4190 = vmax.f32 %v3938, %v4174
    %v4191 = vmax.f32 %v3939, %v4175
    %v4192 = vmax.f32 %v3940, %v4180
    %v4193 = vmax.f32 %v3941, %v4181
    %v4194 = vmax.f32 %v3942, %v4182
    %v4195 = vmax.f32 %v3943, %v4183
    %v4196 = vmul.f32 %v2656, %v118
    %v4197 = vmul.f32 %v2657, %v118
    %v4198 = vmul.f32 %v2658, %v118
    %v4199 = vmul.f32 %v2659, %v118
    %v4200 = vadd.f32 %v4196, 0.0
    %v4201 = vadd.f32 %v4197, 0.0
    %v4202 = vadd.f32 %v4198, 0.0
    %v4203 = vadd.f32 %v4199, 0.0
    %v4204 = vmul.f32 %v2656, %v127
    %v4205 = vmul.f32 %v2657, %v127
    %v4206 = vmul.f32 %v2658, %v127
    %v4207 = vmul.f32 %v2659, %v127
    %v4208 = vadd.f32 %v4204, 0.0
    %v4209 = vadd.f32 %v4205, 0.0
    %v4210 = vadd.f32 %v4206, 0.0
    %v4211 = vadd.f32 %v4207, 0.0
    %v4212 = vmul.f32 %v2656, %v136
    %v4213 = vmul.f32 %v2657, %v136
    %v4214 = vmul.f32 %v2658, %v136
    %v4215 = vmul.f32 %v2659, %v136
    %v4216 = vadd.f32 %v4212, 0.0
    %v4217 = vadd.f32 %v4213, 0.0
    %v4218 = vadd.f32 %v4214, 0.0
    %v4219 = vadd.f32 %v4215, 0.0
    %v4220 = vmul.f32 %v2688, %v154
    %v4221 = vmul.f32 %v2689, %v154
    %v4222 = vmul.f32 %v2690, %v154
    %v4223 = vmul.f32 %v2691, %v154
    %v4224 = vadd.f32 %v4200, %v4220
    %v4225 = vadd.f32 %v4201, %v4221
    %v4226 = vadd.f32 %v4202, %v4222
    %v4227 = vadd.f32 %v4203, %v4223
    %v4228 = vmul.f32 %v2688, %v163
    %v4229 = vmul.f32 %v2689, %v163
    %v4230 = vmul.f32 %v2690, %v163
    %v4231 = vmul.f32 %v2691, %v163
    %v4232 = vadd.f32 %v4208, %v4228
    %v4233 = vadd.f32 %v4209, %v4229
    %v4234 = vadd.f32 %v4210, %v4230
    %v4235 = vadd.f32 %v4211, %v4231
    %v4236 = vmul.f32 %v2688, %v172
    %v4237 = vmul.f32 %v2689, %v172
    %v4238 = vmul.f32 %v2690, %v172
    %v4239 = vmul.f32 %v2691, %v172
    %v4240 = vadd.f32 %v4216, %v4236
    %v4241 = vadd.f32 %v4217, %v4237
    %v4242 = vadd.f32 %v4218, %v4238
    %v4243 = vadd.f32 %v4219, %v4239
    %v4244 = vmul.f32 %v2928, %v190
    %v4245 = vmul.f32 %v2929, %v190
    %v4246 = vmul.f32 %v2930, %v190
    %v4247 = vmul.f32 %v2931, %v190
    %v4248 = vadd.f32 %v4224, %v4244
    %v4249 = vadd.f32 %v4225, %v4245
    %v4250 = vadd.f32 %v4226, %v4246
    %v4251 = vadd.f32 %v4227, %v4247
    %v4252 = vmul.f32 %v2928, %v199
    %v4253 = vmul.f32 %v2929, %v199
    %v4254 = vmul.f32 %v2930, %v199
    %v4255 = vmul.f32 %v2931, %v199
    %v4256 = vadd.f32 %v4232, %v4252
    %v4257 = vadd.f32 %v4233, %v4253
    %v4258 = vadd.f32 %v4234, %v4254
    %v4259 = vadd.f32 %v4235, %v4255
    %v4260 = vmul.f32 %v2928, %v208
    %v4261 = vmul.f32 %v2929, %v208
    %v4262 = vmul.f32 %v2930, %v208
    %v4263 = vmul.f32 %v2931, %v208
    %v4264 = vadd.f32 %v4240, %v4260
    %v4265 = vadd.f32 %v4241, %v4261
    %v4266 = vadd.f32 %v4242, %v4262
    %v4267 = vadd.f32 %v4243, %v4263
    %v4268 = vmul.f32 %v3400, %v226
    %v4269 = vmul.f32 %v3401, %v226
    %v4270 = vmul.f32 %v3402, %v226
    %v4271 = vmul.f32 %v3403, %v226
    %v4272 = vadd.f32 %v4248, %v4268
    %v4273 = vadd.f32 %v4249, %v4269
    %v4274 = vadd.f32 %v4250, %v4270
    %v4275 = vadd.f32 %v4251, %v4271
    %v4276 = vmul.f32 %v3400, %v235
    %v4277 = vmul.f32 %v3401, %v235
    %v4278 = vmul.f32 %v3402, %v235
    %v4279 = vmul.f32 %v3403, %v235
    %v4280 = vadd.f32 %v4256, %v4276
    %v4281 = vadd.f32 %v4257, %v4277
    %v4282 = vadd.f32 %v4258, %v4278
    %v4283 = vadd.f32 %v4259, %v4279
    %v4284 = vmul.f32 %v3400, %v244
    %v4285 = vmul.f32 %v3401, %v244
    %v4286 = vmul.f32 %v3402, %v244
    %v4287 = vmul.f32 %v3403, %v244
    %v4288 = vadd.f32 %v4264, %v4284
    %v4289 = vadd.f32 %v4265, %v4285
    %v4290 = vadd.f32 %v4266, %v4286
    %v4291 = vadd.f32 %v4267, %v4287
    %v4292 = vmul.f32 %v3432, %v262
    %v4293 = vmul.f32 %v3433, %v262
    %v4294 = vmul.f32 %v3434, %v262
    %v4295 = vmul.f32 %v3435, %v262
    %v4296 = vadd.f32 %v4272, %v4292
    %v4297 = vadd.f32 %v4273, %v4293
    %v4298 = vadd.f32 %v4274, %v4294
    %v4299 = vadd.f32 %v4275, %v4295
    %v4300 = vmul.f32 %v3432, %v271
    %v4301 = vmul.f32 %v3433, %v271
    %v4302 = vmul.f32 %v3434, %v271
    %v4303 = vmul.f32 %v3435, %v271
    %v4304 = vadd.f32 %v4280, %v4300
    %v4305 = vadd.f32 %v4281, %v4301
    %v4306 = vadd.f32 %v4282, %v4302
    %v4307 = vadd.f32 %v4283, %v4303
    %v4308 = vmul.f32 %v3432, %v280
    %v4309 = vmul.f32 %v3433, %v280
    %v4310 = vmul.f32 %v3434, %v280
    %v4311 = vmul.f32 %v3435, %v280
    %v4312 = vadd.f32 %v4288, %v4308
    %v4313 = vadd.f32 %v4289, %v4309
    %v4314 = vadd.f32 %v4290, %v4310
    %v4315 = vadd.f32 %v4291, %v4311
    %v4316 = vmul.f32 %v3668, %v298
    %v4317 = vmul.f32 %v3669, %v298
    %v4318 = vmul.f32 %v3670, %v298
    %v4319 = vmul.f32 %v3671, %v298
    %v4320 = vadd.f32 %v4296, %v4316
    %v4321 = vadd.f32 %v4297, %v4317
    %v4322 = vadd.f32 %v4298, %v4318
    %v4323 = vadd.f32 %v4299, %v4319
    %v4324 = vmul.f32 %v3668, %v307
    %v4325 = vmul.f32 %v3669, %v307
    %v4326 = vmul.f32 %v3670, %v307
    %v4327 = vmul.f32 %v3671, %v307
    %v4328 = vadd.f32 %v4304, %v4324
    %v4329 = vadd.f32 %v4305, %v4325
    %v4330 = vadd.f32 %v4306, %v4326
    %v4331 = vadd.f32 %v4307, %v4327
    %v4332 = vmul.f32 %v3668, %v316
    %v4333 = vmul.f32 %v3669, %v316
    %v4334 = vmul.f32 %v3670, %v316
    %v4335 = vmul.f32 %v3671, %v316
    %v4336 = vadd.f32 %v4312, %v4332
    %v4337 = vadd.f32 %v4313, %v4333
    %v4338 = vadd.f32 %v4314, %v4334
    %v4339 = vadd.f32 %v4315, %v4335
    %v4340 = vmul.f32 %v4124, %v334
    %v4341 = vmul.f32 %v4125, %v334
    %v4342 = vmul.f32 %v4126, %v334
    %v4343 = vmul.f32 %v4127, %v334
    %v4344 = vadd.f32 %v4320, %v4340
    %v4345 = vadd.f32 %v4321, %v4341
    %v4346 = vadd.f32 %v4322, %v4342
    %v4347 = vadd.f32 %v4323, %v4343
    %v4348 = vmul.f32 %v4124, %v343
    %v4349 = vmul.f32 %v4125, %v343
    %v4350 = vmul.f32 %v4126, %v343
    %v4351 = vmul.f32 %v4127, %v343
    %v4352 = vadd.f32 %v4328, %v4348
    %v4353 = vadd.f32 %v4329, %v4349
    %v4354 = vadd.f32 %v4330, %v4350
    %v4355 = vadd.f32 %v4331, %v4351
    %v4356 = vmul.f32 %v4124, %v352
    %v4357 = vmul.f32 %v4125, %v352
    %v4358 = vmul.f32 %v4126, %v352
    %v4359 = vmul.f32 %v4127, %v352
    %v4360 = vadd.f32 %v4336, %v4356
    %v4361 = vadd.f32 %v4337, %v4357
    %v4362 = vadd.f32 %v4338, %v4358
    %v4363 = vadd.f32 %v4339, %v4359
    %v4364 = vmul.f32 %v4156, %v370
    %v4365 = vmul.f32 %v4157, %v370
    %v4366 = vmul.f32 %v4158, %v370
    %v4367 = vmul.f32 %v4159, %v370
    %v4368 = vadd.f32 %v4344, %v4364
    %v4369 = vadd.f32 %v4345, %v4365
    %v4370 = vadd.f32 %v4346, %v4366
    %v4371 = vadd.f32 %v4347, %v4367
    %v4372 = vmul.f32 %v4156, %v379
    %v4373 = vmul.f32 %v4157, %v379
    %v4374 = vmul.f32 %v4158, %v379
    %v4375 = vmul.f32 %v4159, %v379
    %v4376 = vadd.f32 %v4352, %v4372
    %v4377 = vadd.f32 %v4353, %v4373
    %v4378 = vadd.f32 %v4354, %v4374
    %v4379 = vadd.f32 %v4355, %v4375
    %v4380 = vmul.f32 %v4156, %v388
    %v4381 = vmul.f32 %v4157, %v388
    %v4382 = vmul.f32 %v4158, %v388
    %v4383 = vmul.f32 %v4159, %v388
    %v4384 = vadd.f32 %v4360, %v4380
    %v4385 = vadd.f32 %v4361, %v4381
    %v4386 = vadd.f32 %v4362, %v4382
    %v4387 = vadd.f32 %v4363, %v4383
    %v4388 = vld [vmem:[%s2119 + $0x10] sm:$0xf]
    %v4389 = vld [vmem:[%s2119 + $0x14] sm:$0xf]
    %v4390 = vld [vmem:[%s2119 + $0x18] sm:$0xf]
    %v4391 = vld [vmem:[%s2119 + $0x1c] sm:$0xf]
    %v4392 = vunpack.c.l.bf16 %v4388
    %v4393 = vunpack.c.l.bf16 %v4389
    %v4394 = vunpack.c.l.bf16 %v4390
    %v4395 = vunpack.c.l.bf16 %v4391
    %v4396 = vmul.f32 %v4392, %v406
    %v4397 = vmul.f32 %v4393, %v406
    %v4398 = vmul.f32 %v4394, %v406
    %v4399 = vmul.f32 %v4395, %v406
    %v4400 = vadd.f32 %v4368, %v4396
    %v4401 = vadd.f32 %v4369, %v4397
    %v4402 = vadd.f32 %v4370, %v4398
    %v4403 = vadd.f32 %v4371, %v4399
    %v4404 = vmul.f32 %v4392, %v415
    %v4405 = vmul.f32 %v4393, %v415
    %v4406 = vmul.f32 %v4394, %v415
    %v4407 = vmul.f32 %v4395, %v415
    %v4408 = vadd.f32 %v4376, %v4404
    %v4409 = vadd.f32 %v4377, %v4405
    %v4410 = vadd.f32 %v4378, %v4406
    %v4411 = vadd.f32 %v4379, %v4407
    %v4412 = vmul.f32 %v4392, %v424
    %v4413 = vmul.f32 %v4393, %v424
    %v4414 = vmul.f32 %v4394, %v424
    %v4415 = vmul.f32 %v4395, %v424
    %v4416 = vadd.f32 %v4384, %v4412
    %v4417 = vadd.f32 %v4385, %v4413
    %v4418 = vadd.f32 %v4386, %v4414
    %v4419 = vadd.f32 %v4387, %v4415
    %v4420 = vmax.f32 %v4184, %v4400
    %v4421 = vmax.f32 %v4185, %v4401
    %v4422 = vmax.f32 %v4186, %v4402
    %v4423 = vmax.f32 %v4187, %v4403
    %v4424 = vmax.f32 %v4188, %v4408
    %v4425 = vmax.f32 %v4189, %v4409
    %v4426 = vmax.f32 %v4190, %v4410
    %v4427 = vmax.f32 %v4191, %v4411
    %v4428 = vmax.f32 %v4192, %v4416
    %v4429 = vmax.f32 %v4193, %v4417
    %v4430 = vmax.f32 %v4194, %v4418
    %v4431 = vmax.f32 %v4195, %v4419
    %v4432 = vmul.f32 %v2688, %v118
    %v4433 = vmul.f32 %v2689, %v118
    %v4434 = vmul.f32 %v2690, %v118
    %v4435 = vmul.f32 %v2691, %v118
    %v4436 = vadd.f32 %v4432, 0.0
    %v4437 = vadd.f32 %v4433, 0.0
    %v4438 = vadd.f32 %v4434, 0.0
    %v4439 = vadd.f32 %v4435, 0.0
    %v4440 = vmul.f32 %v2688, %v127
    %v4441 = vmul.f32 %v2689, %v127
    %v4442 = vmul.f32 %v2690, %v127
    %v4443 = vmul.f32 %v2691, %v127
    %v4444 = vadd.f32 %v4440, 0.0
    %v4445 = vadd.f32 %v4441, 0.0
    %v4446 = vadd.f32 %v4442, 0.0
    %v4447 = vadd.f32 %v4443, 0.0
    %v4448 = vmul.f32 %v2688, %v136
    %v4449 = vmul.f32 %v2689, %v136
    %v4450 = vmul.f32 %v2690, %v136
    %v4451 = vmul.f32 %v2691, %v136
    %v4452 = vadd.f32 %v4448, 0.0
    %v4453 = vadd.f32 %v4449, 0.0
    %v4454 = vadd.f32 %v4450, 0.0
    %v4455 = vadd.f32 %v4451, 0.0
    %v4456 = vmul.f32 %v2928, %v154
    %v4457 = vmul.f32 %v2929, %v154
    %v4458 = vmul.f32 %v2930, %v154
    %v4459 = vmul.f32 %v2931, %v154
    %v4460 = vadd.f32 %v4436, %v4456
    %v4461 = vadd.f32 %v4437, %v4457
    %v4462 = vadd.f32 %v4438, %v4458
    %v4463 = vadd.f32 %v4439, %v4459
    %v4464 = vmul.f32 %v2928, %v163
    %v4465 = vmul.f32 %v2929, %v163
    %v4466 = vmul.f32 %v2930, %v163
    %v4467 = vmul.f32 %v2931, %v163
    %v4468 = vadd.f32 %v4444, %v4464
    %v4469 = vadd.f32 %v4445, %v4465
    %v4470 = vadd.f32 %v4446, %v4466
    %v4471 = vadd.f32 %v4447, %v4467
    %v4472 = vmul.f32 %v2928, %v172
    %v4473 = vmul.f32 %v2929, %v172
    %v4474 = vmul.f32 %v2930, %v172
    %v4475 = vmul.f32 %v2931, %v172
    %v4476 = vadd.f32 %v4452, %v4472
    %v4477 = vadd.f32 %v4453, %v4473
    %v4478 = vadd.f32 %v4454, %v4474
    %v4479 = vadd.f32 %v4455, %v4475
    %v4480 = vmul.f32 %v3180, %v190
    %v4481 = vmul.f32 %v3181, %v190
    %v4482 = vmul.f32 %v3182, %v190
    %v4483 = vmul.f32 %v3183, %v190
    %v4484 = vadd.f32 %v4460, %v4480
    %v4485 = vadd.f32 %v4461, %v4481
    %v4486 = vadd.f32 %v4462, %v4482
    %v4487 = vadd.f32 %v4463, %v4483
    %v4488 = vmul.f32 %v3180, %v199
    %v4489 = vmul.f32 %v3181, %v199
    %v4490 = vmul.f32 %v3182, %v199
    %v4491 = vmul.f32 %v3183, %v199
    %v4492 = vadd.f32 %v4468, %v4488
    %v4493 = vadd.f32 %v4469, %v4489
    %v4494 = vadd.f32 %v4470, %v4490
    %v4495 = vadd.f32 %v4471, %v4491
    %v4496 = vmul.f32 %v3180, %v208
    %v4497 = vmul.f32 %v3181, %v208
    %v4498 = vmul.f32 %v3182, %v208
    %v4499 = vmul.f32 %v3183, %v208
    %v4500 = vadd.f32 %v4476, %v4496
    %v4501 = vadd.f32 %v4477, %v4497
    %v4502 = vadd.f32 %v4478, %v4498
    %v4503 = vadd.f32 %v4479, %v4499
    %v4504 = vmul.f32 %v3432, %v226
    %v4505 = vmul.f32 %v3433, %v226
    %v4506 = vmul.f32 %v3434, %v226
    %v4507 = vmul.f32 %v3435, %v226
    %v4508 = vadd.f32 %v4484, %v4504
    %v4509 = vadd.f32 %v4485, %v4505
    %v4510 = vadd.f32 %v4486, %v4506
    %v4511 = vadd.f32 %v4487, %v4507
    %v4512 = vmul.f32 %v3432, %v235
    %v4513 = vmul.f32 %v3433, %v235
    %v4514 = vmul.f32 %v3434, %v235
    %v4515 = vmul.f32 %v3435, %v235
    %v4516 = vadd.f32 %v4492, %v4512
    %v4517 = vadd.f32 %v4493, %v4513
    %v4518 = vadd.f32 %v4494, %v4514
    %v4519 = vadd.f32 %v4495, %v4515
    %v4520 = vmul.f32 %v3432, %v244
    %v4521 = vmul.f32 %v3433, %v244
    %v4522 = vmul.f32 %v3434, %v244
    %v4523 = vmul.f32 %v3435, %v244
    %v4524 = vadd.f32 %v4500, %v4520
    %v4525 = vadd.f32 %v4501, %v4521
    %v4526 = vadd.f32 %v4502, %v4522
    %v4527 = vadd.f32 %v4503, %v4523
    %v4528 = vmul.f32 %v3668, %v262
    %v4529 = vmul.f32 %v3669, %v262
    %v4530 = vmul.f32 %v3670, %v262
    %v4531 = vmul.f32 %v3671, %v262
    %v4532 = vadd.f32 %v4508, %v4528
    %v4533 = vadd.f32 %v4509, %v4529
    %v4534 = vadd.f32 %v4510, %v4530
    %v4535 = vadd.f32 %v4511, %v4531
    %v4536 = vmul.f32 %v3668, %v271
    %v4537 = vmul.f32 %v3669, %v271
    %v4538 = vmul.f32 %v3670, %v271
    %v4539 = vmul.f32 %v3671, %v271
    %v4540 = vadd.f32 %v4516, %v4536
    %v4541 = vadd.f32 %v4517, %v4537
    %v4542 = vadd.f32 %v4518, %v4538
    %v4543 = vadd.f32 %v4519, %v4539
    %v4544 = vmul.f32 %v3668, %v280
    %v4545 = vmul.f32 %v3669, %v280
    %v4546 = vmul.f32 %v3670, %v280
    %v4547 = vmul.f32 %v3671, %v280
    %v4548 = vadd.f32 %v4524, %v4544
    %v4549 = vadd.f32 %v4525, %v4545
    %v4550 = vadd.f32 %v4526, %v4546
    %v4551 = vadd.f32 %v4527, %v4547
    %v4552 = vmul.f32 %v3904, %v298
    %v4553 = vmul.f32 %v3905, %v298
    %v4554 = vmul.f32 %v3906, %v298
    %v4555 = vmul.f32 %v3907, %v298
    %v4556 = vadd.f32 %v4532, %v4552
    %v4557 = vadd.f32 %v4533, %v4553
    %v4558 = vadd.f32 %v4534, %v4554
    %v4559 = vadd.f32 %v4535, %v4555
    %v4560 = vmul.f32 %v3904, %v307
    %v4561 = vmul.f32 %v3905, %v307
    %v4562 = vmul.f32 %v3906, %v307
    %v4563 = vmul.f32 %v3907, %v307
    %v4564 = vadd.f32 %v4540, %v4560
    %v4565 = vadd.f32 %v4541, %v4561
    %v4566 = vadd.f32 %v4542, %v4562
    %v4567 = vadd.f32 %v4543, %v4563
    %v4568 = vmul.f32 %v3904, %v316
    %v4569 = vmul.f32 %v3905, %v316
    %v4570 = vmul.f32 %v3906, %v316
    %v4571 = vmul.f32 %v3907, %v316
    %v4572 = vadd.f32 %v4548, %v4568
    %v4573 = vadd.f32 %v4549, %v4569
    %v4574 = vadd.f32 %v4550, %v4570
    %v4575 = vadd.f32 %v4551, %v4571
    %v4576 = vmul.f32 %v4156, %v334
    %v4577 = vmul.f32 %v4157, %v334
    %v4578 = vmul.f32 %v4158, %v334
    %v4579 = vmul.f32 %v4159, %v334
    %v4580 = vadd.f32 %v4556, %v4576
    %v4581 = vadd.f32 %v4557, %v4577
    %v4582 = vadd.f32 %v4558, %v4578
    %v4583 = vadd.f32 %v4559, %v4579
    %v4584 = vmul.f32 %v4156, %v343
    %v4585 = vmul.f32 %v4157, %v343
    %v4586 = vmul.f32 %v4158, %v343
    %v4587 = vmul.f32 %v4159, %v343
    %v4588 = vadd.f32 %v4564, %v4584
    %v4589 = vadd.f32 %v4565, %v4585
    %v4590 = vadd.f32 %v4566, %v4586
    %v4591 = vadd.f32 %v4567, %v4587
    %v4592 = vmul.f32 %v4156, %v352
    %v4593 = vmul.f32 %v4157, %v352
    %v4594 = vmul.f32 %v4158, %v352
    %v4595 = vmul.f32 %v4159, %v352
    %v4596 = vadd.f32 %v4572, %v4592
    %v4597 = vadd.f32 %v4573, %v4593
    %v4598 = vadd.f32 %v4574, %v4594
    %v4599 = vadd.f32 %v4575, %v4595
    %v4600 = vmul.f32 %v4392, %v370
    %v4601 = vmul.f32 %v4393, %v370
    %v4602 = vmul.f32 %v4394, %v370
    %v4603 = vmul.f32 %v4395, %v370
    %v4604 = vadd.f32 %v4580, %v4600
    %v4605 = vadd.f32 %v4581, %v4601
    %v4606 = vadd.f32 %v4582, %v4602
    %v4607 = vadd.f32 %v4583, %v4603
    %v4608 = vmul.f32 %v4392, %v379
    %v4609 = vmul.f32 %v4393, %v379
    %v4610 = vmul.f32 %v4394, %v379
    %v4611 = vmul.f32 %v4395, %v379
    %v4612 = vadd.f32 %v4588, %v4608
    %v4613 = vadd.f32 %v4589, %v4609
    %v4614 = vadd.f32 %v4590, %v4610
    %v4615 = vadd.f32 %v4591, %v4611
    %v4616 = vmul.f32 %v4392, %v388
    %v4617 = vmul.f32 %v4393, %v388
    %v4618 = vmul.f32 %v4394, %v388
    %v4619 = vmul.f32 %v4395, %v388
    %v4620 = vadd.f32 %v4596, %v4616
    %v4621 = vadd.f32 %v4597, %v4617
    %v4622 = vadd.f32 %v4598, %v4618
    %v4623 = vadd.f32 %v4599, %v4619
    %v4624 = vld [vmem:[%s2356 + $0x10] sm:$0xf]
    %v4625 = vld [vmem:[%s2356 + $0x14] sm:$0xf]
    %v4626 = vld [vmem:[%s2356 + $0x18] sm:$0xf]
    %v4627 = vld [vmem:[%s2356 + $0x1c] sm:$0xf]
    %v4628 = vunpack.c.l.bf16 %v4624
    %v4629 = vunpack.c.l.bf16 %v4625
    %v4630 = vunpack.c.l.bf16 %v4626
    %v4631 = vunpack.c.l.bf16 %v4627
    %v4632 = vmul.f32 %v4628, %v406
    %v4633 = vmul.f32 %v4629, %v406
    %v4634 = vmul.f32 %v4630, %v406
    %v4635 = vmul.f32 %v4631, %v406
    %v4636 = vadd.f32 %v4604, %v4632
    %v4637 = vadd.f32 %v4605, %v4633
    %v4638 = vadd.f32 %v4606, %v4634
    %v4639 = vadd.f32 %v4607, %v4635
    %v4640 = vmul.f32 %v4628, %v415
    %v4641 = vmul.f32 %v4629, %v415
    %v4642 = vmul.f32 %v4630, %v415
    %v4643 = vmul.f32 %v4631, %v415
    %v4644 = vadd.f32 %v4612, %v4640
    %v4645 = vadd.f32 %v4613, %v4641
    %v4646 = vadd.f32 %v4614, %v4642
    %v4647 = vadd.f32 %v4615, %v4643
    %v4648 = vmul.f32 %v4628, %v424
    %v4649 = vmul.f32 %v4629, %v424
    %v4650 = vmul.f32 %v4630, %v424
    %v4651 = vmul.f32 %v4631, %v424
    %v4652 = vadd.f32 %v4620, %v4648
    %v4653 = vadd.f32 %v4621, %v4649
    %v4654 = vadd.f32 %v4622, %v4650
    %v4655 = vadd.f32 %v4623, %v4651
    %v4656 = vmax.f32 %v4420, %v4636
    %v4657 = vmax.f32 %v4421, %v4637
    %v4658 = vmax.f32 %v4422, %v4638
    %v4659 = vmax.f32 %v4423, %v4639
    %v4660 = vmax.f32 %v4424, %v4644
    %v4661 = vmax.f32 %v4425, %v4645
    %v4662 = vmax.f32 %v4426, %v4646
    %v4663 = vmax.f32 %v4427, %v4647
    %v4664 = vmax.f32 %v4428, %v4652
    %v4665 = vmax.f32 %v4429, %v4653
    %v4666 = vmax.f32 %v4430, %v4654
    %v4667 = vmax.f32 %v4431, %v4655
    %v4668 = vadd.f32 %v4656, %v2401
    %v4669 = vadd.f32 %v4657, %v2401
    %v4670 = vadd.f32 %v4658, %v2401
    %v4671 = vadd.f32 %v4659, %v2401
    %v4672 = vmax.f32 %v4668, 0.0
    %v4673 = vmax.f32 %v4669, 0.0
    %v4674 = vmax.f32 %v4670, 0.0
    %v4675 = vmax.f32 %v4671, 0.0
    %v4676 = vadd.f32 %v4660, %v2410
    %v4677 = vadd.f32 %v4661, %v2410
    %v4678 = vadd.f32 %v4662, %v2410
    %v4679 = vadd.f32 %v4663, %v2410
    %v4680 = vmax.f32 %v4676, 0.0
    %v4681 = vmax.f32 %v4677, 0.0
    %v4682 = vmax.f32 %v4678, 0.0
    %v4683 = vmax.f32 %v4679, 0.0
    %v4684 = vadd.f32 %v4664, %v2419
    %v4685 = vadd.f32 %v4665, %v2419
    %v4686 = vadd.f32 %v4666, %v2419
    %v4687 = vadd.f32 %v4667, %v2419
    %v4688 = vmax.f32 %v4684, 0.0
    %v4689 = vmax.f32 %v4685, 0.0
    %v4690 = vmax.f32 %v4686, 0.0
    %v4691 = vmax.f32 %v4687, 0.0
    %4693 = vset.pattern.permute.xlu0 0
    %4694 = vperm.xlu0 %4693, %v108
    %v4695 = vpop.permute.xlu0 %4694
    %4698 = vset.pattern.permute.xlu0 0
    %4699 = vperm.xlu0 %4698, %v109
    %v4700 = vpop.permute.xlu0 %4699
    %vm4702 = vcmask 523264
    %v4704 = vsel %vm4702, %v105, 0
    %v4707 = vsel %vm4702, %v107, 0
    %4709 = vmatprep.subr.mxu0 0.0
    %4710 = vmatpush1.msra.mxu0 %v4683
    %4711 = vmatprep.subr.mxu0 0.0
    %4712 = vmatpush1.msra.mxu0 %v4682
    %4713 = vmatprep.subr.mxu0 0.0
    %4714 = vmatpush1.msra.mxu0 %v4681
    %4715 = vmatprep.subr.mxu0 0.0
    %4716 = vmatpush1.msra.mxu0 %v4680
    %4717 = vmatprep.subr.mxu0 0.0
    %4718 = vmatpush1.msra.mxu0 %v2418
    %4719 = vmatprep.subr.mxu0 0.0
    %4720 = vmatpush1.msra.mxu0 %v2417
    %4721 = vmatprep.subr.mxu0 0.0
    %4722 = vmatpush1.msra.mxu0 %v2416
    %4723 = vmatprep.subr.mxu0 0.0
    %4724 = vmatpush1.msra.mxu0 %v2415
    %4725 = vmatprep.subr.mxu0 0.0
    %4726 = vmatpush1.msra.mxu0 %v4675
    %4727 = vmatprep.subr.mxu0 0.0
    %4728 = vmatpush1.msra.mxu0 %v4674
    %4729 = vmatprep.subr.mxu0 0.0
    %4730 = vmatpush1.msra.mxu0 %v4673
    %4731 = vmatprep.subr.mxu0 0.0
    %4732 = vmatpush1.msra.mxu0 %v4672
    %4733 = vmatprep.subr.mxu0 0.0
    %4734 = vmatpush1.msra.mxu0 %v2409
    %4735 = vmatprep.subr.mxu0 0.0
    %4736 = vmatpush1.msra.mxu0 %v2408
    %4737 = vmatprep.subr.mxu0 0.0
    %4738 = vmatpush1.msra.mxu0 %v2407
    %4739 = vmatprep.subr.mxu0 0.0
    %4740 = vmatpush1.msra.mxu0 %v2406
    %4741 = vmatprep.subr.mxu0 0.0
    %4742 = vmatpush2.msra.mxu0 0.0
    %4743 = vmatprep.subr.mxu0 0.0
    %4744 = vmatpush2.msra.mxu0 0.0
    %4745 = vmatprep.subr.mxu0 0.0
    %4746 = vmatpush2.msra.mxu0 0.0
    %4747 = vmatprep.subr.mxu0 0.0
    %4748 = vmatpush2.msra.mxu0 0.0
    %4749 = vmatprep.subr.mxu0 0.0
    %4750 = vmatpush2.msra.mxu0 0.0
    %4751 = vmatprep.subr.mxu0 0.0
    %4752 = vmatpush2.msra.mxu0 0.0
    %4753 = vmatprep.subr.mxu0 0.0
    %4754 = vmatpush2.msra.mxu0 0.0
    %4755 = vmatprep.subr.mxu0 0.0
    %4756 = vmatpush2.msra.mxu0 0.0
    %4757 = vmatprep.subr.mxu0 0.0
    %4758 = vmatpush2.msra.mxu0 %v4691
    %4759 = vmatprep.subr.mxu0 0.0
    %4760 = vmatpush2.msra.mxu0 %v4690
    %4761 = vmatprep.subr.mxu0 0.0
    %4762 = vmatpush2.msra.mxu0 %v4689
    %4763 = vmatprep.subr.mxu0 0.0
    %4764 = vmatpush2.msra.mxu0 %v4688
    %4765 = vmatprep.subr.mxu0 0.0
    %4766 = vmatpush2.msra.mxu0 %v2427
    %4767 = vmatprep.subr.mxu0 0.0
    %4768 = vmatpush2.msra.mxu0 %v2426
    %4769 = vmatprep.subr.mxu0 0.0
    %4770 = vmatpush2.msra.mxu0 %v2425
    %4771 = vmatprep.subr.mxu0 0.0
    %4772 = vmatpush2.msra.mxu0 %v2424
    %4773 = vmatprep.mubr.f32.mxu0 %v4704
    %4774 = vmatmul.mubr.f32.gmra.mxu0 %v104
    %v4775 = vpop.f32.mrf.mxu0
    %v4776 = vadd.f32 %v4695, %v4775
    %v4777 = vpop.f32.mrf.mxu0
    %4778 = vmatprep.mubr.f32.mxu0 %v4707
    %4779 = vmatmul.mubr.f32.gmra.mxu0 %v106
    %v4780 = vpop.f32.mrf.mxu0
    %v4781 = vadd.f32 %v4700, %v4780
    %v4782 = vpop.f32.mrf.mxu0
    %4783 = vdwg.mxu0
    %vm4784 = vcmask 1041408
    %v4785 = vsel %vm4784, %v4781, -inf
    %v4786 = vmax.f32 %v4776, %v4785
    %v4787 = vrot.slane %v4786, 4
    %v4788 = vmax.f32 %v4786, %v4787
    %v4789 = vrot.slane %v4788, 2
    %v4790 = vmax.f32 %v4788, %v4789
    %v4791 = vrot.slane %v4790, 1
    %v4792 = vmax.f32 %v4790, %v4791
    %v4793 = vsub.f32 %v4776, %v4792
    %v4794 = vsub.f32 %v4781, %v4792
    %v4795 = vmul.f32 %v4793, 1.442695
    %v4796 = vpow.pop %v4795
    %v4797 = vmul.f32 %v4794, 1.442695
    %v4798 = vpow.pop %v4797
    %v4799 = vsel %vm4784, %v4798, 0.0
    %v4800 = vadd.f32 %v4796, %v4799
    %v4801 = vrot.slane %v4800, 4
    %v4802 = vadd.f32 %v4800, %v4801
    %v4803 = vrot.slane %v4802, 2
    %v4804 = vadd.f32 %v4802, %v4803
    %v4805 = vrot.slane %v4804, 1
    %v4806 = vadd.f32 %v4804, %v4805
    %v4807 = vlog2.pop %v4806
    %v4808 = vmul.f32 %v4807, 0.6931472
    %v4809 = vsub.f32 %v4793, %v4808
    %v4810 = vsub.f32 %v4794, %v4808
    %4811 = vst [vmem:[#allocation11] sm:$0xff] %v4809
    %4812 = vst [vmem:[#allocation11 + $0x8] sm:$0x3] %v4810
    // Predicated region
    $region38: #{tpu_custom_call.1} parent=1 // pred_check
      _
    $region39: #{tpu_custom_call.1} parent=1 // pred_check_branch
      %4814 = sbr.rel (0) target = $region41
    $region40: #{tpu_custom_call.1} parent=1 // pred_region
      %s4816 = ssub.s32 256, 256
      %4817 = vsyncadd [#allocation4], %s4816
      %s4818 = sshll.u32 [#allocation11], 4
      %s4819 = int_to_ptr.vmem [resolvable:$true] %s4818
      %4824 = dma.vmem_to_hbm [thread:$0]  %s4819, 256, %s5, [#allocation4], 128, 128, 8
    $region41: #{tpu_custom_call.1} parent=1 // pred_fallthru
      _
    // Predicated region
    $region42: #{tpu_custom_call.1} parent=1 // pred_check
      _
    $region43: #{tpu_custom_call.1} parent=1 // pred_check_branch
      %4826 = sbr.rel (0) target = $region45
    $region44: #{tpu_custom_call.1} parent=1 // pred_region
      %4827 = dma.done [#allocation4], 256
    $region45: #{tpu_custom_call.1} parent=1 // pred_fallthru
      _
    %4828 = vsyncpa [#allocation3], 1
    %4829 = vsyncpa [#allocation10], 1
    %4830 = vsyncpa [#allocation4], 1
    %4831 = vsyncpa [#allocation5], 1
    %4832 = vsyncpa [#allocation8], 1

</llo_original>
